<compile_context>
chip_gen: v5e
topology: v5e:2x2
jax: 0.10.0
libtpu: 0.0.40
codegen_flags: <defaults>
</compile_context>

<pallas_src>
import jax
import jax.numpy as jnp
from jax import lax
from jax.experimental import pallas as pl
from jax.experimental.pallas import tpu as pltpu


# ---------------------------------------------------------------------------
# Fused Pallas kernel: full bi-LSTM stack + Linear/Sigmoid classifier
# ---------------------------------------------------------------------------
def _make_fused_kernel(num_layers, L, N, H, D0, C):
    """Returns kernel(x_ref, *layer_weight_refs, cls_w_ref, cls_b_ref, out_ref).

    Per layer, per direction (fwd then bwd) the weight refs are:
      wih_t : (D_in, 4H)  input->gates weight (pre-transposed), gate order i,f,g,o
      whh_g : (4, H, H)   recurrent weight, pre-split per gate (transposed)
      bias  : (1, 4H)     b_ih + b_hh
    Classifier: cls_w_t (2H, C), cls_b (1, C).  Output: (L, C).
    """

    def _run_direction(pre_gates, whh_ref, reverse):
        # pre_gates: 4 arrays of shape (L, N, H) — hoisted input projection.
        w = [whh_ref[k] for k in range(4)]            # hoist (H,H) gate weights
        h = jnp.zeros((N, H), jnp.float32)
        c = jnp.zeros((N, H), jnp.float32)
        hs = [None] * L
        for step in range(L):                         # fully unrolled (static L)
            t = L - 1 - step if reverse else step
            gi = jax.nn.sigmoid(pre_gates[0][t] +
                                jnp.dot(h, w[0], preferred_element_type=jnp.float32))
            gf = jax.nn.sigmoid(pre_gates[1][t] +
                                jnp.dot(h, w[1], preferred_element_type=jnp.float32))
            gg = jnp.tanh(pre_gates[2][t] +
                          jnp.dot(h, w[2], preferred_element_type=jnp.float32))
            go = jax.nn.sigmoid(pre_gates[3][t] +
                                jnp.dot(h, w[3], preferred_element_type=jnp.float32))
            c = gf * c + gi * gg
            h = go * jnp.tanh(c)
            hs[t] = h                                 # stored in original time order
        return hs

    def kernel(*refs):
        x_ref = refs[0]
        layer_refs = [refs[1 + 6 * l: 1 + 6 * (l + 1)] for l in range(num_layers)]
        cls_w_ref, cls_b_ref, out_ref = refs[1 + 6 * num_layers:]

        x2d = x_ref[...].reshape(L * N, D0)           # (L*N, D0)
        prev_f2d = prev_b2d = None                    # (L*N, H) per direction

        for layer in range(num_layers):
            (wih_f_ref, whh_f_ref, b_f_ref,
             wih_b_ref, whh_b_ref, b_b_ref) = layer_refs[layer]

            # ---- hoisted input projection: one big MXU matmul per direction ----
            if layer == 0:
                proj_f = (jnp.dot(x2d, wih_f_ref[...],
                                  preferred_element_type=jnp.float32) + b_f_ref[...])
                proj_b = (jnp.dot(x2d, wih_b_ref[...],
                                  preferred_element_type=jnp.float32) + b_b_ref[...])
            else:
                # input = concat(fwd, bwd); fold the concat into the weight rows
                wih_f = wih_f_ref[...]                # (2H, 4H)
                wih_b = wih_b_ref[...]
                proj_f = (jnp.dot(prev_f2d, wih_f[:H, :],
                                  preferred_element_type=jnp.float32)
                          + jnp.dot(prev_b2d, wih_f[H:, :],
                                    preferred_element_type=jnp.float32)
                          + b_f_ref[...])
                proj_b = (jnp.dot(prev_f2d, wih_b[:H, :],
                                  preferred_element_type=jnp.float32)
                          + jnp.dot(prev_b2d, wih_b[H:, :],
                                    preferred_element_type=jnp.float32)
                          + b_b_ref[...])

            # lane-aligned per-gate pre-activations (split once per layer)
            pre_f = [proj_f[:, k * H:(k + 1) * H].reshape(L, N, H) for k in range(4)]
            pre_b = [proj_b[:, k * H:(k + 1) * H].reshape(L, N, H) for k in range(4)]

            # serial recurrences; fwd and bwd chains are independent dataflow,
            # so their MXU/VPU/EUP work interleaves in the unrolled schedule.
            hf_list = _run_direction(pre_f, whh_f_ref, reverse=False)
            hb_list = _run_direction(pre_b, whh_b_ref, reverse=True)

            # feed into next layer / classifier, kept split per direction
            prev_f2d = jnp.concatenate(hf_list, axis=0)   # (L*N, H), time-major
            prev_b2d = jnp.concatenate(hb_list, axis=0)   # (L*N, H)

        # ---- classifier epilogue: feat = h[:, -1, :]
        #      (literal PyTorch indexing: with seq-major layout this selects the
        #       LAST BATCH element, giving an (L, 2H) feature matrix) ----
        ff = prev_f2d.reshape(L, N, H)[:, N - 1, :]       # (L, H)
        fb = prev_b2d.reshape(L, N, H)[:, N - 1, :]       # (L, H)
        cls_w = cls_w_ref[...]                            # (2H, C)
        logits = (jnp.dot(ff, cls_w[:H, :], preferred_element_type=jnp.float32)
                  + jnp.dot(fb, cls_w[H:, :], preferred_element_type=jnp.float32)
                  + cls_b_ref[...])
        # TODO(synk): nn.Dropout(0.5) is identity at inference (eval mode); omitted.
        out_ref[...] = jax.nn.sigmoid(logits)

    return kernel


# ---------------------------------------------------------------------------
# Wrapper
# ---------------------------------------------------------------------------
def lstm_forward(x, params):
    """Mirrors LSTM.forward(x): bi-LSTM stack -> x[:, -1, :] -> Linear+Sigmoid."""
    L, N, D0 = x.shape
    H = params["lstm"][0]["fwd"][1].shape[0]          # whh_t is (H, 4H)
    C = params["cls_b"].shape[-1]
    num_layers = len(params["lstm"])

    flat_inputs = [x]
    for layer_p in params["lstm"]:
        for direction in ("fwd", "bwd"):
            wih_t, whh_t, bias = layer_p[direction]
            # (H, 4H) -> (4, H, H): per-gate recurrent weights (i, f, g, o)
            whh_g = jnp.stack([whh_t[:, k * H:(k + 1) * H] for k in range(4)], axis=0)
            flat_inputs += [wih_t, whh_g, bias]
    flat_inputs += [params["cls_w_t"], params["cls_b"]]

    vmem_spec = pl.BlockSpec(memory_space=pltpu.MemorySpace.VMEM)

    # advisory cost estimate
    flops = 0
    trans = 0
    for layer in range(num_layers):
        d_in = D0 if layer == 0 else 2 * H
        flops += 2 * (2 * L * N * d_in * 4 * H)       # hoisted input projections
        flops += 2 * (L * 2 * N * H * 4 * H)          # recurrent gate matmuls
        trans += 2 * (L * 5 * N * H)                  # sigmoid/tanh per step
    flops += 2 * L * (2 * H) * C + L * C              # classifier
    trans += L * C
    bytes_accessed = sum(int(a.size) * 4 for a in flat_inputs) + L * C * 4

    return pl.pallas_call(
        _make_fused_kernel(num_layers, L, N, H, D0, C),
        out_shape=jax.ShapeDtypeStruct((L, C), jnp.float32),
        in_specs=[vmem_spec] * len(flat_inputs),
        out_specs=vmem_spec,
        compiler_params=pltpu.CompilerParams(vmem_limit_bytes=32 * 1024 * 1024),
        cost_estimate=pl.CostEstimate(flops=flops, transcendentals=trans,
                                      bytes_accessed=bytes_accessed),
    )(*flat_inputs)


# ---------------------------------------------------------------------------
# Pure-JAX reference (numerical validation of the fused kernel)
# ---------------------------------------------------------------------------
def _ref_lstm_layer(x_seq, w_ih_t, w_hh_t, bias):
    _, N, _ = x_seq.shape
    H = w_hh_t.shape[0]

    def step(carry, x_t):
        h, c = carry
        gates = x_t @ w_ih_t + h @ w_hh_t + bias
        i, f, g, o = jnp.split(gates, 4, axis=-1)
        i = jax.nn.sigmoid(i)
        f = jax.nn.sigmoid(f)
        g = jnp.tanh(g)
        o = jax.nn.sigmoid(o)
        c = f * c + i * g
        h = o * jnp.tanh(c)
        return (h, c), h

    init = (jnp.zeros((N, H), jnp.float32), jnp.zeros((N, H), jnp.float32))
    _, hs = lax.scan(step, init, x_seq)
    return hs


def ref_forward(x, params):
    h = x
    for layer in params["lstm"]:
        fwd = _ref_lstm_layer(h, *layer["fwd"])
        bwd = _ref_lstm_layer(h[::-1], *layer["bwd"])[::-1]
        h = jnp.concatenate([fwd, bwd], axis=-1)
    feat = h[:, -1, :]
    return jax.nn.sigmoid(feat @ params["cls_w_t"] + params["cls_b"])


# ---------------------------------------------------------------------------
# Deterministic parameter init (shapes follow nn.LSTM / nn.Linear in __init__)
# ---------------------------------------------------------------------------
def init_params(key, vec_dim, hidden_dim, num_layers, num_classes):
    params = {"lstm": []}
    bound = 1.0 / float(hidden_dim) ** 0.5
    keys = iter(jax.random.split(key, num_layers * 2 * 4 + 2))

    for layer in range(num_layers):
        d_in = vec_dim if layer == 0 else 2 * hidden_dim
        layer_p = {}
        for direction in ("fwd", "bwd"):
            w_ih = jax.random.uniform(next(keys), (4 * hidden_dim, d_in),
                                      jnp.float32, -bound, bound)
            w_hh = jax.random.uniform(next(keys), (4 * hidden_dim, hidden_dim),
                                      jnp.float32, -bound, bound)
            b_ih = jax.random.uniform(next(keys), (4 * hidden_dim,),
                                      jnp.float32, -bound, bound)
            b_hh = jax.random.uniform(next(keys), (4 * hidden_dim,),
                                      jnp.float32, -bound, bound)
            layer_p[direction] = (w_ih.T,                       # (d_in, 4H)
                                  w_hh.T,                       # (H, 4H)
                                  (b_ih + b_hh).reshape(1, -1)) # (1, 4H)
        params["lstm"].append(layer_p)

    # classifier Linear: _initialize_weights -> normal(0, 0.01) weight, bias 0
    cls_w = 0.01 * jax.random.normal(next(keys), (num_classes, 2 * hidden_dim),
                                     jnp.float32)
    params["cls_w_t"] = cls_w.T                                 # (2H, C)
    params["cls_b"] = jnp.zeros((1, num_classes), jnp.float32)
    return params


# ---------------------------------------------------------------------------
if __name__ == "__main__":
    SEQ, BATCH, VEC_DIM = 8, 2, 16
    HIDDEN, NUM_LAYERS, NUM_CLASSES = 32, 2, 10

    key = jax.random.PRNGKey(0)
    k_x, k_p = jax.random.split(key)

    # x: (seq_len, batch, vec_dim) — nn.LSTM default seq-major layout
    x = jax.random.normal(k_x, (SEQ, BATCH, VEC_DIM), jnp.float32)
    params = init_params(k_p, VEC_DIM, HIDDEN, NUM_LAYERS, NUM_CLASSES)

    forward = jax.jit(lstm_forward)
    out = jax.block_until_ready(forward(x, params))
    ref = jax.block_until_ready(ref_forward(x, params))

    assert out.shape == (SEQ, NUM_CLASSES), out.shape
    assert jnp.allclose(out, ref, atol=1e-4, rtol=1e-4), (
        f"max abs err {jnp.max(jnp.abs(out - ref))}")
    print("KERNEL_OK")
</pallas_src>

<mosaic_0001>
module attributes {stable_mosaic.version = 11 : i64} {
  func.func @kernel(%arg0: memref<8x2x16xf32, #tpu.memory_space<vmem>>, %arg1: memref<16x128xf32, #tpu.memory_space<vmem>>, %arg2: memref<4x32x32xf32, #tpu.memory_space<vmem>>, %arg3: memref<1x128xf32, #tpu.memory_space<vmem>>, %arg4: memref<16x128xf32, #tpu.memory_space<vmem>>, %arg5: memref<4x32x32xf32, #tpu.memory_space<vmem>>, %arg6: memref<1x128xf32, #tpu.memory_space<vmem>>, %arg7: memref<64x128xf32, #tpu.memory_space<vmem>>, %arg8: memref<4x32x32xf32, #tpu.memory_space<vmem>>, %arg9: memref<1x128xf32, #tpu.memory_space<vmem>>, %arg10: memref<64x128xf32, #tpu.memory_space<vmem>>, %arg11: memref<4x32x32xf32, #tpu.memory_space<vmem>>, %arg12: memref<1x128xf32, #tpu.memory_space<vmem>>, %arg13: memref<64x10xf32, #tpu.memory_space<vmem>>, %arg14: memref<1x10xf32, #tpu.memory_space<vmem>>, %arg15: memref<8x10xf32, #tpu.memory_space<vmem>>) attributes {dimension_semantics = [], scalar_prefetch = 0 : i64, scratch_operands = 0 : i64, tpu.core_type = #tpu.core_type<tc>} {
    %c0 = arith.constant 0 : index
    %c0_0 = arith.constant 0 : index
    %c0_1 = arith.constant 0 : index
    %0 = vector.load %arg0[%c0, %c0_0, %c0_1] : memref<8x2x16xf32, #tpu.memory_space<vmem>>, vector<8x2x16xf32>
    %1 = vector.shape_cast %0 : vector<8x2x16xf32> to vector<16x16xf32>
    %c0_2 = arith.constant 0 : index
    %c0_3 = arith.constant 0 : index
    %2 = vector.load %arg1[%c0_2, %c0_3] : memref<16x128xf32, #tpu.memory_space<vmem>>, vector<16x128xf32>
    %cst = arith.constant dense<0.000000e+00> : vector<16x128xf32>
    %3 = tpu.matmul %1, %2, %cst {dimension_numbers = #tpu.dot_dimension_numbers<[1], [0], [0], [1], [0, 0, 1, 1], [], []>} : vector<16x16xf32>, vector<16x128xf32>, vector<16x128xf32> -> vector<16x128xf32>
    %c0_4 = arith.constant 0 : index
    %c0_5 = arith.constant 0 : index
    %4 = vector.load %arg3[%c0_4, %c0_5] : memref<1x128xf32, #tpu.memory_space<vmem>>, vector<1x128xf32>
    %5 = vector.broadcast %4 : vector<1x128xf32> to vector<16x128xf32>
    %6 = arith.addf %3, %5 : vector<16x128xf32>
    %c0_6 = arith.constant 0 : index
    %c0_7 = arith.constant 0 : index
    %7 = vector.load %arg4[%c0_6, %c0_7] : memref<16x128xf32, #tpu.memory_space<vmem>>, vector<16x128xf32>
    %cst_8 = arith.constant dense<0.000000e+00> : vector<16x128xf32>
    %8 = tpu.matmul %1, %7, %cst_8 {dimension_numbers = #tpu.dot_dimension_numbers<[1], [0], [0], [1], [0, 0, 1, 1], [], []>} : vector<16x16xf32>, vector<16x128xf32>, vector<16x128xf32> -> vector<16x128xf32>
    %c0_9 = arith.constant 0 : index
    %c0_10 = arith.constant 0 : index
    %9 = vector.load %arg6[%c0_9, %c0_10] : memref<1x128xf32, #tpu.memory_space<vmem>>, vector<1x128xf32>
    %10 = vector.broadcast %9 : vector<1x128xf32> to vector<16x128xf32>
    %11 = arith.addf %8, %10 : vector<16x128xf32>
    %12 = vector.extract_strided_slice %6 {offsets = [0, 0], sizes = [16, 32], strides = [1, 1]} : vector<16x128xf32> to vector<16x32xf32>
    %13 = vector.shape_cast %12 : vector<16x32xf32> to vector<8x2x32xf32>
    %14 = vector.extract_strided_slice %6 {offsets = [0, 32], sizes = [16, 32], strides = [1, 1]} : vector<16x128xf32> to vector<16x32xf32>
    %15 = vector.shape_cast %14 : vector<16x32xf32> to vector<8x2x32xf32>
    %16 = vector.extract_strided_slice %6 {offsets = [0, 64], sizes = [16, 32], strides = [1, 1]} : vector<16x128xf32> to vector<16x32xf32>
    %17 = vector.shape_cast %16 : vector<16x32xf32> to vector<8x2x32xf32>
    %18 = vector.extract_strided_slice %6 {offsets = [0, 96], sizes = [16, 32], strides = [1, 1]} : vector<16x128xf32> to vector<16x32xf32>
    %19 = vector.shape_cast %18 : vector<16x32xf32> to vector<8x2x32xf32>
    %20 = vector.extract_strided_slice %11 {offsets = [0, 0], sizes = [16, 32], strides = [1, 1]} : vector<16x128xf32> to vector<16x32xf32>
    %21 = vector.shape_cast %20 : vector<16x32xf32> to vector<8x2x32xf32>
    %22 = vector.extract_strided_slice %11 {offsets = [0, 32], sizes = [16, 32], strides = [1, 1]} : vector<16x128xf32> to vector<16x32xf32>
    %23 = vector.shape_cast %22 : vector<16x32xf32> to vector<8x2x32xf32>
    %24 = vector.extract_strided_slice %11 {offsets = [0, 64], sizes = [16, 32], strides = [1, 1]} : vector<16x128xf32> to vector<16x32xf32>
    %25 = vector.shape_cast %24 : vector<16x32xf32> to vector<8x2x32xf32>
    %26 = vector.extract_strided_slice %11 {offsets = [0, 96], sizes = [16, 32], strides = [1, 1]} : vector<16x128xf32> to vector<16x32xf32>
    %27 = vector.shape_cast %26 : vector<16x32xf32> to vector<8x2x32xf32>
    %c0_11 = arith.constant 0 : index
    %c0_12 = arith.constant 0 : index
    %c0_13 = arith.constant 0 : index
    %28 = vector.load %arg2[%c0_11, %c0_12, %c0_13] : memref<4x32x32xf32, #tpu.memory_space<vmem>>, vector<1x32x32xf32>
    %29 = vector.shape_cast %28 : vector<1x32x32xf32> to vector<32x32xf32>
    %c1 = arith.constant 1 : index
    %c0_14 = arith.constant 0 : index
    %c0_15 = arith.constant 0 : index
    %30 = vector.load %arg2[%c1, %c0_14, %c0_15] : memref<4x32x32xf32, #tpu.memory_space<vmem>>, vector<1x32x32xf32>
    %31 = vector.shape_cast %30 : vector<1x32x32xf32> to vector<32x32xf32>
    %c2 = arith.constant 2 : index
    %c0_16 = arith.constant 0 : index
    %c0_17 = arith.constant 0 : index
    %32 = vector.load %arg2[%c2, %c0_16, %c0_17] : memref<4x32x32xf32, #tpu.memory_space<vmem>>, vector<1x32x32xf32>
    %33 = vector.shape_cast %32 : vector<1x32x32xf32> to vector<32x32xf32>
    %c3 = arith.constant 3 : index
    %c0_18 = arith.constant 0 : index
    %c0_19 = arith.constant 0 : index
    %34 = vector.load %arg2[%c3, %c0_18, %c0_19] : memref<4x32x32xf32, #tpu.memory_space<vmem>>, vector<1x32x32xf32>
    %35 = vector.shape_cast %34 : vector<1x32x32xf32> to vector<32x32xf32>
    %cst_20 = arith.constant 0.000000e+00 : f32
    %36 = vector.broadcast %cst_20 : f32 to vector<2x32xf32>
    %cst_21 = arith.constant 0.000000e+00 : f32
    %37 = vector.broadcast %cst_21 : f32 to vector<2x32xf32>
    %38 = vector.extract_strided_slice %13 {offsets = [0, 0, 0], sizes = [1, 2, 32], strides = [1, 1, 1]} : vector<8x2x32xf32> to vector<1x2x32xf32>
    %39 = vector.shape_cast %38 : vector<1x2x32xf32> to vector<2x32xf32>
    %cst_22 = arith.constant dense<0.000000e+00> : vector<2x32xf32>
    %40 = tpu.matmul %36, %29, %cst_22 {dimension_numbers = #tpu.dot_dimension_numbers<[1], [0], [0], [1], [0, 0, 1, 1], [], []>} : vector<2x32xf32>, vector<32x32xf32>, vector<2x32xf32> -> vector<2x32xf32>
    %41 = arith.addf %39, %40 : vector<2x32xf32>
    %42 = arith.negf %41 : vector<2x32xf32>
    %43 = math.exp %42 : vector<2x32xf32>
    %cst_23 = arith.constant 1.000000e+00 : f32
    %44 = vector.broadcast %cst_23 : f32 to vector<2x32xf32>
    %45 = arith.addf %44, %43 : vector<2x32xf32>
    %46 = arith.divf %44, %45 : vector<2x32xf32>
    %47 = vector.extract_strided_slice %15 {offsets = [0, 0, 0], sizes = [1, 2, 32], strides = [1, 1, 1]} : vector<8x2x32xf32> to vector<1x2x32xf32>
    %48 = vector.shape_cast %47 : vector<1x2x32xf32> to vector<2x32xf32>
    %cst_24 = arith.constant dense<0.000000e+00> : vector<2x32xf32>
    %49 = tpu.matmul %36, %31, %cst_24 {dimension_numbers = #tpu.dot_dimension_numbers<[1], [0], [0], [1], [0, 0, 1, 1], [], []>} : vector<2x32xf32>, vector<32x32xf32>, vector<2x32xf32> -> vector<2x32xf32>
    %50 = arith.addf %48, %49 : vector<2x32xf32>
    %51 = arith.negf %50 : vector<2x32xf32>
    %52 = math.exp %51 : vector<2x32xf32>
    %cst_25 = arith.constant 1.000000e+00 : f32
    %53 = vector.broadcast %cst_25 : f32 to vector<2x32xf32>
    %54 = arith.addf %53, %52 : vector<2x32xf32>
    %55 = arith.divf %53, %54 : vector<2x32xf32>
    %56 = vector.extract_strided_slice %17 {offsets = [0, 0, 0], sizes = [1, 2, 32], strides = [1, 1, 1]} : vector<8x2x32xf32> to vector<1x2x32xf32>
    %57 = vector.shape_cast %56 : vector<1x2x32xf32> to vector<2x32xf32>
    %cst_26 = arith.constant dense<0.000000e+00> : vector<2x32xf32>
    %58 = tpu.matmul %36, %33, %cst_26 {dimension_numbers = #tpu.dot_dimension_numbers<[1], [0], [0], [1], [0, 0, 1, 1], [], []>} : vector<2x32xf32>, vector<32x32xf32>, vector<2x32xf32> -> vector<2x32xf32>
    %59 = arith.addf %57, %58 : vector<2x32xf32>
    %60 = math.tanh %59 : vector<2x32xf32>
    %61 = vector.extract_strided_slice %19 {offsets = [0, 0, 0], sizes = [1, 2, 32], strides = [1, 1, 1]} : vector<8x2x32xf32> to vector<1x2x32xf32>
    %62 = vector.shape_cast %61 : vector<1x2x32xf32> to vector<2x32xf32>
    %cst_27 = arith.constant dense<0.000000e+00> : vector<2x32xf32>
    %63 = tpu.matmul %36, %35, %cst_27 {dimension_numbers = #tpu.dot_dimension_numbers<[1], [0], [0], [1], [0, 0, 1, 1], [], []>} : vector<2x32xf32>, vector<32x32xf32>, vector<2x32xf32> -> vector<2x32xf32>
    %64 = arith.addf %62, %63 : vector<2x32xf32>
    %65 = arith.negf %64 : vector<2x32xf32>
    %66 = math.exp %65 : vector<2x32xf32>
    %cst_28 = arith.constant 1.000000e+00 : f32
    %67 = vector.broadcast %cst_28 : f32 to vector<2x32xf32>
    %68 = arith.addf %67, %66 : vector<2x32xf32>
    %69 = arith.divf %67, %68 : vector<2x32xf32>
    %70 = arith.mulf %55, %37 : vector<2x32xf32>
    %71 = arith.mulf %46, %60 : vector<2x32xf32>
    %72 = arith.addf %70, %71 : vector<2x32xf32>
    %73 = math.tanh %72 : vector<2x32xf32>
    %74 = arith.mulf %69, %73 : vector<2x32xf32>
    %75 = vector.extract_strided_slice %13 {offsets = [1, 0, 0], sizes = [1, 2, 32], strides = [1, 1, 1]} : vector<8x2x32xf32> to vector<1x2x32xf32>
    %76 = vector.shape_cast %75 : vector<1x2x32xf32> to vector<2x32xf32>
    %cst_29 = arith.constant dense<0.000000e+00> : vector<2x32xf32>
    %77 = tpu.matmul %74, %29, %cst_29 {dimension_numbers = #tpu.dot_dimension_numbers<[1], [0], [0], [1], [0, 0, 1, 1], [], []>} : vector<2x32xf32>, vector<32x32xf32>, vector<2x32xf32> -> vector<2x32xf32>
    %78 = arith.addf %76, %77 : vector<2x32xf32>
    %79 = arith.negf %78 : vector<2x32xf32>
    %80 = math.exp %79 : vector<2x32xf32>
    %cst_30 = arith.constant 1.000000e+00 : f32
    %81 = vector.broadcast %cst_30 : f32 to vector<2x32xf32>
    %82 = arith.addf %81, %80 : vector<2x32xf32>
    %83 = arith.divf %81, %82 : vector<2x32xf32>
    %84 = vector.extract_strided_slice %15 {offsets = [1, 0, 0], sizes = [1, 2, 32], strides = [1, 1, 1]} : vector<8x2x32xf32> to vector<1x2x32xf32>
    %85 = vector.shape_cast %84 : vector<1x2x32xf32> to vector<2x32xf32>
    %cst_31 = arith.constant dense<0.000000e+00> : vector<2x32xf32>
    %86 = tpu.matmul %74, %31, %cst_31 {dimension_numbers = #tpu.dot_dimension_numbers<[1], [0], [0], [1], [0, 0, 1, 1], [], []>} : vector<2x32xf32>, vector<32x32xf32>, vector<2x32xf32> -> vector<2x32xf32>
    %87 = arith.addf %85, %86 : vector<2x32xf32>
    %88 = arith.negf %87 : vector<2x32xf32>
    %89 = math.exp %88 : vector<2x32xf32>
    %cst_32 = arith.constant 1.000000e+00 : f32
    %90 = vector.broadcast %cst_32 : f32 to vector<2x32xf32>
    %91 = arith.addf %90, %89 : vector<2x32xf32>
    %92 = arith.divf %90, %91 : vector<2x32xf32>
    %93 = vector.extract_strided_slice %17 {offsets = [1, 0, 0], sizes = [1, 2, 32], strides = [1, 1, 1]} : vector<8x2x32xf32> to vector<1x2x32xf32>
    %94 = vector.shape_cast %93 : vector<1x2x32xf32> to vector<2x32xf32>
    %cst_33 = arith.constant dense<0.000000e+00> : vector<2x32xf32>
    %95 = tpu.matmul %74, %33, %cst_33 {dimension_numbers = #tpu.dot_dimension_numbers<[1], [0], [0], [1], [0, 0, 1, 1], [], []>} : vector<2x32xf32>, vector<32x32xf32>, vector<2x32xf32> -> vector<2x32xf32>
    %96 = arith.addf %94, %95 : vector<2x32xf32>
    %97 = math.tanh %96 : vector<2x32xf32>
    %98 = vector.extract_strided_slice %19 {offsets = [1, 0, 0], sizes = [1, 2, 32], strides = [1, 1, 1]} : vector<8x2x32xf32> to vector<1x2x32xf32>
    %99 = vector.shape_cast %98 : vector<1x2x32xf32> to vector<2x32xf32>
    %cst_34 = arith.constant dense<0.000000e+00> : vector<2x32xf32>
    %100 = tpu.matmul %74, %35, %cst_34 {dimension_numbers = #tpu.dot_dimension_numbers<[1], [0], [0], [1], [0, 0, 1, 1], [], []>} : vector<2x32xf32>, vector<32x32xf32>, vector<2x32xf32> -> vector<2x32xf32>
    %101 = arith.addf %99, %100 : vector<2x32xf32>
    %102 = arith.negf %101 : vector<2x32xf32>
    %103 = math.exp %102 : vector<2x32xf32>
    %cst_35 = arith.constant 1.000000e+00 : f32
    %104 = vector.broadcast %cst_35 : f32 to vector<2x32xf32>
    %105 = arith.addf %104, %103 : vector<2x32xf32>
    %106 = arith.divf %104, %105 : vector<2x32xf32>
    %107 = arith.mulf %92, %72 : vector<2x32xf32>
    %108 = arith.mulf %83, %97 : vector<2x32xf32>
    %109 = arith.addf %107, %108 : vector<2x32xf32>
    %110 = math.tanh %109 : vector<2x32xf32>
    %111 = arith.mulf %106, %110 : vector<2x32xf32>
    %112 = vector.extract_strided_slice %13 {offsets = [2, 0, 0], sizes = [1, 2, 32], strides = [1, 1, 1]} : vector<8x2x32xf32> to vector<1x2x32xf32>
    %113 = vector.shape_cast %112 : vector<1x2x32xf32> to vector<2x32xf32>
    %cst_36 = arith.constant dense<0.000000e+00> : vector<2x32xf32>
    %114 = tpu.matmul %111, %29, %cst_36 {dimension_numbers = #tpu.dot_dimension_numbers<[1], [0], [0], [1], [0, 0, 1, 1], [], []>} : vector<2x32xf32>, vector<32x32xf32>, vector<2x32xf32> -> vector<2x32xf32>
    %115 = arith.addf %113, %114 : vector<2x32xf32>
    %116 = arith.negf %115 : vector<2x32xf32>
    %117 = math.exp %116 : vector<2x32xf32>
    %cst_37 = arith.constant 1.000000e+00 : f32
    %118 = vector.broadcast %cst_37 : f32 to vector<2x32xf32>
    %119 = arith.addf %118, %117 : vector<2x32xf32>
    %120 = arith.divf %118, %119 : vector<2x32xf32>
    %121 = vector.extract_strided_slice %15 {offsets = [2, 0, 0], sizes = [1, 2, 32], strides = [1, 1, 1]} : vector<8x2x32xf32> to vector<1x2x32xf32>
    %122 = vector.shape_cast %121 : vector<1x2x32xf32> to vector<2x32xf32>
    %cst_38 = arith.constant dense<0.000000e+00> : vector<2x32xf32>
    %123 = tpu.matmul %111, %31, %cst_38 {dimension_numbers = #tpu.dot_dimension_numbers<[1], [0], [0], [1], [0, 0, 1, 1], [], []>} : vector<2x32xf32>, vector<32x32xf32>, vector<2x32xf32> -> vector<2x32xf32>
    %124 = arith.addf %122, %123 : vector<2x32xf32>
    %125 = arith.negf %124 : vector<2x32xf32>
    %126 = math.exp %125 : vector<2x32xf32>
    %cst_39 = arith.constant 1.000000e+00 : f32
    %127 = vector.broadcast %cst_39 : f32 to vector<2x32xf32>
    %128 = arith.addf %127, %126 : vector<2x32xf32>
    %129 = arith.divf %127, %128 : vector<2x32xf32>
    %130 = vector.extract_strided_slice %17 {offsets = [2, 0, 0], sizes = [1, 2, 32], strides = [1, 1, 1]} : vector<8x2x32xf32> to vector<1x2x32xf32>
    %131 = vector.shape_cast %130 : vector<1x2x32xf32> to vector<2x32xf32>
    %cst_40 = arith.constant dense<0.000000e+00> : vector<2x32xf32>
    %132 = tpu.matmul %111, %33, %cst_40 {dimension_numbers = #tpu.dot_dimension_numbers<[1], [0], [0], [1], [0, 0, 1, 1], [], []>} : vector<2x32xf32>, vector<32x32xf32>, vector<2x32xf32> -> vector<2x32xf32>
    %133 = arith.addf %131, %132 : vector<2x32xf32>
    %134 = math.tanh %133 : vector<2x32xf32>
    %135 = vector.extract_strided_slice %19 {offsets = [2, 0, 0], sizes = [1, 2, 32], strides = [1, 1, 1]} : vector<8x2x32xf32> to vector<1x2x32xf32>
    %136 = vector.shape_cast %135 : vector<1x2x32xf32> to vector<2x32xf32>
    %cst_41 = arith.constant dense<0.000000e+00> : vector<2x32xf32>
    %137 = tpu.matmul %111, %35, %cst_41 {dimension_numbers = #tpu.dot_dimension_numbers<[1], [0], [0], [1], [0, 0, 1, 1], [], []>} : vector<2x32xf32>, vector<32x32xf32>, vector<2x32xf32> -> vector<2x32xf32>
    %138 = arith.addf %136, %137 : vector<2x32xf32>
    %139 = arith.negf %138 : vector<2x32xf32>
    %140 = math.exp %139 : vector<2x32xf32>
    %cst_42 = arith.constant 1.000000e+00 : f32
    %141 = vector.broadcast %cst_42 : f32 to vector<2x32xf32>
    %142 = arith.addf %141, %140 : vector<2x32xf32>
    %143 = arith.divf %141, %142 : vector<2x32xf32>
    %144 = arith.mulf %129, %109 : vector<2x32xf32>
    %145 = arith.mulf %120, %134 : vector<2x32xf32>
    %146 = arith.addf %144, %145 : vector<2x32xf32>
    %147 = math.tanh %146 : vector<2x32xf32>
    %148 = arith.mulf %143, %147 : vector<2x32xf32>
    %149 = vector.extract_strided_slice %13 {offsets = [3, 0, 0], sizes = [1, 2, 32], strides = [1, 1, 1]} : vector<8x2x32xf32> to vector<1x2x32xf32>
    %150 = vector.shape_cast %149 : vector<1x2x32xf32> to vector<2x32xf32>
    %cst_43 = arith.constant dense<0.000000e+00> : vector<2x32xf32>
    %151 = tpu.matmul %148, %29, %cst_43 {dimension_numbers = #tpu.dot_dimension_numbers<[1], [0], [0], [1], [0, 0, 1, 1], [], []>} : vector<2x32xf32>, vector<32x32xf32>, vector<2x32xf32> -> vector<2x32xf32>
    %152 = arith.addf %150, %151 : vector<2x32xf32>
    %153 = arith.negf %152 : vector<2x32xf32>
    %154 = math.exp %153 : vector<2x32xf32>
    %cst_44 = arith.constant 1.000000e+00 : f32
    %155 = vector.broadcast %cst_44 : f32 to vector<2x32xf32>
    %156 = arith.addf %155, %154 : vector<2x32xf32>
    %157 = arith.divf %155, %156 : vector<2x32xf32>
    %158 = vector.extract_strided_slice %15 {offsets = [3, 0, 0], sizes = [1, 2, 32], strides = [1, 1, 1]} : vector<8x2x32xf32> to vector<1x2x32xf32>
    %159 = vector.shape_cast %158 : vector<1x2x32xf32> to vector<2x32xf32>
    %cst_45 = arith.constant dense<0.000000e+00> : vector<2x32xf32>
    %160 = tpu.matmul %148, %31, %cst_45 {dimension_numbers = #tpu.dot_dimension_numbers<[1], [0], [0], [1], [0, 0, 1, 1], [], []>} : vector<2x32xf32>, vector<32x32xf32>, vector<2x32xf32> -> vector<2x32xf32>
    %161 = arith.addf %159, %160 : vector<2x32xf32>
    %162 = arith.negf %161 : vector<2x32xf32>
    %163 = math.exp %162 : vector<2x32xf32>
    %cst_46 = arith.constant 1.000000e+00 : f32
    %164 = vector.broadcast %cst_46 : f32 to vector<2x32xf32>
    %165 = arith.addf %164, %163 : vector<2x32xf32>
    %166 = arith.divf %164, %165 : vector<2x32xf32>
    %167 = vector.extract_strided_slice %17 {offsets = [3, 0, 0], sizes = [1, 2, 32], strides = [1, 1, 1]} : vector<8x2x32xf32> to vector<1x2x32xf32>
    %168 = vector.shape_cast %167 : vector<1x2x32xf32> to vector<2x32xf32>
    %cst_47 = arith.constant dense<0.000000e+00> : vector<2x32xf32>
    %169 = tpu.matmul %148, %33, %cst_47 {dimension_numbers = #tpu.dot_dimension_numbers<[1], [0], [0], [1], [0, 0, 1, 1], [], []>} : vector<2x32xf32>, vector<32x32xf32>, vector<2x32xf32> -> vector<2x32xf32>
    %170 = arith.addf %168, %169 : vector<2x32xf32>
    %171 = math.tanh %170 : vector<2x32xf32>
    %172 = vector.extract_strided_slice %19 {offsets = [3, 0, 0], sizes = [1, 2, 32], strides = [1, 1, 1]} : vector<8x2x32xf32> to vector<1x2x32xf32>
    %173 = vector.shape_cast %172 : vector<1x2x32xf32> to vector<2x32xf32>
    %cst_48 = arith.constant dense<0.000000e+00> : vector<2x32xf32>
    %174 = tpu.matmul %148, %35, %cst_48 {dimension_numbers = #tpu.dot_dimension_numbers<[1], [0], [0], [1], [0, 0, 1, 1], [], []>} : vector<2x32xf32>, vector<32x32xf32>, vector<2x32xf32> -> vector<2x32xf32>
    %175 = arith.addf %173, %174 : vector<2x32xf32>
    %176 = arith.negf %175 : vector<2x32xf32>
    %177 = math.exp %176 : vector<2x32xf32>
    %cst_49 = arith.constant 1.000000e+00 : f32
    %178 = vector.broadcast %cst_49 : f32 to vector<2x32xf32>
    %179 = arith.addf %178, %177 : vector<2x32xf32>
    %180 = arith.divf %178, %179 : vector<2x32xf32>
    %181 = arith.mulf %166, %146 : vector<2x32xf32>
    %182 = arith.mulf %157, %171 : vector<2x32xf32>
    %183 = arith.addf %181, %182 : vector<2x32xf32>
    %184 = math.tanh %183 : vector<2x32xf32>
    %185 = arith.mulf %180, %184 : vector<2x32xf32>
    %186 = vector.extract_strided_slice %13 {offsets = [4, 0, 0], sizes = [1, 2, 32], strides = [1, 1, 1]} : vector<8x2x32xf32> to vector<1x2x32xf32>
    %187 = vector.shape_cast %186 : vector<1x2x32xf32> to vector<2x32xf32>
    %cst_50 = arith.constant dense<0.000000e+00> : vector<2x32xf32>
    %188 = tpu.matmul %185, %29, %cst_50 {dimension_numbers = #tpu.dot_dimension_numbers<[1], [0], [0], [1], [0, 0, 1, 1], [], []>} : vector<2x32xf32>, vector<32x32xf32>, vector<2x32xf32> -> vector<2x32xf32>
    %189 = arith.addf %187, %188 : vector<2x32xf32>
    %190 = arith.negf %189 : vector<2x32xf32>
    %191 = math.exp %190 : vector<2x32xf32>
    %cst_51 = arith.constant 1.000000e+00 : f32
    %192 = vector.broadcast %cst_51 : f32 to vector<2x32xf32>
    %193 = arith.addf %192, %191 : vector<2x32xf32>
    %194 = arith.divf %192, %193 : vector<2x32xf32>
    %195 = vector.extract_strided_slice %15 {offsets = [4, 0, 0], sizes = [1, 2, 32], strides = [1, 1, 1]} : vector<8x2x32xf32> to vector<1x2x32xf32>
    %196 = vector.shape_cast %195 : vector<1x2x32xf32> to vector<2x32xf32>
    %cst_52 = arith.constant dense<0.000000e+00> : vector<2x32xf32>
    %197 = tpu.matmul %185, %31, %cst_52 {dimension_numbers = #tpu.dot_dimension_numbers<[1], [0], [0], [1], [0, 0, 1, 1], [], []>} : vector<2x32xf32>, vector<32x32xf32>, vector<2x32xf32> -> vector<2x32xf32>
    %198 = arith.addf %196, %197 : vector<2x32xf32>
    %199 = arith.negf %198 : vector<2x32xf32>
    %200 = math.exp %199 : vector<2x32xf32>
    %cst_53 = arith.constant 1.000000e+00 : f32
    %201 = vector.broadcast %cst_53 : f32 to vector<2x32xf32>
    %202 = arith.addf %201, %200 : vector<2x32xf32>
    %203 = arith.divf %201, %202 : vector<2x32xf32>
    %204 = vector.extract_strided_slice %17 {offsets = [4, 0, 0], sizes = [1, 2, 32], strides = [1, 1, 1]} : vector<8x2x32xf32> to vector<1x2x32xf32>
    %205 = vector.shape_cast %204 : vector<1x2x32xf32> to vector<2x32xf32>
    %cst_54 = arith.constant dense<0.000000e+00> : vector<2x32xf32>
    %206 = tpu.matmul %185, %33, %cst_54 {dimension_numbers = #tpu.dot_dimension_numbers<[1], [0], [0], [1], [0, 0, 1, 1], [], []>} : vector<2x32xf32>, vector<32x32xf32>, vector<2x32xf32> -> vector<2x32xf32>
    %207 = arith.addf %205, %206 : vector<2x32xf32>
    %208 = math.tanh %207 : vector<2x32xf32>
    %209 = vector.extract_strided_slice %19 {offsets = [4, 0, 0], sizes = [1, 2, 32], strides = [1, 1, 1]} : vector<8x2x32xf32> to vector<1x2x32xf32>
    %210 = vector.shape_cast %209 : vector<1x2x32xf32> to vector<2x32xf32>
    %cst_55 = arith.constant dense<0.000000e+00> : vector<2x32xf32>
    %211 = tpu.matmul %185, %35, %cst_55 {dimension_numbers = #tpu.dot_dimension_numbers<[1], [0], [0], [1], [0, 0, 1, 1], [], []>} : vector<2x32xf32>, vector<32x32xf32>, vector<2x32xf32> -> vector<2x32xf32>
    %212 = arith.addf %210, %211 : vector<2x32xf32>
    %213 = arith.negf %212 : vector<2x32xf32>
    %214 = math.exp %213 : vector<2x32xf32>
    %cst_56 = arith.constant 1.000000e+00 : f32
    %215 = vector.broadcast %cst_56 : f32 to vector<2x32xf32>
    %216 = arith.addf %215, %214 : vector<2x32xf32>
    %217 = arith.divf %215, %216 : vector<2x32xf32>
    %218 = arith.mulf %203, %183 : vector<2x32xf32>
    %219 = arith.mulf %194, %208 : vector<2x32xf32>
    %220 = arith.addf %218, %219 : vector<2x32xf32>
    %221 = math.tanh %220 : vector<2x32xf32>
    %222 = arith.mulf %217, %221 : vector<2x32xf32>
    %223 = vector.extract_strided_slice %13 {offsets = [5, 0, 0], sizes = [1, 2, 32], strides = [1, 1, 1]} : vector<8x2x32xf32> to vector<1x2x32xf32>
    %224 = vector.shape_cast %223 : vector<1x2x32xf32> to vector<2x32xf32>
    %cst_57 = arith.constant dense<0.000000e+00> : vector<2x32xf32>
    %225 = tpu.matmul %222, %29, %cst_57 {dimension_numbers = #tpu.dot_dimension_numbers<[1], [0], [0], [1], [0, 0, 1, 1], [], []>} : vector<2x32xf32>, vector<32x32xf32>, vector<2x32xf32> -> vector<2x32xf32>
    %226 = arith.addf %224, %225 : vector<2x32xf32>
    %227 = arith.negf %226 : vector<2x32xf32>
    %228 = math.exp %227 : vector<2x32xf32>
    %cst_58 = arith.constant 1.000000e+00 : f32
    %229 = vector.broadcast %cst_58 : f32 to vector<2x32xf32>
    %230 = arith.addf %229, %228 : vector<2x32xf32>
    %231 = arith.divf %229, %230 : vector<2x32xf32>
    %232 = vector.extract_strided_slice %15 {offsets = [5, 0, 0], sizes = [1, 2, 32], strides = [1, 1, 1]} : vector<8x2x32xf32> to vector<1x2x32xf32>
    %233 = vector.shape_cast %232 : vector<1x2x32xf32> to vector<2x32xf32>
    %cst_59 = arith.constant dense<0.000000e+00> : vector<2x32xf32>
    %234 = tpu.matmul %222, %31, %cst_59 {dimension_numbers = #tpu.dot_dimension_numbers<[1], [0], [0], [1], [0, 0, 1, 1], [], []>} : vector<2x32xf32>, vector<32x32xf32>, vector<2x32xf32> -> vector<2x32xf32>
    %235 = arith.addf %233, %234 : vector<2x32xf32>
    %236 = arith.negf %235 : vector<2x32xf32>
    %237 = math.exp %236 : vector<2x32xf32>
    %cst_60 = arith.constant 1.000000e+00 : f32
    %238 = vector.broadcast %cst_60 : f32 to vector<2x32xf32>
    %239 = arith.addf %238, %237 : vector<2x32xf32>
    %240 = arith.divf %238, %239 : vector<2x32xf32>
    %241 = vector.extract_strided_slice %17 {offsets = [5, 0, 0], sizes = [1, 2, 32], strides = [1, 1, 1]} : vector<8x2x32xf32> to vector<1x2x32xf32>
    %242 = vector.shape_cast %241 : vector<1x2x32xf32> to vector<2x32xf32>
    %cst_61 = arith.constant dense<0.000000e+00> : vector<2x32xf32>
    %243 = tpu.matmul %222, %33, %cst_61 {dimension_numbers = #tpu.dot_dimension_numbers<[1], [0], [0], [1], [0, 0, 1, 1], [], []>} : vector<2x32xf32>, vector<32x32xf32>, vector<2x32xf32> -> vector<2x32xf32>
    %244 = arith.addf %242, %243 : vector<2x32xf32>
    %245 = math.tanh %244 : vector<2x32xf32>
    %246 = vector.extract_strided_slice %19 {offsets = [5, 0, 0], sizes = [1, 2, 32], strides = [1, 1, 1]} : vector<8x2x32xf32> to vector<1x2x32xf32>
    %247 = vector.shape_cast %246 : vector<1x2x32xf32> to vector<2x32xf32>
    %cst_62 = arith.constant dense<0.000000e+00> : vector<2x32xf32>
    %248 = tpu.matmul %222, %35, %cst_62 {dimension_numbers = #tpu.dot_dimension_numbers<[1], [0], [0], [1], [0, 0, 1, 1], [], []>} : vector<2x32xf32>, vector<32x32xf32>, vector<2x32xf32> -> vector<2x32xf32>
    %249 = arith.addf %247, %248 : vector<2x32xf32>
    %250 = arith.negf %249 : vector<2x32xf32>
    %251 = math.exp %250 : vector<2x32xf32>
    %cst_63 = arith.constant 1.000000e+00 : f32
    %252 = vector.broadcast %cst_63 : f32 to vector<2x32xf32>
    %253 = arith.addf %252, %251 : vector<2x32xf32>
    %254 = arith.divf %252, %253 : vector<2x32xf32>
    %255 = arith.mulf %240, %220 : vector<2x32xf32>
    %256 = arith.mulf %231, %245 : vector<2x32xf32>
    %257 = arith.addf %255, %256 : vector<2x32xf32>
    %258 = math.tanh %257 : vector<2x32xf32>
    %259 = arith.mulf %254, %258 : vector<2x32xf32>
    %260 = vector.extract_strided_slice %13 {offsets = [6, 0, 0], sizes = [1, 2, 32], strides = [1, 1, 1]} : vector<8x2x32xf32> to vector<1x2x32xf32>
    %261 = vector.shape_cast %260 : vector<1x2x32xf32> to vector<2x32xf32>
    %cst_64 = arith.constant dense<0.000000e+00> : vector<2x32xf32>
    %262 = tpu.matmul %259, %29, %cst_64 {dimension_numbers = #tpu.dot_dimension_numbers<[1], [0], [0], [1], [0, 0, 1, 1], [], []>} : vector<2x32xf32>, vector<32x32xf32>, vector<2x32xf32> -> vector<2x32xf32>
    %263 = arith.addf %261, %262 : vector<2x32xf32>
    %264 = arith.negf %263 : vector<2x32xf32>
    %265 = math.exp %264 : vector<2x32xf32>
    %cst_65 = arith.constant 1.000000e+00 : f32
    %266 = vector.broadcast %cst_65 : f32 to vector<2x32xf32>
    %267 = arith.addf %266, %265 : vector<2x32xf32>
    %268 = arith.divf %266, %267 : vector<2x32xf32>
    %269 = vector.extract_strided_slice %15 {offsets = [6, 0, 0], sizes = [1, 2, 32], strides = [1, 1, 1]} : vector<8x2x32xf32> to vector<1x2x32xf32>
    %270 = vector.shape_cast %269 : vector<1x2x32xf32> to vector<2x32xf32>
    %cst_66 = arith.constant dense<0.000000e+00> : vector<2x32xf32>
    %271 = tpu.matmul %259, %31, %cst_66 {dimension_numbers = #tpu.dot_dimension_numbers<[1], [0], [0], [1], [0, 0, 1, 1], [], []>} : vector<2x32xf32>, vector<32x32xf32>, vector<2x32xf32> -> vector<2x32xf32>
    %272 = arith.addf %270, %271 : vector<2x32xf32>
    %273 = arith.negf %272 : vector<2x32xf32>
    %274 = math.exp %273 : vector<2x32xf32>
    %cst_67 = arith.constant 1.000000e+00 : f32
    %275 = vector.broadcast %cst_67 : f32 to vector<2x32xf32>
    %276 = arith.addf %275, %274 : vector<2x32xf32>
    %277 = arith.divf %275, %276 : vector<2x32xf32>
    %278 = vector.extract_strided_slice %17 {offsets = [6, 0, 0], sizes = [1, 2, 32], strides = [1, 1, 1]} : vector<8x2x32xf32> to vector<1x2x32xf32>
    %279 = vector.shape_cast %278 : vector<1x2x32xf32> to vector<2x32xf32>
    %cst_68 = arith.constant dense<0.000000e+00> : vector<2x32xf32>
    %280 = tpu.matmul %259, %33, %cst_68 {dimension_numbers = #tpu.dot_dimension_numbers<[1], [0], [0], [1], [0, 0, 1, 1], [], []>} : vector<2x32xf32>, vector<32x32xf32>, vector<2x32xf32> -> vector<2x32xf32>
    %281 = arith.addf %279, %280 : vector<2x32xf32>
    %282 = math.tanh %281 : vector<2x32xf32>
    %283 = vector.extract_strided_slice %19 {offsets = [6, 0, 0], sizes = [1, 2, 32], strides = [1, 1, 1]} : vector<8x2x32xf32> to vector<1x2x32xf32>
    %284 = vector.shape_cast %283 : vector<1x2x32xf32> to vector<2x32xf32>
    %cst_69 = arith.constant dense<0.000000e+00> : vector<2x32xf32>
    %285 = tpu.matmul %259, %35, %cst_69 {dimension_numbers = #tpu.dot_dimension_numbers<[1], [0], [0], [1], [0, 0, 1, 1], [], []>} : vector<2x32xf32>, vector<32x32xf32>, vector<2x32xf32> -> vector<2x32xf32>
    %286 = arith.addf %284, %285 : vector<2x32xf32>
    %287 = arith.negf %286 : vector<2x32xf32>
    %288 = math.exp %287 : vector<2x32xf32>
    %cst_70 = arith.constant 1.000000e+00 : f32
    %289 = vector.broadcast %cst_70 : f32 to vector<2x32xf32>
    %290 = arith.addf %289, %288 : vector<2x32xf32>
    %291 = arith.divf %289, %290 : vector<2x32xf32>
    %292 = arith.mulf %277, %257 : vector<2x32xf32>
    %293 = arith.mulf %268, %282 : vector<2x32xf32>
    %294 = arith.addf %292, %293 : vector<2x32xf32>
    %295 = math.tanh %294 : vector<2x32xf32>
    %296 = arith.mulf %291, %295 : vector<2x32xf32>
    %297 = vector.extract_strided_slice %13 {offsets = [7, 0, 0], sizes = [1, 2, 32], strides = [1, 1, 1]} : vector<8x2x32xf32> to vector<1x2x32xf32>
    %298 = vector.shape_cast %297 : vector<1x2x32xf32> to vector<2x32xf32>
    %cst_71 = arith.constant dense<0.000000e+00> : vector<2x32xf32>
    %299 = tpu.matmul %296, %29, %cst_71 {dimension_numbers = #tpu.dot_dimension_numbers<[1], [0], [0], [1], [0, 0, 1, 1], [], []>} : vector<2x32xf32>, vector<32x32xf32>, vector<2x32xf32> -> vector<2x32xf32>
    %300 = arith.addf %298, %299 : vector<2x32xf32>
    %301 = arith.negf %300 : vector<2x32xf32>
    %302 = math.exp %301 : vector<2x32xf32>
    %cst_72 = arith.constant 1.000000e+00 : f32
    %303 = vector.broadcast %cst_72 : f32 to vector<2x32xf32>
    %304 = arith.addf %303, %302 : vector<2x32xf32>
    %305 = arith.divf %303, %304 : vector<2x32xf32>
    %306 = vector.extract_strided_slice %15 {offsets = [7, 0, 0], sizes = [1, 2, 32], strides = [1, 1, 1]} : vector<8x2x32xf32> to vector<1x2x32xf32>
    %307 = vector.shape_cast %306 : vector<1x2x32xf32> to vector<2x32xf32>
    %cst_73 = arith.constant dense<0.000000e+00> : vector<2x32xf32>
    %308 = tpu.matmul %296, %31, %cst_73 {dimension_numbers = #tpu.dot_dimension_numbers<[1], [0], [0], [1], [0, 0, 1, 1], [], []>} : vector<2x32xf32>, vector<32x32xf32>, vector<2x32xf32> -> vector<2x32xf32>
    %309 = arith.addf %307, %308 : vector<2x32xf32>
    %310 = arith.negf %309 : vector<2x32xf32>
    %311 = math.exp %310 : vector<2x32xf32>
    %cst_74 = arith.constant 1.000000e+00 : f32
    %312 = vector.broadcast %cst_74 : f32 to vector<2x32xf32>
    %313 = arith.addf %312, %311 : vector<2x32xf32>
    %314 = arith.divf %312, %313 : vector<2x32xf32>
    %315 = vector.extract_strided_slice %17 {offsets = [7, 0, 0], sizes = [1, 2, 32], strides = [1, 1, 1]} : vector<8x2x32xf32> to vector<1x2x32xf32>
    %316 = vector.shape_cast %315 : vector<1x2x32xf32> to vector<2x32xf32>
    %cst_75 = arith.constant dense<0.000000e+00> : vector<2x32xf32>
    %317 = tpu.matmul %296, %33, %cst_75 {dimension_numbers = #tpu.dot_dimension_numbers<[1], [0], [0], [1], [0, 0, 1, 1], [], []>} : vector<2x32xf32>, vector<32x32xf32>, vector<2x32xf32> -> vector<2x32xf32>
    %318 = arith.addf %316, %317 : vector<2x32xf32>
    %319 = math.tanh %318 : vector<2x32xf32>
    %320 = vector.extract_strided_slice %19 {offsets = [7, 0, 0], sizes = [1, 2, 32], strides = [1, 1, 1]} : vector<8x2x32xf32> to vector<1x2x32xf32>
    %321 = vector.shape_cast %320 : vector<1x2x32xf32> to vector<2x32xf32>
    %cst_76 = arith.constant dense<0.000000e+00> : vector<2x32xf32>
    %322 = tpu.matmul %296, %35, %cst_76 {dimension_numbers = #tpu.dot_dimension_numbers<[1], [0], [0], [1], [0, 0, 1, 1], [], []>} : vector<2x32xf32>, vector<32x32xf32>, vector<2x32xf32> -> vector<2x32xf32>
    %323 = arith.addf %321, %322 : vector<2x32xf32>
    %324 = arith.negf %323 : vector<2x32xf32>
    %325 = math.exp %324 : vector<2x32xf32>
    %cst_77 = arith.constant 1.000000e+00 : f32
    %326 = vector.broadcast %cst_77 : f32 to vector<2x32xf32>
    %327 = arith.addf %326, %325 : vector<2x32xf32>
    %328 = arith.divf %326, %327 : vector<2x32xf32>
    %329 = arith.mulf %314, %294 : vector<2x32xf32>
    %330 = arith.mulf %305, %319 : vector<2x32xf32>
    %331 = arith.addf %329, %330 : vector<2x32xf32>
    %332 = math.tanh %331 : vector<2x32xf32>
    %333 = arith.mulf %328, %332 : vector<2x32xf32>
    %c0_78 = arith.constant 0 : index
    %c0_79 = arith.constant 0 : index
    %c0_80 = arith.constant 0 : index
    %334 = vector.load %arg5[%c0_78, %c0_79, %c0_80] : memref<4x32x32xf32, #tpu.memory_space<vmem>>, vector<1x32x32xf32>
    %335 = vector.shape_cast %334 : vector<1x32x32xf32> to vector<32x32xf32>
    %c1_81 = arith.constant 1 : index
    %c0_82 = arith.constant 0 : index
    %c0_83 = arith.constant 0 : index
    %336 = vector.load %arg5[%c1_81, %c0_82, %c0_83] : memref<4x32x32xf32, #tpu.memory_space<vmem>>, vector<1x32x32xf32>
    %337 = vector.shape_cast %336 : vector<1x32x32xf32> to vector<32x32xf32>
    %c2_84 = arith.constant 2 : index
    %c0_85 = arith.constant 0 : index
    %c0_86 = arith.constant 0 : index
    %338 = vector.load %arg5[%c2_84, %c0_85, %c0_86] : memref<4x32x32xf32, #tpu.memory_space<vmem>>, vector<1x32x32xf32>
    %339 = vector.shape_cast %338 : vector<1x32x32xf32> to vector<32x32xf32>
    %c3_87 = arith.constant 3 : index
    %c0_88 = arith.constant 0 : index
    %c0_89 = arith.constant 0 : index
    %340 = vector.load %arg5[%c3_87, %c0_88, %c0_89] : memref<4x32x32xf32, #tpu.memory_space<vmem>>, vector<1x32x32xf32>
    %341 = vector.shape_cast %340 : vector<1x32x32xf32> to vector<32x32xf32>
    %cst_90 = arith.constant 0.000000e+00 : f32
    %342 = vector.broadcast %cst_90 : f32 to vector<2x32xf32>
    %cst_91 = arith.constant 0.000000e+00 : f32
    %343 = vector.broadcast %cst_91 : f32 to vector<2x32xf32>
    %344 = vector.extract_strided_slice %21 {offsets = [7, 0, 0], sizes = [1, 2, 32], strides = [1, 1, 1]} : vector<8x2x32xf32> to vector<1x2x32xf32>
    %345 = vector.shape_cast %344 : vector<1x2x32xf32> to vector<2x32xf32>
    %cst_92 = arith.constant dense<0.000000e+00> : vector<2x32xf32>
    %346 = tpu.matmul %342, %335, %cst_92 {dimension_numbers = #tpu.dot_dimension_numbers<[1], [0], [0], [1], [0, 0, 1, 1], [], []>} : vector<2x32xf32>, vector<32x32xf32>, vector<2x32xf32> -> vector<2x32xf32>
    %347 = arith.addf %345, %346 : vector<2x32xf32>
    %348 = arith.negf %347 : vector<2x32xf32>
    %349 = math.exp %348 : vector<2x32xf32>
    %cst_93 = arith.constant 1.000000e+00 : f32
    %350 = vector.broadcast %cst_93 : f32 to vector<2x32xf32>
    %351 = arith.addf %350, %349 : vector<2x32xf32>
    %352 = arith.divf %350, %351 : vector<2x32xf32>
    %353 = vector.extract_strided_slice %23 {offsets = [7, 0, 0], sizes = [1, 2, 32], strides = [1, 1, 1]} : vector<8x2x32xf32> to vector<1x2x32xf32>
    %354 = vector.shape_cast %353 : vector<1x2x32xf32> to vector<2x32xf32>
    %cst_94 = arith.constant dense<0.000000e+00> : vector<2x32xf32>
    %355 = tpu.matmul %342, %337, %cst_94 {dimension_numbers = #tpu.dot_dimension_numbers<[1], [0], [0], [1], [0, 0, 1, 1], [], []>} : vector<2x32xf32>, vector<32x32xf32>, vector<2x32xf32> -> vector<2x32xf32>
    %356 = arith.addf %354, %355 : vector<2x32xf32>
    %357 = arith.negf %356 : vector<2x32xf32>
    %358 = math.exp %357 : vector<2x32xf32>
    %cst_95 = arith.constant 1.000000e+00 : f32
    %359 = vector.broadcast %cst_95 : f32 to vector<2x32xf32>
    %360 = arith.addf %359, %358 : vector<2x32xf32>
    %361 = arith.divf %359, %360 : vector<2x32xf32>
    %362 = vector.extract_strided_slice %25 {offsets = [7, 0, 0], sizes = [1, 2, 32], strides = [1, 1, 1]} : vector<8x2x32xf32> to vector<1x2x32xf32>
    %363 = vector.shape_cast %362 : vector<1x2x32xf32> to vector<2x32xf32>
    %cst_96 = arith.constant dense<0.000000e+00> : vector<2x32xf32>
    %364 = tpu.matmul %342, %339, %cst_96 {dimension_numbers = #tpu.dot_dimension_numbers<[1], [0], [0], [1], [0, 0, 1, 1], [], []>} : vector<2x32xf32>, vector<32x32xf32>, vector<2x32xf32> -> vector<2x32xf32>
    %365 = arith.addf %363, %364 : vector<2x32xf32>
    %366 = math.tanh %365 : vector<2x32xf32>
    %367 = vector.extract_strided_slice %27 {offsets = [7, 0, 0], sizes = [1, 2, 32], strides = [1, 1, 1]} : vector<8x2x32xf32> to vector<1x2x32xf32>
    %368 = vector.shape_cast %367 : vector<1x2x32xf32> to vector<2x32xf32>
    %cst_97 = arith.constant dense<0.000000e+00> : vector<2x32xf32>
    %369 = tpu.matmul %342, %341, %cst_97 {dimension_numbers = #tpu.dot_dimension_numbers<[1], [0], [0], [1], [0, 0, 1, 1], [], []>} : vector<2x32xf32>, vector<32x32xf32>, vector<2x32xf32> -> vector<2x32xf32>
    %370 = arith.addf %368, %369 : vector<2x32xf32>
    %371 = arith.negf %370 : vector<2x32xf32>
    %372 = math.exp %371 : vector<2x32xf32>
    %cst_98 = arith.constant 1.000000e+00 : f32
    %373 = vector.broadcast %cst_98 : f32 to vector<2x32xf32>
    %374 = arith.addf %373, %372 : vector<2x32xf32>
    %375 = arith.divf %373, %374 : vector<2x32xf32>
    %376 = arith.mulf %361, %343 : vector<2x32xf32>
    %377 = arith.mulf %352, %366 : vector<2x32xf32>
    %378 = arith.addf %376, %377 : vector<2x32xf32>
    %379 = math.tanh %378 : vector<2x32xf32>
    %380 = arith.mulf %375, %379 : vector<2x32xf32>
    %381 = vector.extract_strided_slice %21 {offsets = [6, 0, 0], sizes = [1, 2, 32], strides = [1, 1, 1]} : vector<8x2x32xf32> to vector<1x2x32xf32>
    %382 = vector.shape_cast %381 : vector<1x2x32xf32> to vector<2x32xf32>
    %cst_99 = arith.constant dense<0.000000e+00> : vector<2x32xf32>
    %383 = tpu.matmul %380, %335, %cst_99 {dimension_numbers = #tpu.dot_dimension_numbers<[1], [0], [0], [1], [0, 0, 1, 1], [], []>} : vector<2x32xf32>, vector<32x32xf32>, vector<2x32xf32> -> vector<2x32xf32>
    %384 = arith.addf %382, %383 : vector<2x32xf32>
    %385 = arith.negf %384 : vector<2x32xf32>
    %386 = math.exp %385 : vector<2x32xf32>
    %cst_100 = arith.constant 1.000000e+00 : f32
    %387 = vector.broadcast %cst_100 : f32 to vector<2x32xf32>
    %388 = arith.addf %387, %386 : vector<2x32xf32>
    %389 = arith.divf %387, %388 : vector<2x32xf32>
    %390 = vector.extract_strided_slice %23 {offsets = [6, 0, 0], sizes = [1, 2, 32], strides = [1, 1, 1]} : vector<8x2x32xf32> to vector<1x2x32xf32>
    %391 = vector.shape_cast %390 : vector<1x2x32xf32> to vector<2x32xf32>
    %cst_101 = arith.constant dense<0.000000e+00> : vector<2x32xf32>
    %392 = tpu.matmul %380, %337, %cst_101 {dimension_numbers = #tpu.dot_dimension_numbers<[1], [0], [0], [1], [0, 0, 1, 1], [], []>} : vector<2x32xf32>, vector<32x32xf32>, vector<2x32xf32> -> vector<2x32xf32>
    %393 = arith.addf %391, %392 : vector<2x32xf32>
    %394 = arith.negf %393 : vector<2x32xf32>
    %395 = math.exp %394 : vector<2x32xf32>
    %cst_102 = arith.constant 1.000000e+00 : f32
    %396 = vector.broadcast %cst_102 : f32 to vector<2x32xf32>
    %397 = arith.addf %396, %395 : vector<2x32xf32>
    %398 = arith.divf %396, %397 : vector<2x32xf32>
    %399 = vector.extract_strided_slice %25 {offsets = [6, 0, 0], sizes = [1, 2, 32], strides = [1, 1, 1]} : vector<8x2x32xf32> to vector<1x2x32xf32>
    %400 = vector.shape_cast %399 : vector<1x2x32xf32> to vector<2x32xf32>
    %cst_103 = arith.constant dense<0.000000e+00> : vector<2x32xf32>
    %401 = tpu.matmul %380, %339, %cst_103 {dimension_numbers = #tpu.dot_dimension_numbers<[1], [0], [0], [1], [0, 0, 1, 1], [], []>} : vector<2x32xf32>, vector<32x32xf32>, vector<2x32xf32> -> vector<2x32xf32>
    %402 = arith.addf %400, %401 : vector<2x32xf32>
    %403 = math.tanh %402 : vector<2x32xf32>
    %404 = vector.extract_strided_slice %27 {offsets = [6, 0, 0], sizes = [1, 2, 32], strides = [1, 1, 1]} : vector<8x2x32xf32> to vector<1x2x32xf32>
    %405 = vector.shape_cast %404 : vector<1x2x32xf32> to vector<2x32xf32>
    %cst_104 = arith.constant dense<0.000000e+00> : vector<2x32xf32>
    %406 = tpu.matmul %380, %341, %cst_104 {dimension_numbers = #tpu.dot_dimension_numbers<[1], [0], [0], [1], [0, 0, 1, 1], [], []>} : vector<2x32xf32>, vector<32x32xf32>, vector<2x32xf32> -> vector<2x32xf32>
    %407 = arith.addf %405, %406 : vector<2x32xf32>
    %408 = arith.negf %407 : vector<2x32xf32>
    %409 = math.exp %408 : vector<2x32xf32>
    %cst_105 = arith.constant 1.000000e+00 : f32
    %410 = vector.broadcast %cst_105 : f32 to vector<2x32xf32>
    %411 = arith.addf %410, %409 : vector<2x32xf32>
    %412 = arith.divf %410, %411 : vector<2x32xf32>
    %413 = arith.mulf %398, %378 : vector<2x32xf32>
    %414 = arith.mulf %389, %403 : vector<2x32xf32>
    %415 = arith.addf %413, %414 : vector<2x32xf32>
    %416 = math.tanh %415 : vector<2x32xf32>
    %417 = arith.mulf %412, %416 : vector<2x32xf32>
    %418 = vector.extract_strided_slice %21 {offsets = [5, 0, 0], sizes = [1, 2, 32], strides = [1, 1, 1]} : vector<8x2x32xf32> to vector<1x2x32xf32>
    %419 = vector.shape_cast %418 : vector<1x2x32xf32> to vector<2x32xf32>
    %cst_106 = arith.constant dense<0.000000e+00> : vector<2x32xf32>
    %420 = tpu.matmul %417, %335, %cst_106 {dimension_numbers = #tpu.dot_dimension_numbers<[1], [0], [0], [1], [0, 0, 1, 1], [], []>} : vector<2x32xf32>, vector<32x32xf32>, vector<2x32xf32> -> vector<2x32xf32>
    %421 = arith.addf %419, %420 : vector<2x32xf32>
    %422 = arith.negf %421 : vector<2x32xf32>
    %423 = math.exp %422 : vector<2x32xf32>
    %cst_107 = arith.constant 1.000000e+00 : f32
    %424 = vector.broadcast %cst_107 : f32 to vector<2x32xf32>
    %425 = arith.addf %424, %423 : vector<2x32xf32>
    %426 = arith.divf %424, %425 : vector<2x32xf32>
    %427 = vector.extract_strided_slice %23 {offsets = [5, 0, 0], sizes = [1, 2, 32], strides = [1, 1, 1]} : vector<8x2x32xf32> to vector<1x2x32xf32>
    %428 = vector.shape_cast %427 : vector<1x2x32xf32> to vector<2x32xf32>
    %cst_108 = arith.constant dense<0.000000e+00> : vector<2x32xf32>
    %429 = tpu.matmul %417, %337, %cst_108 {dimension_numbers = #tpu.dot_dimension_numbers<[1], [0], [0], [1], [0, 0, 1, 1], [], []>} : vector<2x32xf32>, vector<32x32xf32>, vector<2x32xf32> -> vector<2x32xf32>
    %430 = arith.addf %428, %429 : vector<2x32xf32>
    %431 = arith.negf %430 : vector<2x32xf32>
    %432 = math.exp %431 : vector<2x32xf32>
    %cst_109 = arith.constant 1.000000e+00 : f32
    %433 = vector.broadcast %cst_109 : f32 to vector<2x32xf32>
    %434 = arith.addf %433, %432 : vector<2x32xf32>
    %435 = arith.divf %433, %434 : vector<2x32xf32>
    %436 = vector.extract_strided_slice %25 {offsets = [5, 0, 0], sizes = [1, 2, 32], strides = [1, 1, 1]} : vector<8x2x32xf32> to vector<1x2x32xf32>
    %437 = vector.shape_cast %436 : vector<1x2x32xf32> to vector<2x32xf32>
    %cst_110 = arith.constant dense<0.000000e+00> : vector<2x32xf32>
    %438 = tpu.matmul %417, %339, %cst_110 {dimension_numbers = #tpu.dot_dimension_numbers<[1], [0], [0], [1], [0, 0, 1, 1], [], []>} : vector<2x32xf32>, vector<32x32xf32>, vector<2x32xf32> -> vector<2x32xf32>
    %439 = arith.addf %437, %438 : vector<2x32xf32>
    %440 = math.tanh %439 : vector<2x32xf32>
    %441 = vector.extract_strided_slice %27 {offsets = [5, 0, 0], sizes = [1, 2, 32], strides = [1, 1, 1]} : vector<8x2x32xf32> to vector<1x2x32xf32>
    %442 = vector.shape_cast %441 : vector<1x2x32xf32> to vector<2x32xf32>
    %cst_111 = arith.constant dense<0.000000e+00> : vector<2x32xf32>
    %443 = tpu.matmul %417, %341, %cst_111 {dimension_numbers = #tpu.dot_dimension_numbers<[1], [0], [0], [1], [0, 0, 1, 1], [], []>} : vector<2x32xf32>, vector<32x32xf32>, vector<2x32xf32> -> vector<2x32xf32>
    %444 = arith.addf %442, %443 : vector<2x32xf32>
    %445 = arith.negf %444 : vector<2x32xf32>
    %446 = math.exp %445 : vector<2x32xf32>
    %cst_112 = arith.constant 1.000000e+00 : f32
    %447 = vector.broadcast %cst_112 : f32 to vector<2x32xf32>
    %448 = arith.addf %447, %446 : vector<2x32xf32>
    %449 = arith.divf %447, %448 : vector<2x32xf32>
    %450 = arith.mulf %435, %415 : vector<2x32xf32>
    %451 = arith.mulf %426, %440 : vector<2x32xf32>
    %452 = arith.addf %450, %451 : vector<2x32xf32>
    %453 = math.tanh %452 : vector<2x32xf32>
    %454 = arith.mulf %449, %453 : vector<2x32xf32>
    %455 = vector.extract_strided_slice %21 {offsets = [4, 0, 0], sizes = [1, 2, 32], strides = [1, 1, 1]} : vector<8x2x32xf32> to vector<1x2x32xf32>
    %456 = vector.shape_cast %455 : vector<1x2x32xf32> to vector<2x32xf32>
    %cst_113 = arith.constant dense<0.000000e+00> : vector<2x32xf32>
    %457 = tpu.matmul %454, %335, %cst_113 {dimension_numbers = #tpu.dot_dimension_numbers<[1], [0], [0], [1], [0, 0, 1, 1], [], []>} : vector<2x32xf32>, vector<32x32xf32>, vector<2x32xf32> -> vector<2x32xf32>
    %458 = arith.addf %456, %457 : vector<2x32xf32>
    %459 = arith.negf %458 : vector<2x32xf32>
    %460 = math.exp %459 : vector<2x32xf32>
    %cst_114 = arith.constant 1.000000e+00 : f32
    %461 = vector.broadcast %cst_114 : f32 to vector<2x32xf32>
    %462 = arith.addf %461, %460 : vector<2x32xf32>
    %463 = arith.divf %461, %462 : vector<2x32xf32>
    %464 = vector.extract_strided_slice %23 {offsets = [4, 0, 0], sizes = [1, 2, 32], strides = [1, 1, 1]} : vector<8x2x32xf32> to vector<1x2x32xf32>
    %465 = vector.shape_cast %464 : vector<1x2x32xf32> to vector<2x32xf32>
    %cst_115 = arith.constant dense<0.000000e+00> : vector<2x32xf32>
    %466 = tpu.matmul %454, %337, %cst_115 {dimension_numbers = #tpu.dot_dimension_numbers<[1], [0], [0], [1], [0, 0, 1, 1], [], []>} : vector<2x32xf32>, vector<32x32xf32>, vector<2x32xf32> -> vector<2x32xf32>
    %467 = arith.addf %465, %466 : vector<2x32xf32>
    %468 = arith.negf %467 : vector<2x32xf32>
    %469 = math.exp %468 : vector<2x32xf32>
    %cst_116 = arith.constant 1.000000e+00 : f32
    %470 = vector.broadcast %cst_116 : f32 to vector<2x32xf32>
    %471 = arith.addf %470, %469 : vector<2x32xf32>
    %472 = arith.divf %470, %471 : vector<2x32xf32>
    %473 = vector.extract_strided_slice %25 {offsets = [4, 0, 0], sizes = [1, 2, 32], strides = [1, 1, 1]} : vector<8x2x32xf32> to vector<1x2x32xf32>
    %474 = vector.shape_cast %473 : vector<1x2x32xf32> to vector<2x32xf32>
    %cst_117 = arith.constant dense<0.000000e+00> : vector<2x32xf32>
    %475 = tpu.matmul %454, %339, %cst_117 {dimension_numbers = #tpu.dot_dimension_numbers<[1], [0], [0], [1], [0, 0, 1, 1], [], []>} : vector<2x32xf32>, vector<32x32xf32>, vector<2x32xf32> -> vector<2x32xf32>
    %476 = arith.addf %474, %475 : vector<2x32xf32>
    %477 = math.tanh %476 : vector<2x32xf32>
    %478 = vector.extract_strided_slice %27 {offsets = [4, 0, 0], sizes = [1, 2, 32], strides = [1, 1, 1]} : vector<8x2x32xf32> to vector<1x2x32xf32>
    %479 = vector.shape_cast %478 : vector<1x2x32xf32> to vector<2x32xf32>
    %cst_118 = arith.constant dense<0.000000e+00> : vector<2x32xf32>
    %480 = tpu.matmul %454, %341, %cst_118 {dimension_numbers = #tpu.dot_dimension_numbers<[1], [0], [0], [1], [0, 0, 1, 1], [], []>} : vector<2x32xf32>, vector<32x32xf32>, vector<2x32xf32> -> vector<2x32xf32>
    %481 = arith.addf %479, %480 : vector<2x32xf32>
    %482 = arith.negf %481 : vector<2x32xf32>
    %483 = math.exp %482 : vector<2x32xf32>
    %cst_119 = arith.constant 1.000000e+00 : f32
    %484 = vector.broadcast %cst_119 : f32 to vector<2x32xf32>
    %485 = arith.addf %484, %483 : vector<2x32xf32>
    %486 = arith.divf %484, %485 : vector<2x32xf32>
    %487 = arith.mulf %472, %452 : vector<2x32xf32>
    %488 = arith.mulf %463, %477 : vector<2x32xf32>
    %489 = arith.addf %487, %488 : vector<2x32xf32>
    %490 = math.tanh %489 : vector<2x32xf32>
    %491 = arith.mulf %486, %490 : vector<2x32xf32>
    %492 = vector.extract_strided_slice %21 {offsets = [3, 0, 0], sizes = [1, 2, 32], strides = [1, 1, 1]} : vector<8x2x32xf32> to vector<1x2x32xf32>
    %493 = vector.shape_cast %492 : vector<1x2x32xf32> to vector<2x32xf32>
    %cst_120 = arith.constant dense<0.000000e+00> : vector<2x32xf32>
    %494 = tpu.matmul %491, %335, %cst_120 {dimension_numbers = #tpu.dot_dimension_numbers<[1], [0], [0], [1], [0, 0, 1, 1], [], []>} : vector<2x32xf32>, vector<32x32xf32>, vector<2x32xf32> -> vector<2x32xf32>
    %495 = arith.addf %493, %494 : vector<2x32xf32>
    %496 = arith.negf %495 : vector<2x32xf32>
    %497 = math.exp %496 : vector<2x32xf32>
    %cst_121 = arith.constant 1.000000e+00 : f32
    %498 = vector.broadcast %cst_121 : f32 to vector<2x32xf32>
    %499 = arith.addf %498, %497 : vector<2x32xf32>
    %500 = arith.divf %498, %499 : vector<2x32xf32>
    %501 = vector.extract_strided_slice %23 {offsets = [3, 0, 0], sizes = [1, 2, 32], strides = [1, 1, 1]} : vector<8x2x32xf32> to vector<1x2x32xf32>
    %502 = vector.shape_cast %501 : vector<1x2x32xf32> to vector<2x32xf32>
    %cst_122 = arith.constant dense<0.000000e+00> : vector<2x32xf32>
    %503 = tpu.matmul %491, %337, %cst_122 {dimension_numbers = #tpu.dot_dimension_numbers<[1], [0], [0], [1], [0, 0, 1, 1], [], []>} : vector<2x32xf32>, vector<32x32xf32>, vector<2x32xf32> -> vector<2x32xf32>
    %504 = arith.addf %502, %503 : vector<2x32xf32>
    %505 = arith.negf %504 : vector<2x32xf32>
    %506 = math.exp %505 : vector<2x32xf32>
    %cst_123 = arith.constant 1.000000e+00 : f32
    %507 = vector.broadcast %cst_123 : f32 to vector<2x32xf32>
    %508 = arith.addf %507, %506 : vector<2x32xf32>
    %509 = arith.divf %507, %508 : vector<2x32xf32>
    %510 = vector.extract_strided_slice %25 {offsets = [3, 0, 0], sizes = [1, 2, 32], strides = [1, 1, 1]} : vector<8x2x32xf32> to vector<1x2x32xf32>
    %511 = vector.shape_cast %510 : vector<1x2x32xf32> to vector<2x32xf32>
    %cst_124 = arith.constant dense<0.000000e+00> : vector<2x32xf32>
    %512 = tpu.matmul %491, %339, %cst_124 {dimension_numbers = #tpu.dot_dimension_numbers<[1], [0], [0], [1], [0, 0, 1, 1], [], []>} : vector<2x32xf32>, vector<32x32xf32>, vector<2x32xf32> -> vector<2x32xf32>
    %513 = arith.addf %511, %512 : vector<2x32xf32>
    %514 = math.tanh %513 : vector<2x32xf32>
    %515 = vector.extract_strided_slice %27 {offsets = [3, 0, 0], sizes = [1, 2, 32], strides = [1, 1, 1]} : vector<8x2x32xf32> to vector<1x2x32xf32>
    %516 = vector.shape_cast %515 : vector<1x2x32xf32> to vector<2x32xf32>
    %cst_125 = arith.constant dense<0.000000e+00> : vector<2x32xf32>
    %517 = tpu.matmul %491, %341, %cst_125 {dimension_numbers = #tpu.dot_dimension_numbers<[1], [0], [0], [1], [0, 0, 1, 1], [], []>} : vector<2x32xf32>, vector<32x32xf32>, vector<2x32xf32> -> vector<2x32xf32>
    %518 = arith.addf %516, %517 : vector<2x32xf32>
    %519 = arith.negf %518 : vector<2x32xf32>
    %520 = math.exp %519 : vector<2x32xf32>
    %cst_126 = arith.constant 1.000000e+00 : f32
    %521 = vector.broadcast %cst_126 : f32 to vector<2x32xf32>
    %522 = arith.addf %521, %520 : vector<2x32xf32>
    %523 = arith.divf %521, %522 : vector<2x32xf32>
    %524 = arith.mulf %509, %489 : vector<2x32xf32>
    %525 = arith.mulf %500, %514 : vector<2x32xf32>
    %526 = arith.addf %524, %525 : vector<2x32xf32>
    %527 = math.tanh %526 : vector<2x32xf32>
    %528 = arith.mulf %523, %527 : vector<2x32xf32>
    %529 = vector.extract_strided_slice %21 {offsets = [2, 0, 0], sizes = [1, 2, 32], strides = [1, 1, 1]} : vector<8x2x32xf32> to vector<1x2x32xf32>
    %530 = vector.shape_cast %529 : vector<1x2x32xf32> to vector<2x32xf32>
    %cst_127 = arith.constant dense<0.000000e+00> : vector<2x32xf32>
    %531 = tpu.matmul %528, %335, %cst_127 {dimension_numbers = #tpu.dot_dimension_numbers<[1], [0], [0], [1], [0, 0, 1, 1], [], []>} : vector<2x32xf32>, vector<32x32xf32>, vector<2x32xf32> -> vector<2x32xf32>
    %532 = arith.addf %530, %531 : vector<2x32xf32>
    %533 = arith.negf %532 : vector<2x32xf32>
    %534 = math.exp %533 : vector<2x32xf32>
    %cst_128 = arith.constant 1.000000e+00 : f32
    %535 = vector.broadcast %cst_128 : f32 to vector<2x32xf32>
    %536 = arith.addf %535, %534 : vector<2x32xf32>
    %537 = arith.divf %535, %536 : vector<2x32xf32>
    %538 = vector.extract_strided_slice %23 {offsets = [2, 0, 0], sizes = [1, 2, 32], strides = [1, 1, 1]} : vector<8x2x32xf32> to vector<1x2x32xf32>
    %539 = vector.shape_cast %538 : vector<1x2x32xf32> to vector<2x32xf32>
    %cst_129 = arith.constant dense<0.000000e+00> : vector<2x32xf32>
    %540 = tpu.matmul %528, %337, %cst_129 {dimension_numbers = #tpu.dot_dimension_numbers<[1], [0], [0], [1], [0, 0, 1, 1], [], []>} : vector<2x32xf32>, vector<32x32xf32>, vector<2x32xf32> -> vector<2x32xf32>
    %541 = arith.addf %539, %540 : vector<2x32xf32>
    %542 = arith.negf %541 : vector<2x32xf32>
    %543 = math.exp %542 : vector<2x32xf32>
    %cst_130 = arith.constant 1.000000e+00 : f32
    %544 = vector.broadcast %cst_130 : f32 to vector<2x32xf32>
    %545 = arith.addf %544, %543 : vector<2x32xf32>
    %546 = arith.divf %544, %545 : vector<2x32xf32>
    %547 = vector.extract_strided_slice %25 {offsets = [2, 0, 0], sizes = [1, 2, 32], strides = [1, 1, 1]} : vector<8x2x32xf32> to vector<1x2x32xf32>
    %548 = vector.shape_cast %547 : vector<1x2x32xf32> to vector<2x32xf32>
    %cst_131 = arith.constant dense<0.000000e+00> : vector<2x32xf32>
    %549 = tpu.matmul %528, %339, %cst_131 {dimension_numbers = #tpu.dot_dimension_numbers<[1], [0], [0], [1], [0, 0, 1, 1], [], []>} : vector<2x32xf32>, vector<32x32xf32>, vector<2x32xf32> -> vector<2x32xf32>
    %550 = arith.addf %548, %549 : vector<2x32xf32>
    %551 = math.tanh %550 : vector<2x32xf32>
    %552 = vector.extract_strided_slice %27 {offsets = [2, 0, 0], sizes = [1, 2, 32], strides = [1, 1, 1]} : vector<8x2x32xf32> to vector<1x2x32xf32>
    %553 = vector.shape_cast %552 : vector<1x2x32xf32> to vector<2x32xf32>
    %cst_132 = arith.constant dense<0.000000e+00> : vector<2x32xf32>
    %554 = tpu.matmul %528, %341, %cst_132 {dimension_numbers = #tpu.dot_dimension_numbers<[1], [0], [0], [1], [0, 0, 1, 1], [], []>} : vector<2x32xf32>, vector<32x32xf32>, vector<2x32xf32> -> vector<2x32xf32>
    %555 = arith.addf %553, %554 : vector<2x32xf32>
    %556 = arith.negf %555 : vector<2x32xf32>
    %557 = math.exp %556 : vector<2x32xf32>
    %cst_133 = arith.constant 1.000000e+00 : f32
    %558 = vector.broadcast %cst_133 : f32 to vector<2x32xf32>
    %559 = arith.addf %558, %557 : vector<2x32xf32>
    %560 = arith.divf %558, %559 : vector<2x32xf32>
    %561 = arith.mulf %546, %526 : vector<2x32xf32>
    %562 = arith.mulf %537, %551 : vector<2x32xf32>
    %563 = arith.addf %561, %562 : vector<2x32xf32>
    %564 = math.tanh %563 : vector<2x32xf32>
    %565 = arith.mulf %560, %564 : vector<2x32xf32>
    %566 = vector.extract_strided_slice %21 {offsets = [1, 0, 0], sizes = [1, 2, 32], strides = [1, 1, 1]} : vector<8x2x32xf32> to vector<1x2x32xf32>
    %567 = vector.shape_cast %566 : vector<1x2x32xf32> to vector<2x32xf32>
    %cst_134 = arith.constant dense<0.000000e+00> : vector<2x32xf32>
    %568 = tpu.matmul %565, %335, %cst_134 {dimension_numbers = #tpu.dot_dimension_numbers<[1], [0], [0], [1], [0, 0, 1, 1], [], []>} : vector<2x32xf32>, vector<32x32xf32>, vector<2x32xf32> -> vector<2x32xf32>
    %569 = arith.addf %567, %568 : vector<2x32xf32>
    %570 = arith.negf %569 : vector<2x32xf32>
    %571 = math.exp %570 : vector<2x32xf32>
    %cst_135 = arith.constant 1.000000e+00 : f32
    %572 = vector.broadcast %cst_135 : f32 to vector<2x32xf32>
    %573 = arith.addf %572, %571 : vector<2x32xf32>
    %574 = arith.divf %572, %573 : vector<2x32xf32>
    %575 = vector.extract_strided_slice %23 {offsets = [1, 0, 0], sizes = [1, 2, 32], strides = [1, 1, 1]} : vector<8x2x32xf32> to vector<1x2x32xf32>
    %576 = vector.shape_cast %575 : vector<1x2x32xf32> to vector<2x32xf32>
    %cst_136 = arith.constant dense<0.000000e+00> : vector<2x32xf32>
    %577 = tpu.matmul %565, %337, %cst_136 {dimension_numbers = #tpu.dot_dimension_numbers<[1], [0], [0], [1], [0, 0, 1, 1], [], []>} : vector<2x32xf32>, vector<32x32xf32>, vector<2x32xf32> -> vector<2x32xf32>
    %578 = arith.addf %576, %577 : vector<2x32xf32>
    %579 = arith.negf %578 : vector<2x32xf32>
    %580 = math.exp %579 : vector<2x32xf32>
    %cst_137 = arith.constant 1.000000e+00 : f32
    %581 = vector.broadcast %cst_137 : f32 to vector<2x32xf32>
    %582 = arith.addf %581, %580 : vector<2x32xf32>
    %583 = arith.divf %581, %582 : vector<2x32xf32>
    %584 = vector.extract_strided_slice %25 {offsets = [1, 0, 0], sizes = [1, 2, 32], strides = [1, 1, 1]} : vector<8x2x32xf32> to vector<1x2x32xf32>
    %585 = vector.shape_cast %584 : vector<1x2x32xf32> to vector<2x32xf32>
    %cst_138 = arith.constant dense<0.000000e+00> : vector<2x32xf32>
    %586 = tpu.matmul %565, %339, %cst_138 {dimension_numbers = #tpu.dot_dimension_numbers<[1], [0], [0], [1], [0, 0, 1, 1], [], []>} : vector<2x32xf32>, vector<32x32xf32>, vector<2x32xf32> -> vector<2x32xf32>
    %587 = arith.addf %585, %586 : vector<2x32xf32>
    %588 = math.tanh %587 : vector<2x32xf32>
    %589 = vector.extract_strided_slice %27 {offsets = [1, 0, 0], sizes = [1, 2, 32], strides = [1, 1, 1]} : vector<8x2x32xf32> to vector<1x2x32xf32>
    %590 = vector.shape_cast %589 : vector<1x2x32xf32> to vector<2x32xf32>
    %cst_139 = arith.constant dense<0.000000e+00> : vector<2x32xf32>
    %591 = tpu.matmul %565, %341, %cst_139 {dimension_numbers = #tpu.dot_dimension_numbers<[1], [0], [0], [1], [0, 0, 1, 1], [], []>} : vector<2x32xf32>, vector<32x32xf32>, vector<2x32xf32> -> vector<2x32xf32>
    %592 = arith.addf %590, %591 : vector<2x32xf32>
    %593 = arith.negf %592 : vector<2x32xf32>
    %594 = math.exp %593 : vector<2x32xf32>
    %cst_140 = arith.constant 1.000000e+00 : f32
    %595 = vector.broadcast %cst_140 : f32 to vector<2x32xf32>
    %596 = arith.addf %595, %594 : vector<2x32xf32>
    %597 = arith.divf %595, %596 : vector<2x32xf32>
    %598 = arith.mulf %583, %563 : vector<2x32xf32>
    %599 = arith.mulf %574, %588 : vector<2x32xf32>
    %600 = arith.addf %598, %599 : vector<2x32xf32>
    %601 = math.tanh %600 : vector<2x32xf32>
    %602 = arith.mulf %597, %601 : vector<2x32xf32>
    %603 = vector.extract_strided_slice %21 {offsets = [0, 0, 0], sizes = [1, 2, 32], strides = [1, 1, 1]} : vector<8x2x32xf32> to vector<1x2x32xf32>
    %604 = vector.shape_cast %603 : vector<1x2x32xf32> to vector<2x32xf32>
    %cst_141 = arith.constant dense<0.000000e+00> : vector<2x32xf32>
    %605 = tpu.matmul %602, %335, %cst_141 {dimension_numbers = #tpu.dot_dimension_numbers<[1], [0], [0], [1], [0, 0, 1, 1], [], []>} : vector<2x32xf32>, vector<32x32xf32>, vector<2x32xf32> -> vector<2x32xf32>
    %606 = arith.addf %604, %605 : vector<2x32xf32>
    %607 = arith.negf %606 : vector<2x32xf32>
    %608 = math.exp %607 : vector<2x32xf32>
    %cst_142 = arith.constant 1.000000e+00 : f32
    %609 = vector.broadcast %cst_142 : f32 to vector<2x32xf32>
    %610 = arith.addf %609, %608 : vector<2x32xf32>
    %611 = arith.divf %609, %610 : vector<2x32xf32>
    %612 = vector.extract_strided_slice %23 {offsets = [0, 0, 0], sizes = [1, 2, 32], strides = [1, 1, 1]} : vector<8x2x32xf32> to vector<1x2x32xf32>
    %613 = vector.shape_cast %612 : vector<1x2x32xf32> to vector<2x32xf32>
    %cst_143 = arith.constant dense<0.000000e+00> : vector<2x32xf32>
    %614 = tpu.matmul %602, %337, %cst_143 {dimension_numbers = #tpu.dot_dimension_numbers<[1], [0], [0], [1], [0, 0, 1, 1], [], []>} : vector<2x32xf32>, vector<32x32xf32>, vector<2x32xf32> -> vector<2x32xf32>
    %615 = arith.addf %613, %614 : vector<2x32xf32>
    %616 = arith.negf %615 : vector<2x32xf32>
    %617 = math.exp %616 : vector<2x32xf32>
    %cst_144 = arith.constant 1.000000e+00 : f32
    %618 = vector.broadcast %cst_144 : f32 to vector<2x32xf32>
    %619 = arith.addf %618, %617 : vector<2x32xf32>
    %620 = arith.divf %618, %619 : vector<2x32xf32>
    %621 = vector.extract_strided_slice %25 {offsets = [0, 0, 0], sizes = [1, 2, 32], strides = [1, 1, 1]} : vector<8x2x32xf32> to vector<1x2x32xf32>
    %622 = vector.shape_cast %621 : vector<1x2x32xf32> to vector<2x32xf32>
    %cst_145 = arith.constant dense<0.000000e+00> : vector<2x32xf32>
    %623 = tpu.matmul %602, %339, %cst_145 {dimension_numbers = #tpu.dot_dimension_numbers<[1], [0], [0], [1], [0, 0, 1, 1], [], []>} : vector<2x32xf32>, vector<32x32xf32>, vector<2x32xf32> -> vector<2x32xf32>
    %624 = arith.addf %622, %623 : vector<2x32xf32>
    %625 = math.tanh %624 : vector<2x32xf32>
    %626 = vector.extract_strided_slice %27 {offsets = [0, 0, 0], sizes = [1, 2, 32], strides = [1, 1, 1]} : vector<8x2x32xf32> to vector<1x2x32xf32>
    %627 = vector.shape_cast %626 : vector<1x2x32xf32> to vector<2x32xf32>
    %cst_146 = arith.constant dense<0.000000e+00> : vector<2x32xf32>
    %628 = tpu.matmul %602, %341, %cst_146 {dimension_numbers = #tpu.dot_dimension_numbers<[1], [0], [0], [1], [0, 0, 1, 1], [], []>} : vector<2x32xf32>, vector<32x32xf32>, vector<2x32xf32> -> vector<2x32xf32>
    %629 = arith.addf %627, %628 : vector<2x32xf32>
    %630 = arith.negf %629 : vector<2x32xf32>
    %631 = math.exp %630 : vector<2x32xf32>
    %cst_147 = arith.constant 1.000000e+00 : f32
    %632 = vector.broadcast %cst_147 : f32 to vector<2x32xf32>
    %633 = arith.addf %632, %631 : vector<2x32xf32>
    %634 = arith.divf %632, %633 : vector<2x32xf32>
    %635 = arith.mulf %620, %600 : vector<2x32xf32>
    %636 = arith.mulf %611, %625 : vector<2x32xf32>
    %637 = arith.addf %635, %636 : vector<2x32xf32>
    %638 = math.tanh %637 : vector<2x32xf32>
    %639 = arith.mulf %634, %638 : vector<2x32xf32>
    %640 = tpu.concatenate %74, %111, %148, %185, %222, %259, %296, %333 in 0 : vector<2x32xf32>, vector<2x32xf32>, vector<2x32xf32>, vector<2x32xf32>, vector<2x32xf32>, vector<2x32xf32>, vector<2x32xf32>, vector<2x32xf32> -> vector<16x32xf32>
    %641 = tpu.concatenate %639, %602, %565, %528, %491, %454, %417, %380 in 0 : vector<2x32xf32>, vector<2x32xf32>, vector<2x32xf32>, vector<2x32xf32>, vector<2x32xf32>, vector<2x32xf32>, vector<2x32xf32>, vector<2x32xf32> -> vector<16x32xf32>
    %c0_148 = arith.constant 0 : index
    %c0_149 = arith.constant 0 : index
    %642 = vector.load %arg7[%c0_148, %c0_149] : memref<64x128xf32, #tpu.memory_space<vmem>>, vector<64x128xf32>
    %c0_150 = arith.constant 0 : index
    %c0_151 = arith.constant 0 : index
    %643 = vector.load %arg10[%c0_150, %c0_151] : memref<64x128xf32, #tpu.memory_space<vmem>>, vector<64x128xf32>
    %644 = vector.extract_strided_slice %642 {offsets = [0, 0], sizes = [32, 128], strides = [1, 1]} : vector<64x128xf32> to vector<32x128xf32>
    %cst_152 = arith.constant dense<0.000000e+00> : vector<16x128xf32>
    %645 = tpu.matmul %640, %644, %cst_152 {dimension_numbers = #tpu.dot_dimension_numbers<[1], [0], [0], [1], [0, 0, 1, 1], [], []>} : vector<16x32xf32>, vector<32x128xf32>, vector<16x128xf32> -> vector<16x128xf32>
    %646 = vector.extract_strided_slice %642 {offsets = [32, 0], sizes = [32, 128], strides = [1, 1]} : vector<64x128xf32> to vector<32x128xf32>
    %cst_153 = arith.constant dense<0.000000e+00> : vector<16x128xf32>
    %647 = tpu.matmul %641, %646, %cst_153 {dimension_numbers = #tpu.dot_dimension_numbers<[1], [0], [0], [1], [0, 0, 1, 1], [], []>} : vector<16x32xf32>, vector<32x128xf32>, vector<16x128xf32> -> vector<16x128xf32>
    %648 = arith.addf %645, %647 : vector<16x128xf32>
    %c0_154 = arith.constant 0 : index
    %c0_155 = arith.constant 0 : index
    %649 = vector.load %arg9[%c0_154, %c0_155] : memref<1x128xf32, #tpu.memory_space<vmem>>, vector<1x128xf32>
    %650 = vector.broadcast %649 : vector<1x128xf32> to vector<16x128xf32>
    %651 = arith.addf %648, %650 : vector<16x128xf32>
    %652 = vector.extract_strided_slice %643 {offsets = [0, 0], sizes = [32, 128], strides = [1, 1]} : vector<64x128xf32> to vector<32x128xf32>
    %cst_156 = arith.constant dense<0.000000e+00> : vector<16x128xf32>
    %653 = tpu.matmul %640, %652, %cst_156 {dimension_numbers = #tpu.dot_dimension_numbers<[1], [0], [0], [1], [0, 0, 1, 1], [], []>} : vector<16x32xf32>, vector<32x128xf32>, vector<16x128xf32> -> vector<16x128xf32>
    %654 = vector.extract_strided_slice %643 {offsets = [32, 0], sizes = [32, 128], strides = [1, 1]} : vector<64x128xf32> to vector<32x128xf32>
    %cst_157 = arith.constant dense<0.000000e+00> : vector<16x128xf32>
    %655 = tpu.matmul %641, %654, %cst_157 {dimension_numbers = #tpu.dot_dimension_numbers<[1], [0], [0], [1], [0, 0, 1, 1], [], []>} : vector<16x32xf32>, vector<32x128xf32>, vector<16x128xf32> -> vector<16x128xf32>
    %656 = arith.addf %653, %655 : vector<16x128xf32>
    %c0_158 = arith.constant 0 : index
    %c0_159 = arith.constant 0 : index
    %657 = vector.load %arg12[%c0_158, %c0_159] : memref<1x128xf32, #tpu.memory_space<vmem>>, vector<1x128xf32>
    %658 = vector.broadcast %657 : vector<1x128xf32> to vector<16x128xf32>
    %659 = arith.addf %656, %658 : vector<16x128xf32>
    %660 = vector.extract_strided_slice %651 {offsets = [0, 0], sizes = [16, 32], strides = [1, 1]} : vector<16x128xf32> to vector<16x32xf32>
    %661 = vector.shape_cast %660 : vector<16x32xf32> to vector<8x2x32xf32>
    %662 = vector.extract_strided_slice %651 {offsets = [0, 32], sizes = [16, 32], strides = [1, 1]} : vector<16x128xf32> to vector<16x32xf32>
    %663 = vector.shape_cast %662 : vector<16x32xf32> to vector<8x2x32xf32>
    %664 = vector.extract_strided_slice %651 {offsets = [0, 64], sizes = [16, 32], strides = [1, 1]} : vector<16x128xf32> to vector<16x32xf32>
    %665 = vector.shape_cast %664 : vector<16x32xf32> to vector<8x2x32xf32>
    %666 = vector.extract_strided_slice %651 {offsets = [0, 96], sizes = [16, 32], strides = [1, 1]} : vector<16x128xf32> to vector<16x32xf32>
    %667 = vector.shape_cast %666 : vector<16x32xf32> to vector<8x2x32xf32>
    %668 = vector.extract_strided_slice %659 {offsets = [0, 0], sizes = [16, 32], strides = [1, 1]} : vector<16x128xf32> to vector<16x32xf32>
    %669 = vector.shape_cast %668 : vector<16x32xf32> to vector<8x2x32xf32>
    %670 = vector.extract_strided_slice %659 {offsets = [0, 32], sizes = [16, 32], strides = [1, 1]} : vector<16x128xf32> to vector<16x32xf32>
    %671 = vector.shape_cast %670 : vector<16x32xf32> to vector<8x2x32xf32>
    %672 = vector.extract_strided_slice %659 {offsets = [0, 64], sizes = [16, 32], strides = [1, 1]} : vector<16x128xf32> to vector<16x32xf32>
    %673 = vector.shape_cast %672 : vector<16x32xf32> to vector<8x2x32xf32>
    %674 = vector.extract_strided_slice %659 {offsets = [0, 96], sizes = [16, 32], strides = [1, 1]} : vector<16x128xf32> to vector<16x32xf32>
    %675 = vector.shape_cast %674 : vector<16x32xf32> to vector<8x2x32xf32>
    %c0_160 = arith.constant 0 : index
    %c0_161 = arith.constant 0 : index
    %c0_162 = arith.constant 0 : index
    %676 = vector.load %arg8[%c0_160, %c0_161, %c0_162] : memref<4x32x32xf32, #tpu.memory_space<vmem>>, vector<1x32x32xf32>
    %677 = vector.shape_cast %676 : vector<1x32x32xf32> to vector<32x32xf32>
    %c1_163 = arith.constant 1 : index
    %c0_164 = arith.constant 0 : index
    %c0_165 = arith.constant 0 : index
    %678 = vector.load %arg8[%c1_163, %c0_164, %c0_165] : memref<4x32x32xf32, #tpu.memory_space<vmem>>, vector<1x32x32xf32>
    %679 = vector.shape_cast %678 : vector<1x32x32xf32> to vector<32x32xf32>
    %c2_166 = arith.constant 2 : index
    %c0_167 = arith.constant 0 : index
    %c0_168 = arith.constant 0 : index
    %680 = vector.load %arg8[%c2_166, %c0_167, %c0_168] : memref<4x32x32xf32, #tpu.memory_space<vmem>>, vector<1x32x32xf32>
    %681 = vector.shape_cast %680 : vector<1x32x32xf32> to vector<32x32xf32>
    %c3_169 = arith.constant 3 : index
    %c0_170 = arith.constant 0 : index
    %c0_171 = arith.constant 0 : index
    %682 = vector.load %arg8[%c3_169, %c0_170, %c0_171] : memref<4x32x32xf32, #tpu.memory_space<vmem>>, vector<1x32x32xf32>
    %683 = vector.shape_cast %682 : vector<1x32x32xf32> to vector<32x32xf32>
    %cst_172 = arith.constant 0.000000e+00 : f32
    %684 = vector.broadcast %cst_172 : f32 to vector<2x32xf32>
    %cst_173 = arith.constant 0.000000e+00 : f32
    %685 = vector.broadcast %cst_173 : f32 to vector<2x32xf32>
    %686 = vector.extract_strided_slice %661 {offsets = [0, 0, 0], sizes = [1, 2, 32], strides = [1, 1, 1]} : vector<8x2x32xf32> to vector<1x2x32xf32>
    %687 = vector.shape_cast %686 : vector<1x2x32xf32> to vector<2x32xf32>
    %cst_174 = arith.constant dense<0.000000e+00> : vector<2x32xf32>
    %688 = tpu.matmul %684, %677, %cst_174 {dimension_numbers = #tpu.dot_dimension_numbers<[1], [0], [0], [1], [0, 0, 1, 1], [], []>} : vector<2x32xf32>, vector<32x32xf32>, vector<2x32xf32> -> vector<2x32xf32>
    %689 = arith.addf %687, %688 : vector<2x32xf32>
    %690 = arith.negf %689 : vector<2x32xf32>
    %691 = math.exp %690 : vector<2x32xf32>
    %cst_175 = arith.constant 1.000000e+00 : f32
    %692 = vector.broadcast %cst_175 : f32 to vector<2x32xf32>
    %693 = arith.addf %692, %691 : vector<2x32xf32>
    %694 = arith.divf %692, %693 : vector<2x32xf32>
    %695 = vector.extract_strided_slice %663 {offsets = [0, 0, 0], sizes = [1, 2, 32], strides = [1, 1, 1]} : vector<8x2x32xf32> to vector<1x2x32xf32>
    %696 = vector.shape_cast %695 : vector<1x2x32xf32> to vector<2x32xf32>
    %cst_176 = arith.constant dense<0.000000e+00> : vector<2x32xf32>
    %697 = tpu.matmul %684, %679, %cst_176 {dimension_numbers = #tpu.dot_dimension_numbers<[1], [0], [0], [1], [0, 0, 1, 1], [], []>} : vector<2x32xf32>, vector<32x32xf32>, vector<2x32xf32> -> vector<2x32xf32>
    %698 = arith.addf %696, %697 : vector<2x32xf32>
    %699 = arith.negf %698 : vector<2x32xf32>
    %700 = math.exp %699 : vector<2x32xf32>
    %cst_177 = arith.constant 1.000000e+00 : f32
    %701 = vector.broadcast %cst_177 : f32 to vector<2x32xf32>
    %702 = arith.addf %701, %700 : vector<2x32xf32>
    %703 = arith.divf %701, %702 : vector<2x32xf32>
    %704 = vector.extract_strided_slice %665 {offsets = [0, 0, 0], sizes = [1, 2, 32], strides = [1, 1, 1]} : vector<8x2x32xf32> to vector<1x2x32xf32>
    %705 = vector.shape_cast %704 : vector<1x2x32xf32> to vector<2x32xf32>
    %cst_178 = arith.constant dense<0.000000e+00> : vector<2x32xf32>
    %706 = tpu.matmul %684, %681, %cst_178 {dimension_numbers = #tpu.dot_dimension_numbers<[1], [0], [0], [1], [0, 0, 1, 1], [], []>} : vector<2x32xf32>, vector<32x32xf32>, vector<2x32xf32> -> vector<2x32xf32>
    %707 = arith.addf %705, %706 : vector<2x32xf32>
    %708 = math.tanh %707 : vector<2x32xf32>
    %709 = vector.extract_strided_slice %667 {offsets = [0, 0, 0], sizes = [1, 2, 32], strides = [1, 1, 1]} : vector<8x2x32xf32> to vector<1x2x32xf32>
    %710 = vector.shape_cast %709 : vector<1x2x32xf32> to vector<2x32xf32>
    %cst_179 = arith.constant dense<0.000000e+00> : vector<2x32xf32>
    %711 = tpu.matmul %684, %683, %cst_179 {dimension_numbers = #tpu.dot_dimension_numbers<[1], [0], [0], [1], [0, 0, 1, 1], [], []>} : vector<2x32xf32>, vector<32x32xf32>, vector<2x32xf32> -> vector<2x32xf32>
    %712 = arith.addf %710, %711 : vector<2x32xf32>
    %713 = arith.negf %712 : vector<2x32xf32>
    %714 = math.exp %713 : vector<2x32xf32>
    %cst_180 = arith.constant 1.000000e+00 : f32
    %715 = vector.broadcast %cst_180 : f32 to vector<2x32xf32>
    %716 = arith.addf %715, %714 : vector<2x32xf32>
    %717 = arith.divf %715, %716 : vector<2x32xf32>
    %718 = arith.mulf %703, %685 : vector<2x32xf32>
    %719 = arith.mulf %694, %708 : vector<2x32xf32>
    %720 = arith.addf %718, %719 : vector<2x32xf32>
    %721 = math.tanh %720 : vector<2x32xf32>
    %722 = arith.mulf %717, %721 : vector<2x32xf32>
    %723 = vector.extract_strided_slice %661 {offsets = [1, 0, 0], sizes = [1, 2, 32], strides = [1, 1, 1]} : vector<8x2x32xf32> to vector<1x2x32xf32>
    %724 = vector.shape_cast %723 : vector<1x2x32xf32> to vector<2x32xf32>
    %cst_181 = arith.constant dense<0.000000e+00> : vector<2x32xf32>
    %725 = tpu.matmul %722, %677, %cst_181 {dimension_numbers = #tpu.dot_dimension_numbers<[1], [0], [0], [1], [0, 0, 1, 1], [], []>} : vector<2x32xf32>, vector<32x32xf32>, vector<2x32xf32> -> vector<2x32xf32>
    %726 = arith.addf %724, %725 : vector<2x32xf32>
    %727 = arith.negf %726 : vector<2x32xf32>
    %728 = math.exp %727 : vector<2x32xf32>
    %cst_182 = arith.constant 1.000000e+00 : f32
    %729 = vector.broadcast %cst_182 : f32 to vector<2x32xf32>
    %730 = arith.addf %729, %728 : vector<2x32xf32>
    %731 = arith.divf %729, %730 : vector<2x32xf32>
    %732 = vector.extract_strided_slice %663 {offsets = [1, 0, 0], sizes = [1, 2, 32], strides = [1, 1, 1]} : vector<8x2x32xf32> to vector<1x2x32xf32>
    %733 = vector.shape_cast %732 : vector<1x2x32xf32> to vector<2x32xf32>
    %cst_183 = arith.constant dense<0.000000e+00> : vector<2x32xf32>
    %734 = tpu.matmul %722, %679, %cst_183 {dimension_numbers = #tpu.dot_dimension_numbers<[1], [0], [0], [1], [0, 0, 1, 1], [], []>} : vector<2x32xf32>, vector<32x32xf32>, vector<2x32xf32> -> vector<2x32xf32>
    %735 = arith.addf %733, %734 : vector<2x32xf32>
    %736 = arith.negf %735 : vector<2x32xf32>
    %737 = math.exp %736 : vector<2x32xf32>
    %cst_184 = arith.constant 1.000000e+00 : f32
    %738 = vector.broadcast %cst_184 : f32 to vector<2x32xf32>
    %739 = arith.addf %738, %737 : vector<2x32xf32>
    %740 = arith.divf %738, %739 : vector<2x32xf32>
    %741 = vector.extract_strided_slice %665 {offsets = [1, 0, 0], sizes = [1, 2, 32], strides = [1, 1, 1]} : vector<8x2x32xf32> to vector<1x2x32xf32>
    %742 = vector.shape_cast %741 : vector<1x2x32xf32> to vector<2x32xf32>
    %cst_185 = arith.constant dense<0.000000e+00> : vector<2x32xf32>
    %743 = tpu.matmul %722, %681, %cst_185 {dimension_numbers = #tpu.dot_dimension_numbers<[1], [0], [0], [1], [0, 0, 1, 1], [], []>} : vector<2x32xf32>, vector<32x32xf32>, vector<2x32xf32> -> vector<2x32xf32>
    %744 = arith.addf %742, %743 : vector<2x32xf32>
    %745 = math.tanh %744 : vector<2x32xf32>
    %746 = vector.extract_strided_slice %667 {offsets = [1, 0, 0], sizes = [1, 2, 32], strides = [1, 1, 1]} : vector<8x2x32xf32> to vector<1x2x32xf32>
    %747 = vector.shape_cast %746 : vector<1x2x32xf32> to vector<2x32xf32>
    %cst_186 = arith.constant dense<0.000000e+00> : vector<2x32xf32>
    %748 = tpu.matmul %722, %683, %cst_186 {dimension_numbers = #tpu.dot_dimension_numbers<[1], [0], [0], [1], [0, 0, 1, 1], [], []>} : vector<2x32xf32>, vector<32x32xf32>, vector<2x32xf32> -> vector<2x32xf32>
    %749 = arith.addf %747, %748 : vector<2x32xf32>
    %750 = arith.negf %749 : vector<2x32xf32>
    %751 = math.exp %750 : vector<2x32xf32>
    %cst_187 = arith.constant 1.000000e+00 : f32
    %752 = vector.broadcast %cst_187 : f32 to vector<2x32xf32>
    %753 = arith.addf %752, %751 : vector<2x32xf32>
    %754 = arith.divf %752, %753 : vector<2x32xf32>
    %755 = arith.mulf %740, %720 : vector<2x32xf32>
    %756 = arith.mulf %731, %745 : vector<2x32xf32>
    %757 = arith.addf %755, %756 : vector<2x32xf32>
    %758 = math.tanh %757 : vector<2x32xf32>
    %759 = arith.mulf %754, %758 : vector<2x32xf32>
    %760 = vector.extract_strided_slice %661 {offsets = [2, 0, 0], sizes = [1, 2, 32], strides = [1, 1, 1]} : vector<8x2x32xf32> to vector<1x2x32xf32>
    %761 = vector.shape_cast %760 : vector<1x2x32xf32> to vector<2x32xf32>
    %cst_188 = arith.constant dense<0.000000e+00> : vector<2x32xf32>
    %762 = tpu.matmul %759, %677, %cst_188 {dimension_numbers = #tpu.dot_dimension_numbers<[1], [0], [0], [1], [0, 0, 1, 1], [], []>} : vector<2x32xf32>, vector<32x32xf32>, vector<2x32xf32> -> vector<2x32xf32>
    %763 = arith.addf %761, %762 : vector<2x32xf32>
    %764 = arith.negf %763 : vector<2x32xf32>
    %765 = math.exp %764 : vector<2x32xf32>
    %cst_189 = arith.constant 1.000000e+00 : f32
    %766 = vector.broadcast %cst_189 : f32 to vector<2x32xf32>
    %767 = arith.addf %766, %765 : vector<2x32xf32>
    %768 = arith.divf %766, %767 : vector<2x32xf32>
    %769 = vector.extract_strided_slice %663 {offsets = [2, 0, 0], sizes = [1, 2, 32], strides = [1, 1, 1]} : vector<8x2x32xf32> to vector<1x2x32xf32>
    %770 = vector.shape_cast %769 : vector<1x2x32xf32> to vector<2x32xf32>
    %cst_190 = arith.constant dense<0.000000e+00> : vector<2x32xf32>
    %771 = tpu.matmul %759, %679, %cst_190 {dimension_numbers = #tpu.dot_dimension_numbers<[1], [0], [0], [1], [0, 0, 1, 1], [], []>} : vector<2x32xf32>, vector<32x32xf32>, vector<2x32xf32> -> vector<2x32xf32>
    %772 = arith.addf %770, %771 : vector<2x32xf32>
    %773 = arith.negf %772 : vector<2x32xf32>
    %774 = math.exp %773 : vector<2x32xf32>
    %cst_191 = arith.constant 1.000000e+00 : f32
    %775 = vector.broadcast %cst_191 : f32 to vector<2x32xf32>
    %776 = arith.addf %775, %774 : vector<2x32xf32>
    %777 = arith.divf %775, %776 : vector<2x32xf32>
    %778 = vector.extract_strided_slice %665 {offsets = [2, 0, 0], sizes = [1, 2, 32], strides = [1, 1, 1]} : vector<8x2x32xf32> to vector<1x2x32xf32>
    %779 = vector.shape_cast %778 : vector<1x2x32xf32> to vector<2x32xf32>
    %cst_192 = arith.constant dense<0.000000e+00> : vector<2x32xf32>
    %780 = tpu.matmul %759, %681, %cst_192 {dimension_numbers = #tpu.dot_dimension_numbers<[1], [0], [0], [1], [0, 0, 1, 1], [], []>} : vector<2x32xf32>, vector<32x32xf32>, vector<2x32xf32> -> vector<2x32xf32>
    %781 = arith.addf %779, %780 : vector<2x32xf32>
    %782 = math.tanh %781 : vector<2x32xf32>
    %783 = vector.extract_strided_slice %667 {offsets = [2, 0, 0], sizes = [1, 2, 32], strides = [1, 1, 1]} : vector<8x2x32xf32> to vector<1x2x32xf32>
    %784 = vector.shape_cast %783 : vector<1x2x32xf32> to vector<2x32xf32>
    %cst_193 = arith.constant dense<0.000000e+00> : vector<2x32xf32>
    %785 = tpu.matmul %759, %683, %cst_193 {dimension_numbers = #tpu.dot_dimension_numbers<[1], [0], [0], [1], [0, 0, 1, 1], [], []>} : vector<2x32xf32>, vector<32x32xf32>, vector<2x32xf32> -> vector<2x32xf32>
    %786 = arith.addf %784, %785 : vector<2x32xf32>
    %787 = arith.negf %786 : vector<2x32xf32>
    %788 = math.exp %787 : vector<2x32xf32>
    %cst_194 = arith.constant 1.000000e+00 : f32
    %789 = vector.broadcast %cst_194 : f32 to vector<2x32xf32>
    %790 = arith.addf %789, %788 : vector<2x32xf32>
    %791 = arith.divf %789, %790 : vector<2x32xf32>
    %792 = arith.mulf %777, %757 : vector<2x32xf32>
    %793 = arith.mulf %768, %782 : vector<2x32xf32>
    %794 = arith.addf %792, %793 : vector<2x32xf32>
    %795 = math.tanh %794 : vector<2x32xf32>
    %796 = arith.mulf %791, %795 : vector<2x32xf32>
    %797 = vector.extract_strided_slice %661 {offsets = [3, 0, 0], sizes = [1, 2, 32], strides = [1, 1, 1]} : vector<8x2x32xf32> to vector<1x2x32xf32>
    %798 = vector.shape_cast %797 : vector<1x2x32xf32> to vector<2x32xf32>
    %cst_195 = arith.constant dense<0.000000e+00> : vector<2x32xf32>
    %799 = tpu.matmul %796, %677, %cst_195 {dimension_numbers = #tpu.dot_dimension_numbers<[1], [0], [0], [1], [0, 0, 1, 1], [], []>} : vector<2x32xf32>, vector<32x32xf32>, vector<2x32xf32> -> vector<2x32xf32>
    %800 = arith.addf %798, %799 : vector<2x32xf32>
    %801 = arith.negf %800 : vector<2x32xf32>
    %802 = math.exp %801 : vector<2x32xf32>
    %cst_196 = arith.constant 1.000000e+00 : f32
    %803 = vector.broadcast %cst_196 : f32 to vector<2x32xf32>
    %804 = arith.addf %803, %802 : vector<2x32xf32>
    %805 = arith.divf %803, %804 : vector<2x32xf32>
    %806 = vector.extract_strided_slice %663 {offsets = [3, 0, 0], sizes = [1, 2, 32], strides = [1, 1, 1]} : vector<8x2x32xf32> to vector<1x2x32xf32>
    %807 = vector.shape_cast %806 : vector<1x2x32xf32> to vector<2x32xf32>
    %cst_197 = arith.constant dense<0.000000e+00> : vector<2x32xf32>
    %808 = tpu.matmul %796, %679, %cst_197 {dimension_numbers = #tpu.dot_dimension_numbers<[1], [0], [0], [1], [0, 0, 1, 1], [], []>} : vector<2x32xf32>, vector<32x32xf32>, vector<2x32xf32> -> vector<2x32xf32>
    %809 = arith.addf %807, %808 : vector<2x32xf32>
    %810 = arith.negf %809 : vector<2x32xf32>
    %811 = math.exp %810 : vector<2x32xf32>
    %cst_198 = arith.constant 1.000000e+00 : f32
    %812 = vector.broadcast %cst_198 : f32 to vector<2x32xf32>
    %813 = arith.addf %812, %811 : vector<2x32xf32>
    %814 = arith.divf %812, %813 : vector<2x32xf32>
    %815 = vector.extract_strided_slice %665 {offsets = [3, 0, 0], sizes = [1, 2, 32], strides = [1, 1, 1]} : vector<8x2x32xf32> to vector<1x2x32xf32>
    %816 = vector.shape_cast %815 : vector<1x2x32xf32> to vector<2x32xf32>
    %cst_199 = arith.constant dense<0.000000e+00> : vector<2x32xf32>
    %817 = tpu.matmul %796, %681, %cst_199 {dimension_numbers = #tpu.dot_dimension_numbers<[1], [0], [0], [1], [0, 0, 1, 1], [], []>} : vector<2x32xf32>, vector<32x32xf32>, vector<2x32xf32> -> vector<2x32xf32>
    %818 = arith.addf %816, %817 : vector<2x32xf32>
    %819 = math.tanh %818 : vector<2x32xf32>
    %820 = vector.extract_strided_slice %667 {offsets = [3, 0, 0], sizes = [1, 2, 32], strides = [1, 1, 1]} : vector<8x2x32xf32> to vector<1x2x32xf32>
    %821 = vector.shape_cast %820 : vector<1x2x32xf32> to vector<2x32xf32>
    %cst_200 = arith.constant dense<0.000000e+00> : vector<2x32xf32>
    %822 = tpu.matmul %796, %683, %cst_200 {dimension_numbers = #tpu.dot_dimension_numbers<[1], [0], [0], [1], [0, 0, 1, 1], [], []>} : vector<2x32xf32>, vector<32x32xf32>, vector<2x32xf32> -> vector<2x32xf32>
    %823 = arith.addf %821, %822 : vector<2x32xf32>
    %824 = arith.negf %823 : vector<2x32xf32>
    %825 = math.exp %824 : vector<2x32xf32>
    %cst_201 = arith.constant 1.000000e+00 : f32
    %826 = vector.broadcast %cst_201 : f32 to vector<2x32xf32>
    %827 = arith.addf %826, %825 : vector<2x32xf32>
    %828 = arith.divf %826, %827 : vector<2x32xf32>
    %829 = arith.mulf %814, %794 : vector<2x32xf32>
    %830 = arith.mulf %805, %819 : vector<2x32xf32>
    %831 = arith.addf %829, %830 : vector<2x32xf32>
    %832 = math.tanh %831 : vector<2x32xf32>
    %833 = arith.mulf %828, %832 : vector<2x32xf32>
    %834 = vector.extract_strided_slice %661 {offsets = [4, 0, 0], sizes = [1, 2, 32], strides = [1, 1, 1]} : vector<8x2x32xf32> to vector<1x2x32xf32>
    %835 = vector.shape_cast %834 : vector<1x2x32xf32> to vector<2x32xf32>
    %cst_202 = arith.constant dense<0.000000e+00> : vector<2x32xf32>
    %836 = tpu.matmul %833, %677, %cst_202 {dimension_numbers = #tpu.dot_dimension_numbers<[1], [0], [0], [1], [0, 0, 1, 1], [], []>} : vector<2x32xf32>, vector<32x32xf32>, vector<2x32xf32> -> vector<2x32xf32>
    %837 = arith.addf %835, %836 : vector<2x32xf32>
    %838 = arith.negf %837 : vector<2x32xf32>
    %839 = math.exp %838 : vector<2x32xf32>
    %cst_203 = arith.constant 1.000000e+00 : f32
    %840 = vector.broadcast %cst_203 : f32 to vector<2x32xf32>
    %841 = arith.addf %840, %839 : vector<2x32xf32>
    %842 = arith.divf %840, %841 : vector<2x32xf32>
    %843 = vector.extract_strided_slice %663 {offsets = [4, 0, 0], sizes = [1, 2, 32], strides = [1, 1, 1]} : vector<8x2x32xf32> to vector<1x2x32xf32>
    %844 = vector.shape_cast %843 : vector<1x2x32xf32> to vector<2x32xf32>
    %cst_204 = arith.constant dense<0.000000e+00> : vector<2x32xf32>
    %845 = tpu.matmul %833, %679, %cst_204 {dimension_numbers = #tpu.dot_dimension_numbers<[1], [0], [0], [1], [0, 0, 1, 1], [], []>} : vector<2x32xf32>, vector<32x32xf32>, vector<2x32xf32> -> vector<2x32xf32>
    %846 = arith.addf %844, %845 : vector<2x32xf32>
    %847 = arith.negf %846 : vector<2x32xf32>
    %848 = math.exp %847 : vector<2x32xf32>
    %cst_205 = arith.constant 1.000000e+00 : f32
    %849 = vector.broadcast %cst_205 : f32 to vector<2x32xf32>
    %850 = arith.addf %849, %848 : vector<2x32xf32>
    %851 = arith.divf %849, %850 : vector<2x32xf32>
    %852 = vector.extract_strided_slice %665 {offsets = [4, 0, 0], sizes = [1, 2, 32], strides = [1, 1, 1]} : vector<8x2x32xf32> to vector<1x2x32xf32>
    %853 = vector.shape_cast %852 : vector<1x2x32xf32> to vector<2x32xf32>
    %cst_206 = arith.constant dense<0.000000e+00> : vector<2x32xf32>
    %854 = tpu.matmul %833, %681, %cst_206 {dimension_numbers = #tpu.dot_dimension_numbers<[1], [0], [0], [1], [0, 0, 1, 1], [], []>} : vector<2x32xf32>, vector<32x32xf32>, vector<2x32xf32> -> vector<2x32xf32>
    %855 = arith.addf %853, %854 : vector<2x32xf32>
    %856 = math.tanh %855 : vector<2x32xf32>
    %857 = vector.extract_strided_slice %667 {offsets = [4, 0, 0], sizes = [1, 2, 32], strides = [1, 1, 1]} : vector<8x2x32xf32> to vector<1x2x32xf32>
    %858 = vector.shape_cast %857 : vector<1x2x32xf32> to vector<2x32xf32>
    %cst_207 = arith.constant dense<0.000000e+00> : vector<2x32xf32>
    %859 = tpu.matmul %833, %683, %cst_207 {dimension_numbers = #tpu.dot_dimension_numbers<[1], [0], [0], [1], [0, 0, 1, 1], [], []>} : vector<2x32xf32>, vector<32x32xf32>, vector<2x32xf32> -> vector<2x32xf32>
    %860 = arith.addf %858, %859 : vector<2x32xf32>
    %861 = arith.negf %860 : vector<2x32xf32>
    %862 = math.exp %861 : vector<2x32xf32>
    %cst_208 = arith.constant 1.000000e+00 : f32
    %863 = vector.broadcast %cst_208 : f32 to vector<2x32xf32>
    %864 = arith.addf %863, %862 : vector<2x32xf32>
    %865 = arith.divf %863, %864 : vector<2x32xf32>
    %866 = arith.mulf %851, %831 : vector<2x32xf32>
    %867 = arith.mulf %842, %856 : vector<2x32xf32>
    %868 = arith.addf %866, %867 : vector<2x32xf32>
    %869 = math.tanh %868 : vector<2x32xf32>
    %870 = arith.mulf %865, %869 : vector<2x32xf32>
    %871 = vector.extract_strided_slice %661 {offsets = [5, 0, 0], sizes = [1, 2, 32], strides = [1, 1, 1]} : vector<8x2x32xf32> to vector<1x2x32xf32>
    %872 = vector.shape_cast %871 : vector<1x2x32xf32> to vector<2x32xf32>
    %cst_209 = arith.constant dense<0.000000e+00> : vector<2x32xf32>
    %873 = tpu.matmul %870, %677, %cst_209 {dimension_numbers = #tpu.dot_dimension_numbers<[1], [0], [0], [1], [0, 0, 1, 1], [], []>} : vector<2x32xf32>, vector<32x32xf32>, vector<2x32xf32> -> vector<2x32xf32>
    %874 = arith.addf %872, %873 : vector<2x32xf32>
    %875 = arith.negf %874 : vector<2x32xf32>
    %876 = math.exp %875 : vector<2x32xf32>
    %cst_210 = arith.constant 1.000000e+00 : f32
    %877 = vector.broadcast %cst_210 : f32 to vector<2x32xf32>
    %878 = arith.addf %877, %876 : vector<2x32xf32>
    %879 = arith.divf %877, %878 : vector<2x32xf32>
    %880 = vector.extract_strided_slice %663 {offsets = [5, 0, 0], sizes = [1, 2, 32], strides = [1, 1, 1]} : vector<8x2x32xf32> to vector<1x2x32xf32>
    %881 = vector.shape_cast %880 : vector<1x2x32xf32> to vector<2x32xf32>
    %cst_211 = arith.constant dense<0.000000e+00> : vector<2x32xf32>
    %882 = tpu.matmul %870, %679, %cst_211 {dimension_numbers = #tpu.dot_dimension_numbers<[1], [0], [0], [1], [0, 0, 1, 1], [], []>} : vector<2x32xf32>, vector<32x32xf32>, vector<2x32xf32> -> vector<2x32xf32>
    %883 = arith.addf %881, %882 : vector<2x32xf32>
    %884 = arith.negf %883 : vector<2x32xf32>
    %885 = math.exp %884 : vector<2x32xf32>
    %cst_212 = arith.constant 1.000000e+00 : f32
    %886 = vector.broadcast %cst_212 : f32 to vector<2x32xf32>
    %887 = arith.addf %886, %885 : vector<2x32xf32>
    %888 = arith.divf %886, %887 : vector<2x32xf32>
    %889 = vector.extract_strided_slice %665 {offsets = [5, 0, 0], sizes = [1, 2, 32], strides = [1, 1, 1]} : vector<8x2x32xf32> to vector<1x2x32xf32>
    %890 = vector.shape_cast %889 : vector<1x2x32xf32> to vector<2x32xf32>
    %cst_213 = arith.constant dense<0.000000e+00> : vector<2x32xf32>
    %891 = tpu.matmul %870, %681, %cst_213 {dimension_numbers = #tpu.dot_dimension_numbers<[1], [0], [0], [1], [0, 0, 1, 1], [], []>} : vector<2x32xf32>, vector<32x32xf32>, vector<2x32xf32> -> vector<2x32xf32>
    %892 = arith.addf %890, %891 : vector<2x32xf32>
    %893 = math.tanh %892 : vector<2x32xf32>
    %894 = vector.extract_strided_slice %667 {offsets = [5, 0, 0], sizes = [1, 2, 32], strides = [1, 1, 1]} : vector<8x2x32xf32> to vector<1x2x32xf32>
    %895 = vector.shape_cast %894 : vector<1x2x32xf32> to vector<2x32xf32>
    %cst_214 = arith.constant dense<0.000000e+00> : vector<2x32xf32>
    %896 = tpu.matmul %870, %683, %cst_214 {dimension_numbers = #tpu.dot_dimension_numbers<[1], [0], [0], [1], [0, 0, 1, 1], [], []>} : vector<2x32xf32>, vector<32x32xf32>, vector<2x32xf32> -> vector<2x32xf32>
    %897 = arith.addf %895, %896 : vector<2x32xf32>
    %898 = arith.negf %897 : vector<2x32xf32>
    %899 = math.exp %898 : vector<2x32xf32>
    %cst_215 = arith.constant 1.000000e+00 : f32
    %900 = vector.broadcast %cst_215 : f32 to vector<2x32xf32>
    %901 = arith.addf %900, %899 : vector<2x32xf32>
    %902 = arith.divf %900, %901 : vector<2x32xf32>
    %903 = arith.mulf %888, %868 : vector<2x32xf32>
    %904 = arith.mulf %879, %893 : vector<2x32xf32>
    %905 = arith.addf %903, %904 : vector<2x32xf32>
    %906 = math.tanh %905 : vector<2x32xf32>
    %907 = arith.mulf %902, %906 : vector<2x32xf32>
    %908 = vector.extract_strided_slice %661 {offsets = [6, 0, 0], sizes = [1, 2, 32], strides = [1, 1, 1]} : vector<8x2x32xf32> to vector<1x2x32xf32>
    %909 = vector.shape_cast %908 : vector<1x2x32xf32> to vector<2x32xf32>
    %cst_216 = arith.constant dense<0.000000e+00> : vector<2x32xf32>
    %910 = tpu.matmul %907, %677, %cst_216 {dimension_numbers = #tpu.dot_dimension_numbers<[1], [0], [0], [1], [0, 0, 1, 1], [], []>} : vector<2x32xf32>, vector<32x32xf32>, vector<2x32xf32> -> vector<2x32xf32>
    %911 = arith.addf %909, %910 : vector<2x32xf32>
    %912 = arith.negf %911 : vector<2x32xf32>
    %913 = math.exp %912 : vector<2x32xf32>
    %cst_217 = arith.constant 1.000000e+00 : f32
    %914 = vector.broadcast %cst_217 : f32 to vector<2x32xf32>
    %915 = arith.addf %914, %913 : vector<2x32xf32>
    %916 = arith.divf %914, %915 : vector<2x32xf32>
    %917 = vector.extract_strided_slice %663 {offsets = [6, 0, 0], sizes = [1, 2, 32], strides = [1, 1, 1]} : vector<8x2x32xf32> to vector<1x2x32xf32>
    %918 = vector.shape_cast %917 : vector<1x2x32xf32> to vector<2x32xf32>
    %cst_218 = arith.constant dense<0.000000e+00> : vector<2x32xf32>
    %919 = tpu.matmul %907, %679, %cst_218 {dimension_numbers = #tpu.dot_dimension_numbers<[1], [0], [0], [1], [0, 0, 1, 1], [], []>} : vector<2x32xf32>, vector<32x32xf32>, vector<2x32xf32> -> vector<2x32xf32>
    %920 = arith.addf %918, %919 : vector<2x32xf32>
    %921 = arith.negf %920 : vector<2x32xf32>
    %922 = math.exp %921 : vector<2x32xf32>
    %cst_219 = arith.constant 1.000000e+00 : f32
    %923 = vector.broadcast %cst_219 : f32 to vector<2x32xf32>
    %924 = arith.addf %923, %922 : vector<2x32xf32>
    %925 = arith.divf %923, %924 : vector<2x32xf32>
    %926 = vector.extract_strided_slice %665 {offsets = [6, 0, 0], sizes = [1, 2, 32], strides = [1, 1, 1]} : vector<8x2x32xf32> to vector<1x2x32xf32>
    %927 = vector.shape_cast %926 : vector<1x2x32xf32> to vector<2x32xf32>
    %cst_220 = arith.constant dense<0.000000e+00> : vector<2x32xf32>
    %928 = tpu.matmul %907, %681, %cst_220 {dimension_numbers = #tpu.dot_dimension_numbers<[1], [0], [0], [1], [0, 0, 1, 1], [], []>} : vector<2x32xf32>, vector<32x32xf32>, vector<2x32xf32> -> vector<2x32xf32>
    %929 = arith.addf %927, %928 : vector<2x32xf32>
    %930 = math.tanh %929 : vector<2x32xf32>
    %931 = vector.extract_strided_slice %667 {offsets = [6, 0, 0], sizes = [1, 2, 32], strides = [1, 1, 1]} : vector<8x2x32xf32> to vector<1x2x32xf32>
    %932 = vector.shape_cast %931 : vector<1x2x32xf32> to vector<2x32xf32>
    %cst_221 = arith.constant dense<0.000000e+00> : vector<2x32xf32>
    %933 = tpu.matmul %907, %683, %cst_221 {dimension_numbers = #tpu.dot_dimension_numbers<[1], [0], [0], [1], [0, 0, 1, 1], [], []>} : vector<2x32xf32>, vector<32x32xf32>, vector<2x32xf32> -> vector<2x32xf32>
    %934 = arith.addf %932, %933 : vector<2x32xf32>
    %935 = arith.negf %934 : vector<2x32xf32>
    %936 = math.exp %935 : vector<2x32xf32>
    %cst_222 = arith.constant 1.000000e+00 : f32
    %937 = vector.broadcast %cst_222 : f32 to vector<2x32xf32>
    %938 = arith.addf %937, %936 : vector<2x32xf32>
    %939 = arith.divf %937, %938 : vector<2x32xf32>
    %940 = arith.mulf %925, %905 : vector<2x32xf32>
    %941 = arith.mulf %916, %930 : vector<2x32xf32>
    %942 = arith.addf %940, %941 : vector<2x32xf32>
    %943 = math.tanh %942 : vector<2x32xf32>
    %944 = arith.mulf %939, %943 : vector<2x32xf32>
    %945 = vector.extract_strided_slice %661 {offsets = [7, 0, 0], sizes = [1, 2, 32], strides = [1, 1, 1]} : vector<8x2x32xf32> to vector<1x2x32xf32>
    %946 = vector.shape_cast %945 : vector<1x2x32xf32> to vector<2x32xf32>
    %cst_223 = arith.constant dense<0.000000e+00> : vector<2x32xf32>
    %947 = tpu.matmul %944, %677, %cst_223 {dimension_numbers = #tpu.dot_dimension_numbers<[1], [0], [0], [1], [0, 0, 1, 1], [], []>} : vector<2x32xf32>, vector<32x32xf32>, vector<2x32xf32> -> vector<2x32xf32>
    %948 = arith.addf %946, %947 : vector<2x32xf32>
    %949 = arith.negf %948 : vector<2x32xf32>
    %950 = math.exp %949 : vector<2x32xf32>
    %cst_224 = arith.constant 1.000000e+00 : f32
    %951 = vector.broadcast %cst_224 : f32 to vector<2x32xf32>
    %952 = arith.addf %951, %950 : vector<2x32xf32>
    %953 = arith.divf %951, %952 : vector<2x32xf32>
    %954 = vector.extract_strided_slice %663 {offsets = [7, 0, 0], sizes = [1, 2, 32], strides = [1, 1, 1]} : vector<8x2x32xf32> to vector<1x2x32xf32>
    %955 = vector.shape_cast %954 : vector<1x2x32xf32> to vector<2x32xf32>
    %cst_225 = arith.constant dense<0.000000e+00> : vector<2x32xf32>
    %956 = tpu.matmul %944, %679, %cst_225 {dimension_numbers = #tpu.dot_dimension_numbers<[1], [0], [0], [1], [0, 0, 1, 1], [], []>} : vector<2x32xf32>, vector<32x32xf32>, vector<2x32xf32> -> vector<2x32xf32>
    %957 = arith.addf %955, %956 : vector<2x32xf32>
    %958 = arith.negf %957 : vector<2x32xf32>
    %959 = math.exp %958 : vector<2x32xf32>
    %cst_226 = arith.constant 1.000000e+00 : f32
    %960 = vector.broadcast %cst_226 : f32 to vector<2x32xf32>
    %961 = arith.addf %960, %959 : vector<2x32xf32>
    %962 = arith.divf %960, %961 : vector<2x32xf32>
    %963 = vector.extract_strided_slice %665 {offsets = [7, 0, 0], sizes = [1, 2, 32], strides = [1, 1, 1]} : vector<8x2x32xf32> to vector<1x2x32xf32>
    %964 = vector.shape_cast %963 : vector<1x2x32xf32> to vector<2x32xf32>
    %cst_227 = arith.constant dense<0.000000e+00> : vector<2x32xf32>
    %965 = tpu.matmul %944, %681, %cst_227 {dimension_numbers = #tpu.dot_dimension_numbers<[1], [0], [0], [1], [0, 0, 1, 1], [], []>} : vector<2x32xf32>, vector<32x32xf32>, vector<2x32xf32> -> vector<2x32xf32>
    %966 = arith.addf %964, %965 : vector<2x32xf32>
    %967 = math.tanh %966 : vector<2x32xf32>
    %968 = vector.extract_strided_slice %667 {offsets = [7, 0, 0], sizes = [1, 2, 32], strides = [1, 1, 1]} : vector<8x2x32xf32> to vector<1x2x32xf32>
    %969 = vector.shape_cast %968 : vector<1x2x32xf32> to vector<2x32xf32>
    %cst_228 = arith.constant dense<0.000000e+00> : vector<2x32xf32>
    %970 = tpu.matmul %944, %683, %cst_228 {dimension_numbers = #tpu.dot_dimension_numbers<[1], [0], [0], [1], [0, 0, 1, 1], [], []>} : vector<2x32xf32>, vector<32x32xf32>, vector<2x32xf32> -> vector<2x32xf32>
    %971 = arith.addf %969, %970 : vector<2x32xf32>
    %972 = arith.negf %971 : vector<2x32xf32>
    %973 = math.exp %972 : vector<2x32xf32>
    %cst_229 = arith.constant 1.000000e+00 : f32
    %974 = vector.broadcast %cst_229 : f32 to vector<2x32xf32>
    %975 = arith.addf %974, %973 : vector<2x32xf32>
    %976 = arith.divf %974, %975 : vector<2x32xf32>
    %977 = arith.mulf %962, %942 : vector<2x32xf32>
    %978 = arith.mulf %953, %967 : vector<2x32xf32>
    %979 = arith.addf %977, %978 : vector<2x32xf32>
    %980 = math.tanh %979 : vector<2x32xf32>
    %981 = arith.mulf %976, %980 : vector<2x32xf32>
    %c0_230 = arith.constant 0 : index
    %c0_231 = arith.constant 0 : index
    %c0_232 = arith.constant 0 : index
    %982 = vector.load %arg11[%c0_230, %c0_231, %c0_232] : memref<4x32x32xf32, #tpu.memory_space<vmem>>, vector<1x32x32xf32>
    %983 = vector.shape_cast %982 : vector<1x32x32xf32> to vector<32x32xf32>
    %c1_233 = arith.constant 1 : index
    %c0_234 = arith.constant 0 : index
    %c0_235 = arith.constant 0 : index
    %984 = vector.load %arg11[%c1_233, %c0_234, %c0_235] : memref<4x32x32xf32, #tpu.memory_space<vmem>>, vector<1x32x32xf32>
    %985 = vector.shape_cast %984 : vector<1x32x32xf32> to vector<32x32xf32>
    %c2_236 = arith.constant 2 : index
    %c0_237 = arith.constant 0 : index
    %c0_238 = arith.constant 0 : index
    %986 = vector.load %arg11[%c2_236, %c0_237, %c0_238] : memref<4x32x32xf32, #tpu.memory_space<vmem>>, vector<1x32x32xf32>
    %987 = vector.shape_cast %986 : vector<1x32x32xf32> to vector<32x32xf32>
    %c3_239 = arith.constant 3 : index
    %c0_240 = arith.constant 0 : index
    %c0_241 = arith.constant 0 : index
    %988 = vector.load %arg11[%c3_239, %c0_240, %c0_241] : memref<4x32x32xf32, #tpu.memory_space<vmem>>, vector<1x32x32xf32>
    %989 = vector.shape_cast %988 : vector<1x32x32xf32> to vector<32x32xf32>
    %cst_242 = arith.constant 0.000000e+00 : f32
    %990 = vector.broadcast %cst_242 : f32 to vector<2x32xf32>
    %cst_243 = arith.constant 0.000000e+00 : f32
    %991 = vector.broadcast %cst_243 : f32 to vector<2x32xf32>
    %992 = vector.extract_strided_slice %669 {offsets = [7, 0, 0], sizes = [1, 2, 32], strides = [1, 1, 1]} : vector<8x2x32xf32> to vector<1x2x32xf32>
    %993 = vector.shape_cast %992 : vector<1x2x32xf32> to vector<2x32xf32>
    %cst_244 = arith.constant dense<0.000000e+00> : vector<2x32xf32>
    %994 = tpu.matmul %990, %983, %cst_244 {dimension_numbers = #tpu.dot_dimension_numbers<[1], [0], [0], [1], [0, 0, 1, 1], [], []>} : vector<2x32xf32>, vector<32x32xf32>, vector<2x32xf32> -> vector<2x32xf32>
    %995 = arith.addf %993, %994 : vector<2x32xf32>
    %996 = arith.negf %995 : vector<2x32xf32>
    %997 = math.exp %996 : vector<2x32xf32>
    %cst_245 = arith.constant 1.000000e+00 : f32
    %998 = vector.broadcast %cst_245 : f32 to vector<2x32xf32>
    %999 = arith.addf %998, %997 : vector<2x32xf32>
    %1000 = arith.divf %998, %999 : vector<2x32xf32>
    %1001 = vector.extract_strided_slice %671 {offsets = [7, 0, 0], sizes = [1, 2, 32], strides = [1, 1, 1]} : vector<8x2x32xf32> to vector<1x2x32xf32>
    %1002 = vector.shape_cast %1001 : vector<1x2x32xf32> to vector<2x32xf32>
    %cst_246 = arith.constant dense<0.000000e+00> : vector<2x32xf32>
    %1003 = tpu.matmul %990, %985, %cst_246 {dimension_numbers = #tpu.dot_dimension_numbers<[1], [0], [0], [1], [0, 0, 1, 1], [], []>} : vector<2x32xf32>, vector<32x32xf32>, vector<2x32xf32> -> vector<2x32xf32>
    %1004 = arith.addf %1002, %1003 : vector<2x32xf32>
    %1005 = arith.negf %1004 : vector<2x32xf32>
    %1006 = math.exp %1005 : vector<2x32xf32>
    %cst_247 = arith.constant 1.000000e+00 : f32
    %1007 = vector.broadcast %cst_247 : f32 to vector<2x32xf32>
    %1008 = arith.addf %1007, %1006 : vector<2x32xf32>
    %1009 = arith.divf %1007, %1008 : vector<2x32xf32>
    %1010 = vector.extract_strided_slice %673 {offsets = [7, 0, 0], sizes = [1, 2, 32], strides = [1, 1, 1]} : vector<8x2x32xf32> to vector<1x2x32xf32>
    %1011 = vector.shape_cast %1010 : vector<1x2x32xf32> to vector<2x32xf32>
    %cst_248 = arith.constant dense<0.000000e+00> : vector<2x32xf32>
    %1012 = tpu.matmul %990, %987, %cst_248 {dimension_numbers = #tpu.dot_dimension_numbers<[1], [0], [0], [1], [0, 0, 1, 1], [], []>} : vector<2x32xf32>, vector<32x32xf32>, vector<2x32xf32> -> vector<2x32xf32>
    %1013 = arith.addf %1011, %1012 : vector<2x32xf32>
    %1014 = math.tanh %1013 : vector<2x32xf32>
    %1015 = vector.extract_strided_slice %675 {offsets = [7, 0, 0], sizes = [1, 2, 32], strides = [1, 1, 1]} : vector<8x2x32xf32> to vector<1x2x32xf32>
    %1016 = vector.shape_cast %1015 : vector<1x2x32xf32> to vector<2x32xf32>
    %cst_249 = arith.constant dense<0.000000e+00> : vector<2x32xf32>
    %1017 = tpu.matmul %990, %989, %cst_249 {dimension_numbers = #tpu.dot_dimension_numbers<[1], [0], [0], [1], [0, 0, 1, 1], [], []>} : vector<2x32xf32>, vector<32x32xf32>, vector<2x32xf32> -> vector<2x32xf32>
    %1018 = arith.addf %1016, %1017 : vector<2x32xf32>
    %1019 = arith.negf %1018 : vector<2x32xf32>
    %1020 = math.exp %1019 : vector<2x32xf32>
    %cst_250 = arith.constant 1.000000e+00 : f32
    %1021 = vector.broadcast %cst_250 : f32 to vector<2x32xf32>
    %1022 = arith.addf %1021, %1020 : vector<2x32xf32>
    %1023 = arith.divf %1021, %1022 : vector<2x32xf32>
    %1024 = arith.mulf %1009, %991 : vector<2x32xf32>
    %1025 = arith.mulf %1000, %1014 : vector<2x32xf32>
    %1026 = arith.addf %1024, %1025 : vector<2x32xf32>
    %1027 = math.tanh %1026 : vector<2x32xf32>
    %1028 = arith.mulf %1023, %1027 : vector<2x32xf32>
    %1029 = vector.extract_strided_slice %669 {offsets = [6, 0, 0], sizes = [1, 2, 32], strides = [1, 1, 1]} : vector<8x2x32xf32> to vector<1x2x32xf32>
    %1030 = vector.shape_cast %1029 : vector<1x2x32xf32> to vector<2x32xf32>
    %cst_251 = arith.constant dense<0.000000e+00> : vector<2x32xf32>
    %1031 = tpu.matmul %1028, %983, %cst_251 {dimension_numbers = #tpu.dot_dimension_numbers<[1], [0], [0], [1], [0, 0, 1, 1], [], []>} : vector<2x32xf32>, vector<32x32xf32>, vector<2x32xf32> -> vector<2x32xf32>
    %1032 = arith.addf %1030, %1031 : vector<2x32xf32>
    %1033 = arith.negf %1032 : vector<2x32xf32>
    %1034 = math.exp %1033 : vector<2x32xf32>
    %cst_252 = arith.constant 1.000000e+00 : f32
    %1035 = vector.broadcast %cst_252 : f32 to vector<2x32xf32>
    %1036 = arith.addf %1035, %1034 : vector<2x32xf32>
    %1037 = arith.divf %1035, %1036 : vector<2x32xf32>
    %1038 = vector.extract_strided_slice %671 {offsets = [6, 0, 0], sizes = [1, 2, 32], strides = [1, 1, 1]} : vector<8x2x32xf32> to vector<1x2x32xf32>
    %1039 = vector.shape_cast %1038 : vector<1x2x32xf32> to vector<2x32xf32>
    %cst_253 = arith.constant dense<0.000000e+00> : vector<2x32xf32>
    %1040 = tpu.matmul %1028, %985, %cst_253 {dimension_numbers = #tpu.dot_dimension_numbers<[1], [0], [0], [1], [0, 0, 1, 1], [], []>} : vector<2x32xf32>, vector<32x32xf32>, vector<2x32xf32> -> vector<2x32xf32>
    %1041 = arith.addf %1039, %1040 : vector<2x32xf32>
    %1042 = arith.negf %1041 : vector<2x32xf32>
    %1043 = math.exp %1042 : vector<2x32xf32>
    %cst_254 = arith.constant 1.000000e+00 : f32
    %1044 = vector.broadcast %cst_254 : f32 to vector<2x32xf32>
    %1045 = arith.addf %1044, %1043 : vector<2x32xf32>
    %1046 = arith.divf %1044, %1045 : vector<2x32xf32>
    %1047 = vector.extract_strided_slice %673 {offsets = [6, 0, 0], sizes = [1, 2, 32], strides = [1, 1, 1]} : vector<8x2x32xf32> to vector<1x2x32xf32>
    %1048 = vector.shape_cast %1047 : vector<1x2x32xf32> to vector<2x32xf32>
    %cst_255 = arith.constant dense<0.000000e+00> : vector<2x32xf32>
    %1049 = tpu.matmul %1028, %987, %cst_255 {dimension_numbers = #tpu.dot_dimension_numbers<[1], [0], [0], [1], [0, 0, 1, 1], [], []>} : vector<2x32xf32>, vector<32x32xf32>, vector<2x32xf32> -> vector<2x32xf32>
    %1050 = arith.addf %1048, %1049 : vector<2x32xf32>
    %1051 = math.tanh %1050 : vector<2x32xf32>
    %1052 = vector.extract_strided_slice %675 {offsets = [6, 0, 0], sizes = [1, 2, 32], strides = [1, 1, 1]} : vector<8x2x32xf32> to vector<1x2x32xf32>
    %1053 = vector.shape_cast %1052 : vector<1x2x32xf32> to vector<2x32xf32>
    %cst_256 = arith.constant dense<0.000000e+00> : vector<2x32xf32>
    %1054 = tpu.matmul %1028, %989, %cst_256 {dimension_numbers = #tpu.dot_dimension_numbers<[1], [0], [0], [1], [0, 0, 1, 1], [], []>} : vector<2x32xf32>, vector<32x32xf32>, vector<2x32xf32> -> vector<2x32xf32>
    %1055 = arith.addf %1053, %1054 : vector<2x32xf32>
    %1056 = arith.negf %1055 : vector<2x32xf32>
    %1057 = math.exp %1056 : vector<2x32xf32>
    %cst_257 = arith.constant 1.000000e+00 : f32
    %1058 = vector.broadcast %cst_257 : f32 to vector<2x32xf32>
    %1059 = arith.addf %1058, %1057 : vector<2x32xf32>
    %1060 = arith.divf %1058, %1059 : vector<2x32xf32>
    %1061 = arith.mulf %1046, %1026 : vector<2x32xf32>
    %1062 = arith.mulf %1037, %1051 : vector<2x32xf32>
    %1063 = arith.addf %1061, %1062 : vector<2x32xf32>
    %1064 = math.tanh %1063 : vector<2x32xf32>
    %1065 = arith.mulf %1060, %1064 : vector<2x32xf32>
    %1066 = vector.extract_strided_slice %669 {offsets = [5, 0, 0], sizes = [1, 2, 32], strides = [1, 1, 1]} : vector<8x2x32xf32> to vector<1x2x32xf32>
    %1067 = vector.shape_cast %1066 : vector<1x2x32xf32> to vector<2x32xf32>
    %cst_258 = arith.constant dense<0.000000e+00> : vector<2x32xf32>
    %1068 = tpu.matmul %1065, %983, %cst_258 {dimension_numbers = #tpu.dot_dimension_numbers<[1], [0], [0], [1], [0, 0, 1, 1], [], []>} : vector<2x32xf32>, vector<32x32xf32>, vector<2x32xf32> -> vector<2x32xf32>
    %1069 = arith.addf %1067, %1068 : vector<2x32xf32>
    %1070 = arith.negf %1069 : vector<2x32xf32>
    %1071 = math.exp %1070 : vector<2x32xf32>
    %cst_259 = arith.constant 1.000000e+00 : f32
    %1072 = vector.broadcast %cst_259 : f32 to vector<2x32xf32>
    %1073 = arith.addf %1072, %1071 : vector<2x32xf32>
    %1074 = arith.divf %1072, %1073 : vector<2x32xf32>
    %1075 = vector.extract_strided_slice %671 {offsets = [5, 0, 0], sizes = [1, 2, 32], strides = [1, 1, 1]} : vector<8x2x32xf32> to vector<1x2x32xf32>
    %1076 = vector.shape_cast %1075 : vector<1x2x32xf32> to vector<2x32xf32>
    %cst_260 = arith.constant dense<0.000000e+00> : vector<2x32xf32>
    %1077 = tpu.matmul %1065, %985, %cst_260 {dimension_numbers = #tpu.dot_dimension_numbers<[1], [0], [0], [1], [0, 0, 1, 1], [], []>} : vector<2x32xf32>, vector<32x32xf32>, vector<2x32xf32> -> vector<2x32xf32>
    %1078 = arith.addf %1076, %1077 : vector<2x32xf32>
    %1079 = arith.negf %1078 : vector<2x32xf32>
    %1080 = math.exp %1079 : vector<2x32xf32>
    %cst_261 = arith.constant 1.000000e+00 : f32
    %1081 = vector.broadcast %cst_261 : f32 to vector<2x32xf32>
    %1082 = arith.addf %1081, %1080 : vector<2x32xf32>
    %1083 = arith.divf %1081, %1082 : vector<2x32xf32>
    %1084 = vector.extract_strided_slice %673 {offsets = [5, 0, 0], sizes = [1, 2, 32], strides = [1, 1, 1]} : vector<8x2x32xf32> to vector<1x2x32xf32>
    %1085 = vector.shape_cast %1084 : vector<1x2x32xf32> to vector<2x32xf32>
    %cst_262 = arith.constant dense<0.000000e+00> : vector<2x32xf32>
    %1086 = tpu.matmul %1065, %987, %cst_262 {dimension_numbers = #tpu.dot_dimension_numbers<[1], [0], [0], [1], [0, 0, 1, 1], [], []>} : vector<2x32xf32>, vector<32x32xf32>, vector<2x32xf32> -> vector<2x32xf32>
    %1087 = arith.addf %1085, %1086 : vector<2x32xf32>
    %1088 = math.tanh %1087 : vector<2x32xf32>
    %1089 = vector.extract_strided_slice %675 {offsets = [5, 0, 0], sizes = [1, 2, 32], strides = [1, 1, 1]} : vector<8x2x32xf32> to vector<1x2x32xf32>
    %1090 = vector.shape_cast %1089 : vector<1x2x32xf32> to vector<2x32xf32>
    %cst_263 = arith.constant dense<0.000000e+00> : vector<2x32xf32>
    %1091 = tpu.matmul %1065, %989, %cst_263 {dimension_numbers = #tpu.dot_dimension_numbers<[1], [0], [0], [1], [0, 0, 1, 1], [], []>} : vector<2x32xf32>, vector<32x32xf32>, vector<2x32xf32> -> vector<2x32xf32>
    %1092 = arith.addf %1090, %1091 : vector<2x32xf32>
    %1093 = arith.negf %1092 : vector<2x32xf32>
    %1094 = math.exp %1093 : vector<2x32xf32>
    %cst_264 = arith.constant 1.000000e+00 : f32
    %1095 = vector.broadcast %cst_264 : f32 to vector<2x32xf32>
    %1096 = arith.addf %1095, %1094 : vector<2x32xf32>
    %1097 = arith.divf %1095, %1096 : vector<2x32xf32>
    %1098 = arith.mulf %1083, %1063 : vector<2x32xf32>
    %1099 = arith.mulf %1074, %1088 : vector<2x32xf32>
    %1100 = arith.addf %1098, %1099 : vector<2x32xf32>
    %1101 = math.tanh %1100 : vector<2x32xf32>
    %1102 = arith.mulf %1097, %1101 : vector<2x32xf32>
    %1103 = vector.extract_strided_slice %669 {offsets = [4, 0, 0], sizes = [1, 2, 32], strides = [1, 1, 1]} : vector<8x2x32xf32> to vector<1x2x32xf32>
    %1104 = vector.shape_cast %1103 : vector<1x2x32xf32> to vector<2x32xf32>
    %cst_265 = arith.constant dense<0.000000e+00> : vector<2x32xf32>
    %1105 = tpu.matmul %1102, %983, %cst_265 {dimension_numbers = #tpu.dot_dimension_numbers<[1], [0], [0], [1], [0, 0, 1, 1], [], []>} : vector<2x32xf32>, vector<32x32xf32>, vector<2x32xf32> -> vector<2x32xf32>
    %1106 = arith.addf %1104, %1105 : vector<2x32xf32>
    %1107 = arith.negf %1106 : vector<2x32xf32>
    %1108 = math.exp %1107 : vector<2x32xf32>
    %cst_266 = arith.constant 1.000000e+00 : f32
    %1109 = vector.broadcast %cst_266 : f32 to vector<2x32xf32>
    %1110 = arith.addf %1109, %1108 : vector<2x32xf32>
    %1111 = arith.divf %1109, %1110 : vector<2x32xf32>
    %1112 = vector.extract_strided_slice %671 {offsets = [4, 0, 0], sizes = [1, 2, 32], strides = [1, 1, 1]} : vector<8x2x32xf32> to vector<1x2x32xf32>
    %1113 = vector.shape_cast %1112 : vector<1x2x32xf32> to vector<2x32xf32>
    %cst_267 = arith.constant dense<0.000000e+00> : vector<2x32xf32>
    %1114 = tpu.matmul %1102, %985, %cst_267 {dimension_numbers = #tpu.dot_dimension_numbers<[1], [0], [0], [1], [0, 0, 1, 1], [], []>} : vector<2x32xf32>, vector<32x32xf32>, vector<2x32xf32> -> vector<2x32xf32>
    %1115 = arith.addf %1113, %1114 : vector<2x32xf32>
    %1116 = arith.negf %1115 : vector<2x32xf32>
    %1117 = math.exp %1116 : vector<2x32xf32>
    %cst_268 = arith.constant 1.000000e+00 : f32
    %1118 = vector.broadcast %cst_268 : f32 to vector<2x32xf32>
    %1119 = arith.addf %1118, %1117 : vector<2x32xf32>
    %1120 = arith.divf %1118, %1119 : vector<2x32xf32>
    %1121 = vector.extract_strided_slice %673 {offsets = [4, 0, 0], sizes = [1, 2, 32], strides = [1, 1, 1]} : vector<8x2x32xf32> to vector<1x2x32xf32>
    %1122 = vector.shape_cast %1121 : vector<1x2x32xf32> to vector<2x32xf32>
    %cst_269 = arith.constant dense<0.000000e+00> : vector<2x32xf32>
    %1123 = tpu.matmul %1102, %987, %cst_269 {dimension_numbers = #tpu.dot_dimension_numbers<[1], [0], [0], [1], [0, 0, 1, 1], [], []>} : vector<2x32xf32>, vector<32x32xf32>, vector<2x32xf32> -> vector<2x32xf32>
    %1124 = arith.addf %1122, %1123 : vector<2x32xf32>
    %1125 = math.tanh %1124 : vector<2x32xf32>
    %1126 = vector.extract_strided_slice %675 {offsets = [4, 0, 0], sizes = [1, 2, 32], strides = [1, 1, 1]} : vector<8x2x32xf32> to vector<1x2x32xf32>
    %1127 = vector.shape_cast %1126 : vector<1x2x32xf32> to vector<2x32xf32>
    %cst_270 = arith.constant dense<0.000000e+00> : vector<2x32xf32>
    %1128 = tpu.matmul %1102, %989, %cst_270 {dimension_numbers = #tpu.dot_dimension_numbers<[1], [0], [0], [1], [0, 0, 1, 1], [], []>} : vector<2x32xf32>, vector<32x32xf32>, vector<2x32xf32> -> vector<2x32xf32>
    %1129 = arith.addf %1127, %1128 : vector<2x32xf32>
    %1130 = arith.negf %1129 : vector<2x32xf32>
    %1131 = math.exp %1130 : vector<2x32xf32>
    %cst_271 = arith.constant 1.000000e+00 : f32
    %1132 = vector.broadcast %cst_271 : f32 to vector<2x32xf32>
    %1133 = arith.addf %1132, %1131 : vector<2x32xf32>
    %1134 = arith.divf %1132, %1133 : vector<2x32xf32>
    %1135 = arith.mulf %1120, %1100 : vector<2x32xf32>
    %1136 = arith.mulf %1111, %1125 : vector<2x32xf32>
    %1137 = arith.addf %1135, %1136 : vector<2x32xf32>
    %1138 = math.tanh %1137 : vector<2x32xf32>
    %1139 = arith.mulf %1134, %1138 : vector<2x32xf32>
    %1140 = vector.extract_strided_slice %669 {offsets = [3, 0, 0], sizes = [1, 2, 32], strides = [1, 1, 1]} : vector<8x2x32xf32> to vector<1x2x32xf32>
    %1141 = vector.shape_cast %1140 : vector<1x2x32xf32> to vector<2x32xf32>
    %cst_272 = arith.constant dense<0.000000e+00> : vector<2x32xf32>
    %1142 = tpu.matmul %1139, %983, %cst_272 {dimension_numbers = #tpu.dot_dimension_numbers<[1], [0], [0], [1], [0, 0, 1, 1], [], []>} : vector<2x32xf32>, vector<32x32xf32>, vector<2x32xf32> -> vector<2x32xf32>
    %1143 = arith.addf %1141, %1142 : vector<2x32xf32>
    %1144 = arith.negf %1143 : vector<2x32xf32>
    %1145 = math.exp %1144 : vector<2x32xf32>
    %cst_273 = arith.constant 1.000000e+00 : f32
    %1146 = vector.broadcast %cst_273 : f32 to vector<2x32xf32>
    %1147 = arith.addf %1146, %1145 : vector<2x32xf32>
    %1148 = arith.divf %1146, %1147 : vector<2x32xf32>
    %1149 = vector.extract_strided_slice %671 {offsets = [3, 0, 0], sizes = [1, 2, 32], strides = [1, 1, 1]} : vector<8x2x32xf32> to vector<1x2x32xf32>
    %1150 = vector.shape_cast %1149 : vector<1x2x32xf32> to vector<2x32xf32>
    %cst_274 = arith.constant dense<0.000000e+00> : vector<2x32xf32>
    %1151 = tpu.matmul %1139, %985, %cst_274 {dimension_numbers = #tpu.dot_dimension_numbers<[1], [0], [0], [1], [0, 0, 1, 1], [], []>} : vector<2x32xf32>, vector<32x32xf32>, vector<2x32xf32> -> vector<2x32xf32>
    %1152 = arith.addf %1150, %1151 : vector<2x32xf32>
    %1153 = arith.negf %1152 : vector<2x32xf32>
    %1154 = math.exp %1153 : vector<2x32xf32>
    %cst_275 = arith.constant 1.000000e+00 : f32
    %1155 = vector.broadcast %cst_275 : f32 to vector<2x32xf32>
    %1156 = arith.addf %1155, %1154 : vector<2x32xf32>
    %1157 = arith.divf %1155, %1156 : vector<2x32xf32>
    %1158 = vector.extract_strided_slice %673 {offsets = [3, 0, 0], sizes = [1, 2, 32], strides = [1, 1, 1]} : vector<8x2x32xf32> to vector<1x2x32xf32>
    %1159 = vector.shape_cast %1158 : vector<1x2x32xf32> to vector<2x32xf32>
    %cst_276 = arith.constant dense<0.000000e+00> : vector<2x32xf32>
    %1160 = tpu.matmul %1139, %987, %cst_276 {dimension_numbers = #tpu.dot_dimension_numbers<[1], [0], [0], [1], [0, 0, 1, 1], [], []>} : vector<2x32xf32>, vector<32x32xf32>, vector<2x32xf32> -> vector<2x32xf32>
    %1161 = arith.addf %1159, %1160 : vector<2x32xf32>
    %1162 = math.tanh %1161 : vector<2x32xf32>
    %1163 = vector.extract_strided_slice %675 {offsets = [3, 0, 0], sizes = [1, 2, 32], strides = [1, 1, 1]} : vector<8x2x32xf32> to vector<1x2x32xf32>
    %1164 = vector.shape_cast %1163 : vector<1x2x32xf32> to vector<2x32xf32>
    %cst_277 = arith.constant dense<0.000000e+00> : vector<2x32xf32>
    %1165 = tpu.matmul %1139, %989, %cst_277 {dimension_numbers = #tpu.dot_dimension_numbers<[1], [0], [0], [1], [0, 0, 1, 1], [], []>} : vector<2x32xf32>, vector<32x32xf32>, vector<2x32xf32> -> vector<2x32xf32>
    %1166 = arith.addf %1164, %1165 : vector<2x32xf32>
    %1167 = arith.negf %1166 : vector<2x32xf32>
    %1168 = math.exp %1167 : vector<2x32xf32>
    %cst_278 = arith.constant 1.000000e+00 : f32
    %1169 = vector.broadcast %cst_278 : f32 to vector<2x32xf32>
    %1170 = arith.addf %1169, %1168 : vector<2x32xf32>
    %1171 = arith.divf %1169, %1170 : vector<2x32xf32>
    %1172 = arith.mulf %1157, %1137 : vector<2x32xf32>
    %1173 = arith.mulf %1148, %1162 : vector<2x32xf32>
    %1174 = arith.addf %1172, %1173 : vector<2x32xf32>
    %1175 = math.tanh %1174 : vector<2x32xf32>
    %1176 = arith.mulf %1171, %1175 : vector<2x32xf32>
    %1177 = vector.extract_strided_slice %669 {offsets = [2, 0, 0], sizes = [1, 2, 32], strides = [1, 1, 1]} : vector<8x2x32xf32> to vector<1x2x32xf32>
    %1178 = vector.shape_cast %1177 : vector<1x2x32xf32> to vector<2x32xf32>
    %cst_279 = arith.constant dense<0.000000e+00> : vector<2x32xf32>
    %1179 = tpu.matmul %1176, %983, %cst_279 {dimension_numbers = #tpu.dot_dimension_numbers<[1], [0], [0], [1], [0, 0, 1, 1], [], []>} : vector<2x32xf32>, vector<32x32xf32>, vector<2x32xf32> -> vector<2x32xf32>
    %1180 = arith.addf %1178, %1179 : vector<2x32xf32>
    %1181 = arith.negf %1180 : vector<2x32xf32>
    %1182 = math.exp %1181 : vector<2x32xf32>
    %cst_280 = arith.constant 1.000000e+00 : f32
    %1183 = vector.broadcast %cst_280 : f32 to vector<2x32xf32>
    %1184 = arith.addf %1183, %1182 : vector<2x32xf32>
    %1185 = arith.divf %1183, %1184 : vector<2x32xf32>
    %1186 = vector.extract_strided_slice %671 {offsets = [2, 0, 0], sizes = [1, 2, 32], strides = [1, 1, 1]} : vector<8x2x32xf32> to vector<1x2x32xf32>
    %1187 = vector.shape_cast %1186 : vector<1x2x32xf32> to vector<2x32xf32>
    %cst_281 = arith.constant dense<0.000000e+00> : vector<2x32xf32>
    %1188 = tpu.matmul %1176, %985, %cst_281 {dimension_numbers = #tpu.dot_dimension_numbers<[1], [0], [0], [1], [0, 0, 1, 1], [], []>} : vector<2x32xf32>, vector<32x32xf32>, vector<2x32xf32> -> vector<2x32xf32>
    %1189 = arith.addf %1187, %1188 : vector<2x32xf32>
    %1190 = arith.negf %1189 : vector<2x32xf32>
    %1191 = math.exp %1190 : vector<2x32xf32>
    %cst_282 = arith.constant 1.000000e+00 : f32
    %1192 = vector.broadcast %cst_282 : f32 to vector<2x32xf32>
    %1193 = arith.addf %1192, %1191 : vector<2x32xf32>
    %1194 = arith.divf %1192, %1193 : vector<2x32xf32>
    %1195 = vector.extract_strided_slice %673 {offsets = [2, 0, 0], sizes = [1, 2, 32], strides = [1, 1, 1]} : vector<8x2x32xf32> to vector<1x2x32xf32>
    %1196 = vector.shape_cast %1195 : vector<1x2x32xf32> to vector<2x32xf32>
    %cst_283 = arith.constant dense<0.000000e+00> : vector<2x32xf32>
    %1197 = tpu.matmul %1176, %987, %cst_283 {dimension_numbers = #tpu.dot_dimension_numbers<[1], [0], [0], [1], [0, 0, 1, 1], [], []>} : vector<2x32xf32>, vector<32x32xf32>, vector<2x32xf32> -> vector<2x32xf32>
    %1198 = arith.addf %1196, %1197 : vector<2x32xf32>
    %1199 = math.tanh %1198 : vector<2x32xf32>
    %1200 = vector.extract_strided_slice %675 {offsets = [2, 0, 0], sizes = [1, 2, 32], strides = [1, 1, 1]} : vector<8x2x32xf32> to vector<1x2x32xf32>
    %1201 = vector.shape_cast %1200 : vector<1x2x32xf32> to vector<2x32xf32>
    %cst_284 = arith.constant dense<0.000000e+00> : vector<2x32xf32>
    %1202 = tpu.matmul %1176, %989, %cst_284 {dimension_numbers = #tpu.dot_dimension_numbers<[1], [0], [0], [1], [0, 0, 1, 1], [], []>} : vector<2x32xf32>, vector<32x32xf32>, vector<2x32xf32> -> vector<2x32xf32>
    %1203 = arith.addf %1201, %1202 : vector<2x32xf32>
    %1204 = arith.negf %1203 : vector<2x32xf32>
    %1205 = math.exp %1204 : vector<2x32xf32>
    %cst_285 = arith.constant 1.000000e+00 : f32
    %1206 = vector.broadcast %cst_285 : f32 to vector<2x32xf32>
    %1207 = arith.addf %1206, %1205 : vector<2x32xf32>
    %1208 = arith.divf %1206, %1207 : vector<2x32xf32>
    %1209 = arith.mulf %1194, %1174 : vector<2x32xf32>
    %1210 = arith.mulf %1185, %1199 : vector<2x32xf32>
    %1211 = arith.addf %1209, %1210 : vector<2x32xf32>
    %1212 = math.tanh %1211 : vector<2x32xf32>
    %1213 = arith.mulf %1208, %1212 : vector<2x32xf32>
    %1214 = vector.extract_strided_slice %669 {offsets = [1, 0, 0], sizes = [1, 2, 32], strides = [1, 1, 1]} : vector<8x2x32xf32> to vector<1x2x32xf32>
    %1215 = vector.shape_cast %1214 : vector<1x2x32xf32> to vector<2x32xf32>
    %cst_286 = arith.constant dense<0.000000e+00> : vector<2x32xf32>
    %1216 = tpu.matmul %1213, %983, %cst_286 {dimension_numbers = #tpu.dot_dimension_numbers<[1], [0], [0], [1], [0, 0, 1, 1], [], []>} : vector<2x32xf32>, vector<32x32xf32>, vector<2x32xf32> -> vector<2x32xf32>
    %1217 = arith.addf %1215, %1216 : vector<2x32xf32>
    %1218 = arith.negf %1217 : vector<2x32xf32>
    %1219 = math.exp %1218 : vector<2x32xf32>
    %cst_287 = arith.constant 1.000000e+00 : f32
    %1220 = vector.broadcast %cst_287 : f32 to vector<2x32xf32>
    %1221 = arith.addf %1220, %1219 : vector<2x32xf32>
    %1222 = arith.divf %1220, %1221 : vector<2x32xf32>
    %1223 = vector.extract_strided_slice %671 {offsets = [1, 0, 0], sizes = [1, 2, 32], strides = [1, 1, 1]} : vector<8x2x32xf32> to vector<1x2x32xf32>
    %1224 = vector.shape_cast %1223 : vector<1x2x32xf32> to vector<2x32xf32>
    %cst_288 = arith.constant dense<0.000000e+00> : vector<2x32xf32>
    %1225 = tpu.matmul %1213, %985, %cst_288 {dimension_numbers = #tpu.dot_dimension_numbers<[1], [0], [0], [1], [0, 0, 1, 1], [], []>} : vector<2x32xf32>, vector<32x32xf32>, vector<2x32xf32> -> vector<2x32xf32>
    %1226 = arith.addf %1224, %1225 : vector<2x32xf32>
    %1227 = arith.negf %1226 : vector<2x32xf32>
    %1228 = math.exp %1227 : vector<2x32xf32>
    %cst_289 = arith.constant 1.000000e+00 : f32
    %1229 = vector.broadcast %cst_289 : f32 to vector<2x32xf32>
    %1230 = arith.addf %1229, %1228 : vector<2x32xf32>
    %1231 = arith.divf %1229, %1230 : vector<2x32xf32>
    %1232 = vector.extract_strided_slice %673 {offsets = [1, 0, 0], sizes = [1, 2, 32], strides = [1, 1, 1]} : vector<8x2x32xf32> to vector<1x2x32xf32>
    %1233 = vector.shape_cast %1232 : vector<1x2x32xf32> to vector<2x32xf32>
    %cst_290 = arith.constant dense<0.000000e+00> : vector<2x32xf32>
    %1234 = tpu.matmul %1213, %987, %cst_290 {dimension_numbers = #tpu.dot_dimension_numbers<[1], [0], [0], [1], [0, 0, 1, 1], [], []>} : vector<2x32xf32>, vector<32x32xf32>, vector<2x32xf32> -> vector<2x32xf32>
    %1235 = arith.addf %1233, %1234 : vector<2x32xf32>
    %1236 = math.tanh %1235 : vector<2x32xf32>
    %1237 = vector.extract_strided_slice %675 {offsets = [1, 0, 0], sizes = [1, 2, 32], strides = [1, 1, 1]} : vector<8x2x32xf32> to vector<1x2x32xf32>
    %1238 = vector.shape_cast %1237 : vector<1x2x32xf32> to vector<2x32xf32>
    %cst_291 = arith.constant dense<0.000000e+00> : vector<2x32xf32>
    %1239 = tpu.matmul %1213, %989, %cst_291 {dimension_numbers = #tpu.dot_dimension_numbers<[1], [0], [0], [1], [0, 0, 1, 1], [], []>} : vector<2x32xf32>, vector<32x32xf32>, vector<2x32xf32> -> vector<2x32xf32>
    %1240 = arith.addf %1238, %1239 : vector<2x32xf32>
    %1241 = arith.negf %1240 : vector<2x32xf32>
    %1242 = math.exp %1241 : vector<2x32xf32>
    %cst_292 = arith.constant 1.000000e+00 : f32
    %1243 = vector.broadcast %cst_292 : f32 to vector<2x32xf32>
    %1244 = arith.addf %1243, %1242 : vector<2x32xf32>
    %1245 = arith.divf %1243, %1244 : vector<2x32xf32>
    %1246 = arith.mulf %1231, %1211 : vector<2x32xf32>
    %1247 = arith.mulf %1222, %1236 : vector<2x32xf32>
    %1248 = arith.addf %1246, %1247 : vector<2x32xf32>
    %1249 = math.tanh %1248 : vector<2x32xf32>
    %1250 = arith.mulf %1245, %1249 : vector<2x32xf32>
    %1251 = vector.extract_strided_slice %669 {offsets = [0, 0, 0], sizes = [1, 2, 32], strides = [1, 1, 1]} : vector<8x2x32xf32> to vector<1x2x32xf32>
    %1252 = vector.shape_cast %1251 : vector<1x2x32xf32> to vector<2x32xf32>
    %cst_293 = arith.constant dense<0.000000e+00> : vector<2x32xf32>
    %1253 = tpu.matmul %1250, %983, %cst_293 {dimension_numbers = #tpu.dot_dimension_numbers<[1], [0], [0], [1], [0, 0, 1, 1], [], []>} : vector<2x32xf32>, vector<32x32xf32>, vector<2x32xf32> -> vector<2x32xf32>
    %1254 = arith.addf %1252, %1253 : vector<2x32xf32>
    %1255 = arith.negf %1254 : vector<2x32xf32>
    %1256 = math.exp %1255 : vector<2x32xf32>
    %cst_294 = arith.constant 1.000000e+00 : f32
    %1257 = vector.broadcast %cst_294 : f32 to vector<2x32xf32>
    %1258 = arith.addf %1257, %1256 : vector<2x32xf32>
    %1259 = arith.divf %1257, %1258 : vector<2x32xf32>
    %1260 = vector.extract_strided_slice %671 {offsets = [0, 0, 0], sizes = [1, 2, 32], strides = [1, 1, 1]} : vector<8x2x32xf32> to vector<1x2x32xf32>
    %1261 = vector.shape_cast %1260 : vector<1x2x32xf32> to vector<2x32xf32>
    %cst_295 = arith.constant dense<0.000000e+00> : vector<2x32xf32>
    %1262 = tpu.matmul %1250, %985, %cst_295 {dimension_numbers = #tpu.dot_dimension_numbers<[1], [0], [0], [1], [0, 0, 1, 1], [], []>} : vector<2x32xf32>, vector<32x32xf32>, vector<2x32xf32> -> vector<2x32xf32>
    %1263 = arith.addf %1261, %1262 : vector<2x32xf32>
    %1264 = arith.negf %1263 : vector<2x32xf32>
    %1265 = math.exp %1264 : vector<2x32xf32>
    %cst_296 = arith.constant 1.000000e+00 : f32
    %1266 = vector.broadcast %cst_296 : f32 to vector<2x32xf32>
    %1267 = arith.addf %1266, %1265 : vector<2x32xf32>
    %1268 = arith.divf %1266, %1267 : vector<2x32xf32>
    %1269 = vector.extract_strided_slice %673 {offsets = [0, 0, 0], sizes = [1, 2, 32], strides = [1, 1, 1]} : vector<8x2x32xf32> to vector<1x2x32xf32>
    %1270 = vector.shape_cast %1269 : vector<1x2x32xf32> to vector<2x32xf32>
    %cst_297 = arith.constant dense<0.000000e+00> : vector<2x32xf32>
    %1271 = tpu.matmul %1250, %987, %cst_297 {dimension_numbers = #tpu.dot_dimension_numbers<[1], [0], [0], [1], [0, 0, 1, 1], [], []>} : vector<2x32xf32>, vector<32x32xf32>, vector<2x32xf32> -> vector<2x32xf32>
    %1272 = arith.addf %1270, %1271 : vector<2x32xf32>
    %1273 = math.tanh %1272 : vector<2x32xf32>
    %1274 = vector.extract_strided_slice %675 {offsets = [0, 0, 0], sizes = [1, 2, 32], strides = [1, 1, 1]} : vector<8x2x32xf32> to vector<1x2x32xf32>
    %1275 = vector.shape_cast %1274 : vector<1x2x32xf32> to vector<2x32xf32>
    %cst_298 = arith.constant dense<0.000000e+00> : vector<2x32xf32>
    %1276 = tpu.matmul %1250, %989, %cst_298 {dimension_numbers = #tpu.dot_dimension_numbers<[1], [0], [0], [1], [0, 0, 1, 1], [], []>} : vector<2x32xf32>, vector<32x32xf32>, vector<2x32xf32> -> vector<2x32xf32>
    %1277 = arith.addf %1275, %1276 : vector<2x32xf32>
    %1278 = arith.negf %1277 : vector<2x32xf32>
    %1279 = math.exp %1278 : vector<2x32xf32>
    %cst_299 = arith.constant 1.000000e+00 : f32
    %1280 = vector.broadcast %cst_299 : f32 to vector<2x32xf32>
    %1281 = arith.addf %1280, %1279 : vector<2x32xf32>
    %1282 = arith.divf %1280, %1281 : vector<2x32xf32>
    %1283 = arith.mulf %1268, %1248 : vector<2x32xf32>
    %1284 = arith.mulf %1259, %1273 : vector<2x32xf32>
    %1285 = arith.addf %1283, %1284 : vector<2x32xf32>
    %1286 = math.tanh %1285 : vector<2x32xf32>
    %1287 = arith.mulf %1282, %1286 : vector<2x32xf32>
    %1288 = tpu.concatenate %722, %759, %796, %833, %870, %907, %944, %981 in 0 : vector<2x32xf32>, vector<2x32xf32>, vector<2x32xf32>, vector<2x32xf32>, vector<2x32xf32>, vector<2x32xf32>, vector<2x32xf32>, vector<2x32xf32> -> vector<16x32xf32>
    %1289 = tpu.concatenate %1287, %1250, %1213, %1176, %1139, %1102, %1065, %1028 in 0 : vector<2x32xf32>, vector<2x32xf32>, vector<2x32xf32>, vector<2x32xf32>, vector<2x32xf32>, vector<2x32xf32>, vector<2x32xf32>, vector<2x32xf32> -> vector<16x32xf32>
    %1290 = vector.shape_cast %1288 : vector<16x32xf32> to vector<8x2x32xf32>
    %1291 = vector.extract_strided_slice %1290 {offsets = [0, 1, 0], sizes = [8, 1, 32], strides = [1, 1, 1]} : vector<8x2x32xf32> to vector<8x1x32xf32>
    %1292 = vector.shape_cast %1291 : vector<8x1x32xf32> to vector<8x32xf32>
    %1293 = vector.shape_cast %1289 : vector<16x32xf32> to vector<8x2x32xf32>
    %1294 = vector.extract_strided_slice %1293 {offsets = [0, 1, 0], sizes = [8, 1, 32], strides = [1, 1, 1]} : vector<8x2x32xf32> to vector<8x1x32xf32>
    %1295 = vector.shape_cast %1294 : vector<8x1x32xf32> to vector<8x32xf32>
    %c0_300 = arith.constant 0 : index
    %c0_301 = arith.constant 0 : index
    %1296 = vector.load %arg13[%c0_300, %c0_301] : memref<64x10xf32, #tpu.memory_space<vmem>>, vector<64x10xf32>
    %1297 = vector.extract_strided_slice %1296 {offsets = [0, 0], sizes = [32, 10], strides = [1, 1]} : vector<64x10xf32> to vector<32x10xf32>
    %cst_302 = arith.constant dense<0.000000e+00> : vector<8x10xf32>
    %1298 = tpu.matmul %1292, %1297, %cst_302 {dimension_numbers = #tpu.dot_dimension_numbers<[1], [0], [0], [1], [0, 0, 1, 1], [], []>} : vector<8x32xf32>, vector<32x10xf32>, vector<8x10xf32> -> vector<8x10xf32>
    %1299 = vector.extract_strided_slice %1296 {offsets = [32, 0], sizes = [32, 10], strides = [1, 1]} : vector<64x10xf32> to vector<32x10xf32>
    %cst_303 = arith.constant dense<0.000000e+00> : vector<8x10xf32>
    %1300 = tpu.matmul %1295, %1299, %cst_303 {dimension_numbers = #tpu.dot_dimension_numbers<[1], [0], [0], [1], [0, 0, 1, 1], [], []>} : vector<8x32xf32>, vector<32x10xf32>, vector<8x10xf32> -> vector<8x10xf32>
    %1301 = arith.addf %1298, %1300 : vector<8x10xf32>
    %c0_304 = arith.constant 0 : index
    %c0_305 = arith.constant 0 : index
    %1302 = vector.load %arg14[%c0_304, %c0_305] : memref<1x10xf32, #tpu.memory_space<vmem>>, vector<1x10xf32>
    %1303 = vector.broadcast %1302 : vector<1x10xf32> to vector<8x10xf32>
    %1304 = arith.addf %1301, %1303 : vector<8x10xf32>
    %1305 = arith.negf %1304 : vector<8x10xf32>
    %1306 = math.exp %1305 : vector<8x10xf32>
    %cst_306 = arith.constant 1.000000e+00 : f32
    %1307 = vector.broadcast %cst_306 : f32 to vector<8x10xf32>
    %1308 = arith.addf %1307, %1306 : vector<8x10xf32>
    %1309 = arith.divf %1307, %1308 : vector<8x10xf32>
    %c0_307 = arith.constant 0 : index
    %c0_308 = arith.constant 0 : index
    %1310 = vector.load %arg15[%c0_307, %c0_308] : memref<8x10xf32, #tpu.memory_space<vmem>>, vector<8x10xf32>
    tpu.vector_store %arg15[%c0_307, %c0_308], %1309 {strides = array<i32>} : memref<8x10xf32, #tpu.memory_space<vmem>>, vector<8x10xf32>,
    return
  }
}

</mosaic_0001>

<llo_original>
// kernel: lstm_forward.1
$region0: #{lstm_forward.1}
  #allocation0 [shape = 'u32[]', space=smem, size = 0x4, offset = 0x4, fixed_abs, tag = 'smem constant byte address 0x4 - core index']
  #allocation1 [shape = 'u32[72,128]{1,0:T(1,128)}', space=vmem, size = 0x9000, scoped, tag = 'internal scratch']
  %s0 = inlined_call_operand.vmem [shape: f32[8,2,16], index: 0, kind: input, shape index: {}]
  %s1 = inlined_call_operand.vmem [shape: f32[16,128], index: 1, kind: input, shape index: {}]
  %s2 = inlined_call_operand.vmem [shape: f32[4,32,32], index: 2, kind: input, shape index: {}]
  %s3 = inlined_call_operand.vmem [shape: f32[1,128], index: 3, kind: input, shape index: {}]
  %s4 = inlined_call_operand.vmem [shape: f32[16,128], index: 4, kind: input, shape index: {}]
  %s5 = inlined_call_operand.vmem [shape: f32[4,32,32], index: 5, kind: input, shape index: {}]
  %s6 = inlined_call_operand.vmem [shape: f32[1,128], index: 6, kind: input, shape index: {}]
  %s7 = inlined_call_operand.vmem [shape: f32[64,128], index: 7, kind: input, shape index: {}]
  %s8 = inlined_call_operand.vmem [shape: f32[4,32,32], index: 8, kind: input, shape index: {}]
  %s9 = inlined_call_operand.vmem [shape: f32[1,128], index: 9, kind: input, shape index: {}]
  %s10 = inlined_call_operand.vmem [shape: f32[64,128], index: 10, kind: input, shape index: {}]
  %s11 = inlined_call_operand.vmem [shape: f32[4,32,32], index: 11, kind: input, shape index: {}]
  %s12 = inlined_call_operand.vmem [shape: f32[1,128], index: 12, kind: input, shape index: {}]
  %s13 = inlined_call_operand.vmem [shape: f32[64,10], index: 13, kind: input, shape index: {}]
  %s14 = inlined_call_operand.vmem [shape: f32[1,10], index: 14, kind: input, shape index: {}]
  %s15 = inlined_call_operand.hbm [shape: f32[8,10], index: 15, kind: output, shape index: {}]
  %s16 = sld [smem:[#allocation0]]
  $region70: #{lstm_forward.1} parent=0
    _
  %s18 = ssub.s32 1, %s16
  %s19 = scalar_select 0, %s18, %s16
  $region1: #{lstm_forward.1} parent=0
    #allocation2 [shape = 'u8[4096]{0}', space=vmem, size = 0x1000, scoped, tag = 'output window, operand 0, single buffered']
    #allocation3 [shape = 's32[1]{0}', space=sflag, size = 0x4, scoped, tag = 'scoped memory for lstm_forward.1']
    %20 = vsyncpa [#allocation3], 0
    // Predicated region
    $region2: #{lstm_forward.1} parent=1 // pred_check
      _
    $region3: #{lstm_forward.1} parent=1 // pred_check_branch
      %22 = sbr.rel (0) target = $region5
    $region4: #{lstm_forward.1} parent=1 // pred_region
      _
    $region5: #{lstm_forward.1} parent=1 // pred_fallthru
      _
    // Predicated region
    $region6: #{lstm_forward.1} parent=1 // pred_check
      _
    $region7: #{lstm_forward.1} parent=1 // pred_check_branch
      %24 = sbr.rel (0) target = $region9
    $region8: #{lstm_forward.1} parent=1 // pred_region
      _
    $region9: #{lstm_forward.1} parent=1 // pred_fallthru
      _
    // Predicated region
    $region10: #{lstm_forward.1} parent=1 // pred_check
      _
    $region11: #{lstm_forward.1} parent=1 // pred_check_branch
      %26 = sbr.rel (0) target = $region13
    $region12: #{lstm_forward.1} parent=1 // pred_region
      _
    $region13: #{lstm_forward.1} parent=1 // pred_fallthru
      _
    // Predicated region
    $region14: #{lstm_forward.1} parent=1 // pred_check
      _
    $region15: #{lstm_forward.1} parent=1 // pred_check_branch
      %28 = sbr.rel (0) target = $region17
    $region16: #{lstm_forward.1} parent=1 // pred_region
      _
    $region17: #{lstm_forward.1} parent=1 // pred_fallthru
      _
    // Predicated region
    $region18: #{lstm_forward.1} parent=1 // pred_check
      _
    $region19: #{lstm_forward.1} parent=1 // pred_check_branch
      %30 = sbr.rel (0) target = $region21
    $region20: #{lstm_forward.1} parent=1 // pred_region
      _
    $region21: #{lstm_forward.1} parent=1 // pred_fallthru
      _
    // Predicated region
    $region22: #{lstm_forward.1} parent=1 // pred_check
      _
    $region23: #{lstm_forward.1} parent=1 // pred_check_branch
      %32 = sbr.rel (0) target = $region25
    $region24: #{lstm_forward.1} parent=1 // pred_region
      _
    $region25: #{lstm_forward.1} parent=1 // pred_fallthru
      _
    // Predicated region
    $region26: #{lstm_forward.1} parent=1 // pred_check
      _
    $region27: #{lstm_forward.1} parent=1 // pred_check_branch
      %34 = sbr.rel (0) target = $region29
    $region28: #{lstm_forward.1} parent=1 // pred_region
      _
    $region29: #{lstm_forward.1} parent=1 // pred_fallthru
      _
    // Predicated region
    $region30: #{lstm_forward.1} parent=1 // pred_check
      _
    $region31: #{lstm_forward.1} parent=1 // pred_check_branch
      %36 = sbr.rel (0) target = $region33
    $region32: #{lstm_forward.1} parent=1 // pred_region
      _
    $region33: #{lstm_forward.1} parent=1 // pred_fallthru
      _
    // Predicated region
    $region34: #{lstm_forward.1} parent=1 // pred_check
      _
    $region35: #{lstm_forward.1} parent=1 // pred_check_branch
      %38 = sbr.rel (0) target = $region37
    $region36: #{lstm_forward.1} parent=1 // pred_region
      _
    $region37: #{lstm_forward.1} parent=1 // pred_fallthru
      _
    // Predicated region
    $region38: #{lstm_forward.1} parent=1 // pred_check
      _
    $region39: #{lstm_forward.1} parent=1 // pred_check_branch
      %40 = sbr.rel (0) target = $region41
    $region40: #{lstm_forward.1} parent=1 // pred_region
      _
    $region41: #{lstm_forward.1} parent=1 // pred_fallthru
      _
    // Predicated region
    $region42: #{lstm_forward.1} parent=1 // pred_check
      _
    $region43: #{lstm_forward.1} parent=1 // pred_check_branch
      %42 = sbr.rel (0) target = $region45
    $region44: #{lstm_forward.1} parent=1 // pred_region
      _
    $region45: #{lstm_forward.1} parent=1 // pred_fallthru
      _
    // Predicated region
    $region46: #{lstm_forward.1} parent=1 // pred_check
      _
    $region47: #{lstm_forward.1} parent=1 // pred_check_branch
      %44 = sbr.rel (0) target = $region49
    $region48: #{lstm_forward.1} parent=1 // pred_region
      _
    $region49: #{lstm_forward.1} parent=1 // pred_fallthru
      _
    // Predicated region
    $region50: #{lstm_forward.1} parent=1 // pred_check
      _
    $region51: #{lstm_forward.1} parent=1 // pred_check_branch
      %46 = sbr.rel (0) target = $region53
    $region52: #{lstm_forward.1} parent=1 // pred_region
      _
    $region53: #{lstm_forward.1} parent=1 // pred_fallthru
      _
    // Predicated region
    $region54: #{lstm_forward.1} parent=1 // pred_check
      _
    $region55: #{lstm_forward.1} parent=1 // pred_check_branch
      %48 = sbr.rel (0) target = $region57
    $region56: #{lstm_forward.1} parent=1 // pred_region
      _
    $region57: #{lstm_forward.1} parent=1 // pred_fallthru
      _
    // Predicated region
    $region58: #{lstm_forward.1} parent=1 // pred_check
      _
    $region59: #{lstm_forward.1} parent=1 // pred_check_branch
      %50 = sbr.rel (0) target = $region61
    $region60: #{lstm_forward.1} parent=1 // pred_region
      _
    $region61: #{lstm_forward.1} parent=1 // pred_fallthru
      _
    %v51 = vld [vmem:[%s0] sm:$0x3]
    %v52 = vld [vmem:[%s0 + $0x2] sm:$0x3]
    %v53 = vld [vmem:[%s0 + $0x4] sm:$0x3]
    %v54 = vld [vmem:[%s0 + $0x6] sm:$0x3]
    %v55 = vld [vmem:[%s0 + $0x8] sm:$0x3]
    %v56 = vld [vmem:[%s0 + $0xa] sm:$0x3]
    %v57 = vld [vmem:[%s0 + $0xc] sm:$0x3]
    %v58 = vld [vmem:[%s0 + $0xe] sm:$0x3]
    %v59 = vld [vmem:[%s1] sm:$0xff]
    %v60 = vld [vmem:[%s1 + $0x8] sm:$0xff]
    %v61 = vld [vmem:[%s3] sm:$0x1]
    %v63 = vperm.slane %v61, 0
    %73 = vst [vmem:[#allocation1] ss:$4 sm:$0xff] %v51
    %s74 = scalar_lea.vmem [#allocation1], 1
    %75 = vst [vmem:[%s74] ss:$4 sm:$0xff] %v52
    %s76 = scalar_lea.vmem [#allocation1], 2
    %77 = vst [vmem:[%s76] ss:$4 sm:$0xff] %v53
    %s78 = scalar_lea.vmem [#allocation1], 3
    %79 = vst [vmem:[%s78] ss:$4 sm:$0xff] %v54
    %s80 = scalar_lea.vmem [#allocation1], 32
    %81 = vst [vmem:[%s80] ss:$4 sm:$0xff] %v55
    %s82 = scalar_lea.vmem [#allocation1], 33
    %83 = vst [vmem:[%s82] ss:$4 sm:$0xff] %v56
    %s84 = scalar_lea.vmem [#allocation1], 34
    %85 = vst [vmem:[%s84] ss:$4 sm:$0xff] %v57
    %s86 = scalar_lea.vmem [#allocation1], 35
    %87 = vst [vmem:[%s86] ss:$4 sm:$0xff] %v58
    %v88 = vld.sshfl [vmem:[#allocation1] sm:$0xff pattern:$0x73625140]
    %v89 = vld.sshfl [vmem:[#allocation1 + $0x20] sm:$0xff pattern:$0x73625140]
    %vm90 = vcmask 130048
    %v91 = vsel %vm90, %v88, 0
    %v93 = vsel %vm90, %v89, 0
    %95 = vmatpush.msra.mxu0 0.0
    %96 = vmatpush.msra.mxu0 0.0
    %97 = vmatpush.msra.mxu0 0.0
    %98 = vmatpush.msra.mxu0 0.0
    %99 = vmatpush.msra.mxu0 0.0
    %100 = vmatpush.msra.mxu0 0.0
    %101 = vmatpush.msra.mxu0 0.0
    %102 = vmatpush.msra.mxu0 0.0
    %103 = vmatpush.msra.mxu0 0.0
    %104 = vmatpush.msra.mxu0 0.0
    %105 = vmatpush.msra.mxu0 0.0
    %106 = vmatpush.msra.mxu0 0.0
    %107 = vmatpush.msra.mxu0 0.0
    %108 = vmatpush.msra.mxu0 0.0
    %109 = vmatpush.msra.mxu0 %v60
    %110 = vmatpush.msra.mxu0 %v59
    %111 = vmatmul.f32.gmra.mxu0 %v91
    %v112 = vpop.f32.mrf.mxu0
    %v113 = vadd.f32 %v63, %v112
    %114 = vmatmul.f32.gmra.mxu0 %v93
    %v115 = vpop.f32.mrf.mxu0
    %v116 = vadd.f32 %v63, %v115
    %117 = vdwg.mxu0
    %v118 = vld [vmem:[%s4] sm:$0xff]
    %v119 = vld [vmem:[%s4 + $0x8] sm:$0xff]
    %v120 = vld [vmem:[%s6] sm:$0x1]
    %v122 = vperm.slane %v120, 0
    %124 = vst [vmem:[#allocation1] ss:$4 sm:$0xff] %v51
    %s125 = scalar_lea.vmem [#allocation1], 1
    %126 = vst [vmem:[%s125] ss:$4 sm:$0xff] %v52
    %s127 = scalar_lea.vmem [#allocation1], 2
    %128 = vst [vmem:[%s127] ss:$4 sm:$0xff] %v53
    %s129 = scalar_lea.vmem [#allocation1], 3
    %130 = vst [vmem:[%s129] ss:$4 sm:$0xff] %v54
    %s131 = scalar_lea.vmem [#allocation1], 32
    %132 = vst [vmem:[%s131] ss:$4 sm:$0xff] %v55
    %s133 = scalar_lea.vmem [#allocation1], 33
    %134 = vst [vmem:[%s133] ss:$4 sm:$0xff] %v56
    %s135 = scalar_lea.vmem [#allocation1], 34
    %136 = vst [vmem:[%s135] ss:$4 sm:$0xff] %v57
    %s137 = scalar_lea.vmem [#allocation1], 35
    %138 = vst [vmem:[%s137] ss:$4 sm:$0xff] %v58
    %v139 = vld.sshfl [vmem:[#allocation1] sm:$0xff pattern:$0x73625140]
    %v140 = vld.sshfl [vmem:[#allocation1 + $0x20] sm:$0xff pattern:$0x73625140]
    %v141 = vsel %vm90, %v139, 0
    %v143 = vsel %vm90, %v140, 0
    %145 = vmatpush.msra.mxu0 0.0
    %146 = vmatpush.msra.mxu0 0.0
    %147 = vmatpush.msra.mxu0 0.0
    %148 = vmatpush.msra.mxu0 0.0
    %149 = vmatpush.msra.mxu0 0.0
    %150 = vmatpush.msra.mxu0 0.0
    %151 = vmatpush.msra.mxu0 0.0
    %152 = vmatpush.msra.mxu0 0.0
    %153 = vmatpush.msra.mxu0 0.0
    %154 = vmatpush.msra.mxu0 0.0
    %155 = vmatpush.msra.mxu0 0.0
    %156 = vmatpush.msra.mxu0 0.0
    %157 = vmatpush.msra.mxu0 0.0
    %158 = vmatpush.msra.mxu0 0.0
    %159 = vmatpush.msra.mxu0 %v119
    %160 = vmatpush.msra.mxu0 %v118
    %161 = vmatmul.f32.gmra.mxu0 %v141
    %v162 = vpop.f32.mrf.mxu0
    %v163 = vadd.f32 %v122, %v162
    %164 = vmatmul.f32.gmra.mxu0 %v143
    %v165 = vpop.f32.mrf.mxu0
    %v166 = vadd.f32 %v122, %v165
    %167 = vdwg.mxu0
    %v170 = vrot.slane %v113, 2
    %v171 = vrot.slane %v113, 4
    %v172 = vrot.slane %v113, 6
    %v173 = vrot.slane %v116, 2
    %v174 = vrot.slane %v116, 4
    %v175 = vrot.slane %v116, 6
    %v184 = vrot.slane %v163, 2
    %v185 = vrot.slane %v163, 4
    %v186 = vrot.slane %v163, 6
    %v187 = vrot.slane %v166, 2
    %v188 = vrot.slane %v166, 4
    %v189 = vrot.slane %v166, 6
    %v196 = vld [vmem:[%s2] sm:$0xff]
    %v197 = vld [vmem:[%s2 + $0x8] sm:$0xff]
    %v198 = vld [vmem:[%s2 + $0x10] sm:$0xff]
    %v199 = vld [vmem:[%s2 + $0x18] sm:$0xff]
    %s200 = scalar_lea.vmem %s2, 32
    %v201 = vld [vmem:[%s200] sm:$0xff]
    %v202 = vld [vmem:[%s200 + $0x8] sm:$0xff]
    %v203 = vld [vmem:[%s200 + $0x10] sm:$0xff]
    %v204 = vld [vmem:[%s200 + $0x18] sm:$0xff]
    %s205 = scalar_lea.vmem %s2, 64
    %v206 = vld [vmem:[%s205] sm:$0xff]
    %v207 = vld [vmem:[%s205 + $0x8] sm:$0xff]
    %v208 = vld [vmem:[%s205 + $0x10] sm:$0xff]
    %v209 = vld [vmem:[%s205 + $0x18] sm:$0xff]
    %s210 = scalar_lea.vmem %s2, 96
    %v211 = vld [vmem:[%s210] sm:$0xff]
    %v212 = vld [vmem:[%s210 + $0x8] sm:$0xff]
    %v213 = vld [vmem:[%s210 + $0x10] sm:$0xff]
    %v214 = vld [vmem:[%s210 + $0x18] sm:$0xff]
    %vm215 = vcmask 261120
    %v217 = vsel %vm215, 0.0, 0
    %219 = vmatpush.msra.mxu0 0.0
    %220 = vmatpush.msra.mxu0 0.0
    %221 = vmatpush.msra.mxu0 0.0
    %222 = vmatpush.msra.mxu0 0.0
    %223 = vmatpush.msra.mxu0 0.0
    %224 = vmatpush.msra.mxu0 0.0
    %225 = vmatpush.msra.mxu0 0.0
    %226 = vmatpush.msra.mxu0 0.0
    %227 = vmatpush.msra.mxu0 0.0
    %228 = vmatpush.msra.mxu0 0.0
    %229 = vmatpush.msra.mxu0 0.0
    %230 = vmatpush.msra.mxu0 0.0
    %231 = vmatpush.msra.mxu0 %v199
    %232 = vmatpush.msra.mxu0 %v198
    %233 = vmatpush.msra.mxu0 %v197
    %234 = vmatpush.msra.mxu0 %v196
    %235 = vmatmul.f32.gmra.mxu0 %v217
    %v236 = vpop.f32.mrf.mxu0
    %v237 = vadd.f32 0.0, %v236
    %238 = vdwg.mxu0
    %v239 = vadd.f32 %v113, %v237
    %v240 = vxor.u32 %v239, 2147483648
    %v241 = vmul.f32 %v240, 1.442695
    %v242 = vpow.pop %v241
    %v243 = vadd.f32 %v242, 1.0
    %v244 = vrcp.pop %v243
    %v245 = vmul.f32 %v243, %v244
    %v246 = vsub.f32 1.0, %v245
    %v247 = vmul.f32 %v244, %v246
    %v248 = vadd.f32 %v244, %v247
    %vm249 = vweird.f32 %v243
    %vm250 = vweird.f32 %v244
    %vm251 = vmor %vm249, %vm250
    %v252 = vsel %vm251, %v244, %v248
    %v253 = vand.u32 2147483647, %v243
    %vm254 = vcmp.eq.f32.partialorder %v253, 8.507059e+37
    %v255 = vand.u32 %v243, 2147483648
    %v256 = vor.u32 1.1754944e-38, %v255
    %v257 = vsel %vm254, %v256, %v252
    %v258 = vmul.f32 1.0, %v257
    %259 = vmatpush.msra.mxu0 0.0
    %260 = vmatpush.msra.mxu0 0.0
    %261 = vmatpush.msra.mxu0 0.0
    %262 = vmatpush.msra.mxu0 0.0
    %263 = vmatpush.msra.mxu0 0.0
    %264 = vmatpush.msra.mxu0 0.0
    %265 = vmatpush.msra.mxu0 0.0
    %266 = vmatpush.msra.mxu0 0.0
    %267 = vmatpush.msra.mxu0 0.0
    %268 = vmatpush.msra.mxu0 0.0
    %269 = vmatpush.msra.mxu0 0.0
    %270 = vmatpush.msra.mxu0 0.0
    %271 = vmatpush.msra.mxu0 %v204
    %272 = vmatpush.msra.mxu0 %v203
    %273 = vmatpush.msra.mxu0 %v202
    %274 = vmatpush.msra.mxu0 %v201
    %275 = vmatmul.f32.gmra.mxu0 %v217
    %v276 = vpop.f32.mrf.mxu0
    %v277 = vadd.f32 0.0, %v276
    %278 = vdwg.mxu0
    %280 = vrot.lane.b32.xlu0 %v277, 32
    %v281 = vpop.permute.xlu0 %280
    %v283 = vadd.f32 %v113, %v281
    %v284 = vxor.u32 %v283, 2147483648
    %v285 = vmul.f32 %v284, 1.442695
    %v286 = vpow.pop %v285
    %v287 = vadd.f32 %v286, 1.0
    %v288 = vrcp.pop %v287
    %v289 = vmul.f32 %v287, %v288
    %v290 = vsub.f32 1.0, %v289
    %v291 = vmul.f32 %v288, %v290
    %v292 = vadd.f32 %v288, %v291
    %vm293 = vweird.f32 %v287
    %vm294 = vweird.f32 %v288
    %vm295 = vmor %vm293, %vm294
    %v296 = vsel %vm295, %v288, %v292
    %v297 = vand.u32 2147483647, %v287
    %vm298 = vcmp.eq.f32.partialorder %v297, 8.507059e+37
    %v299 = vand.u32 %v287, 2147483648
    %v300 = vor.u32 1.1754944e-38, %v299
    %v301 = vsel %vm298, %v300, %v296
    %v302 = vmul.f32 1.0, %v301
    %303 = vmatpush.msra.mxu0 0.0
    %304 = vmatpush.msra.mxu0 0.0
    %305 = vmatpush.msra.mxu0 0.0
    %306 = vmatpush.msra.mxu0 0.0
    %307 = vmatpush.msra.mxu0 0.0
    %308 = vmatpush.msra.mxu0 0.0
    %309 = vmatpush.msra.mxu0 0.0
    %310 = vmatpush.msra.mxu0 0.0
    %311 = vmatpush.msra.mxu0 0.0
    %312 = vmatpush.msra.mxu0 0.0
    %313 = vmatpush.msra.mxu0 0.0
    %314 = vmatpush.msra.mxu0 0.0
    %315 = vmatpush.msra.mxu0 %v209
    %316 = vmatpush.msra.mxu0 %v208
    %317 = vmatpush.msra.mxu0 %v207
    %318 = vmatpush.msra.mxu0 %v206
    %319 = vmatmul.f32.gmra.mxu0 %v217
    %v320 = vpop.f32.mrf.mxu0
    %v321 = vadd.f32 0.0, %v320
    %322 = vdwg.mxu0
    %324 = vrot.lane.b32.xlu0 %v321, 64
    %v325 = vpop.permute.xlu0 %324
    %v327 = vadd.f32 %v113, %v325
    %v328 = vtanh.pop %v327
    %329 = vmatpush.msra.mxu0 0.0
    %330 = vmatpush.msra.mxu0 0.0
    %331 = vmatpush.msra.mxu0 0.0
    %332 = vmatpush.msra.mxu0 0.0
    %333 = vmatpush.msra.mxu0 0.0
    %334 = vmatpush.msra.mxu0 0.0
    %335 = vmatpush.msra.mxu0 0.0
    %336 = vmatpush.msra.mxu0 0.0
    %337 = vmatpush.msra.mxu0 0.0
    %338 = vmatpush.msra.mxu0 0.0
    %339 = vmatpush.msra.mxu0 0.0
    %340 = vmatpush.msra.mxu0 0.0
    %341 = vmatpush.msra.mxu0 %v214
    %342 = vmatpush.msra.mxu0 %v213
    %343 = vmatpush.msra.mxu0 %v212
    %344 = vmatpush.msra.mxu0 %v211
    %345 = vmatmul.f32.gmra.mxu0 %v217
    %v346 = vpop.f32.mrf.mxu0
    %v347 = vadd.f32 0.0, %v346
    %348 = vdwg.mxu0
    %350 = vrot.lane.b32.xlu0 %v347, 96
    %v351 = vpop.permute.xlu0 %350
    %v353 = vadd.f32 %v113, %v351
    %v354 = vxor.u32 %v353, 2147483648
    %v355 = vmul.f32 %v354, 1.442695
    %v356 = vpow.pop %v355
    %v357 = vadd.f32 %v356, 1.0
    %v358 = vrcp.pop %v357
    %v359 = vmul.f32 %v357, %v358
    %v360 = vsub.f32 1.0, %v359
    %v361 = vmul.f32 %v358, %v360
    %v362 = vadd.f32 %v358, %v361
    %vm363 = vweird.f32 %v357
    %vm364 = vweird.f32 %v358
    %vm365 = vmor %vm363, %vm364
    %v366 = vsel %vm365, %v358, %v362
    %v367 = vand.u32 2147483647, %v357
    %vm368 = vcmp.eq.f32.partialorder %v367, 8.507059e+37
    %v369 = vand.u32 %v357, 2147483648
    %v370 = vor.u32 1.1754944e-38, %v369
    %v371 = vsel %vm368, %v370, %v366
    %v372 = vmul.f32 1.0, %v371
    %v373 = vmul.f32 %v302, 0.0
    %375 = vrot.lane.b32.xlu0 %v328, 64
    %v376 = vpop.permute.xlu0 %375
    %v378 = vmul.f32 %v258, %v376
    %380 = vrot.lane.b32.xlu0 %v378, 32
    %v381 = vpop.permute.xlu0 %380
    %v383 = vadd.f32 %v373, %v381
    %v384 = vtanh.pop %v383
    %386 = vrot.lane.b32.xlu0 %v384, 64
    %v387 = vpop.permute.xlu0 %386
    %v389 = vmul.f32 %v372, %v387
    %391 = vst [vmem:[#allocation1] ss:$4 sm:$0xff] %v389
    %v392 = vld.sshfl [vmem:[#allocation1] sm:$0xff pattern:$0x73625140]
    %393 = vrot.lane.b32.xlu0 %v392, 32
    %v394 = vpop.permute.xlu0 %393
    %v395 = vsel %vm215, %v394, 0
    %397 = vmatpush.msra.mxu0 0.0
    %398 = vmatpush.msra.mxu0 0.0
    %399 = vmatpush.msra.mxu0 0.0
    %400 = vmatpush.msra.mxu0 0.0
    %401 = vmatpush.msra.mxu0 0.0
    %402 = vmatpush.msra.mxu0 0.0
    %403 = vmatpush.msra.mxu0 0.0
    %404 = vmatpush.msra.mxu0 0.0
    %405 = vmatpush.msra.mxu0 0.0
    %406 = vmatpush.msra.mxu0 0.0
    %407 = vmatpush.msra.mxu0 0.0
    %408 = vmatpush.msra.mxu0 0.0
    %409 = vmatpush.msra.mxu0 %v199
    %410 = vmatpush.msra.mxu0 %v198
    %411 = vmatpush.msra.mxu0 %v197
    %412 = vmatpush.msra.mxu0 %v196
    %413 = vmatmul.f32.gmra.mxu0 %v395
    %v414 = vpop.f32.mrf.mxu0
    %v415 = vadd.f32 0.0, %v414
    %416 = vdwg.mxu0
    %v417 = vadd.f32 %v170, %v415
    %v418 = vxor.u32 %v417, 2147483648
    %v419 = vmul.f32 %v418, 1.442695
    %v420 = vpow.pop %v419
    %v421 = vadd.f32 %v420, 1.0
    %v422 = vrcp.pop %v421
    %v423 = vmul.f32 %v421, %v422
    %v424 = vsub.f32 1.0, %v423
    %v425 = vmul.f32 %v422, %v424
    %v426 = vadd.f32 %v422, %v425
    %vm427 = vweird.f32 %v421
    %vm428 = vweird.f32 %v422
    %vm429 = vmor %vm427, %vm428
    %v430 = vsel %vm429, %v422, %v426
    %v431 = vand.u32 2147483647, %v421
    %vm432 = vcmp.eq.f32.partialorder %v431, 8.507059e+37
    %v433 = vand.u32 %v421, 2147483648
    %v434 = vor.u32 1.1754944e-38, %v433
    %v435 = vsel %vm432, %v434, %v430
    %v436 = vmul.f32 1.0, %v435
    %437 = vst [vmem:[#allocation1] ss:$4 sm:$0xff] %v389
    %v438 = vld.sshfl [vmem:[#allocation1] sm:$0xff pattern:$0x73625140]
    %439 = vrot.lane.b32.xlu0 %v438, 32
    %v440 = vpop.permute.xlu0 %439
    %v441 = vsel %vm215, %v440, 0
    %443 = vmatpush.msra.mxu0 0.0
    %444 = vmatpush.msra.mxu0 0.0
    %445 = vmatpush.msra.mxu0 0.0
    %446 = vmatpush.msra.mxu0 0.0
    %447 = vmatpush.msra.mxu0 0.0
    %448 = vmatpush.msra.mxu0 0.0
    %449 = vmatpush.msra.mxu0 0.0
    %450 = vmatpush.msra.mxu0 0.0
    %451 = vmatpush.msra.mxu0 0.0
    %452 = vmatpush.msra.mxu0 0.0
    %453 = vmatpush.msra.mxu0 0.0
    %454 = vmatpush.msra.mxu0 0.0
    %455 = vmatpush.msra.mxu0 %v204
    %456 = vmatpush.msra.mxu0 %v203
    %457 = vmatpush.msra.mxu0 %v202
    %458 = vmatpush.msra.mxu0 %v201
    %459 = vmatmul.f32.gmra.mxu0 %v441
    %v460 = vpop.f32.mrf.mxu0
    %v461 = vadd.f32 0.0, %v460
    %462 = vdwg.mxu0
    %464 = vrot.lane.b32.xlu0 %v461, 32
    %v465 = vpop.permute.xlu0 %464
    %v467 = vadd.f32 %v170, %v465
    %v468 = vxor.u32 %v467, 2147483648
    %v469 = vmul.f32 %v468, 1.442695
    %v470 = vpow.pop %v469
    %v471 = vadd.f32 %v470, 1.0
    %v472 = vrcp.pop %v471
    %v473 = vmul.f32 %v471, %v472
    %v474 = vsub.f32 1.0, %v473
    %v475 = vmul.f32 %v472, %v474
    %v476 = vadd.f32 %v472, %v475
    %vm477 = vweird.f32 %v471
    %vm478 = vweird.f32 %v472
    %vm479 = vmor %vm477, %vm478
    %v480 = vsel %vm479, %v472, %v476
    %v481 = vand.u32 2147483647, %v471
    %vm482 = vcmp.eq.f32.partialorder %v481, 8.507059e+37
    %v483 = vand.u32 %v471, 2147483648
    %v484 = vor.u32 1.1754944e-38, %v483
    %v485 = vsel %vm482, %v484, %v480
    %v486 = vmul.f32 1.0, %v485
    %487 = vst [vmem:[#allocation1] ss:$4 sm:$0xff] %v389
    %v488 = vld.sshfl [vmem:[#allocation1] sm:$0xff pattern:$0x73625140]
    %489 = vrot.lane.b32.xlu0 %v488, 32
    %v490 = vpop.permute.xlu0 %489
    %v491 = vsel %vm215, %v490, 0
    %493 = vmatpush.msra.mxu0 0.0
    %494 = vmatpush.msra.mxu0 0.0
    %495 = vmatpush.msra.mxu0 0.0
    %496 = vmatpush.msra.mxu0 0.0
    %497 = vmatpush.msra.mxu0 0.0
    %498 = vmatpush.msra.mxu0 0.0
    %499 = vmatpush.msra.mxu0 0.0
    %500 = vmatpush.msra.mxu0 0.0
    %501 = vmatpush.msra.mxu0 0.0
    %502 = vmatpush.msra.mxu0 0.0
    %503 = vmatpush.msra.mxu0 0.0
    %504 = vmatpush.msra.mxu0 0.0
    %505 = vmatpush.msra.mxu0 %v209
    %506 = vmatpush.msra.mxu0 %v208
    %507 = vmatpush.msra.mxu0 %v207
    %508 = vmatpush.msra.mxu0 %v206
    %509 = vmatmul.f32.gmra.mxu0 %v491
    %v510 = vpop.f32.mrf.mxu0
    %v511 = vadd.f32 0.0, %v510
    %512 = vdwg.mxu0
    %514 = vrot.lane.b32.xlu0 %v511, 64
    %v515 = vpop.permute.xlu0 %514
    %v517 = vadd.f32 %v170, %v515
    %v518 = vtanh.pop %v517
    %519 = vst [vmem:[#allocation1] ss:$4 sm:$0xff] %v389
    %v520 = vld.sshfl [vmem:[#allocation1] sm:$0xff pattern:$0x73625140]
    %521 = vrot.lane.b32.xlu0 %v520, 32
    %v522 = vpop.permute.xlu0 %521
    %v523 = vsel %vm215, %v522, 0
    %525 = vmatpush.msra.mxu0 0.0
    %526 = vmatpush.msra.mxu0 0.0
    %527 = vmatpush.msra.mxu0 0.0
    %528 = vmatpush.msra.mxu0 0.0
    %529 = vmatpush.msra.mxu0 0.0
    %530 = vmatpush.msra.mxu0 0.0
    %531 = vmatpush.msra.mxu0 0.0
    %532 = vmatpush.msra.mxu0 0.0
    %533 = vmatpush.msra.mxu0 0.0
    %534 = vmatpush.msra.mxu0 0.0
    %535 = vmatpush.msra.mxu0 0.0
    %536 = vmatpush.msra.mxu0 0.0
    %537 = vmatpush.msra.mxu0 %v214
    %538 = vmatpush.msra.mxu0 %v213
    %539 = vmatpush.msra.mxu0 %v212
    %540 = vmatpush.msra.mxu0 %v211
    %541 = vmatmul.f32.gmra.mxu0 %v523
    %v542 = vpop.f32.mrf.mxu0
    %v543 = vadd.f32 0.0, %v542
    %544 = vdwg.mxu0
    %546 = vrot.lane.b32.xlu0 %v543, 96
    %v547 = vpop.permute.xlu0 %546
    %v549 = vadd.f32 %v170, %v547
    %v550 = vxor.u32 %v549, 2147483648
    %v551 = vmul.f32 %v550, 1.442695
    %v552 = vpow.pop %v551
    %v553 = vadd.f32 %v552, 1.0
    %v554 = vrcp.pop %v553
    %v555 = vmul.f32 %v553, %v554
    %v556 = vsub.f32 1.0, %v555
    %v557 = vmul.f32 %v554, %v556
    %v558 = vadd.f32 %v554, %v557
    %vm559 = vweird.f32 %v553
    %vm560 = vweird.f32 %v554
    %vm561 = vmor %vm559, %vm560
    %v562 = vsel %vm561, %v554, %v558
    %v563 = vand.u32 2147483647, %v553
    %vm564 = vcmp.eq.f32.partialorder %v563, 8.507059e+37
    %v565 = vand.u32 %v553, 2147483648
    %v566 = vor.u32 1.1754944e-38, %v565
    %v567 = vsel %vm564, %v566, %v562
    %v568 = vmul.f32 1.0, %v567
    %v569 = vmul.f32 %v486, %v383
    %571 = vrot.lane.b32.xlu0 %v518, 64
    %v572 = vpop.permute.xlu0 %571
    %v574 = vmul.f32 %v436, %v572
    %576 = vrot.lane.b32.xlu0 %v574, 32
    %v577 = vpop.permute.xlu0 %576
    %v579 = vadd.f32 %v569, %v577
    %v580 = vtanh.pop %v579
    %582 = vrot.lane.b32.xlu0 %v580, 64
    %v583 = vpop.permute.xlu0 %582
    %v585 = vmul.f32 %v568, %v583
    %587 = vst [vmem:[#allocation1] ss:$4 sm:$0xff] %v585
    %v588 = vld.sshfl [vmem:[#allocation1] sm:$0xff pattern:$0x73625140]
    %589 = vrot.lane.b32.xlu0 %v588, 32
    %v590 = vpop.permute.xlu0 %589
    %v591 = vsel %vm215, %v590, 0
    %593 = vmatpush.msra.mxu0 0.0
    %594 = vmatpush.msra.mxu0 0.0
    %595 = vmatpush.msra.mxu0 0.0
    %596 = vmatpush.msra.mxu0 0.0
    %597 = vmatpush.msra.mxu0 0.0
    %598 = vmatpush.msra.mxu0 0.0
    %599 = vmatpush.msra.mxu0 0.0
    %600 = vmatpush.msra.mxu0 0.0
    %601 = vmatpush.msra.mxu0 0.0
    %602 = vmatpush.msra.mxu0 0.0
    %603 = vmatpush.msra.mxu0 0.0
    %604 = vmatpush.msra.mxu0 0.0
    %605 = vmatpush.msra.mxu0 %v199
    %606 = vmatpush.msra.mxu0 %v198
    %607 = vmatpush.msra.mxu0 %v197
    %608 = vmatpush.msra.mxu0 %v196
    %609 = vmatmul.f32.gmra.mxu0 %v591
    %v610 = vpop.f32.mrf.mxu0
    %v611 = vadd.f32 0.0, %v610
    %612 = vdwg.mxu0
    %v613 = vadd.f32 %v171, %v611
    %v614 = vxor.u32 %v613, 2147483648
    %v615 = vmul.f32 %v614, 1.442695
    %v616 = vpow.pop %v615
    %v617 = vadd.f32 %v616, 1.0
    %v618 = vrcp.pop %v617
    %v619 = vmul.f32 %v617, %v618
    %v620 = vsub.f32 1.0, %v619
    %v621 = vmul.f32 %v618, %v620
    %v622 = vadd.f32 %v618, %v621
    %vm623 = vweird.f32 %v617
    %vm624 = vweird.f32 %v618
    %vm625 = vmor %vm623, %vm624
    %v626 = vsel %vm625, %v618, %v622
    %v627 = vand.u32 2147483647, %v617
    %vm628 = vcmp.eq.f32.partialorder %v627, 8.507059e+37
    %v629 = vand.u32 %v617, 2147483648
    %v630 = vor.u32 1.1754944e-38, %v629
    %v631 = vsel %vm628, %v630, %v626
    %v632 = vmul.f32 1.0, %v631
    %633 = vst [vmem:[#allocation1] ss:$4 sm:$0xff] %v585
    %v634 = vld.sshfl [vmem:[#allocation1] sm:$0xff pattern:$0x73625140]
    %635 = vrot.lane.b32.xlu0 %v634, 32
    %v636 = vpop.permute.xlu0 %635
    %v637 = vsel %vm215, %v636, 0
    %639 = vmatpush.msra.mxu0 0.0
    %640 = vmatpush.msra.mxu0 0.0
    %641 = vmatpush.msra.mxu0 0.0
    %642 = vmatpush.msra.mxu0 0.0
    %643 = vmatpush.msra.mxu0 0.0
    %644 = vmatpush.msra.mxu0 0.0
    %645 = vmatpush.msra.mxu0 0.0
    %646 = vmatpush.msra.mxu0 0.0
    %647 = vmatpush.msra.mxu0 0.0
    %648 = vmatpush.msra.mxu0 0.0
    %649 = vmatpush.msra.mxu0 0.0
    %650 = vmatpush.msra.mxu0 0.0
    %651 = vmatpush.msra.mxu0 %v204
    %652 = vmatpush.msra.mxu0 %v203
    %653 = vmatpush.msra.mxu0 %v202
    %654 = vmatpush.msra.mxu0 %v201
    %655 = vmatmul.f32.gmra.mxu0 %v637
    %v656 = vpop.f32.mrf.mxu0
    %v657 = vadd.f32 0.0, %v656
    %658 = vdwg.mxu0
    %660 = vrot.lane.b32.xlu0 %v657, 32
    %v661 = vpop.permute.xlu0 %660
    %v663 = vadd.f32 %v171, %v661
    %v664 = vxor.u32 %v663, 2147483648
    %v665 = vmul.f32 %v664, 1.442695
    %v666 = vpow.pop %v665
    %v667 = vadd.f32 %v666, 1.0
    %v668 = vrcp.pop %v667
    %v669 = vmul.f32 %v667, %v668
    %v670 = vsub.f32 1.0, %v669
    %v671 = vmul.f32 %v668, %v670
    %v672 = vadd.f32 %v668, %v671
    %vm673 = vweird.f32 %v667
    %vm674 = vweird.f32 %v668
    %vm675 = vmor %vm673, %vm674
    %v676 = vsel %vm675, %v668, %v672
    %v677 = vand.u32 2147483647, %v667
    %vm678 = vcmp.eq.f32.partialorder %v677, 8.507059e+37
    %v679 = vand.u32 %v667, 2147483648
    %v680 = vor.u32 1.1754944e-38, %v679
    %v681 = vsel %vm678, %v680, %v676
    %v682 = vmul.f32 1.0, %v681
    %683 = vst [vmem:[#allocation1] ss:$4 sm:$0xff] %v585
    %v684 = vld.sshfl [vmem:[#allocation1] sm:$0xff pattern:$0x73625140]
    %685 = vrot.lane.b32.xlu0 %v684, 32
    %v686 = vpop.permute.xlu0 %685
    %v687 = vsel %vm215, %v686, 0
    %689 = vmatpush.msra.mxu0 0.0
    %690 = vmatpush.msra.mxu0 0.0
    %691 = vmatpush.msra.mxu0 0.0
    %692 = vmatpush.msra.mxu0 0.0
    %693 = vmatpush.msra.mxu0 0.0
    %694 = vmatpush.msra.mxu0 0.0
    %695 = vmatpush.msra.mxu0 0.0
    %696 = vmatpush.msra.mxu0 0.0
    %697 = vmatpush.msra.mxu0 0.0
    %698 = vmatpush.msra.mxu0 0.0
    %699 = vmatpush.msra.mxu0 0.0
    %700 = vmatpush.msra.mxu0 0.0
    %701 = vmatpush.msra.mxu0 %v209
    %702 = vmatpush.msra.mxu0 %v208
    %703 = vmatpush.msra.mxu0 %v207
    %704 = vmatpush.msra.mxu0 %v206
    %705 = vmatmul.f32.gmra.mxu0 %v687
    %v706 = vpop.f32.mrf.mxu0
    %v707 = vadd.f32 0.0, %v706
    %708 = vdwg.mxu0
    %710 = vrot.lane.b32.xlu0 %v707, 64
    %v711 = vpop.permute.xlu0 %710
    %v713 = vadd.f32 %v171, %v711
    %v714 = vtanh.pop %v713
    %715 = vst [vmem:[#allocation1] ss:$4 sm:$0xff] %v585
    %v716 = vld.sshfl [vmem:[#allocation1] sm:$0xff pattern:$0x73625140]
    %717 = vrot.lane.b32.xlu0 %v716, 32
    %v718 = vpop.permute.xlu0 %717
    %v719 = vsel %vm215, %v718, 0
    %721 = vmatpush.msra.mxu0 0.0
    %722 = vmatpush.msra.mxu0 0.0
    %723 = vmatpush.msra.mxu0 0.0
    %724 = vmatpush.msra.mxu0 0.0
    %725 = vmatpush.msra.mxu0 0.0
    %726 = vmatpush.msra.mxu0 0.0
    %727 = vmatpush.msra.mxu0 0.0
    %728 = vmatpush.msra.mxu0 0.0
    %729 = vmatpush.msra.mxu0 0.0
    %730 = vmatpush.msra.mxu0 0.0
    %731 = vmatpush.msra.mxu0 0.0
    %732 = vmatpush.msra.mxu0 0.0
    %733 = vmatpush.msra.mxu0 %v214
    %734 = vmatpush.msra.mxu0 %v213
    %735 = vmatpush.msra.mxu0 %v212
    %736 = vmatpush.msra.mxu0 %v211
    %737 = vmatmul.f32.gmra.mxu0 %v719
    %v738 = vpop.f32.mrf.mxu0
    %v739 = vadd.f32 0.0, %v738
    %740 = vdwg.mxu0
    %742 = vrot.lane.b32.xlu0 %v739, 96
    %v743 = vpop.permute.xlu0 %742
    %v745 = vadd.f32 %v171, %v743
    %v746 = vxor.u32 %v745, 2147483648
    %v747 = vmul.f32 %v746, 1.442695
    %v748 = vpow.pop %v747
    %v749 = vadd.f32 %v748, 1.0
    %v750 = vrcp.pop %v749
    %v751 = vmul.f32 %v749, %v750
    %v752 = vsub.f32 1.0, %v751
    %v753 = vmul.f32 %v750, %v752
    %v754 = vadd.f32 %v750, %v753
    %vm755 = vweird.f32 %v749
    %vm756 = vweird.f32 %v750
    %vm757 = vmor %vm755, %vm756
    %v758 = vsel %vm757, %v750, %v754
    %v759 = vand.u32 2147483647, %v749
    %vm760 = vcmp.eq.f32.partialorder %v759, 8.507059e+37
    %v761 = vand.u32 %v749, 2147483648
    %v762 = vor.u32 1.1754944e-38, %v761
    %v763 = vsel %vm760, %v762, %v758
    %v764 = vmul.f32 1.0, %v763
    %v765 = vmul.f32 %v682, %v579
    %767 = vrot.lane.b32.xlu0 %v714, 64
    %v768 = vpop.permute.xlu0 %767
    %v770 = vmul.f32 %v632, %v768
    %772 = vrot.lane.b32.xlu0 %v770, 32
    %v773 = vpop.permute.xlu0 %772
    %v775 = vadd.f32 %v765, %v773
    %v776 = vtanh.pop %v775
    %778 = vrot.lane.b32.xlu0 %v776, 64
    %v779 = vpop.permute.xlu0 %778
    %v781 = vmul.f32 %v764, %v779
    %783 = vst [vmem:[#allocation1] ss:$4 sm:$0xff] %v781
    %v784 = vld.sshfl [vmem:[#allocation1] sm:$0xff pattern:$0x73625140]
    %785 = vrot.lane.b32.xlu0 %v784, 32
    %v786 = vpop.permute.xlu0 %785
    %v787 = vsel %vm215, %v786, 0
    %789 = vmatpush.msra.mxu0 0.0
    %790 = vmatpush.msra.mxu0 0.0
    %791 = vmatpush.msra.mxu0 0.0
    %792 = vmatpush.msra.mxu0 0.0
    %793 = vmatpush.msra.mxu0 0.0
    %794 = vmatpush.msra.mxu0 0.0
    %795 = vmatpush.msra.mxu0 0.0
    %796 = vmatpush.msra.mxu0 0.0
    %797 = vmatpush.msra.mxu0 0.0
    %798 = vmatpush.msra.mxu0 0.0
    %799 = vmatpush.msra.mxu0 0.0
    %800 = vmatpush.msra.mxu0 0.0
    %801 = vmatpush.msra.mxu0 %v199
    %802 = vmatpush.msra.mxu0 %v198
    %803 = vmatpush.msra.mxu0 %v197
    %804 = vmatpush.msra.mxu0 %v196
    %805 = vmatmul.f32.gmra.mxu0 %v787
    %v806 = vpop.f32.mrf.mxu0
    %v807 = vadd.f32 0.0, %v806
    %808 = vdwg.mxu0
    %v809 = vadd.f32 %v172, %v807
    %v810 = vxor.u32 %v809, 2147483648
    %v811 = vmul.f32 %v810, 1.442695
    %v812 = vpow.pop %v811
    %v813 = vadd.f32 %v812, 1.0
    %v814 = vrcp.pop %v813
    %v815 = vmul.f32 %v813, %v814
    %v816 = vsub.f32 1.0, %v815
    %v817 = vmul.f32 %v814, %v816
    %v818 = vadd.f32 %v814, %v817
    %vm819 = vweird.f32 %v813
    %vm820 = vweird.f32 %v814
    %vm821 = vmor %vm819, %vm820
    %v822 = vsel %vm821, %v814, %v818
    %v823 = vand.u32 2147483647, %v813
    %vm824 = vcmp.eq.f32.partialorder %v823, 8.507059e+37
    %v825 = vand.u32 %v813, 2147483648
    %v826 = vor.u32 1.1754944e-38, %v825
    %v827 = vsel %vm824, %v826, %v822
    %v828 = vmul.f32 1.0, %v827
    %829 = vst [vmem:[#allocation1] ss:$4 sm:$0xff] %v781
    %v830 = vld.sshfl [vmem:[#allocation1] sm:$0xff pattern:$0x73625140]
    %831 = vrot.lane.b32.xlu0 %v830, 32
    %v832 = vpop.permute.xlu0 %831
    %v833 = vsel %vm215, %v832, 0
    %835 = vmatpush.msra.mxu0 0.0
    %836 = vmatpush.msra.mxu0 0.0
    %837 = vmatpush.msra.mxu0 0.0
    %838 = vmatpush.msra.mxu0 0.0
    %839 = vmatpush.msra.mxu0 0.0
    %840 = vmatpush.msra.mxu0 0.0
    %841 = vmatpush.msra.mxu0 0.0
    %842 = vmatpush.msra.mxu0 0.0
    %843 = vmatpush.msra.mxu0 0.0
    %844 = vmatpush.msra.mxu0 0.0
    %845 = vmatpush.msra.mxu0 0.0
    %846 = vmatpush.msra.mxu0 0.0
    %847 = vmatpush.msra.mxu0 %v204
    %848 = vmatpush.msra.mxu0 %v203
    %849 = vmatpush.msra.mxu0 %v202
    %850 = vmatpush.msra.mxu0 %v201
    %851 = vmatmul.f32.gmra.mxu0 %v833
    %v852 = vpop.f32.mrf.mxu0
    %v853 = vadd.f32 0.0, %v852
    %854 = vdwg.mxu0
    %856 = vrot.lane.b32.xlu0 %v853, 32
    %v857 = vpop.permute.xlu0 %856
    %v859 = vadd.f32 %v172, %v857
    %v860 = vxor.u32 %v859, 2147483648
    %v861 = vmul.f32 %v860, 1.442695
    %v862 = vpow.pop %v861
    %v863 = vadd.f32 %v862, 1.0
    %v864 = vrcp.pop %v863
    %v865 = vmul.f32 %v863, %v864
    %v866 = vsub.f32 1.0, %v865
    %v867 = vmul.f32 %v864, %v866
    %v868 = vadd.f32 %v864, %v867
    %vm869 = vweird.f32 %v863
    %vm870 = vweird.f32 %v864
    %vm871 = vmor %vm869, %vm870
    %v872 = vsel %vm871, %v864, %v868
    %v873 = vand.u32 2147483647, %v863
    %vm874 = vcmp.eq.f32.partialorder %v873, 8.507059e+37
    %v875 = vand.u32 %v863, 2147483648
    %v876 = vor.u32 1.1754944e-38, %v875
    %v877 = vsel %vm874, %v876, %v872
    %v878 = vmul.f32 1.0, %v877
    %879 = vst [vmem:[#allocation1] ss:$4 sm:$0xff] %v781
    %v880 = vld.sshfl [vmem:[#allocation1] sm:$0xff pattern:$0x73625140]
    %881 = vrot.lane.b32.xlu0 %v880, 32
    %v882 = vpop.permute.xlu0 %881
    %v883 = vsel %vm215, %v882, 0
    %885 = vmatpush.msra.mxu0 0.0
    %886 = vmatpush.msra.mxu0 0.0
    %887 = vmatpush.msra.mxu0 0.0
    %888 = vmatpush.msra.mxu0 0.0
    %889 = vmatpush.msra.mxu0 0.0
    %890 = vmatpush.msra.mxu0 0.0
    %891 = vmatpush.msra.mxu0 0.0
    %892 = vmatpush.msra.mxu0 0.0
    %893 = vmatpush.msra.mxu0 0.0
    %894 = vmatpush.msra.mxu0 0.0
    %895 = vmatpush.msra.mxu0 0.0
    %896 = vmatpush.msra.mxu0 0.0
    %897 = vmatpush.msra.mxu0 %v209
    %898 = vmatpush.msra.mxu0 %v208
    %899 = vmatpush.msra.mxu0 %v207
    %900 = vmatpush.msra.mxu0 %v206
    %901 = vmatmul.f32.gmra.mxu0 %v883
    %v902 = vpop.f32.mrf.mxu0
    %v903 = vadd.f32 0.0, %v902
    %904 = vdwg.mxu0
    %906 = vrot.lane.b32.xlu0 %v903, 64
    %v907 = vpop.permute.xlu0 %906
    %v909 = vadd.f32 %v172, %v907
    %v910 = vtanh.pop %v909
    %911 = vst [vmem:[#allocation1] ss:$4 sm:$0xff] %v781
    %v912 = vld.sshfl [vmem:[#allocation1] sm:$0xff pattern:$0x73625140]
    %913 = vrot.lane.b32.xlu0 %v912, 32
    %v914 = vpop.permute.xlu0 %913
    %v915 = vsel %vm215, %v914, 0
    %917 = vmatpush.msra.mxu0 0.0
    %918 = vmatpush.msra.mxu0 0.0
    %919 = vmatpush.msra.mxu0 0.0
    %920 = vmatpush.msra.mxu0 0.0
    %921 = vmatpush.msra.mxu0 0.0
    %922 = vmatpush.msra.mxu0 0.0
    %923 = vmatpush.msra.mxu0 0.0
    %924 = vmatpush.msra.mxu0 0.0
    %925 = vmatpush.msra.mxu0 0.0
    %926 = vmatpush.msra.mxu0 0.0
    %927 = vmatpush.msra.mxu0 0.0
    %928 = vmatpush.msra.mxu0 0.0
    %929 = vmatpush.msra.mxu0 %v214
    %930 = vmatpush.msra.mxu0 %v213
    %931 = vmatpush.msra.mxu0 %v212
    %932 = vmatpush.msra.mxu0 %v211
    %933 = vmatmul.f32.gmra.mxu0 %v915
    %v934 = vpop.f32.mrf.mxu0
    %v935 = vadd.f32 0.0, %v934
    %936 = vdwg.mxu0
    %938 = vrot.lane.b32.xlu0 %v935, 96
    %v939 = vpop.permute.xlu0 %938
    %v941 = vadd.f32 %v172, %v939
    %v942 = vxor.u32 %v941, 2147483648
    %v943 = vmul.f32 %v942, 1.442695
    %v944 = vpow.pop %v943
    %v945 = vadd.f32 %v944, 1.0
    %v946 = vrcp.pop %v945
    %v947 = vmul.f32 %v945, %v946
    %v948 = vsub.f32 1.0, %v947
    %v949 = vmul.f32 %v946, %v948
    %v950 = vadd.f32 %v946, %v949
    %vm951 = vweird.f32 %v945
    %vm952 = vweird.f32 %v946
    %vm953 = vmor %vm951, %vm952
    %v954 = vsel %vm953, %v946, %v950
    %v955 = vand.u32 2147483647, %v945
    %vm956 = vcmp.eq.f32.partialorder %v955, 8.507059e+37
    %v957 = vand.u32 %v945, 2147483648
    %v958 = vor.u32 1.1754944e-38, %v957
    %v959 = vsel %vm956, %v958, %v954
    %v960 = vmul.f32 1.0, %v959
    %v961 = vmul.f32 %v878, %v775
    %963 = vrot.lane.b32.xlu0 %v910, 64
    %v964 = vpop.permute.xlu0 %963
    %v966 = vmul.f32 %v828, %v964
    %968 = vrot.lane.b32.xlu0 %v966, 32
    %v969 = vpop.permute.xlu0 %968
    %v971 = vadd.f32 %v961, %v969
    %v972 = vtanh.pop %v971
    %974 = vrot.lane.b32.xlu0 %v972, 64
    %v975 = vpop.permute.xlu0 %974
    %v977 = vmul.f32 %v960, %v975
    %979 = vst [vmem:[#allocation1] ss:$4 sm:$0xff] %v977
    %v980 = vld.sshfl [vmem:[#allocation1] sm:$0xff pattern:$0x73625140]
    %981 = vrot.lane.b32.xlu0 %v980, 32
    %v982 = vpop.permute.xlu0 %981
    %v983 = vsel %vm215, %v982, 0
    %985 = vmatpush.msra.mxu0 0.0
    %986 = vmatpush.msra.mxu0 0.0
    %987 = vmatpush.msra.mxu0 0.0
    %988 = vmatpush.msra.mxu0 0.0
    %989 = vmatpush.msra.mxu0 0.0
    %990 = vmatpush.msra.mxu0 0.0
    %991 = vmatpush.msra.mxu0 0.0
    %992 = vmatpush.msra.mxu0 0.0
    %993 = vmatpush.msra.mxu0 0.0
    %994 = vmatpush.msra.mxu0 0.0
    %995 = vmatpush.msra.mxu0 0.0
    %996 = vmatpush.msra.mxu0 0.0
    %997 = vmatpush.msra.mxu0 %v199
    %998 = vmatpush.msra.mxu0 %v198
    %999 = vmatpush.msra.mxu0 %v197
    %1000 = vmatpush.msra.mxu0 %v196
    %1001 = vmatmul.f32.gmra.mxu0 %v983
    %v1002 = vpop.f32.mrf.mxu0
    %v1003 = vadd.f32 0.0, %v1002
    %1004 = vdwg.mxu0
    %v1005 = vadd.f32 %v116, %v1003
    %v1006 = vxor.u32 %v1005, 2147483648
    %v1007 = vmul.f32 %v1006, 1.442695
    %v1008 = vpow.pop %v1007
    %v1009 = vadd.f32 %v1008, 1.0
    %v1010 = vrcp.pop %v1009
    %v1011 = vmul.f32 %v1009, %v1010
    %v1012 = vsub.f32 1.0, %v1011
    %v1013 = vmul.f32 %v1010, %v1012
    %v1014 = vadd.f32 %v1010, %v1013
    %vm1015 = vweird.f32 %v1009
    %vm1016 = vweird.f32 %v1010
    %vm1017 = vmor %vm1015, %vm1016
    %v1018 = vsel %vm1017, %v1010, %v1014
    %v1019 = vand.u32 2147483647, %v1009
    %vm1020 = vcmp.eq.f32.partialorder %v1019, 8.507059e+37
    %v1021 = vand.u32 %v1009, 2147483648
    %v1022 = vor.u32 1.1754944e-38, %v1021
    %v1023 = vsel %vm1020, %v1022, %v1018
    %v1024 = vmul.f32 1.0, %v1023
    %1025 = vst [vmem:[#allocation1] ss:$4 sm:$0xff] %v977
    %v1026 = vld.sshfl [vmem:[#allocation1] sm:$0xff pattern:$0x73625140]
    %1027 = vrot.lane.b32.xlu0 %v1026, 32
    %v1028 = vpop.permute.xlu0 %1027
    %v1029 = vsel %vm215, %v1028, 0
    %1031 = vmatpush.msra.mxu0 0.0
    %1032 = vmatpush.msra.mxu0 0.0
    %1033 = vmatpush.msra.mxu0 0.0
    %1034 = vmatpush.msra.mxu0 0.0
    %1035 = vmatpush.msra.mxu0 0.0
    %1036 = vmatpush.msra.mxu0 0.0
    %1037 = vmatpush.msra.mxu0 0.0
    %1038 = vmatpush.msra.mxu0 0.0
    %1039 = vmatpush.msra.mxu0 0.0
    %1040 = vmatpush.msra.mxu0 0.0
    %1041 = vmatpush.msra.mxu0 0.0
    %1042 = vmatpush.msra.mxu0 0.0
    %1043 = vmatpush.msra.mxu0 %v204
    %1044 = vmatpush.msra.mxu0 %v203
    %1045 = vmatpush.msra.mxu0 %v202
    %1046 = vmatpush.msra.mxu0 %v201
    %1047 = vmatmul.f32.gmra.mxu0 %v1029
    %v1048 = vpop.f32.mrf.mxu0
    %v1049 = vadd.f32 0.0, %v1048
    %1050 = vdwg.mxu0
    %1052 = vrot.lane.b32.xlu0 %v1049, 32
    %v1053 = vpop.permute.xlu0 %1052
    %v1055 = vadd.f32 %v116, %v1053
    %v1056 = vxor.u32 %v1055, 2147483648
    %v1057 = vmul.f32 %v1056, 1.442695
    %v1058 = vpow.pop %v1057
    %v1059 = vadd.f32 %v1058, 1.0
    %v1060 = vrcp.pop %v1059
    %v1061 = vmul.f32 %v1059, %v1060
    %v1062 = vsub.f32 1.0, %v1061
    %v1063 = vmul.f32 %v1060, %v1062
    %v1064 = vadd.f32 %v1060, %v1063
    %vm1065 = vweird.f32 %v1059
    %vm1066 = vweird.f32 %v1060
    %vm1067 = vmor %vm1065, %vm1066
    %v1068 = vsel %vm1067, %v1060, %v1064
    %v1069 = vand.u32 2147483647, %v1059
    %vm1070 = vcmp.eq.f32.partialorder %v1069, 8.507059e+37
    %v1071 = vand.u32 %v1059, 2147483648
    %v1072 = vor.u32 1.1754944e-38, %v1071
    %v1073 = vsel %vm1070, %v1072, %v1068
    %v1074 = vmul.f32 1.0, %v1073
    %1075 = vst [vmem:[#allocation1] ss:$4 sm:$0xff] %v977
    %v1076 = vld.sshfl [vmem:[#allocation1] sm:$0xff pattern:$0x73625140]
    %1077 = vrot.lane.b32.xlu0 %v1076, 32
    %v1078 = vpop.permute.xlu0 %1077
    %v1079 = vsel %vm215, %v1078, 0
    %1081 = vmatpush.msra.mxu0 0.0
    %1082 = vmatpush.msra.mxu0 0.0
    %1083 = vmatpush.msra.mxu0 0.0
    %1084 = vmatpush.msra.mxu0 0.0
    %1085 = vmatpush.msra.mxu0 0.0
    %1086 = vmatpush.msra.mxu0 0.0
    %1087 = vmatpush.msra.mxu0 0.0
    %1088 = vmatpush.msra.mxu0 0.0
    %1089 = vmatpush.msra.mxu0 0.0
    %1090 = vmatpush.msra.mxu0 0.0
    %1091 = vmatpush.msra.mxu0 0.0
    %1092 = vmatpush.msra.mxu0 0.0
    %1093 = vmatpush.msra.mxu0 %v209
    %1094 = vmatpush.msra.mxu0 %v208
    %1095 = vmatpush.msra.mxu0 %v207
    %1096 = vmatpush.msra.mxu0 %v206
    %1097 = vmatmul.f32.gmra.mxu0 %v1079
    %v1098 = vpop.f32.mrf.mxu0
    %v1099 = vadd.f32 0.0, %v1098
    %1100 = vdwg.mxu0
    %1102 = vrot.lane.b32.xlu0 %v1099, 64
    %v1103 = vpop.permute.xlu0 %1102
    %v1105 = vadd.f32 %v116, %v1103
    %v1106 = vtanh.pop %v1105
    %1107 = vst [vmem:[#allocation1] ss:$4 sm:$0xff] %v977
    %v1108 = vld.sshfl [vmem:[#allocation1] sm:$0xff pattern:$0x73625140]
    %1109 = vrot.lane.b32.xlu0 %v1108, 32
    %v1110 = vpop.permute.xlu0 %1109
    %v1111 = vsel %vm215, %v1110, 0
    %1113 = vmatpush.msra.mxu0 0.0
    %1114 = vmatpush.msra.mxu0 0.0
    %1115 = vmatpush.msra.mxu0 0.0
    %1116 = vmatpush.msra.mxu0 0.0
    %1117 = vmatpush.msra.mxu0 0.0
    %1118 = vmatpush.msra.mxu0 0.0
    %1119 = vmatpush.msra.mxu0 0.0
    %1120 = vmatpush.msra.mxu0 0.0
    %1121 = vmatpush.msra.mxu0 0.0
    %1122 = vmatpush.msra.mxu0 0.0
    %1123 = vmatpush.msra.mxu0 0.0
    %1124 = vmatpush.msra.mxu0 0.0
    %1125 = vmatpush.msra.mxu0 %v214
    %1126 = vmatpush.msra.mxu0 %v213
    %1127 = vmatpush.msra.mxu0 %v212
    %1128 = vmatpush.msra.mxu0 %v211
    %1129 = vmatmul.f32.gmra.mxu0 %v1111
    %v1130 = vpop.f32.mrf.mxu0
    %v1131 = vadd.f32 0.0, %v1130
    %1132 = vdwg.mxu0
    %1134 = vrot.lane.b32.xlu0 %v1131, 96
    %v1135 = vpop.permute.xlu0 %1134
    %v1137 = vadd.f32 %v116, %v1135
    %v1138 = vxor.u32 %v1137, 2147483648
    %v1139 = vmul.f32 %v1138, 1.442695
    %v1140 = vpow.pop %v1139
    %v1141 = vadd.f32 %v1140, 1.0
    %v1142 = vrcp.pop %v1141
    %v1143 = vmul.f32 %v1141, %v1142
    %v1144 = vsub.f32 1.0, %v1143
    %v1145 = vmul.f32 %v1142, %v1144
    %v1146 = vadd.f32 %v1142, %v1145
    %vm1147 = vweird.f32 %v1141
    %vm1148 = vweird.f32 %v1142
    %vm1149 = vmor %vm1147, %vm1148
    %v1150 = vsel %vm1149, %v1142, %v1146
    %v1151 = vand.u32 2147483647, %v1141
    %vm1152 = vcmp.eq.f32.partialorder %v1151, 8.507059e+37
    %v1153 = vand.u32 %v1141, 2147483648
    %v1154 = vor.u32 1.1754944e-38, %v1153
    %v1155 = vsel %vm1152, %v1154, %v1150
    %v1156 = vmul.f32 1.0, %v1155
    %v1157 = vmul.f32 %v1074, %v971
    %1159 = vrot.lane.b32.xlu0 %v1106, 64
    %v1160 = vpop.permute.xlu0 %1159
    %v1162 = vmul.f32 %v1024, %v1160
    %1164 = vrot.lane.b32.xlu0 %v1162, 32
    %v1165 = vpop.permute.xlu0 %1164
    %v1167 = vadd.f32 %v1157, %v1165
    %v1168 = vtanh.pop %v1167
    %1170 = vrot.lane.b32.xlu0 %v1168, 64
    %v1171 = vpop.permute.xlu0 %1170
    %v1173 = vmul.f32 %v1156, %v1171
    %1175 = vst [vmem:[#allocation1] ss:$4 sm:$0xff] %v1173
    %v1176 = vld.sshfl [vmem:[#allocation1] sm:$0xff pattern:$0x73625140]
    %1177 = vrot.lane.b32.xlu0 %v1176, 32
    %v1178 = vpop.permute.xlu0 %1177
    %v1179 = vsel %vm215, %v1178, 0
    %1181 = vmatpush.msra.mxu0 0.0
    %1182 = vmatpush.msra.mxu0 0.0
    %1183 = vmatpush.msra.mxu0 0.0
    %1184 = vmatpush.msra.mxu0 0.0
    %1185 = vmatpush.msra.mxu0 0.0
    %1186 = vmatpush.msra.mxu0 0.0
    %1187 = vmatpush.msra.mxu0 0.0
    %1188 = vmatpush.msra.mxu0 0.0
    %1189 = vmatpush.msra.mxu0 0.0
    %1190 = vmatpush.msra.mxu0 0.0
    %1191 = vmatpush.msra.mxu0 0.0
    %1192 = vmatpush.msra.mxu0 0.0
    %1193 = vmatpush.msra.mxu0 %v199
    %1194 = vmatpush.msra.mxu0 %v198
    %1195 = vmatpush.msra.mxu0 %v197
    %1196 = vmatpush.msra.mxu0 %v196
    %1197 = vmatmul.f32.gmra.mxu0 %v1179
    %v1198 = vpop.f32.mrf.mxu0
    %v1199 = vadd.f32 0.0, %v1198
    %1200 = vdwg.mxu0
    %v1201 = vadd.f32 %v173, %v1199
    %v1202 = vxor.u32 %v1201, 2147483648
    %v1203 = vmul.f32 %v1202, 1.442695
    %v1204 = vpow.pop %v1203
    %v1205 = vadd.f32 %v1204, 1.0
    %v1206 = vrcp.pop %v1205
    %v1207 = vmul.f32 %v1205, %v1206
    %v1208 = vsub.f32 1.0, %v1207
    %v1209 = vmul.f32 %v1206, %v1208
    %v1210 = vadd.f32 %v1206, %v1209
    %vm1211 = vweird.f32 %v1205
    %vm1212 = vweird.f32 %v1206
    %vm1213 = vmor %vm1211, %vm1212
    %v1214 = vsel %vm1213, %v1206, %v1210
    %v1215 = vand.u32 2147483647, %v1205
    %vm1216 = vcmp.eq.f32.partialorder %v1215, 8.507059e+37
    %v1217 = vand.u32 %v1205, 2147483648
    %v1218 = vor.u32 1.1754944e-38, %v1217
    %v1219 = vsel %vm1216, %v1218, %v1214
    %v1220 = vmul.f32 1.0, %v1219
    %1221 = vst [vmem:[#allocation1] ss:$4 sm:$0xff] %v1173
    %v1222 = vld.sshfl [vmem:[#allocation1] sm:$0xff pattern:$0x73625140]
    %1223 = vrot.lane.b32.xlu0 %v1222, 32
    %v1224 = vpop.permute.xlu0 %1223
    %v1225 = vsel %vm215, %v1224, 0
    %1227 = vmatpush.msra.mxu0 0.0
    %1228 = vmatpush.msra.mxu0 0.0
    %1229 = vmatpush.msra.mxu0 0.0
    %1230 = vmatpush.msra.mxu0 0.0
    %1231 = vmatpush.msra.mxu0 0.0
    %1232 = vmatpush.msra.mxu0 0.0
    %1233 = vmatpush.msra.mxu0 0.0
    %1234 = vmatpush.msra.mxu0 0.0
    %1235 = vmatpush.msra.mxu0 0.0
    %1236 = vmatpush.msra.mxu0 0.0
    %1237 = vmatpush.msra.mxu0 0.0
    %1238 = vmatpush.msra.mxu0 0.0
    %1239 = vmatpush.msra.mxu0 %v204
    %1240 = vmatpush.msra.mxu0 %v203
    %1241 = vmatpush.msra.mxu0 %v202
    %1242 = vmatpush.msra.mxu0 %v201
    %1243 = vmatmul.f32.gmra.mxu0 %v1225
    %v1244 = vpop.f32.mrf.mxu0
    %v1245 = vadd.f32 0.0, %v1244
    %1246 = vdwg.mxu0
    %1248 = vrot.lane.b32.xlu0 %v1245, 32
    %v1249 = vpop.permute.xlu0 %1248
    %v1251 = vadd.f32 %v173, %v1249
    %v1252 = vxor.u32 %v1251, 2147483648
    %v1253 = vmul.f32 %v1252, 1.442695
    %v1254 = vpow.pop %v1253
    %v1255 = vadd.f32 %v1254, 1.0
    %v1256 = vrcp.pop %v1255
    %v1257 = vmul.f32 %v1255, %v1256
    %v1258 = vsub.f32 1.0, %v1257
    %v1259 = vmul.f32 %v1256, %v1258
    %v1260 = vadd.f32 %v1256, %v1259
    %vm1261 = vweird.f32 %v1255
    %vm1262 = vweird.f32 %v1256
    %vm1263 = vmor %vm1261, %vm1262
    %v1264 = vsel %vm1263, %v1256, %v1260
    %v1265 = vand.u32 2147483647, %v1255
    %vm1266 = vcmp.eq.f32.partialorder %v1265, 8.507059e+37
    %v1267 = vand.u32 %v1255, 2147483648
    %v1268 = vor.u32 1.1754944e-38, %v1267
    %v1269 = vsel %vm1266, %v1268, %v1264
    %v1270 = vmul.f32 1.0, %v1269
    %1271 = vst [vmem:[#allocation1] ss:$4 sm:$0xff] %v1173
    %v1272 = vld.sshfl [vmem:[#allocation1] sm:$0xff pattern:$0x73625140]
    %1273 = vrot.lane.b32.xlu0 %v1272, 32
    %v1274 = vpop.permute.xlu0 %1273
    %v1275 = vsel %vm215, %v1274, 0
    %1277 = vmatpush.msra.mxu0 0.0
    %1278 = vmatpush.msra.mxu0 0.0
    %1279 = vmatpush.msra.mxu0 0.0
    %1280 = vmatpush.msra.mxu0 0.0
    %1281 = vmatpush.msra.mxu0 0.0
    %1282 = vmatpush.msra.mxu0 0.0
    %1283 = vmatpush.msra.mxu0 0.0
    %1284 = vmatpush.msra.mxu0 0.0
    %1285 = vmatpush.msra.mxu0 0.0
    %1286 = vmatpush.msra.mxu0 0.0
    %1287 = vmatpush.msra.mxu0 0.0
    %1288 = vmatpush.msra.mxu0 0.0
    %1289 = vmatpush.msra.mxu0 %v209
    %1290 = vmatpush.msra.mxu0 %v208
    %1291 = vmatpush.msra.mxu0 %v207
    %1292 = vmatpush.msra.mxu0 %v206
    %1293 = vmatmul.f32.gmra.mxu0 %v1275
    %v1294 = vpop.f32.mrf.mxu0
    %v1295 = vadd.f32 0.0, %v1294
    %1296 = vdwg.mxu0
    %1298 = vrot.lane.b32.xlu0 %v1295, 64
    %v1299 = vpop.permute.xlu0 %1298
    %v1301 = vadd.f32 %v173, %v1299
    %v1302 = vtanh.pop %v1301
    %1303 = vst [vmem:[#allocation1] ss:$4 sm:$0xff] %v1173
    %v1304 = vld.sshfl [vmem:[#allocation1] sm:$0xff pattern:$0x73625140]
    %1305 = vrot.lane.b32.xlu0 %v1304, 32
    %v1306 = vpop.permute.xlu0 %1305
    %v1307 = vsel %vm215, %v1306, 0
    %1309 = vmatpush.msra.mxu0 0.0
    %1310 = vmatpush.msra.mxu0 0.0
    %1311 = vmatpush.msra.mxu0 0.0
    %1312 = vmatpush.msra.mxu0 0.0
    %1313 = vmatpush.msra.mxu0 0.0
    %1314 = vmatpush.msra.mxu0 0.0
    %1315 = vmatpush.msra.mxu0 0.0
    %1316 = vmatpush.msra.mxu0 0.0
    %1317 = vmatpush.msra.mxu0 0.0
    %1318 = vmatpush.msra.mxu0 0.0
    %1319 = vmatpush.msra.mxu0 0.0
    %1320 = vmatpush.msra.mxu0 0.0
    %1321 = vmatpush.msra.mxu0 %v214
    %1322 = vmatpush.msra.mxu0 %v213
    %1323 = vmatpush.msra.mxu0 %v212
    %1324 = vmatpush.msra.mxu0 %v211
    %1325 = vmatmul.f32.gmra.mxu0 %v1307
    %v1326 = vpop.f32.mrf.mxu0
    %v1327 = vadd.f32 0.0, %v1326
    %1328 = vdwg.mxu0
    %1330 = vrot.lane.b32.xlu0 %v1327, 96
    %v1331 = vpop.permute.xlu0 %1330
    %v1333 = vadd.f32 %v173, %v1331
    %v1334 = vxor.u32 %v1333, 2147483648
    %v1335 = vmul.f32 %v1334, 1.442695
    %v1336 = vpow.pop %v1335
    %v1337 = vadd.f32 %v1336, 1.0
    %v1338 = vrcp.pop %v1337
    %v1339 = vmul.f32 %v1337, %v1338
    %v1340 = vsub.f32 1.0, %v1339
    %v1341 = vmul.f32 %v1338, %v1340
    %v1342 = vadd.f32 %v1338, %v1341
    %vm1343 = vweird.f32 %v1337
    %vm1344 = vweird.f32 %v1338
    %vm1345 = vmor %vm1343, %vm1344
    %v1346 = vsel %vm1345, %v1338, %v1342
    %v1347 = vand.u32 2147483647, %v1337
    %vm1348 = vcmp.eq.f32.partialorder %v1347, 8.507059e+37
    %v1349 = vand.u32 %v1337, 2147483648
    %v1350 = vor.u32 1.1754944e-38, %v1349
    %v1351 = vsel %vm1348, %v1350, %v1346
    %v1352 = vmul.f32 1.0, %v1351
    %v1353 = vmul.f32 %v1270, %v1167
    %1355 = vrot.lane.b32.xlu0 %v1302, 64
    %v1356 = vpop.permute.xlu0 %1355
    %v1358 = vmul.f32 %v1220, %v1356
    %1360 = vrot.lane.b32.xlu0 %v1358, 32
    %v1361 = vpop.permute.xlu0 %1360
    %v1363 = vadd.f32 %v1353, %v1361
    %v1364 = vtanh.pop %v1363
    %1366 = vrot.lane.b32.xlu0 %v1364, 64
    %v1367 = vpop.permute.xlu0 %1366
    %v1369 = vmul.f32 %v1352, %v1367
    %1371 = vst [vmem:[#allocation1] ss:$4 sm:$0xff] %v1369
    %v1372 = vld.sshfl [vmem:[#allocation1] sm:$0xff pattern:$0x73625140]
    %1373 = vrot.lane.b32.xlu0 %v1372, 32
    %v1374 = vpop.permute.xlu0 %1373
    %v1375 = vsel %vm215, %v1374, 0
    %1377 = vmatpush.msra.mxu0 0.0
    %1378 = vmatpush.msra.mxu0 0.0
    %1379 = vmatpush.msra.mxu0 0.0
    %1380 = vmatpush.msra.mxu0 0.0
    %1381 = vmatpush.msra.mxu0 0.0
    %1382 = vmatpush.msra.mxu0 0.0
    %1383 = vmatpush.msra.mxu0 0.0
    %1384 = vmatpush.msra.mxu0 0.0
    %1385 = vmatpush.msra.mxu0 0.0
    %1386 = vmatpush.msra.mxu0 0.0
    %1387 = vmatpush.msra.mxu0 0.0
    %1388 = vmatpush.msra.mxu0 0.0
    %1389 = vmatpush.msra.mxu0 %v199
    %1390 = vmatpush.msra.mxu0 %v198
    %1391 = vmatpush.msra.mxu0 %v197
    %1392 = vmatpush.msra.mxu0 %v196
    %1393 = vmatmul.f32.gmra.mxu0 %v1375
    %v1394 = vpop.f32.mrf.mxu0
    %v1395 = vadd.f32 0.0, %v1394
    %1396 = vdwg.mxu0
    %v1397 = vadd.f32 %v174, %v1395
    %v1398 = vxor.u32 %v1397, 2147483648
    %v1399 = vmul.f32 %v1398, 1.442695
    %v1400 = vpow.pop %v1399
    %v1401 = vadd.f32 %v1400, 1.0
    %v1402 = vrcp.pop %v1401
    %v1403 = vmul.f32 %v1401, %v1402
    %v1404 = vsub.f32 1.0, %v1403
    %v1405 = vmul.f32 %v1402, %v1404
    %v1406 = vadd.f32 %v1402, %v1405
    %vm1407 = vweird.f32 %v1401
    %vm1408 = vweird.f32 %v1402
    %vm1409 = vmor %vm1407, %vm1408
    %v1410 = vsel %vm1409, %v1402, %v1406
    %v1411 = vand.u32 2147483647, %v1401
    %vm1412 = vcmp.eq.f32.partialorder %v1411, 8.507059e+37
    %v1413 = vand.u32 %v1401, 2147483648
    %v1414 = vor.u32 1.1754944e-38, %v1413
    %v1415 = vsel %vm1412, %v1414, %v1410
    %v1416 = vmul.f32 1.0, %v1415
    %1417 = vst [vmem:[#allocation1] ss:$4 sm:$0xff] %v1369
    %v1418 = vld.sshfl [vmem:[#allocation1] sm:$0xff pattern:$0x73625140]
    %1419 = vrot.lane.b32.xlu0 %v1418, 32
    %v1420 = vpop.permute.xlu0 %1419
    %v1421 = vsel %vm215, %v1420, 0
    %1423 = vmatpush.msra.mxu0 0.0
    %1424 = vmatpush.msra.mxu0 0.0
    %1425 = vmatpush.msra.mxu0 0.0
    %1426 = vmatpush.msra.mxu0 0.0
    %1427 = vmatpush.msra.mxu0 0.0
    %1428 = vmatpush.msra.mxu0 0.0
    %1429 = vmatpush.msra.mxu0 0.0
    %1430 = vmatpush.msra.mxu0 0.0
    %1431 = vmatpush.msra.mxu0 0.0
    %1432 = vmatpush.msra.mxu0 0.0
    %1433 = vmatpush.msra.mxu0 0.0
    %1434 = vmatpush.msra.mxu0 0.0
    %1435 = vmatpush.msra.mxu0 %v204
    %1436 = vmatpush.msra.mxu0 %v203
    %1437 = vmatpush.msra.mxu0 %v202
    %1438 = vmatpush.msra.mxu0 %v201
    %1439 = vmatmul.f32.gmra.mxu0 %v1421
    %v1440 = vpop.f32.mrf.mxu0
    %v1441 = vadd.f32 0.0, %v1440
    %1442 = vdwg.mxu0
    %1444 = vrot.lane.b32.xlu0 %v1441, 32
    %v1445 = vpop.permute.xlu0 %1444
    %v1447 = vadd.f32 %v174, %v1445
    %v1448 = vxor.u32 %v1447, 2147483648
    %v1449 = vmul.f32 %v1448, 1.442695
    %v1450 = vpow.pop %v1449
    %v1451 = vadd.f32 %v1450, 1.0
    %v1452 = vrcp.pop %v1451
    %v1453 = vmul.f32 %v1451, %v1452
    %v1454 = vsub.f32 1.0, %v1453
    %v1455 = vmul.f32 %v1452, %v1454
    %v1456 = vadd.f32 %v1452, %v1455
    %vm1457 = vweird.f32 %v1451
    %vm1458 = vweird.f32 %v1452
    %vm1459 = vmor %vm1457, %vm1458
    %v1460 = vsel %vm1459, %v1452, %v1456
    %v1461 = vand.u32 2147483647, %v1451
    %vm1462 = vcmp.eq.f32.partialorder %v1461, 8.507059e+37
    %v1463 = vand.u32 %v1451, 2147483648
    %v1464 = vor.u32 1.1754944e-38, %v1463
    %v1465 = vsel %vm1462, %v1464, %v1460
    %v1466 = vmul.f32 1.0, %v1465
    %1467 = vst [vmem:[#allocation1] ss:$4 sm:$0xff] %v1369
    %v1468 = vld.sshfl [vmem:[#allocation1] sm:$0xff pattern:$0x73625140]
    %1469 = vrot.lane.b32.xlu0 %v1468, 32
    %v1470 = vpop.permute.xlu0 %1469
    %v1471 = vsel %vm215, %v1470, 0
    %1473 = vmatpush.msra.mxu0 0.0
    %1474 = vmatpush.msra.mxu0 0.0
    %1475 = vmatpush.msra.mxu0 0.0
    %1476 = vmatpush.msra.mxu0 0.0
    %1477 = vmatpush.msra.mxu0 0.0
    %1478 = vmatpush.msra.mxu0 0.0
    %1479 = vmatpush.msra.mxu0 0.0
    %1480 = vmatpush.msra.mxu0 0.0
    %1481 = vmatpush.msra.mxu0 0.0
    %1482 = vmatpush.msra.mxu0 0.0
    %1483 = vmatpush.msra.mxu0 0.0
    %1484 = vmatpush.msra.mxu0 0.0
    %1485 = vmatpush.msra.mxu0 %v209
    %1486 = vmatpush.msra.mxu0 %v208
    %1487 = vmatpush.msra.mxu0 %v207
    %1488 = vmatpush.msra.mxu0 %v206
    %1489 = vmatmul.f32.gmra.mxu0 %v1471
    %v1490 = vpop.f32.mrf.mxu0
    %v1491 = vadd.f32 0.0, %v1490
    %1492 = vdwg.mxu0
    %1494 = vrot.lane.b32.xlu0 %v1491, 64
    %v1495 = vpop.permute.xlu0 %1494
    %v1497 = vadd.f32 %v174, %v1495
    %v1498 = vtanh.pop %v1497
    %1499 = vst [vmem:[#allocation1] ss:$4 sm:$0xff] %v1369
    %v1500 = vld.sshfl [vmem:[#allocation1] sm:$0xff pattern:$0x73625140]
    %1501 = vrot.lane.b32.xlu0 %v1500, 32
    %v1502 = vpop.permute.xlu0 %1501
    %v1503 = vsel %vm215, %v1502, 0
    %1505 = vmatpush.msra.mxu0 0.0
    %1506 = vmatpush.msra.mxu0 0.0
    %1507 = vmatpush.msra.mxu0 0.0
    %1508 = vmatpush.msra.mxu0 0.0
    %1509 = vmatpush.msra.mxu0 0.0
    %1510 = vmatpush.msra.mxu0 0.0
    %1511 = vmatpush.msra.mxu0 0.0
    %1512 = vmatpush.msra.mxu0 0.0
    %1513 = vmatpush.msra.mxu0 0.0
    %1514 = vmatpush.msra.mxu0 0.0
    %1515 = vmatpush.msra.mxu0 0.0
    %1516 = vmatpush.msra.mxu0 0.0
    %1517 = vmatpush.msra.mxu0 %v214
    %1518 = vmatpush.msra.mxu0 %v213
    %1519 = vmatpush.msra.mxu0 %v212
    %1520 = vmatpush.msra.mxu0 %v211
    %1521 = vmatmul.f32.gmra.mxu0 %v1503
    %v1522 = vpop.f32.mrf.mxu0
    %v1523 = vadd.f32 0.0, %v1522
    %1524 = vdwg.mxu0
    %1526 = vrot.lane.b32.xlu0 %v1523, 96
    %v1527 = vpop.permute.xlu0 %1526
    %v1529 = vadd.f32 %v174, %v1527
    %v1530 = vxor.u32 %v1529, 2147483648
    %v1531 = vmul.f32 %v1530, 1.442695
    %v1532 = vpow.pop %v1531
    %v1533 = vadd.f32 %v1532, 1.0
    %v1534 = vrcp.pop %v1533
    %v1535 = vmul.f32 %v1533, %v1534
    %v1536 = vsub.f32 1.0, %v1535
    %v1537 = vmul.f32 %v1534, %v1536
    %v1538 = vadd.f32 %v1534, %v1537
    %vm1539 = vweird.f32 %v1533
    %vm1540 = vweird.f32 %v1534
    %vm1541 = vmor %vm1539, %vm1540
    %v1542 = vsel %vm1541, %v1534, %v1538
    %v1543 = vand.u32 2147483647, %v1533
    %vm1544 = vcmp.eq.f32.partialorder %v1543, 8.507059e+37
    %v1545 = vand.u32 %v1533, 2147483648
    %v1546 = vor.u32 1.1754944e-38, %v1545
    %v1547 = vsel %vm1544, %v1546, %v1542
    %v1548 = vmul.f32 1.0, %v1547
    %v1549 = vmul.f32 %v1466, %v1363
    %1551 = vrot.lane.b32.xlu0 %v1498, 64
    %v1552 = vpop.permute.xlu0 %1551
    %v1554 = vmul.f32 %v1416, %v1552
    %1556 = vrot.lane.b32.xlu0 %v1554, 32
    %v1557 = vpop.permute.xlu0 %1556
    %v1559 = vadd.f32 %v1549, %v1557
    %v1560 = vtanh.pop %v1559
    %1562 = vrot.lane.b32.xlu0 %v1560, 64
    %v1563 = vpop.permute.xlu0 %1562
    %v1565 = vmul.f32 %v1548, %v1563
    %1567 = vst [vmem:[#allocation1] ss:$4 sm:$0xff] %v1565
    %v1568 = vld.sshfl [vmem:[#allocation1] sm:$0xff pattern:$0x73625140]
    %1569 = vrot.lane.b32.xlu0 %v1568, 32
    %v1570 = vpop.permute.xlu0 %1569
    %v1571 = vsel %vm215, %v1570, 0
    %1573 = vmatpush.msra.mxu0 0.0
    %1574 = vmatpush.msra.mxu0 0.0
    %1575 = vmatpush.msra.mxu0 0.0
    %1576 = vmatpush.msra.mxu0 0.0
    %1577 = vmatpush.msra.mxu0 0.0
    %1578 = vmatpush.msra.mxu0 0.0
    %1579 = vmatpush.msra.mxu0 0.0
    %1580 = vmatpush.msra.mxu0 0.0
    %1581 = vmatpush.msra.mxu0 0.0
    %1582 = vmatpush.msra.mxu0 0.0
    %1583 = vmatpush.msra.mxu0 0.0
    %1584 = vmatpush.msra.mxu0 0.0
    %1585 = vmatpush.msra.mxu0 %v199
    %1586 = vmatpush.msra.mxu0 %v198
    %1587 = vmatpush.msra.mxu0 %v197
    %1588 = vmatpush.msra.mxu0 %v196
    %1589 = vmatmul.f32.gmra.mxu0 %v1571
    %v1590 = vpop.f32.mrf.mxu0
    %v1591 = vadd.f32 0.0, %v1590
    %1592 = vdwg.mxu0
    %v1593 = vadd.f32 %v175, %v1591
    %v1594 = vxor.u32 %v1593, 2147483648
    %v1595 = vmul.f32 %v1594, 1.442695
    %v1596 = vpow.pop %v1595
    %v1597 = vadd.f32 %v1596, 1.0
    %v1598 = vrcp.pop %v1597
    %v1599 = vmul.f32 %v1597, %v1598
    %v1600 = vsub.f32 1.0, %v1599
    %v1601 = vmul.f32 %v1598, %v1600
    %v1602 = vadd.f32 %v1598, %v1601
    %vm1603 = vweird.f32 %v1597
    %vm1604 = vweird.f32 %v1598
    %vm1605 = vmor %vm1603, %vm1604
    %v1606 = vsel %vm1605, %v1598, %v1602
    %v1607 = vand.u32 2147483647, %v1597
    %vm1608 = vcmp.eq.f32.partialorder %v1607, 8.507059e+37
    %v1609 = vand.u32 %v1597, 2147483648
    %v1610 = vor.u32 1.1754944e-38, %v1609
    %v1611 = vsel %vm1608, %v1610, %v1606
    %v1612 = vmul.f32 1.0, %v1611
    %1613 = vst [vmem:[#allocation1] ss:$4 sm:$0xff] %v1565
    %v1614 = vld.sshfl [vmem:[#allocation1] sm:$0xff pattern:$0x73625140]
    %1615 = vrot.lane.b32.xlu0 %v1614, 32
    %v1616 = vpop.permute.xlu0 %1615
    %v1617 = vsel %vm215, %v1616, 0
    %1619 = vmatpush.msra.mxu0 0.0
    %1620 = vmatpush.msra.mxu0 0.0
    %1621 = vmatpush.msra.mxu0 0.0
    %1622 = vmatpush.msra.mxu0 0.0
    %1623 = vmatpush.msra.mxu0 0.0
    %1624 = vmatpush.msra.mxu0 0.0
    %1625 = vmatpush.msra.mxu0 0.0
    %1626 = vmatpush.msra.mxu0 0.0
    %1627 = vmatpush.msra.mxu0 0.0
    %1628 = vmatpush.msra.mxu0 0.0
    %1629 = vmatpush.msra.mxu0 0.0
    %1630 = vmatpush.msra.mxu0 0.0
    %1631 = vmatpush.msra.mxu0 %v204
    %1632 = vmatpush.msra.mxu0 %v203
    %1633 = vmatpush.msra.mxu0 %v202
    %1634 = vmatpush.msra.mxu0 %v201
    %1635 = vmatmul.f32.gmra.mxu0 %v1617
    %v1636 = vpop.f32.mrf.mxu0
    %v1637 = vadd.f32 0.0, %v1636
    %1638 = vdwg.mxu0
    %1640 = vrot.lane.b32.xlu0 %v1637, 32
    %v1641 = vpop.permute.xlu0 %1640
    %v1643 = vadd.f32 %v175, %v1641
    %v1644 = vxor.u32 %v1643, 2147483648
    %v1645 = vmul.f32 %v1644, 1.442695
    %v1646 = vpow.pop %v1645
    %v1647 = vadd.f32 %v1646, 1.0
    %v1648 = vrcp.pop %v1647
    %v1649 = vmul.f32 %v1647, %v1648
    %v1650 = vsub.f32 1.0, %v1649
    %v1651 = vmul.f32 %v1648, %v1650
    %v1652 = vadd.f32 %v1648, %v1651
    %vm1653 = vweird.f32 %v1647
    %vm1654 = vweird.f32 %v1648
    %vm1655 = vmor %vm1653, %vm1654
    %v1656 = vsel %vm1655, %v1648, %v1652
    %v1657 = vand.u32 2147483647, %v1647
    %vm1658 = vcmp.eq.f32.partialorder %v1657, 8.507059e+37
    %v1659 = vand.u32 %v1647, 2147483648
    %v1660 = vor.u32 1.1754944e-38, %v1659
    %v1661 = vsel %vm1658, %v1660, %v1656
    %v1662 = vmul.f32 1.0, %v1661
    %1663 = vst [vmem:[#allocation1] ss:$4 sm:$0xff] %v1565
    %v1664 = vld.sshfl [vmem:[#allocation1] sm:$0xff pattern:$0x73625140]
    %1665 = vrot.lane.b32.xlu0 %v1664, 32
    %v1666 = vpop.permute.xlu0 %1665
    %v1667 = vsel %vm215, %v1666, 0
    %1669 = vmatpush.msra.mxu0 0.0
    %1670 = vmatpush.msra.mxu0 0.0
    %1671 = vmatpush.msra.mxu0 0.0
    %1672 = vmatpush.msra.mxu0 0.0
    %1673 = vmatpush.msra.mxu0 0.0
    %1674 = vmatpush.msra.mxu0 0.0
    %1675 = vmatpush.msra.mxu0 0.0
    %1676 = vmatpush.msra.mxu0 0.0
    %1677 = vmatpush.msra.mxu0 0.0
    %1678 = vmatpush.msra.mxu0 0.0
    %1679 = vmatpush.msra.mxu0 0.0
    %1680 = vmatpush.msra.mxu0 0.0
    %1681 = vmatpush.msra.mxu0 %v209
    %1682 = vmatpush.msra.mxu0 %v208
    %1683 = vmatpush.msra.mxu0 %v207
    %1684 = vmatpush.msra.mxu0 %v206
    %1685 = vmatmul.f32.gmra.mxu0 %v1667
    %v1686 = vpop.f32.mrf.mxu0
    %v1687 = vadd.f32 0.0, %v1686
    %1688 = vdwg.mxu0
    %1690 = vrot.lane.b32.xlu0 %v1687, 64
    %v1691 = vpop.permute.xlu0 %1690
    %v1693 = vadd.f32 %v175, %v1691
    %v1694 = vtanh.pop %v1693
    %1695 = vst [vmem:[#allocation1] ss:$4 sm:$0xff] %v1565
    %v1696 = vld.sshfl [vmem:[#allocation1] sm:$0xff pattern:$0x73625140]
    %1697 = vrot.lane.b32.xlu0 %v1696, 32
    %v1698 = vpop.permute.xlu0 %1697
    %v1699 = vsel %vm215, %v1698, 0
    %1701 = vmatpush.msra.mxu0 0.0
    %1702 = vmatpush.msra.mxu0 0.0
    %1703 = vmatpush.msra.mxu0 0.0
    %1704 = vmatpush.msra.mxu0 0.0
    %1705 = vmatpush.msra.mxu0 0.0
    %1706 = vmatpush.msra.mxu0 0.0
    %1707 = vmatpush.msra.mxu0 0.0
    %1708 = vmatpush.msra.mxu0 0.0
    %1709 = vmatpush.msra.mxu0 0.0
    %1710 = vmatpush.msra.mxu0 0.0
    %1711 = vmatpush.msra.mxu0 0.0
    %1712 = vmatpush.msra.mxu0 0.0
    %1713 = vmatpush.msra.mxu0 %v214
    %1714 = vmatpush.msra.mxu0 %v213
    %1715 = vmatpush.msra.mxu0 %v212
    %1716 = vmatpush.msra.mxu0 %v211
    %1717 = vmatmul.f32.gmra.mxu0 %v1699
    %v1718 = vpop.f32.mrf.mxu0
    %v1719 = vadd.f32 0.0, %v1718
    %1720 = vdwg.mxu0
    %1722 = vrot.lane.b32.xlu0 %v1719, 96
    %v1723 = vpop.permute.xlu0 %1722
    %v1725 = vadd.f32 %v175, %v1723
    %v1726 = vxor.u32 %v1725, 2147483648
    %v1727 = vmul.f32 %v1726, 1.442695
    %v1728 = vpow.pop %v1727
    %v1729 = vadd.f32 %v1728, 1.0
    %v1730 = vrcp.pop %v1729
    %v1731 = vmul.f32 %v1729, %v1730
    %v1732 = vsub.f32 1.0, %v1731
    %v1733 = vmul.f32 %v1730, %v1732
    %v1734 = vadd.f32 %v1730, %v1733
    %vm1735 = vweird.f32 %v1729
    %vm1736 = vweird.f32 %v1730
    %vm1737 = vmor %vm1735, %vm1736
    %v1738 = vsel %vm1737, %v1730, %v1734
    %v1739 = vand.u32 2147483647, %v1729
    %vm1740 = vcmp.eq.f32.partialorder %v1739, 8.507059e+37
    %v1741 = vand.u32 %v1729, 2147483648
    %v1742 = vor.u32 1.1754944e-38, %v1741
    %v1743 = vsel %vm1740, %v1742, %v1738
    %v1744 = vmul.f32 1.0, %v1743
    %v1745 = vmul.f32 %v1662, %v1559
    %1747 = vrot.lane.b32.xlu0 %v1694, 64
    %v1748 = vpop.permute.xlu0 %1747
    %v1750 = vmul.f32 %v1612, %v1748
    %1752 = vrot.lane.b32.xlu0 %v1750, 32
    %v1753 = vpop.permute.xlu0 %1752
    %v1755 = vadd.f32 %v1745, %v1753
    %v1756 = vtanh.pop %v1755
    %1758 = vrot.lane.b32.xlu0 %v1756, 64
    %v1759 = vpop.permute.xlu0 %1758
    %v1761 = vmul.f32 %v1744, %v1759
    %v1762 = vld [vmem:[%s5] sm:$0xff]
    %v1763 = vld [vmem:[%s5 + $0x8] sm:$0xff]
    %v1764 = vld [vmem:[%s5 + $0x10] sm:$0xff]
    %v1765 = vld [vmem:[%s5 + $0x18] sm:$0xff]
    %s1766 = scalar_lea.vmem %s5, 32
    %v1767 = vld [vmem:[%s1766] sm:$0xff]
    %v1768 = vld [vmem:[%s1766 + $0x8] sm:$0xff]
    %v1769 = vld [vmem:[%s1766 + $0x10] sm:$0xff]
    %v1770 = vld [vmem:[%s1766 + $0x18] sm:$0xff]
    %s1771 = scalar_lea.vmem %s5, 64
    %v1772 = vld [vmem:[%s1771] sm:$0xff]
    %v1773 = vld [vmem:[%s1771 + $0x8] sm:$0xff]
    %v1774 = vld [vmem:[%s1771 + $0x10] sm:$0xff]
    %v1775 = vld [vmem:[%s1771 + $0x18] sm:$0xff]
    %s1776 = scalar_lea.vmem %s5, 96
    %v1777 = vld [vmem:[%s1776] sm:$0xff]
    %v1778 = vld [vmem:[%s1776 + $0x8] sm:$0xff]
    %v1779 = vld [vmem:[%s1776 + $0x10] sm:$0xff]
    %v1780 = vld [vmem:[%s1776 + $0x18] sm:$0xff]
    %1781 = vmatpush.msra.mxu0 0.0
    %1782 = vmatpush.msra.mxu0 0.0
    %1783 = vmatpush.msra.mxu0 0.0
    %1784 = vmatpush.msra.mxu0 0.0
    %1785 = vmatpush.msra.mxu0 0.0
    %1786 = vmatpush.msra.mxu0 0.0
    %1787 = vmatpush.msra.mxu0 0.0
    %1788 = vmatpush.msra.mxu0 0.0
    %1789 = vmatpush.msra.mxu0 0.0
    %1790 = vmatpush.msra.mxu0 0.0
    %1791 = vmatpush.msra.mxu0 0.0
    %1792 = vmatpush.msra.mxu0 0.0
    %1793 = vmatpush.msra.mxu0 %v1765
    %1794 = vmatpush.msra.mxu0 %v1764
    %1795 = vmatpush.msra.mxu0 %v1763
    %1796 = vmatpush.msra.mxu0 %v1762
    %1797 = vmatmul.f32.gmra.mxu0 %v217
    %v1798 = vpop.f32.mrf.mxu0
    %v1799 = vadd.f32 0.0, %v1798
    %1800 = vdwg.mxu0
    %v1801 = vadd.f32 %v189, %v1799
    %v1802 = vxor.u32 %v1801, 2147483648
    %v1803 = vmul.f32 %v1802, 1.442695
    %v1804 = vpow.pop %v1803
    %v1805 = vadd.f32 %v1804, 1.0
    %v1806 = vrcp.pop %v1805
    %v1807 = vmul.f32 %v1805, %v1806
    %v1808 = vsub.f32 1.0, %v1807
    %v1809 = vmul.f32 %v1806, %v1808
    %v1810 = vadd.f32 %v1806, %v1809
    %vm1811 = vweird.f32 %v1805
    %vm1812 = vweird.f32 %v1806
    %vm1813 = vmor %vm1811, %vm1812
    %v1814 = vsel %vm1813, %v1806, %v1810
    %v1815 = vand.u32 2147483647, %v1805
    %vm1816 = vcmp.eq.f32.partialorder %v1815, 8.507059e+37
    %v1817 = vand.u32 %v1805, 2147483648
    %v1818 = vor.u32 1.1754944e-38, %v1817
    %v1819 = vsel %vm1816, %v1818, %v1814
    %v1820 = vmul.f32 1.0, %v1819
    %1821 = vmatpush.msra.mxu0 0.0
    %1822 = vmatpush.msra.mxu0 0.0
    %1823 = vmatpush.msra.mxu0 0.0
    %1824 = vmatpush.msra.mxu0 0.0
    %1825 = vmatpush.msra.mxu0 0.0
    %1826 = vmatpush.msra.mxu0 0.0
    %1827 = vmatpush.msra.mxu0 0.0
    %1828 = vmatpush.msra.mxu0 0.0
    %1829 = vmatpush.msra.mxu0 0.0
    %1830 = vmatpush.msra.mxu0 0.0
    %1831 = vmatpush.msra.mxu0 0.0
    %1832 = vmatpush.msra.mxu0 0.0
    %1833 = vmatpush.msra.mxu0 %v1770
    %1834 = vmatpush.msra.mxu0 %v1769
    %1835 = vmatpush.msra.mxu0 %v1768
    %1836 = vmatpush.msra.mxu0 %v1767
    %1837 = vmatmul.f32.gmra.mxu0 %v217
    %v1838 = vpop.f32.mrf.mxu0
    %v1839 = vadd.f32 0.0, %v1838
    %1840 = vdwg.mxu0
    %1842 = vrot.lane.b32.xlu0 %v1839, 32
    %v1843 = vpop.permute.xlu0 %1842
    %v1845 = vadd.f32 %v189, %v1843
    %v1846 = vxor.u32 %v1845, 2147483648
    %v1847 = vmul.f32 %v1846, 1.442695
    %v1848 = vpow.pop %v1847
    %v1849 = vadd.f32 %v1848, 1.0
    %v1850 = vrcp.pop %v1849
    %v1851 = vmul.f32 %v1849, %v1850
    %v1852 = vsub.f32 1.0, %v1851
    %v1853 = vmul.f32 %v1850, %v1852
    %v1854 = vadd.f32 %v1850, %v1853
    %vm1855 = vweird.f32 %v1849
    %vm1856 = vweird.f32 %v1850
    %vm1857 = vmor %vm1855, %vm1856
    %v1858 = vsel %vm1857, %v1850, %v1854
    %v1859 = vand.u32 2147483647, %v1849
    %vm1860 = vcmp.eq.f32.partialorder %v1859, 8.507059e+37
    %v1861 = vand.u32 %v1849, 2147483648
    %v1862 = vor.u32 1.1754944e-38, %v1861
    %v1863 = vsel %vm1860, %v1862, %v1858
    %v1864 = vmul.f32 1.0, %v1863
    %1865 = vmatpush.msra.mxu0 0.0
    %1866 = vmatpush.msra.mxu0 0.0
    %1867 = vmatpush.msra.mxu0 0.0
    %1868 = vmatpush.msra.mxu0 0.0
    %1869 = vmatpush.msra.mxu0 0.0
    %1870 = vmatpush.msra.mxu0 0.0
    %1871 = vmatpush.msra.mxu0 0.0
    %1872 = vmatpush.msra.mxu0 0.0
    %1873 = vmatpush.msra.mxu0 0.0
    %1874 = vmatpush.msra.mxu0 0.0
    %1875 = vmatpush.msra.mxu0 0.0
    %1876 = vmatpush.msra.mxu0 0.0
    %1877 = vmatpush.msra.mxu0 %v1775
    %1878 = vmatpush.msra.mxu0 %v1774
    %1879 = vmatpush.msra.mxu0 %v1773
    %1880 = vmatpush.msra.mxu0 %v1772
    %1881 = vmatmul.f32.gmra.mxu0 %v217
    %v1882 = vpop.f32.mrf.mxu0
    %v1883 = vadd.f32 0.0, %v1882
    %1884 = vdwg.mxu0
    %1886 = vrot.lane.b32.xlu0 %v1883, 64
    %v1887 = vpop.permute.xlu0 %1886
    %v1889 = vadd.f32 %v189, %v1887
    %v1890 = vtanh.pop %v1889
    %1891 = vmatpush.msra.mxu0 0.0
    %1892 = vmatpush.msra.mxu0 0.0
    %1893 = vmatpush.msra.mxu0 0.0
    %1894 = vmatpush.msra.mxu0 0.0
    %1895 = vmatpush.msra.mxu0 0.0
    %1896 = vmatpush.msra.mxu0 0.0
    %1897 = vmatpush.msra.mxu0 0.0
    %1898 = vmatpush.msra.mxu0 0.0
    %1899 = vmatpush.msra.mxu0 0.0
    %1900 = vmatpush.msra.mxu0 0.0
    %1901 = vmatpush.msra.mxu0 0.0
    %1902 = vmatpush.msra.mxu0 0.0
    %1903 = vmatpush.msra.mxu0 %v1780
    %1904 = vmatpush.msra.mxu0 %v1779
    %1905 = vmatpush.msra.mxu0 %v1778
    %1906 = vmatpush.msra.mxu0 %v1777
    %1907 = vmatmul.f32.gmra.mxu0 %v217
    %v1908 = vpop.f32.mrf.mxu0
    %v1909 = vadd.f32 0.0, %v1908
    %1910 = vdwg.mxu0
    %1912 = vrot.lane.b32.xlu0 %v1909, 96
    %v1913 = vpop.permute.xlu0 %1912
    %v1915 = vadd.f32 %v189, %v1913
    %v1916 = vxor.u32 %v1915, 2147483648
    %v1917 = vmul.f32 %v1916, 1.442695
    %v1918 = vpow.pop %v1917
    %v1919 = vadd.f32 %v1918, 1.0
    %v1920 = vrcp.pop %v1919
    %v1921 = vmul.f32 %v1919, %v1920
    %v1922 = vsub.f32 1.0, %v1921
    %v1923 = vmul.f32 %v1920, %v1922
    %v1924 = vadd.f32 %v1920, %v1923
    %vm1925 = vweird.f32 %v1919
    %vm1926 = vweird.f32 %v1920
    %vm1927 = vmor %vm1925, %vm1926
    %v1928 = vsel %vm1927, %v1920, %v1924
    %v1929 = vand.u32 2147483647, %v1919
    %vm1930 = vcmp.eq.f32.partialorder %v1929, 8.507059e+37
    %v1931 = vand.u32 %v1919, 2147483648
    %v1932 = vor.u32 1.1754944e-38, %v1931
    %v1933 = vsel %vm1930, %v1932, %v1928
    %v1934 = vmul.f32 1.0, %v1933
    %v1935 = vmul.f32 %v1864, 0.0
    %1937 = vrot.lane.b32.xlu0 %v1890, 64
    %v1938 = vpop.permute.xlu0 %1937
    %v1940 = vmul.f32 %v1820, %v1938
    %1942 = vrot.lane.b32.xlu0 %v1940, 32
    %v1943 = vpop.permute.xlu0 %1942
    %v1945 = vadd.f32 %v1935, %v1943
    %v1946 = vtanh.pop %v1945
    %1948 = vrot.lane.b32.xlu0 %v1946, 64
    %v1949 = vpop.permute.xlu0 %1948
    %v1951 = vmul.f32 %v1934, %v1949
    %1953 = vst [vmem:[#allocation1] ss:$4 sm:$0xff] %v1951
    %v1954 = vld.sshfl [vmem:[#allocation1] sm:$0xff pattern:$0x73625140]
    %1955 = vrot.lane.b32.xlu0 %v1954, 32
    %v1956 = vpop.permute.xlu0 %1955
    %v1957 = vsel %vm215, %v1956, 0
    %1959 = vmatpush.msra.mxu0 0.0
    %1960 = vmatpush.msra.mxu0 0.0
    %1961 = vmatpush.msra.mxu0 0.0
    %1962 = vmatpush.msra.mxu0 0.0
    %1963 = vmatpush.msra.mxu0 0.0
    %1964 = vmatpush.msra.mxu0 0.0
    %1965 = vmatpush.msra.mxu0 0.0
    %1966 = vmatpush.msra.mxu0 0.0
    %1967 = vmatpush.msra.mxu0 0.0
    %1968 = vmatpush.msra.mxu0 0.0
    %1969 = vmatpush.msra.mxu0 0.0
    %1970 = vmatpush.msra.mxu0 0.0
    %1971 = vmatpush.msra.mxu0 %v1765
    %1972 = vmatpush.msra.mxu0 %v1764
    %1973 = vmatpush.msra.mxu0 %v1763
    %1974 = vmatpush.msra.mxu0 %v1762
    %1975 = vmatmul.f32.gmra.mxu0 %v1957
    %v1976 = vpop.f32.mrf.mxu0
    %v1977 = vadd.f32 0.0, %v1976
    %1978 = vdwg.mxu0
    %v1979 = vadd.f32 %v188, %v1977
    %v1980 = vxor.u32 %v1979, 2147483648
    %v1981 = vmul.f32 %v1980, 1.442695
    %v1982 = vpow.pop %v1981
    %v1983 = vadd.f32 %v1982, 1.0
    %v1984 = vrcp.pop %v1983
    %v1985 = vmul.f32 %v1983, %v1984
    %v1986 = vsub.f32 1.0, %v1985
    %v1987 = vmul.f32 %v1984, %v1986
    %v1988 = vadd.f32 %v1984, %v1987
    %vm1989 = vweird.f32 %v1983
    %vm1990 = vweird.f32 %v1984
    %vm1991 = vmor %vm1989, %vm1990
    %v1992 = vsel %vm1991, %v1984, %v1988
    %v1993 = vand.u32 2147483647, %v1983
    %vm1994 = vcmp.eq.f32.partialorder %v1993, 8.507059e+37
    %v1995 = vand.u32 %v1983, 2147483648
    %v1996 = vor.u32 1.1754944e-38, %v1995
    %v1997 = vsel %vm1994, %v1996, %v1992
    %v1998 = vmul.f32 1.0, %v1997
    %1999 = vst [vmem:[#allocation1] ss:$4 sm:$0xff] %v1951
    %v2000 = vld.sshfl [vmem:[#allocation1] sm:$0xff pattern:$0x73625140]
    %2001 = vrot.lane.b32.xlu0 %v2000, 32
    %v2002 = vpop.permute.xlu0 %2001
    %v2003 = vsel %vm215, %v2002, 0
    %2005 = vmatpush.msra.mxu0 0.0
    %2006 = vmatpush.msra.mxu0 0.0
    %2007 = vmatpush.msra.mxu0 0.0
    %2008 = vmatpush.msra.mxu0 0.0
    %2009 = vmatpush.msra.mxu0 0.0
    %2010 = vmatpush.msra.mxu0 0.0
    %2011 = vmatpush.msra.mxu0 0.0
    %2012 = vmatpush.msra.mxu0 0.0
    %2013 = vmatpush.msra.mxu0 0.0
    %2014 = vmatpush.msra.mxu0 0.0
    %2015 = vmatpush.msra.mxu0 0.0
    %2016 = vmatpush.msra.mxu0 0.0
    %2017 = vmatpush.msra.mxu0 %v1770
    %2018 = vmatpush.msra.mxu0 %v1769
    %2019 = vmatpush.msra.mxu0 %v1768
    %2020 = vmatpush.msra.mxu0 %v1767
    %2021 = vmatmul.f32.gmra.mxu0 %v2003
    %v2022 = vpop.f32.mrf.mxu0
    %v2023 = vadd.f32 0.0, %v2022
    %2024 = vdwg.mxu0
    %2026 = vrot.lane.b32.xlu0 %v2023, 32
    %v2027 = vpop.permute.xlu0 %2026
    %v2029 = vadd.f32 %v188, %v2027
    %v2030 = vxor.u32 %v2029, 2147483648
    %v2031 = vmul.f32 %v2030, 1.442695
    %v2032 = vpow.pop %v2031
    %v2033 = vadd.f32 %v2032, 1.0
    %v2034 = vrcp.pop %v2033
    %v2035 = vmul.f32 %v2033, %v2034
    %v2036 = vsub.f32 1.0, %v2035
    %v2037 = vmul.f32 %v2034, %v2036
    %v2038 = vadd.f32 %v2034, %v2037
    %vm2039 = vweird.f32 %v2033
    %vm2040 = vweird.f32 %v2034
    %vm2041 = vmor %vm2039, %vm2040
    %v2042 = vsel %vm2041, %v2034, %v2038
    %v2043 = vand.u32 2147483647, %v2033
    %vm2044 = vcmp.eq.f32.partialorder %v2043, 8.507059e+37
    %v2045 = vand.u32 %v2033, 2147483648
    %v2046 = vor.u32 1.1754944e-38, %v2045
    %v2047 = vsel %vm2044, %v2046, %v2042
    %v2048 = vmul.f32 1.0, %v2047
    %2049 = vst [vmem:[#allocation1] ss:$4 sm:$0xff] %v1951
    %v2050 = vld.sshfl [vmem:[#allocation1] sm:$0xff pattern:$0x73625140]
    %2051 = vrot.lane.b32.xlu0 %v2050, 32
    %v2052 = vpop.permute.xlu0 %2051
    %v2053 = vsel %vm215, %v2052, 0
    %2055 = vmatpush.msra.mxu0 0.0
    %2056 = vmatpush.msra.mxu0 0.0
    %2057 = vmatpush.msra.mxu0 0.0
    %2058 = vmatpush.msra.mxu0 0.0
    %2059 = vmatpush.msra.mxu0 0.0
    %2060 = vmatpush.msra.mxu0 0.0
    %2061 = vmatpush.msra.mxu0 0.0
    %2062 = vmatpush.msra.mxu0 0.0
    %2063 = vmatpush.msra.mxu0 0.0
    %2064 = vmatpush.msra.mxu0 0.0
    %2065 = vmatpush.msra.mxu0 0.0
    %2066 = vmatpush.msra.mxu0 0.0
    %2067 = vmatpush.msra.mxu0 %v1775
    %2068 = vmatpush.msra.mxu0 %v1774
    %2069 = vmatpush.msra.mxu0 %v1773
    %2070 = vmatpush.msra.mxu0 %v1772
    %2071 = vmatmul.f32.gmra.mxu0 %v2053
    %v2072 = vpop.f32.mrf.mxu0
    %v2073 = vadd.f32 0.0, %v2072
    %2074 = vdwg.mxu0
    %2076 = vrot.lane.b32.xlu0 %v2073, 64
    %v2077 = vpop.permute.xlu0 %2076
    %v2079 = vadd.f32 %v188, %v2077
    %v2080 = vtanh.pop %v2079
    %2081 = vst [vmem:[#allocation1] ss:$4 sm:$0xff] %v1951
    %v2082 = vld.sshfl [vmem:[#allocation1] sm:$0xff pattern:$0x73625140]
    %2083 = vrot.lane.b32.xlu0 %v2082, 32
    %v2084 = vpop.permute.xlu0 %2083
    %v2085 = vsel %vm215, %v2084, 0
    %2087 = vmatpush.msra.mxu0 0.0
    %2088 = vmatpush.msra.mxu0 0.0
    %2089 = vmatpush.msra.mxu0 0.0
    %2090 = vmatpush.msra.mxu0 0.0
    %2091 = vmatpush.msra.mxu0 0.0
    %2092 = vmatpush.msra.mxu0 0.0
    %2093 = vmatpush.msra.mxu0 0.0
    %2094 = vmatpush.msra.mxu0 0.0
    %2095 = vmatpush.msra.mxu0 0.0
    %2096 = vmatpush.msra.mxu0 0.0
    %2097 = vmatpush.msra.mxu0 0.0
    %2098 = vmatpush.msra.mxu0 0.0
    %2099 = vmatpush.msra.mxu0 %v1780
    %2100 = vmatpush.msra.mxu0 %v1779
    %2101 = vmatpush.msra.mxu0 %v1778
    %2102 = vmatpush.msra.mxu0 %v1777
    %2103 = vmatmul.f32.gmra.mxu0 %v2085
    %v2104 = vpop.f32.mrf.mxu0
    %v2105 = vadd.f32 0.0, %v2104
    %2106 = vdwg.mxu0
    %2108 = vrot.lane.b32.xlu0 %v2105, 96
    %v2109 = vpop.permute.xlu0 %2108
    %v2111 = vadd.f32 %v188, %v2109
    %v2112 = vxor.u32 %v2111, 2147483648
    %v2113 = vmul.f32 %v2112, 1.442695
    %v2114 = vpow.pop %v2113
    %v2115 = vadd.f32 %v2114, 1.0
    %v2116 = vrcp.pop %v2115
    %v2117 = vmul.f32 %v2115, %v2116
    %v2118 = vsub.f32 1.0, %v2117
    %v2119 = vmul.f32 %v2116, %v2118
    %v2120 = vadd.f32 %v2116, %v2119
    %vm2121 = vweird.f32 %v2115
    %vm2122 = vweird.f32 %v2116
    %vm2123 = vmor %vm2121, %vm2122
    %v2124 = vsel %vm2123, %v2116, %v2120
    %v2125 = vand.u32 2147483647, %v2115
    %vm2126 = vcmp.eq.f32.partialorder %v2125, 8.507059e+37
    %v2127 = vand.u32 %v2115, 2147483648
    %v2128 = vor.u32 1.1754944e-38, %v2127
    %v2129 = vsel %vm2126, %v2128, %v2124
    %v2130 = vmul.f32 1.0, %v2129
    %v2131 = vmul.f32 %v2048, %v1945
    %2133 = vrot.lane.b32.xlu0 %v2080, 64
    %v2134 = vpop.permute.xlu0 %2133
    %v2136 = vmul.f32 %v1998, %v2134
    %2138 = vrot.lane.b32.xlu0 %v2136, 32
    %v2139 = vpop.permute.xlu0 %2138
    %v2141 = vadd.f32 %v2131, %v2139
    %v2142 = vtanh.pop %v2141
    %2144 = vrot.lane.b32.xlu0 %v2142, 64
    %v2145 = vpop.permute.xlu0 %2144
    %v2147 = vmul.f32 %v2130, %v2145
    %2149 = vst [vmem:[#allocation1] ss:$4 sm:$0xff] %v2147
    %v2150 = vld.sshfl [vmem:[#allocation1] sm:$0xff pattern:$0x73625140]
    %2151 = vrot.lane.b32.xlu0 %v2150, 32
    %v2152 = vpop.permute.xlu0 %2151
    %v2153 = vsel %vm215, %v2152, 0
    %2155 = vmatpush.msra.mxu0 0.0
    %2156 = vmatpush.msra.mxu0 0.0
    %2157 = vmatpush.msra.mxu0 0.0
    %2158 = vmatpush.msra.mxu0 0.0
    %2159 = vmatpush.msra.mxu0 0.0
    %2160 = vmatpush.msra.mxu0 0.0
    %2161 = vmatpush.msra.mxu0 0.0
    %2162 = vmatpush.msra.mxu0 0.0
    %2163 = vmatpush.msra.mxu0 0.0
    %2164 = vmatpush.msra.mxu0 0.0
    %2165 = vmatpush.msra.mxu0 0.0
    %2166 = vmatpush.msra.mxu0 0.0
    %2167 = vmatpush.msra.mxu0 %v1765
    %2168 = vmatpush.msra.mxu0 %v1764
    %2169 = vmatpush.msra.mxu0 %v1763
    %2170 = vmatpush.msra.mxu0 %v1762
    %2171 = vmatmul.f32.gmra.mxu0 %v2153
    %v2172 = vpop.f32.mrf.mxu0
    %v2173 = vadd.f32 0.0, %v2172
    %2174 = vdwg.mxu0
    %v2175 = vadd.f32 %v187, %v2173
    %v2176 = vxor.u32 %v2175, 2147483648
    %v2177 = vmul.f32 %v2176, 1.442695
    %v2178 = vpow.pop %v2177
    %v2179 = vadd.f32 %v2178, 1.0
    %v2180 = vrcp.pop %v2179
    %v2181 = vmul.f32 %v2179, %v2180
    %v2182 = vsub.f32 1.0, %v2181
    %v2183 = vmul.f32 %v2180, %v2182
    %v2184 = vadd.f32 %v2180, %v2183
    %vm2185 = vweird.f32 %v2179
    %vm2186 = vweird.f32 %v2180
    %vm2187 = vmor %vm2185, %vm2186
    %v2188 = vsel %vm2187, %v2180, %v2184
    %v2189 = vand.u32 2147483647, %v2179
    %vm2190 = vcmp.eq.f32.partialorder %v2189, 8.507059e+37
    %v2191 = vand.u32 %v2179, 2147483648
    %v2192 = vor.u32 1.1754944e-38, %v2191
    %v2193 = vsel %vm2190, %v2192, %v2188
    %v2194 = vmul.f32 1.0, %v2193
    %2195 = vst [vmem:[#allocation1] ss:$4 sm:$0xff] %v2147
    %v2196 = vld.sshfl [vmem:[#allocation1] sm:$0xff pattern:$0x73625140]
    %2197 = vrot.lane.b32.xlu0 %v2196, 32
    %v2198 = vpop.permute.xlu0 %2197
    %v2199 = vsel %vm215, %v2198, 0
    %2201 = vmatpush.msra.mxu0 0.0
    %2202 = vmatpush.msra.mxu0 0.0
    %2203 = vmatpush.msra.mxu0 0.0
    %2204 = vmatpush.msra.mxu0 0.0
    %2205 = vmatpush.msra.mxu0 0.0
    %2206 = vmatpush.msra.mxu0 0.0
    %2207 = vmatpush.msra.mxu0 0.0
    %2208 = vmatpush.msra.mxu0 0.0
    %2209 = vmatpush.msra.mxu0 0.0
    %2210 = vmatpush.msra.mxu0 0.0
    %2211 = vmatpush.msra.mxu0 0.0
    %2212 = vmatpush.msra.mxu0 0.0
    %2213 = vmatpush.msra.mxu0 %v1770
    %2214 = vmatpush.msra.mxu0 %v1769
    %2215 = vmatpush.msra.mxu0 %v1768
    %2216 = vmatpush.msra.mxu0 %v1767
    %2217 = vmatmul.f32.gmra.mxu0 %v2199
    %v2218 = vpop.f32.mrf.mxu0
    %v2219 = vadd.f32 0.0, %v2218
    %2220 = vdwg.mxu0
    %2222 = vrot.lane.b32.xlu0 %v2219, 32
    %v2223 = vpop.permute.xlu0 %2222
    %v2225 = vadd.f32 %v187, %v2223
    %v2226 = vxor.u32 %v2225, 2147483648
    %v2227 = vmul.f32 %v2226, 1.442695
    %v2228 = vpow.pop %v2227
    %v2229 = vadd.f32 %v2228, 1.0
    %v2230 = vrcp.pop %v2229
    %v2231 = vmul.f32 %v2229, %v2230
    %v2232 = vsub.f32 1.0, %v2231
    %v2233 = vmul.f32 %v2230, %v2232
    %v2234 = vadd.f32 %v2230, %v2233
    %vm2235 = vweird.f32 %v2229
    %vm2236 = vweird.f32 %v2230
    %vm2237 = vmor %vm2235, %vm2236
    %v2238 = vsel %vm2237, %v2230, %v2234
    %v2239 = vand.u32 2147483647, %v2229
    %vm2240 = vcmp.eq.f32.partialorder %v2239, 8.507059e+37
    %v2241 = vand.u32 %v2229, 2147483648
    %v2242 = vor.u32 1.1754944e-38, %v2241
    %v2243 = vsel %vm2240, %v2242, %v2238
    %v2244 = vmul.f32 1.0, %v2243
    %2245 = vst [vmem:[#allocation1] ss:$4 sm:$0xff] %v2147
    %v2246 = vld.sshfl [vmem:[#allocation1] sm:$0xff pattern:$0x73625140]
    %2247 = vrot.lane.b32.xlu0 %v2246, 32
    %v2248 = vpop.permute.xlu0 %2247
    %v2249 = vsel %vm215, %v2248, 0
    %2251 = vmatpush.msra.mxu0 0.0
    %2252 = vmatpush.msra.mxu0 0.0
    %2253 = vmatpush.msra.mxu0 0.0
    %2254 = vmatpush.msra.mxu0 0.0
    %2255 = vmatpush.msra.mxu0 0.0
    %2256 = vmatpush.msra.mxu0 0.0
    %2257 = vmatpush.msra.mxu0 0.0
    %2258 = vmatpush.msra.mxu0 0.0
    %2259 = vmatpush.msra.mxu0 0.0
    %2260 = vmatpush.msra.mxu0 0.0
    %2261 = vmatpush.msra.mxu0 0.0
    %2262 = vmatpush.msra.mxu0 0.0
    %2263 = vmatpush.msra.mxu0 %v1775
    %2264 = vmatpush.msra.mxu0 %v1774
    %2265 = vmatpush.msra.mxu0 %v1773
    %2266 = vmatpush.msra.mxu0 %v1772
    %2267 = vmatmul.f32.gmra.mxu0 %v2249
    %v2268 = vpop.f32.mrf.mxu0
    %v2269 = vadd.f32 0.0, %v2268
    %2270 = vdwg.mxu0
    %2272 = vrot.lane.b32.xlu0 %v2269, 64
    %v2273 = vpop.permute.xlu0 %2272
    %v2275 = vadd.f32 %v187, %v2273
    %v2276 = vtanh.pop %v2275
    %2277 = vst [vmem:[#allocation1] ss:$4 sm:$0xff] %v2147
    %v2278 = vld.sshfl [vmem:[#allocation1] sm:$0xff pattern:$0x73625140]
    %2279 = vrot.lane.b32.xlu0 %v2278, 32
    %v2280 = vpop.permute.xlu0 %2279
    %v2281 = vsel %vm215, %v2280, 0
    %2283 = vmatpush.msra.mxu0 0.0
    %2284 = vmatpush.msra.mxu0 0.0
    %2285 = vmatpush.msra.mxu0 0.0
    %2286 = vmatpush.msra.mxu0 0.0
    %2287 = vmatpush.msra.mxu0 0.0
    %2288 = vmatpush.msra.mxu0 0.0
    %2289 = vmatpush.msra.mxu0 0.0
    %2290 = vmatpush.msra.mxu0 0.0
    %2291 = vmatpush.msra.mxu0 0.0
    %2292 = vmatpush.msra.mxu0 0.0
    %2293 = vmatpush.msra.mxu0 0.0
    %2294 = vmatpush.msra.mxu0 0.0
    %2295 = vmatpush.msra.mxu0 %v1780
    %2296 = vmatpush.msra.mxu0 %v1779
    %2297 = vmatpush.msra.mxu0 %v1778
    %2298 = vmatpush.msra.mxu0 %v1777
    %2299 = vmatmul.f32.gmra.mxu0 %v2281
    %v2300 = vpop.f32.mrf.mxu0
    %v2301 = vadd.f32 0.0, %v2300
    %2302 = vdwg.mxu0
    %2304 = vrot.lane.b32.xlu0 %v2301, 96
    %v2305 = vpop.permute.xlu0 %2304
    %v2307 = vadd.f32 %v187, %v2305
    %v2308 = vxor.u32 %v2307, 2147483648
    %v2309 = vmul.f32 %v2308, 1.442695
    %v2310 = vpow.pop %v2309
    %v2311 = vadd.f32 %v2310, 1.0
    %v2312 = vrcp.pop %v2311
    %v2313 = vmul.f32 %v2311, %v2312
    %v2314 = vsub.f32 1.0, %v2313
    %v2315 = vmul.f32 %v2312, %v2314
    %v2316 = vadd.f32 %v2312, %v2315
    %vm2317 = vweird.f32 %v2311
    %vm2318 = vweird.f32 %v2312
    %vm2319 = vmor %vm2317, %vm2318
    %v2320 = vsel %vm2319, %v2312, %v2316
    %v2321 = vand.u32 2147483647, %v2311
    %vm2322 = vcmp.eq.f32.partialorder %v2321, 8.507059e+37
    %v2323 = vand.u32 %v2311, 2147483648
    %v2324 = vor.u32 1.1754944e-38, %v2323
    %v2325 = vsel %vm2322, %v2324, %v2320
    %v2326 = vmul.f32 1.0, %v2325
    %v2327 = vmul.f32 %v2244, %v2141
    %2329 = vrot.lane.b32.xlu0 %v2276, 64
    %v2330 = vpop.permute.xlu0 %2329
    %v2332 = vmul.f32 %v2194, %v2330
    %2334 = vrot.lane.b32.xlu0 %v2332, 32
    %v2335 = vpop.permute.xlu0 %2334
    %v2337 = vadd.f32 %v2327, %v2335
    %v2338 = vtanh.pop %v2337
    %2340 = vrot.lane.b32.xlu0 %v2338, 64
    %v2341 = vpop.permute.xlu0 %2340
    %v2343 = vmul.f32 %v2326, %v2341
    %2345 = vst [vmem:[#allocation1] ss:$4 sm:$0xff] %v2343
    %v2346 = vld.sshfl [vmem:[#allocation1] sm:$0xff pattern:$0x73625140]
    %2347 = vrot.lane.b32.xlu0 %v2346, 32
    %v2348 = vpop.permute.xlu0 %2347
    %v2349 = vsel %vm215, %v2348, 0
    %2351 = vmatpush.msra.mxu0 0.0
    %2352 = vmatpush.msra.mxu0 0.0
    %2353 = vmatpush.msra.mxu0 0.0
    %2354 = vmatpush.msra.mxu0 0.0
    %2355 = vmatpush.msra.mxu0 0.0
    %2356 = vmatpush.msra.mxu0 0.0
    %2357 = vmatpush.msra.mxu0 0.0
    %2358 = vmatpush.msra.mxu0 0.0
    %2359 = vmatpush.msra.mxu0 0.0
    %2360 = vmatpush.msra.mxu0 0.0
    %2361 = vmatpush.msra.mxu0 0.0
    %2362 = vmatpush.msra.mxu0 0.0
    %2363 = vmatpush.msra.mxu0 %v1765
    %2364 = vmatpush.msra.mxu0 %v1764
    %2365 = vmatpush.msra.mxu0 %v1763
    %2366 = vmatpush.msra.mxu0 %v1762
    %2367 = vmatmul.f32.gmra.mxu0 %v2349
    %v2368 = vpop.f32.mrf.mxu0
    %v2369 = vadd.f32 0.0, %v2368
    %2370 = vdwg.mxu0
    %v2371 = vadd.f32 %v166, %v2369
    %v2372 = vxor.u32 %v2371, 2147483648
    %v2373 = vmul.f32 %v2372, 1.442695
    %v2374 = vpow.pop %v2373
    %v2375 = vadd.f32 %v2374, 1.0
    %v2376 = vrcp.pop %v2375
    %v2377 = vmul.f32 %v2375, %v2376
    %v2378 = vsub.f32 1.0, %v2377
    %v2379 = vmul.f32 %v2376, %v2378
    %v2380 = vadd.f32 %v2376, %v2379
    %vm2381 = vweird.f32 %v2375
    %vm2382 = vweird.f32 %v2376
    %vm2383 = vmor %vm2381, %vm2382
    %v2384 = vsel %vm2383, %v2376, %v2380
    %v2385 = vand.u32 2147483647, %v2375
    %vm2386 = vcmp.eq.f32.partialorder %v2385, 8.507059e+37
    %v2387 = vand.u32 %v2375, 2147483648
    %v2388 = vor.u32 1.1754944e-38, %v2387
    %v2389 = vsel %vm2386, %v2388, %v2384
    %v2390 = vmul.f32 1.0, %v2389
    %2391 = vst [vmem:[#allocation1] ss:$4 sm:$0xff] %v2343
    %v2392 = vld.sshfl [vmem:[#allocation1] sm:$0xff pattern:$0x73625140]
    %2393 = vrot.lane.b32.xlu0 %v2392, 32
    %v2394 = vpop.permute.xlu0 %2393
    %v2395 = vsel %vm215, %v2394, 0
    %2397 = vmatpush.msra.mxu0 0.0
    %2398 = vmatpush.msra.mxu0 0.0
    %2399 = vmatpush.msra.mxu0 0.0
    %2400 = vmatpush.msra.mxu0 0.0
    %2401 = vmatpush.msra.mxu0 0.0
    %2402 = vmatpush.msra.mxu0 0.0
    %2403 = vmatpush.msra.mxu0 0.0
    %2404 = vmatpush.msra.mxu0 0.0
    %2405 = vmatpush.msra.mxu0 0.0
    %2406 = vmatpush.msra.mxu0 0.0
    %2407 = vmatpush.msra.mxu0 0.0
    %2408 = vmatpush.msra.mxu0 0.0
    %2409 = vmatpush.msra.mxu0 %v1770
    %2410 = vmatpush.msra.mxu0 %v1769
    %2411 = vmatpush.msra.mxu0 %v1768
    %2412 = vmatpush.msra.mxu0 %v1767
    %2413 = vmatmul.f32.gmra.mxu0 %v2395
    %v2414 = vpop.f32.mrf.mxu0
    %v2415 = vadd.f32 0.0, %v2414
    %2416 = vdwg.mxu0
    %2418 = vrot.lane.b32.xlu0 %v2415, 32
    %v2419 = vpop.permute.xlu0 %2418
    %v2421 = vadd.f32 %v166, %v2419
    %v2422 = vxor.u32 %v2421, 2147483648
    %v2423 = vmul.f32 %v2422, 1.442695
    %v2424 = vpow.pop %v2423
    %v2425 = vadd.f32 %v2424, 1.0
    %v2426 = vrcp.pop %v2425
    %v2427 = vmul.f32 %v2425, %v2426
    %v2428 = vsub.f32 1.0, %v2427
    %v2429 = vmul.f32 %v2426, %v2428
    %v2430 = vadd.f32 %v2426, %v2429
    %vm2431 = vweird.f32 %v2425
    %vm2432 = vweird.f32 %v2426
    %vm2433 = vmor %vm2431, %vm2432
    %v2434 = vsel %vm2433, %v2426, %v2430
    %v2435 = vand.u32 2147483647, %v2425
    %vm2436 = vcmp.eq.f32.partialorder %v2435, 8.507059e+37
    %v2437 = vand.u32 %v2425, 2147483648
    %v2438 = vor.u32 1.1754944e-38, %v2437
    %v2439 = vsel %vm2436, %v2438, %v2434
    %v2440 = vmul.f32 1.0, %v2439
    %2441 = vst [vmem:[#allocation1] ss:$4 sm:$0xff] %v2343
    %v2442 = vld.sshfl [vmem:[#allocation1] sm:$0xff pattern:$0x73625140]
    %2443 = vrot.lane.b32.xlu0 %v2442, 32
    %v2444 = vpop.permute.xlu0 %2443
    %v2445 = vsel %vm215, %v2444, 0
    %2447 = vmatpush.msra.mxu0 0.0
    %2448 = vmatpush.msra.mxu0 0.0
    %2449 = vmatpush.msra.mxu0 0.0
    %2450 = vmatpush.msra.mxu0 0.0
    %2451 = vmatpush.msra.mxu0 0.0
    %2452 = vmatpush.msra.mxu0 0.0
    %2453 = vmatpush.msra.mxu0 0.0
    %2454 = vmatpush.msra.mxu0 0.0
    %2455 = vmatpush.msra.mxu0 0.0
    %2456 = vmatpush.msra.mxu0 0.0
    %2457 = vmatpush.msra.mxu0 0.0
    %2458 = vmatpush.msra.mxu0 0.0
    %2459 = vmatpush.msra.mxu0 %v1775
    %2460 = vmatpush.msra.mxu0 %v1774
    %2461 = vmatpush.msra.mxu0 %v1773
    %2462 = vmatpush.msra.mxu0 %v1772
    %2463 = vmatmul.f32.gmra.mxu0 %v2445
    %v2464 = vpop.f32.mrf.mxu0
    %v2465 = vadd.f32 0.0, %v2464
    %2466 = vdwg.mxu0
    %2468 = vrot.lane.b32.xlu0 %v2465, 64
    %v2469 = vpop.permute.xlu0 %2468
    %v2471 = vadd.f32 %v166, %v2469
    %v2472 = vtanh.pop %v2471
    %2473 = vst [vmem:[#allocation1] ss:$4 sm:$0xff] %v2343
    %v2474 = vld.sshfl [vmem:[#allocation1] sm:$0xff pattern:$0x73625140]
    %2475 = vrot.lane.b32.xlu0 %v2474, 32
    %v2476 = vpop.permute.xlu0 %2475
    %v2477 = vsel %vm215, %v2476, 0
    %2479 = vmatpush.msra.mxu0 0.0
    %2480 = vmatpush.msra.mxu0 0.0
    %2481 = vmatpush.msra.mxu0 0.0
    %2482 = vmatpush.msra.mxu0 0.0
    %2483 = vmatpush.msra.mxu0 0.0
    %2484 = vmatpush.msra.mxu0 0.0
    %2485 = vmatpush.msra.mxu0 0.0
    %2486 = vmatpush.msra.mxu0 0.0
    %2487 = vmatpush.msra.mxu0 0.0
    %2488 = vmatpush.msra.mxu0 0.0
    %2489 = vmatpush.msra.mxu0 0.0
    %2490 = vmatpush.msra.mxu0 0.0
    %2491 = vmatpush.msra.mxu0 %v1780
    %2492 = vmatpush.msra.mxu0 %v1779
    %2493 = vmatpush.msra.mxu0 %v1778
    %2494 = vmatpush.msra.mxu0 %v1777
    %2495 = vmatmul.f32.gmra.mxu0 %v2477
    %v2496 = vpop.f32.mrf.mxu0
    %v2497 = vadd.f32 0.0, %v2496
    %2498 = vdwg.mxu0
    %2500 = vrot.lane.b32.xlu0 %v2497, 96
    %v2501 = vpop.permute.xlu0 %2500
    %v2503 = vadd.f32 %v166, %v2501
    %v2504 = vxor.u32 %v2503, 2147483648
    %v2505 = vmul.f32 %v2504, 1.442695
    %v2506 = vpow.pop %v2505
    %v2507 = vadd.f32 %v2506, 1.0
    %v2508 = vrcp.pop %v2507
    %v2509 = vmul.f32 %v2507, %v2508
    %v2510 = vsub.f32 1.0, %v2509
    %v2511 = vmul.f32 %v2508, %v2510
    %v2512 = vadd.f32 %v2508, %v2511
    %vm2513 = vweird.f32 %v2507
    %vm2514 = vweird.f32 %v2508
    %vm2515 = vmor %vm2513, %vm2514
    %v2516 = vsel %vm2515, %v2508, %v2512
    %v2517 = vand.u32 2147483647, %v2507
    %vm2518 = vcmp.eq.f32.partialorder %v2517, 8.507059e+37
    %v2519 = vand.u32 %v2507, 2147483648
    %v2520 = vor.u32 1.1754944e-38, %v2519
    %v2521 = vsel %vm2518, %v2520, %v2516
    %v2522 = vmul.f32 1.0, %v2521
    %v2523 = vmul.f32 %v2440, %v2337
    %2525 = vrot.lane.b32.xlu0 %v2472, 64
    %v2526 = vpop.permute.xlu0 %2525
    %v2528 = vmul.f32 %v2390, %v2526
    %2530 = vrot.lane.b32.xlu0 %v2528, 32
    %v2531 = vpop.permute.xlu0 %2530
    %v2533 = vadd.f32 %v2523, %v2531
    %v2534 = vtanh.pop %v2533
    %2536 = vrot.lane.b32.xlu0 %v2534, 64
    %v2537 = vpop.permute.xlu0 %2536
    %v2539 = vmul.f32 %v2522, %v2537
    %2541 = vst [vmem:[#allocation1] ss:$4 sm:$0xff] %v2539
    %v2542 = vld.sshfl [vmem:[#allocation1] sm:$0xff pattern:$0x73625140]
    %2543 = vrot.lane.b32.xlu0 %v2542, 32
    %v2544 = vpop.permute.xlu0 %2543
    %v2545 = vsel %vm215, %v2544, 0
    %2547 = vmatpush.msra.mxu0 0.0
    %2548 = vmatpush.msra.mxu0 0.0
    %2549 = vmatpush.msra.mxu0 0.0
    %2550 = vmatpush.msra.mxu0 0.0
    %2551 = vmatpush.msra.mxu0 0.0
    %2552 = vmatpush.msra.mxu0 0.0
    %2553 = vmatpush.msra.mxu0 0.0
    %2554 = vmatpush.msra.mxu0 0.0
    %2555 = vmatpush.msra.mxu0 0.0
    %2556 = vmatpush.msra.mxu0 0.0
    %2557 = vmatpush.msra.mxu0 0.0
    %2558 = vmatpush.msra.mxu0 0.0
    %2559 = vmatpush.msra.mxu0 %v1765
    %2560 = vmatpush.msra.mxu0 %v1764
    %2561 = vmatpush.msra.mxu0 %v1763
    %2562 = vmatpush.msra.mxu0 %v1762
    %2563 = vmatmul.f32.gmra.mxu0 %v2545
    %v2564 = vpop.f32.mrf.mxu0
    %v2565 = vadd.f32 0.0, %v2564
    %2566 = vdwg.mxu0
    %v2567 = vadd.f32 %v186, %v2565
    %v2568 = vxor.u32 %v2567, 2147483648
    %v2569 = vmul.f32 %v2568, 1.442695
    %v2570 = vpow.pop %v2569
    %v2571 = vadd.f32 %v2570, 1.0
    %v2572 = vrcp.pop %v2571
    %v2573 = vmul.f32 %v2571, %v2572
    %v2574 = vsub.f32 1.0, %v2573
    %v2575 = vmul.f32 %v2572, %v2574
    %v2576 = vadd.f32 %v2572, %v2575
    %vm2577 = vweird.f32 %v2571
    %vm2578 = vweird.f32 %v2572
    %vm2579 = vmor %vm2577, %vm2578
    %v2580 = vsel %vm2579, %v2572, %v2576
    %v2581 = vand.u32 2147483647, %v2571
    %vm2582 = vcmp.eq.f32.partialorder %v2581, 8.507059e+37
    %v2583 = vand.u32 %v2571, 2147483648
    %v2584 = vor.u32 1.1754944e-38, %v2583
    %v2585 = vsel %vm2582, %v2584, %v2580
    %v2586 = vmul.f32 1.0, %v2585
    %2587 = vst [vmem:[#allocation1] ss:$4 sm:$0xff] %v2539
    %v2588 = vld.sshfl [vmem:[#allocation1] sm:$0xff pattern:$0x73625140]
    %2589 = vrot.lane.b32.xlu0 %v2588, 32
    %v2590 = vpop.permute.xlu0 %2589
    %v2591 = vsel %vm215, %v2590, 0
    %2593 = vmatpush.msra.mxu0 0.0
    %2594 = vmatpush.msra.mxu0 0.0
    %2595 = vmatpush.msra.mxu0 0.0
    %2596 = vmatpush.msra.mxu0 0.0
    %2597 = vmatpush.msra.mxu0 0.0
    %2598 = vmatpush.msra.mxu0 0.0
    %2599 = vmatpush.msra.mxu0 0.0
    %2600 = vmatpush.msra.mxu0 0.0
    %2601 = vmatpush.msra.mxu0 0.0
    %2602 = vmatpush.msra.mxu0 0.0
    %2603 = vmatpush.msra.mxu0 0.0
    %2604 = vmatpush.msra.mxu0 0.0
    %2605 = vmatpush.msra.mxu0 %v1770
    %2606 = vmatpush.msra.mxu0 %v1769
    %2607 = vmatpush.msra.mxu0 %v1768
    %2608 = vmatpush.msra.mxu0 %v1767
    %2609 = vmatmul.f32.gmra.mxu0 %v2591
    %v2610 = vpop.f32.mrf.mxu0
    %v2611 = vadd.f32 0.0, %v2610
    %2612 = vdwg.mxu0
    %2614 = vrot.lane.b32.xlu0 %v2611, 32
    %v2615 = vpop.permute.xlu0 %2614
    %v2617 = vadd.f32 %v186, %v2615
    %v2618 = vxor.u32 %v2617, 2147483648
    %v2619 = vmul.f32 %v2618, 1.442695
    %v2620 = vpow.pop %v2619
    %v2621 = vadd.f32 %v2620, 1.0
    %v2622 = vrcp.pop %v2621
    %v2623 = vmul.f32 %v2621, %v2622
    %v2624 = vsub.f32 1.0, %v2623
    %v2625 = vmul.f32 %v2622, %v2624
    %v2626 = vadd.f32 %v2622, %v2625
    %vm2627 = vweird.f32 %v2621
    %vm2628 = vweird.f32 %v2622
    %vm2629 = vmor %vm2627, %vm2628
    %v2630 = vsel %vm2629, %v2622, %v2626
    %v2631 = vand.u32 2147483647, %v2621
    %vm2632 = vcmp.eq.f32.partialorder %v2631, 8.507059e+37
    %v2633 = vand.u32 %v2621, 2147483648
    %v2634 = vor.u32 1.1754944e-38, %v2633
    %v2635 = vsel %vm2632, %v2634, %v2630
    %v2636 = vmul.f32 1.0, %v2635
    %2637 = vst [vmem:[#allocation1] ss:$4 sm:$0xff] %v2539
    %v2638 = vld.sshfl [vmem:[#allocation1] sm:$0xff pattern:$0x73625140]
    %2639 = vrot.lane.b32.xlu0 %v2638, 32
    %v2640 = vpop.permute.xlu0 %2639
    %v2641 = vsel %vm215, %v2640, 0
    %2643 = vmatpush.msra.mxu0 0.0
    %2644 = vmatpush.msra.mxu0 0.0
    %2645 = vmatpush.msra.mxu0 0.0
    %2646 = vmatpush.msra.mxu0 0.0
    %2647 = vmatpush.msra.mxu0 0.0
    %2648 = vmatpush.msra.mxu0 0.0
    %2649 = vmatpush.msra.mxu0 0.0
    %2650 = vmatpush.msra.mxu0 0.0
    %2651 = vmatpush.msra.mxu0 0.0
    %2652 = vmatpush.msra.mxu0 0.0
    %2653 = vmatpush.msra.mxu0 0.0
    %2654 = vmatpush.msra.mxu0 0.0
    %2655 = vmatpush.msra.mxu0 %v1775
    %2656 = vmatpush.msra.mxu0 %v1774
    %2657 = vmatpush.msra.mxu0 %v1773
    %2658 = vmatpush.msra.mxu0 %v1772
    %2659 = vmatmul.f32.gmra.mxu0 %v2641
    %v2660 = vpop.f32.mrf.mxu0
    %v2661 = vadd.f32 0.0, %v2660
    %2662 = vdwg.mxu0
    %2664 = vrot.lane.b32.xlu0 %v2661, 64
    %v2665 = vpop.permute.xlu0 %2664
    %v2667 = vadd.f32 %v186, %v2665
    %v2668 = vtanh.pop %v2667
    %2669 = vst [vmem:[#allocation1] ss:$4 sm:$0xff] %v2539
    %v2670 = vld.sshfl [vmem:[#allocation1] sm:$0xff pattern:$0x73625140]
    %2671 = vrot.lane.b32.xlu0 %v2670, 32
    %v2672 = vpop.permute.xlu0 %2671
    %v2673 = vsel %vm215, %v2672, 0
    %2675 = vmatpush.msra.mxu0 0.0
    %2676 = vmatpush.msra.mxu0 0.0
    %2677 = vmatpush.msra.mxu0 0.0
    %2678 = vmatpush.msra.mxu0 0.0
    %2679 = vmatpush.msra.mxu0 0.0
    %2680 = vmatpush.msra.mxu0 0.0
    %2681 = vmatpush.msra.mxu0 0.0
    %2682 = vmatpush.msra.mxu0 0.0
    %2683 = vmatpush.msra.mxu0 0.0
    %2684 = vmatpush.msra.mxu0 0.0
    %2685 = vmatpush.msra.mxu0 0.0
    %2686 = vmatpush.msra.mxu0 0.0
    %2687 = vmatpush.msra.mxu0 %v1780
    %2688 = vmatpush.msra.mxu0 %v1779
    %2689 = vmatpush.msra.mxu0 %v1778
    %2690 = vmatpush.msra.mxu0 %v1777
    %2691 = vmatmul.f32.gmra.mxu0 %v2673
    %v2692 = vpop.f32.mrf.mxu0
    %v2693 = vadd.f32 0.0, %v2692
    %2694 = vdwg.mxu0
    %2696 = vrot.lane.b32.xlu0 %v2693, 96
    %v2697 = vpop.permute.xlu0 %2696
    %v2699 = vadd.f32 %v186, %v2697
    %v2700 = vxor.u32 %v2699, 2147483648
    %v2701 = vmul.f32 %v2700, 1.442695
    %v2702 = vpow.pop %v2701
    %v2703 = vadd.f32 %v2702, 1.0
    %v2704 = vrcp.pop %v2703
    %v2705 = vmul.f32 %v2703, %v2704
    %v2706 = vsub.f32 1.0, %v2705
    %v2707 = vmul.f32 %v2704, %v2706
    %v2708 = vadd.f32 %v2704, %v2707
    %vm2709 = vweird.f32 %v2703
    %vm2710 = vweird.f32 %v2704
    %vm2711 = vmor %vm2709, %vm2710
    %v2712 = vsel %vm2711, %v2704, %v2708
    %v2713 = vand.u32 2147483647, %v2703
    %vm2714 = vcmp.eq.f32.partialorder %v2713, 8.507059e+37
    %v2715 = vand.u32 %v2703, 2147483648
    %v2716 = vor.u32 1.1754944e-38, %v2715
    %v2717 = vsel %vm2714, %v2716, %v2712
    %v2718 = vmul.f32 1.0, %v2717
    %v2719 = vmul.f32 %v2636, %v2533
    %2721 = vrot.lane.b32.xlu0 %v2668, 64
    %v2722 = vpop.permute.xlu0 %2721
    %v2724 = vmul.f32 %v2586, %v2722
    %2726 = vrot.lane.b32.xlu0 %v2724, 32
    %v2727 = vpop.permute.xlu0 %2726
    %v2729 = vadd.f32 %v2719, %v2727
    %v2730 = vtanh.pop %v2729
    %2732 = vrot.lane.b32.xlu0 %v2730, 64
    %v2733 = vpop.permute.xlu0 %2732
    %v2735 = vmul.f32 %v2718, %v2733
    %2737 = vst [vmem:[#allocation1] ss:$4 sm:$0xff] %v2735
    %v2738 = vld.sshfl [vmem:[#allocation1] sm:$0xff pattern:$0x73625140]
    %2739 = vrot.lane.b32.xlu0 %v2738, 32
    %v2740 = vpop.permute.xlu0 %2739
    %v2741 = vsel %vm215, %v2740, 0
    %2743 = vmatpush.msra.mxu0 0.0
    %2744 = vmatpush.msra.mxu0 0.0
    %2745 = vmatpush.msra.mxu0 0.0
    %2746 = vmatpush.msra.mxu0 0.0
    %2747 = vmatpush.msra.mxu0 0.0
    %2748 = vmatpush.msra.mxu0 0.0
    %2749 = vmatpush.msra.mxu0 0.0
    %2750 = vmatpush.msra.mxu0 0.0
    %2751 = vmatpush.msra.mxu0 0.0
    %2752 = vmatpush.msra.mxu0 0.0
    %2753 = vmatpush.msra.mxu0 0.0
    %2754 = vmatpush.msra.mxu0 0.0
    %2755 = vmatpush.msra.mxu0 %v1765
    %2756 = vmatpush.msra.mxu0 %v1764
    %2757 = vmatpush.msra.mxu0 %v1763
    %2758 = vmatpush.msra.mxu0 %v1762
    %2759 = vmatmul.f32.gmra.mxu0 %v2741
    %v2760 = vpop.f32.mrf.mxu0
    %v2761 = vadd.f32 0.0, %v2760
    %2762 = vdwg.mxu0
    %v2763 = vadd.f32 %v185, %v2761
    %v2764 = vxor.u32 %v2763, 2147483648
    %v2765 = vmul.f32 %v2764, 1.442695
    %v2766 = vpow.pop %v2765
    %v2767 = vadd.f32 %v2766, 1.0
    %v2768 = vrcp.pop %v2767
    %v2769 = vmul.f32 %v2767, %v2768
    %v2770 = vsub.f32 1.0, %v2769
    %v2771 = vmul.f32 %v2768, %v2770
    %v2772 = vadd.f32 %v2768, %v2771
    %vm2773 = vweird.f32 %v2767
    %vm2774 = vweird.f32 %v2768
    %vm2775 = vmor %vm2773, %vm2774
    %v2776 = vsel %vm2775, %v2768, %v2772
    %v2777 = vand.u32 2147483647, %v2767
    %vm2778 = vcmp.eq.f32.partialorder %v2777, 8.507059e+37
    %v2779 = vand.u32 %v2767, 2147483648
    %v2780 = vor.u32 1.1754944e-38, %v2779
    %v2781 = vsel %vm2778, %v2780, %v2776
    %v2782 = vmul.f32 1.0, %v2781
    %2783 = vst [vmem:[#allocation1] ss:$4 sm:$0xff] %v2735
    %v2784 = vld.sshfl [vmem:[#allocation1] sm:$0xff pattern:$0x73625140]
    %2785 = vrot.lane.b32.xlu0 %v2784, 32
    %v2786 = vpop.permute.xlu0 %2785
    %v2787 = vsel %vm215, %v2786, 0
    %2789 = vmatpush.msra.mxu0 0.0
    %2790 = vmatpush.msra.mxu0 0.0
    %2791 = vmatpush.msra.mxu0 0.0
    %2792 = vmatpush.msra.mxu0 0.0
    %2793 = vmatpush.msra.mxu0 0.0
    %2794 = vmatpush.msra.mxu0 0.0
    %2795 = vmatpush.msra.mxu0 0.0
    %2796 = vmatpush.msra.mxu0 0.0
    %2797 = vmatpush.msra.mxu0 0.0
    %2798 = vmatpush.msra.mxu0 0.0
    %2799 = vmatpush.msra.mxu0 0.0
    %2800 = vmatpush.msra.mxu0 0.0
    %2801 = vmatpush.msra.mxu0 %v1770
    %2802 = vmatpush.msra.mxu0 %v1769
    %2803 = vmatpush.msra.mxu0 %v1768
    %2804 = vmatpush.msra.mxu0 %v1767
    %2805 = vmatmul.f32.gmra.mxu0 %v2787
    %v2806 = vpop.f32.mrf.mxu0
    %v2807 = vadd.f32 0.0, %v2806
    %2808 = vdwg.mxu0
    %2810 = vrot.lane.b32.xlu0 %v2807, 32
    %v2811 = vpop.permute.xlu0 %2810
    %v2813 = vadd.f32 %v185, %v2811
    %v2814 = vxor.u32 %v2813, 2147483648
    %v2815 = vmul.f32 %v2814, 1.442695
    %v2816 = vpow.pop %v2815
    %v2817 = vadd.f32 %v2816, 1.0
    %v2818 = vrcp.pop %v2817
    %v2819 = vmul.f32 %v2817, %v2818
    %v2820 = vsub.f32 1.0, %v2819
    %v2821 = vmul.f32 %v2818, %v2820
    %v2822 = vadd.f32 %v2818, %v2821
    %vm2823 = vweird.f32 %v2817
    %vm2824 = vweird.f32 %v2818
    %vm2825 = vmor %vm2823, %vm2824
    %v2826 = vsel %vm2825, %v2818, %v2822
    %v2827 = vand.u32 2147483647, %v2817
    %vm2828 = vcmp.eq.f32.partialorder %v2827, 8.507059e+37
    %v2829 = vand.u32 %v2817, 2147483648
    %v2830 = vor.u32 1.1754944e-38, %v2829
    %v2831 = vsel %vm2828, %v2830, %v2826
    %v2832 = vmul.f32 1.0, %v2831
    %2833 = vst [vmem:[#allocation1] ss:$4 sm:$0xff] %v2735
    %v2834 = vld.sshfl [vmem:[#allocation1] sm:$0xff pattern:$0x73625140]
    %2835 = vrot.lane.b32.xlu0 %v2834, 32
    %v2836 = vpop.permute.xlu0 %2835
    %v2837 = vsel %vm215, %v2836, 0
    %2839 = vmatpush.msra.mxu0 0.0
    %2840 = vmatpush.msra.mxu0 0.0
    %2841 = vmatpush.msra.mxu0 0.0
    %2842 = vmatpush.msra.mxu0 0.0
    %2843 = vmatpush.msra.mxu0 0.0
    %2844 = vmatpush.msra.mxu0 0.0
    %2845 = vmatpush.msra.mxu0 0.0
    %2846 = vmatpush.msra.mxu0 0.0
    %2847 = vmatpush.msra.mxu0 0.0
    %2848 = vmatpush.msra.mxu0 0.0
    %2849 = vmatpush.msra.mxu0 0.0
    %2850 = vmatpush.msra.mxu0 0.0
    %2851 = vmatpush.msra.mxu0 %v1775
    %2852 = vmatpush.msra.mxu0 %v1774
    %2853 = vmatpush.msra.mxu0 %v1773
    %2854 = vmatpush.msra.mxu0 %v1772
    %2855 = vmatmul.f32.gmra.mxu0 %v2837
    %v2856 = vpop.f32.mrf.mxu0
    %v2857 = vadd.f32 0.0, %v2856
    %2858 = vdwg.mxu0
    %2860 = vrot.lane.b32.xlu0 %v2857, 64
    %v2861 = vpop.permute.xlu0 %2860
    %v2863 = vadd.f32 %v185, %v2861
    %v2864 = vtanh.pop %v2863
    %2865 = vst [vmem:[#allocation1] ss:$4 sm:$0xff] %v2735
    %v2866 = vld.sshfl [vmem:[#allocation1] sm:$0xff pattern:$0x73625140]
    %2867 = vrot.lane.b32.xlu0 %v2866, 32
    %v2868 = vpop.permute.xlu0 %2867
    %v2869 = vsel %vm215, %v2868, 0
    %2871 = vmatpush.msra.mxu0 0.0
    %2872 = vmatpush.msra.mxu0 0.0
    %2873 = vmatpush.msra.mxu0 0.0
    %2874 = vmatpush.msra.mxu0 0.0
    %2875 = vmatpush.msra.mxu0 0.0
    %2876 = vmatpush.msra.mxu0 0.0
    %2877 = vmatpush.msra.mxu0 0.0
    %2878 = vmatpush.msra.mxu0 0.0
    %2879 = vmatpush.msra.mxu0 0.0
    %2880 = vmatpush.msra.mxu0 0.0
    %2881 = vmatpush.msra.mxu0 0.0
    %2882 = vmatpush.msra.mxu0 0.0
    %2883 = vmatpush.msra.mxu0 %v1780
    %2884 = vmatpush.msra.mxu0 %v1779
    %2885 = vmatpush.msra.mxu0 %v1778
    %2886 = vmatpush.msra.mxu0 %v1777
    %2887 = vmatmul.f32.gmra.mxu0 %v2869
    %v2888 = vpop.f32.mrf.mxu0
    %v2889 = vadd.f32 0.0, %v2888
    %2890 = vdwg.mxu0
    %2892 = vrot.lane.b32.xlu0 %v2889, 96
    %v2893 = vpop.permute.xlu0 %2892
    %v2895 = vadd.f32 %v185, %v2893
    %v2896 = vxor.u32 %v2895, 2147483648
    %v2897 = vmul.f32 %v2896, 1.442695
    %v2898 = vpow.pop %v2897
    %v2899 = vadd.f32 %v2898, 1.0
    %v2900 = vrcp.pop %v2899
    %v2901 = vmul.f32 %v2899, %v2900
    %v2902 = vsub.f32 1.0, %v2901
    %v2903 = vmul.f32 %v2900, %v2902
    %v2904 = vadd.f32 %v2900, %v2903
    %vm2905 = vweird.f32 %v2899
    %vm2906 = vweird.f32 %v2900
    %vm2907 = vmor %vm2905, %vm2906
    %v2908 = vsel %vm2907, %v2900, %v2904
    %v2909 = vand.u32 2147483647, %v2899
    %vm2910 = vcmp.eq.f32.partialorder %v2909, 8.507059e+37
    %v2911 = vand.u32 %v2899, 2147483648
    %v2912 = vor.u32 1.1754944e-38, %v2911
    %v2913 = vsel %vm2910, %v2912, %v2908
    %v2914 = vmul.f32 1.0, %v2913
    %v2915 = vmul.f32 %v2832, %v2729
    %2917 = vrot.lane.b32.xlu0 %v2864, 64
    %v2918 = vpop.permute.xlu0 %2917
    %v2920 = vmul.f32 %v2782, %v2918
    %2922 = vrot.lane.b32.xlu0 %v2920, 32
    %v2923 = vpop.permute.xlu0 %2922
    %v2925 = vadd.f32 %v2915, %v2923
    %v2926 = vtanh.pop %v2925
    %2928 = vrot.lane.b32.xlu0 %v2926, 64
    %v2929 = vpop.permute.xlu0 %2928
    %v2931 = vmul.f32 %v2914, %v2929
    %2933 = vst [vmem:[#allocation1] ss:$4 sm:$0xff] %v2931
    %v2934 = vld.sshfl [vmem:[#allocation1] sm:$0xff pattern:$0x73625140]
    %2935 = vrot.lane.b32.xlu0 %v2934, 32
    %v2936 = vpop.permute.xlu0 %2935
    %v2937 = vsel %vm215, %v2936, 0
    %2939 = vmatpush.msra.mxu0 0.0
    %2940 = vmatpush.msra.mxu0 0.0
    %2941 = vmatpush.msra.mxu0 0.0
    %2942 = vmatpush.msra.mxu0 0.0
    %2943 = vmatpush.msra.mxu0 0.0
    %2944 = vmatpush.msra.mxu0 0.0
    %2945 = vmatpush.msra.mxu0 0.0
    %2946 = vmatpush.msra.mxu0 0.0
    %2947 = vmatpush.msra.mxu0 0.0
    %2948 = vmatpush.msra.mxu0 0.0
    %2949 = vmatpush.msra.mxu0 0.0
    %2950 = vmatpush.msra.mxu0 0.0
    %2951 = vmatpush.msra.mxu0 %v1765
    %2952 = vmatpush.msra.mxu0 %v1764
    %2953 = vmatpush.msra.mxu0 %v1763
    %2954 = vmatpush.msra.mxu0 %v1762
    %2955 = vmatmul.f32.gmra.mxu0 %v2937
    %v2956 = vpop.f32.mrf.mxu0
    %v2957 = vadd.f32 0.0, %v2956
    %2958 = vdwg.mxu0
    %v2959 = vadd.f32 %v184, %v2957
    %v2960 = vxor.u32 %v2959, 2147483648
    %v2961 = vmul.f32 %v2960, 1.442695
    %v2962 = vpow.pop %v2961
    %v2963 = vadd.f32 %v2962, 1.0
    %v2964 = vrcp.pop %v2963
    %v2965 = vmul.f32 %v2963, %v2964
    %v2966 = vsub.f32 1.0, %v2965
    %v2967 = vmul.f32 %v2964, %v2966
    %v2968 = vadd.f32 %v2964, %v2967
    %vm2969 = vweird.f32 %v2963
    %vm2970 = vweird.f32 %v2964
    %vm2971 = vmor %vm2969, %vm2970
    %v2972 = vsel %vm2971, %v2964, %v2968
    %v2973 = vand.u32 2147483647, %v2963
    %vm2974 = vcmp.eq.f32.partialorder %v2973, 8.507059e+37
    %v2975 = vand.u32 %v2963, 2147483648
    %v2976 = vor.u32 1.1754944e-38, %v2975
    %v2977 = vsel %vm2974, %v2976, %v2972
    %v2978 = vmul.f32 1.0, %v2977
    %2979 = vst [vmem:[#allocation1] ss:$4 sm:$0xff] %v2931
    %v2980 = vld.sshfl [vmem:[#allocation1] sm:$0xff pattern:$0x73625140]
    %2981 = vrot.lane.b32.xlu0 %v2980, 32
    %v2982 = vpop.permute.xlu0 %2981
    %v2983 = vsel %vm215, %v2982, 0
    %2985 = vmatpush.msra.mxu0 0.0
    %2986 = vmatpush.msra.mxu0 0.0
    %2987 = vmatpush.msra.mxu0 0.0
    %2988 = vmatpush.msra.mxu0 0.0
    %2989 = vmatpush.msra.mxu0 0.0
    %2990 = vmatpush.msra.mxu0 0.0
    %2991 = vmatpush.msra.mxu0 0.0
    %2992 = vmatpush.msra.mxu0 0.0
    %2993 = vmatpush.msra.mxu0 0.0
    %2994 = vmatpush.msra.mxu0 0.0
    %2995 = vmatpush.msra.mxu0 0.0
    %2996 = vmatpush.msra.mxu0 0.0
    %2997 = vmatpush.msra.mxu0 %v1770
    %2998 = vmatpush.msra.mxu0 %v1769
    %2999 = vmatpush.msra.mxu0 %v1768
    %3000 = vmatpush.msra.mxu0 %v1767
    %3001 = vmatmul.f32.gmra.mxu0 %v2983
    %v3002 = vpop.f32.mrf.mxu0
    %v3003 = vadd.f32 0.0, %v3002
    %3004 = vdwg.mxu0
    %3006 = vrot.lane.b32.xlu0 %v3003, 32
    %v3007 = vpop.permute.xlu0 %3006
    %v3009 = vadd.f32 %v184, %v3007
    %v3010 = vxor.u32 %v3009, 2147483648
    %v3011 = vmul.f32 %v3010, 1.442695
    %v3012 = vpow.pop %v3011
    %v3013 = vadd.f32 %v3012, 1.0
    %v3014 = vrcp.pop %v3013
    %v3015 = vmul.f32 %v3013, %v3014
    %v3016 = vsub.f32 1.0, %v3015
    %v3017 = vmul.f32 %v3014, %v3016
    %v3018 = vadd.f32 %v3014, %v3017
    %vm3019 = vweird.f32 %v3013
    %vm3020 = vweird.f32 %v3014
    %vm3021 = vmor %vm3019, %vm3020
    %v3022 = vsel %vm3021, %v3014, %v3018
    %v3023 = vand.u32 2147483647, %v3013
    %vm3024 = vcmp.eq.f32.partialorder %v3023, 8.507059e+37
    %v3025 = vand.u32 %v3013, 2147483648
    %v3026 = vor.u32 1.1754944e-38, %v3025
    %v3027 = vsel %vm3024, %v3026, %v3022
    %v3028 = vmul.f32 1.0, %v3027
    %3029 = vst [vmem:[#allocation1] ss:$4 sm:$0xff] %v2931
    %v3030 = vld.sshfl [vmem:[#allocation1] sm:$0xff pattern:$0x73625140]
    %3031 = vrot.lane.b32.xlu0 %v3030, 32
    %v3032 = vpop.permute.xlu0 %3031
    %v3033 = vsel %vm215, %v3032, 0
    %3035 = vmatpush.msra.mxu0 0.0
    %3036 = vmatpush.msra.mxu0 0.0
    %3037 = vmatpush.msra.mxu0 0.0
    %3038 = vmatpush.msra.mxu0 0.0
    %3039 = vmatpush.msra.mxu0 0.0
    %3040 = vmatpush.msra.mxu0 0.0
    %3041 = vmatpush.msra.mxu0 0.0
    %3042 = vmatpush.msra.mxu0 0.0
    %3043 = vmatpush.msra.mxu0 0.0
    %3044 = vmatpush.msra.mxu0 0.0
    %3045 = vmatpush.msra.mxu0 0.0
    %3046 = vmatpush.msra.mxu0 0.0
    %3047 = vmatpush.msra.mxu0 %v1775
    %3048 = vmatpush.msra.mxu0 %v1774
    %3049 = vmatpush.msra.mxu0 %v1773
    %3050 = vmatpush.msra.mxu0 %v1772
    %3051 = vmatmul.f32.gmra.mxu0 %v3033
    %v3052 = vpop.f32.mrf.mxu0
    %v3053 = vadd.f32 0.0, %v3052
    %3054 = vdwg.mxu0
    %3056 = vrot.lane.b32.xlu0 %v3053, 64
    %v3057 = vpop.permute.xlu0 %3056
    %v3059 = vadd.f32 %v184, %v3057
    %v3060 = vtanh.pop %v3059
    %3061 = vst [vmem:[#allocation1] ss:$4 sm:$0xff] %v2931
    %v3062 = vld.sshfl [vmem:[#allocation1] sm:$0xff pattern:$0x73625140]
    %3063 = vrot.lane.b32.xlu0 %v3062, 32
    %v3064 = vpop.permute.xlu0 %3063
    %v3065 = vsel %vm215, %v3064, 0
    %3067 = vmatpush.msra.mxu0 0.0
    %3068 = vmatpush.msra.mxu0 0.0
    %3069 = vmatpush.msra.mxu0 0.0
    %3070 = vmatpush.msra.mxu0 0.0
    %3071 = vmatpush.msra.mxu0 0.0
    %3072 = vmatpush.msra.mxu0 0.0
    %3073 = vmatpush.msra.mxu0 0.0
    %3074 = vmatpush.msra.mxu0 0.0
    %3075 = vmatpush.msra.mxu0 0.0
    %3076 = vmatpush.msra.mxu0 0.0
    %3077 = vmatpush.msra.mxu0 0.0
    %3078 = vmatpush.msra.mxu0 0.0
    %3079 = vmatpush.msra.mxu0 %v1780
    %3080 = vmatpush.msra.mxu0 %v1779
    %3081 = vmatpush.msra.mxu0 %v1778
    %3082 = vmatpush.msra.mxu0 %v1777
    %3083 = vmatmul.f32.gmra.mxu0 %v3065
    %v3084 = vpop.f32.mrf.mxu0
    %v3085 = vadd.f32 0.0, %v3084
    %3086 = vdwg.mxu0
    %3088 = vrot.lane.b32.xlu0 %v3085, 96
    %v3089 = vpop.permute.xlu0 %3088
    %v3091 = vadd.f32 %v184, %v3089
    %v3092 = vxor.u32 %v3091, 2147483648
    %v3093 = vmul.f32 %v3092, 1.442695
    %v3094 = vpow.pop %v3093
    %v3095 = vadd.f32 %v3094, 1.0
    %v3096 = vrcp.pop %v3095
    %v3097 = vmul.f32 %v3095, %v3096
    %v3098 = vsub.f32 1.0, %v3097
    %v3099 = vmul.f32 %v3096, %v3098
    %v3100 = vadd.f32 %v3096, %v3099
    %vm3101 = vweird.f32 %v3095
    %vm3102 = vweird.f32 %v3096
    %vm3103 = vmor %vm3101, %vm3102
    %v3104 = vsel %vm3103, %v3096, %v3100
    %v3105 = vand.u32 2147483647, %v3095
    %vm3106 = vcmp.eq.f32.partialorder %v3105, 8.507059e+37
    %v3107 = vand.u32 %v3095, 2147483648
    %v3108 = vor.u32 1.1754944e-38, %v3107
    %v3109 = vsel %vm3106, %v3108, %v3104
    %v3110 = vmul.f32 1.0, %v3109
    %v3111 = vmul.f32 %v3028, %v2925
    %3113 = vrot.lane.b32.xlu0 %v3060, 64
    %v3114 = vpop.permute.xlu0 %3113
    %v3116 = vmul.f32 %v2978, %v3114
    %3118 = vrot.lane.b32.xlu0 %v3116, 32
    %v3119 = vpop.permute.xlu0 %3118
    %v3121 = vadd.f32 %v3111, %v3119
    %v3122 = vtanh.pop %v3121
    %3124 = vrot.lane.b32.xlu0 %v3122, 64
    %v3125 = vpop.permute.xlu0 %3124
    %v3127 = vmul.f32 %v3110, %v3125
    %3129 = vst [vmem:[#allocation1] ss:$4 sm:$0xff] %v3127
    %v3130 = vld.sshfl [vmem:[#allocation1] sm:$0xff pattern:$0x73625140]
    %3131 = vrot.lane.b32.xlu0 %v3130, 32
    %v3132 = vpop.permute.xlu0 %3131
    %v3133 = vsel %vm215, %v3132, 0
    %3135 = vmatpush.msra.mxu0 0.0
    %3136 = vmatpush.msra.mxu0 0.0
    %3137 = vmatpush.msra.mxu0 0.0
    %3138 = vmatpush.msra.mxu0 0.0
    %3139 = vmatpush.msra.mxu0 0.0
    %3140 = vmatpush.msra.mxu0 0.0
    %3141 = vmatpush.msra.mxu0 0.0
    %3142 = vmatpush.msra.mxu0 0.0
    %3143 = vmatpush.msra.mxu0 0.0
    %3144 = vmatpush.msra.mxu0 0.0
    %3145 = vmatpush.msra.mxu0 0.0
    %3146 = vmatpush.msra.mxu0 0.0
    %3147 = vmatpush.msra.mxu0 %v1765
    %3148 = vmatpush.msra.mxu0 %v1764
    %3149 = vmatpush.msra.mxu0 %v1763
    %3150 = vmatpush.msra.mxu0 %v1762
    %3151 = vmatmul.f32.gmra.mxu0 %v3133
    %v3152 = vpop.f32.mrf.mxu0
    %v3153 = vadd.f32 0.0, %v3152
    %3154 = vdwg.mxu0
    %v3155 = vadd.f32 %v163, %v3153
    %v3156 = vxor.u32 %v3155, 2147483648
    %v3157 = vmul.f32 %v3156, 1.442695
    %v3158 = vpow.pop %v3157
    %v3159 = vadd.f32 %v3158, 1.0
    %v3160 = vrcp.pop %v3159
    %v3161 = vmul.f32 %v3159, %v3160
    %v3162 = vsub.f32 1.0, %v3161
    %v3163 = vmul.f32 %v3160, %v3162
    %v3164 = vadd.f32 %v3160, %v3163
    %vm3165 = vweird.f32 %v3159
    %vm3166 = vweird.f32 %v3160
    %vm3167 = vmor %vm3165, %vm3166
    %v3168 = vsel %vm3167, %v3160, %v3164
    %v3169 = vand.u32 2147483647, %v3159
    %vm3170 = vcmp.eq.f32.partialorder %v3169, 8.507059e+37
    %v3171 = vand.u32 %v3159, 2147483648
    %v3172 = vor.u32 1.1754944e-38, %v3171
    %v3173 = vsel %vm3170, %v3172, %v3168
    %v3174 = vmul.f32 1.0, %v3173
    %3175 = vst [vmem:[#allocation1] ss:$4 sm:$0xff] %v3127
    %v3176 = vld.sshfl [vmem:[#allocation1] sm:$0xff pattern:$0x73625140]
    %3177 = vrot.lane.b32.xlu0 %v3176, 32
    %v3178 = vpop.permute.xlu0 %3177
    %v3179 = vsel %vm215, %v3178, 0
    %3181 = vmatpush.msra.mxu0 0.0
    %3182 = vmatpush.msra.mxu0 0.0
    %3183 = vmatpush.msra.mxu0 0.0
    %3184 = vmatpush.msra.mxu0 0.0
    %3185 = vmatpush.msra.mxu0 0.0
    %3186 = vmatpush.msra.mxu0 0.0
    %3187 = vmatpush.msra.mxu0 0.0
    %3188 = vmatpush.msra.mxu0 0.0
    %3189 = vmatpush.msra.mxu0 0.0
    %3190 = vmatpush.msra.mxu0 0.0
    %3191 = vmatpush.msra.mxu0 0.0
    %3192 = vmatpush.msra.mxu0 0.0
    %3193 = vmatpush.msra.mxu0 %v1770
    %3194 = vmatpush.msra.mxu0 %v1769
    %3195 = vmatpush.msra.mxu0 %v1768
    %3196 = vmatpush.msra.mxu0 %v1767
    %3197 = vmatmul.f32.gmra.mxu0 %v3179
    %v3198 = vpop.f32.mrf.mxu0
    %v3199 = vadd.f32 0.0, %v3198
    %3200 = vdwg.mxu0
    %3202 = vrot.lane.b32.xlu0 %v3199, 32
    %v3203 = vpop.permute.xlu0 %3202
    %v3205 = vadd.f32 %v163, %v3203
    %v3206 = vxor.u32 %v3205, 2147483648
    %v3207 = vmul.f32 %v3206, 1.442695
    %v3208 = vpow.pop %v3207
    %v3209 = vadd.f32 %v3208, 1.0
    %v3210 = vrcp.pop %v3209
    %v3211 = vmul.f32 %v3209, %v3210
    %v3212 = vsub.f32 1.0, %v3211
    %v3213 = vmul.f32 %v3210, %v3212
    %v3214 = vadd.f32 %v3210, %v3213
    %vm3215 = vweird.f32 %v3209
    %vm3216 = vweird.f32 %v3210
    %vm3217 = vmor %vm3215, %vm3216
    %v3218 = vsel %vm3217, %v3210, %v3214
    %v3219 = vand.u32 2147483647, %v3209
    %vm3220 = vcmp.eq.f32.partialorder %v3219, 8.507059e+37
    %v3221 = vand.u32 %v3209, 2147483648
    %v3222 = vor.u32 1.1754944e-38, %v3221
    %v3223 = vsel %vm3220, %v3222, %v3218
    %v3224 = vmul.f32 1.0, %v3223
    %3225 = vst [vmem:[#allocation1] ss:$4 sm:$0xff] %v3127
    %v3226 = vld.sshfl [vmem:[#allocation1] sm:$0xff pattern:$0x73625140]
    %3227 = vrot.lane.b32.xlu0 %v3226, 32
    %v3228 = vpop.permute.xlu0 %3227
    %v3229 = vsel %vm215, %v3228, 0
    %3231 = vmatpush.msra.mxu0 0.0
    %3232 = vmatpush.msra.mxu0 0.0
    %3233 = vmatpush.msra.mxu0 0.0
    %3234 = vmatpush.msra.mxu0 0.0
    %3235 = vmatpush.msra.mxu0 0.0
    %3236 = vmatpush.msra.mxu0 0.0
    %3237 = vmatpush.msra.mxu0 0.0
    %3238 = vmatpush.msra.mxu0 0.0
    %3239 = vmatpush.msra.mxu0 0.0
    %3240 = vmatpush.msra.mxu0 0.0
    %3241 = vmatpush.msra.mxu0 0.0
    %3242 = vmatpush.msra.mxu0 0.0
    %3243 = vmatpush.msra.mxu0 %v1775
    %3244 = vmatpush.msra.mxu0 %v1774
    %3245 = vmatpush.msra.mxu0 %v1773
    %3246 = vmatpush.msra.mxu0 %v1772
    %3247 = vmatmul.f32.gmra.mxu0 %v3229
    %v3248 = vpop.f32.mrf.mxu0
    %v3249 = vadd.f32 0.0, %v3248
    %3250 = vdwg.mxu0
    %3252 = vrot.lane.b32.xlu0 %v3249, 64
    %v3253 = vpop.permute.xlu0 %3252
    %v3255 = vadd.f32 %v163, %v3253
    %v3256 = vtanh.pop %v3255
    %3257 = vst [vmem:[#allocation1] ss:$4 sm:$0xff] %v3127
    %v3258 = vld.sshfl [vmem:[#allocation1] sm:$0xff pattern:$0x73625140]
    %3259 = vrot.lane.b32.xlu0 %v3258, 32
    %v3260 = vpop.permute.xlu0 %3259
    %v3261 = vsel %vm215, %v3260, 0
    %3263 = vmatpush.msra.mxu0 0.0
    %3264 = vmatpush.msra.mxu0 0.0
    %3265 = vmatpush.msra.mxu0 0.0
    %3266 = vmatpush.msra.mxu0 0.0
    %3267 = vmatpush.msra.mxu0 0.0
    %3268 = vmatpush.msra.mxu0 0.0
    %3269 = vmatpush.msra.mxu0 0.0
    %3270 = vmatpush.msra.mxu0 0.0
    %3271 = vmatpush.msra.mxu0 0.0
    %3272 = vmatpush.msra.mxu0 0.0
    %3273 = vmatpush.msra.mxu0 0.0
    %3274 = vmatpush.msra.mxu0 0.0
    %3275 = vmatpush.msra.mxu0 %v1780
    %3276 = vmatpush.msra.mxu0 %v1779
    %3277 = vmatpush.msra.mxu0 %v1778
    %3278 = vmatpush.msra.mxu0 %v1777
    %3279 = vmatmul.f32.gmra.mxu0 %v3261
    %v3280 = vpop.f32.mrf.mxu0
    %v3281 = vadd.f32 0.0, %v3280
    %3282 = vdwg.mxu0
    %3284 = vrot.lane.b32.xlu0 %v3281, 96
    %v3285 = vpop.permute.xlu0 %3284
    %v3287 = vadd.f32 %v163, %v3285
    %v3288 = vxor.u32 %v3287, 2147483648
    %v3289 = vmul.f32 %v3288, 1.442695
    %v3290 = vpow.pop %v3289
    %v3291 = vadd.f32 %v3290, 1.0
    %v3292 = vrcp.pop %v3291
    %v3293 = vmul.f32 %v3291, %v3292
    %v3294 = vsub.f32 1.0, %v3293
    %v3295 = vmul.f32 %v3292, %v3294
    %v3296 = vadd.f32 %v3292, %v3295
    %vm3297 = vweird.f32 %v3291
    %vm3298 = vweird.f32 %v3292
    %vm3299 = vmor %vm3297, %vm3298
    %v3300 = vsel %vm3299, %v3292, %v3296
    %v3301 = vand.u32 2147483647, %v3291
    %vm3302 = vcmp.eq.f32.partialorder %v3301, 8.507059e+37
    %v3303 = vand.u32 %v3291, 2147483648
    %v3304 = vor.u32 1.1754944e-38, %v3303
    %v3305 = vsel %vm3302, %v3304, %v3300
    %v3306 = vmul.f32 1.0, %v3305
    %v3307 = vmul.f32 %v3224, %v3121
    %3309 = vrot.lane.b32.xlu0 %v3256, 64
    %v3310 = vpop.permute.xlu0 %3309
    %v3312 = vmul.f32 %v3174, %v3310
    %3314 = vrot.lane.b32.xlu0 %v3312, 32
    %v3315 = vpop.permute.xlu0 %3314
    %v3317 = vadd.f32 %v3307, %v3315
    %v3318 = vtanh.pop %v3317
    %3320 = vrot.lane.b32.xlu0 %v3318, 64
    %v3321 = vpop.permute.xlu0 %3320
    %v3323 = vmul.f32 %v3306, %v3321
    %s3324 = scalar_lea.vmem [#allocation1], 1
    %3325 = vst [vmem:[%s3324] ss:$4 sm:$0xff] %v585
    %v3326 = vld.sshfl [vmem:[#allocation1] sm:$0xff pattern:$0x73625140]
    %s3328 = scalar_lea.vmem [#allocation1], 2
    %3329 = vst [vmem:[%s3328] ss:$4 sm:$0xff] %v781
    %v3330 = vld.sshfl [vmem:[#allocation1] sm:$0xff pattern:$0x73625140]
    %s3332 = scalar_lea.vmem [#allocation1], 3
    %3333 = vst [vmem:[%s3332] ss:$4 sm:$0xff] %v977
    %v3334 = vld.sshfl [vmem:[#allocation1] sm:$0xff pattern:$0x73625140]
    %s3336 = scalar_lea.vmem [#allocation1], 1
    %3337 = vst [vmem:[%s3336] ss:$4 sm:$0xff] %v1369
    %v3338 = vld.sshfl [vmem:[#allocation1] sm:$0xff pattern:$0x73625140]
    %s3340 = scalar_lea.vmem [#allocation1], 2
    %3341 = vst [vmem:[%s3340] ss:$4 sm:$0xff] %v1565
    %v3342 = vld.sshfl [vmem:[#allocation1] sm:$0xff pattern:$0x73625140]
    %s3345 = scalar_lea.vmem [#allocation1], 3
    %3346 = vst [vmem:[%s3345] ss:$4 sm:$0xff] %v1761
    %v3347 = vld.sshfl [vmem:[#allocation1] sm:$0xff pattern:$0x73625140]
    %vm3349 = vcmask 1041408
    %v3350 = vsel %vm3349, %v389, %v3326
    %vm3351 = vcmask 1043456
    %v3352 = vsel %vm3351, %v3350, %v3330
    %vm3353 = vcmask 1045504
    %v3354 = vsel %vm3353, %v3352, %v3334
    %v3355 = vsel %vm3349, %v1173, %v3338
    %v3356 = vsel %vm3351, %v3355, %v3342
    %v3357 = vsel %vm3353, %v3356, %v3347
    %s3358 = scalar_lea.vmem [#allocation1], 1
    %3359 = vst [vmem:[%s3358] ss:$4 sm:$0xff] %v3127
    %v3360 = vld.sshfl [vmem:[#allocation1] sm:$0xff pattern:$0x73625140]
    %s3362 = scalar_lea.vmem [#allocation1], 2
    %3363 = vst [vmem:[%s3362] ss:$4 sm:$0xff] %v2931
    %v3364 = vld.sshfl [vmem:[#allocation1] sm:$0xff pattern:$0x73625140]
    %s3366 = scalar_lea.vmem [#allocation1], 3
    %3367 = vst [vmem:[%s3366] ss:$4 sm:$0xff] %v2735
    %v3368 = vld.sshfl [vmem:[#allocation1] sm:$0xff pattern:$0x73625140]
    %s3370 = scalar_lea.vmem [#allocation1], 1
    %3371 = vst [vmem:[%s3370] ss:$4 sm:$0xff] %v2343
    %v3372 = vld.sshfl [vmem:[#allocation1] sm:$0xff pattern:$0x73625140]
    %s3374 = scalar_lea.vmem [#allocation1], 2
    %3375 = vst [vmem:[%s3374] ss:$4 sm:$0xff] %v2147
    %v3376 = vld.sshfl [vmem:[#allocation1] sm:$0xff pattern:$0x73625140]
    %s3378 = scalar_lea.vmem [#allocation1], 3
    %3379 = vst [vmem:[%s3378] ss:$4 sm:$0xff] %v1951
    %v3380 = vld.sshfl [vmem:[#allocation1] sm:$0xff pattern:$0x73625140]
    %v3382 = vsel %vm3349, %v3323, %v3360
    %v3383 = vsel %vm3351, %v3382, %v3364
    %v3384 = vsel %vm3353, %v3383, %v3368
    %v3385 = vsel %vm3349, %v2539, %v3372
    %v3386 = vsel %vm3351, %v3385, %v3376
    %v3387 = vsel %vm3353, %v3386, %v3380
    %v3388 = vld [vmem:[%s7] sm:$0xff]
    %v3389 = vld [vmem:[%s7 + $0x8] sm:$0xff]
    %v3390 = vld [vmem:[%s7 + $0x10] sm:$0xff]
    %v3391 = vld [vmem:[%s7 + $0x18] sm:$0xff]
    %v3392 = vld [vmem:[%s7 + $0x20] sm:$0xff]
    %v3393 = vld [vmem:[%s7 + $0x28] sm:$0xff]
    %v3394 = vld [vmem:[%s7 + $0x30] sm:$0xff]
    %v3395 = vld [vmem:[%s7 + $0x38] sm:$0xff]
    %v3396 = vld [vmem:[%s10] sm:$0xff]
    %v3397 = vld [vmem:[%s10 + $0x8] sm:$0xff]
    %v3398 = vld [vmem:[%s10 + $0x10] sm:$0xff]
    %v3399 = vld [vmem:[%s10 + $0x18] sm:$0xff]
    %v3400 = vld [vmem:[%s10 + $0x20] sm:$0xff]
    %v3401 = vld [vmem:[%s10 + $0x28] sm:$0xff]
    %v3402 = vld [vmem:[%s10 + $0x30] sm:$0xff]
    %v3403 = vld [vmem:[%s10 + $0x38] sm:$0xff]
    %3406 = vrot.lane.b32.xlu0 %v3384, 32
    %v3407 = vpop.permute.xlu0 %3406
    %3408 = vrot.lane.b32.xlu0 %v3387, 32
    %v3409 = vpop.permute.xlu0 %3408
    %v3410 = vsel %vm215, %v3407, 0
    %v3412 = vsel %vm215, %v3409, 0
    %3414 = vmatpush.msra.mxu0 0.0
    %3415 = vmatpush.msra.mxu0 0.0
    %3416 = vmatpush.msra.mxu0 0.0
    %3417 = vmatpush.msra.mxu0 0.0
    %3418 = vmatpush.msra.mxu0 0.0
    %3419 = vmatpush.msra.mxu0 0.0
    %3420 = vmatpush.msra.mxu0 0.0
    %3421 = vmatpush.msra.mxu0 0.0
    %3422 = vmatpush.msra.mxu0 0.0
    %3423 = vmatpush.msra.mxu0 0.0
    %3424 = vmatpush.msra.mxu0 0.0
    %3425 = vmatpush.msra.mxu0 0.0
    %3426 = vmatpush.msra.mxu0 %v3395
    %3427 = vmatpush.msra.mxu0 %v3394
    %3428 = vmatpush.msra.mxu0 %v3393
    %3429 = vmatpush.msra.mxu0 %v3392
    %3430 = vmatmul.f32.gmra.mxu0 %v3410
    %v3431 = vpop.f32.mrf.mxu0
    %v3432 = vadd.f32 0.0, %v3431
    %3433 = vmatmul.f32.gmra.mxu0 %v3412
    %v3434 = vpop.f32.mrf.mxu0
    %v3435 = vadd.f32 0.0, %v3434
    %3436 = vdwg.mxu0
    %3439 = vrot.lane.b32.xlu0 %v3354, 32
    %v3440 = vpop.permute.xlu0 %3439
    %3441 = vrot.lane.b32.xlu0 %v3357, 32
    %v3442 = vpop.permute.xlu0 %3441
    %v3443 = vsel %vm215, %v3440, 0
    %v3445 = vsel %vm215, %v3442, 0
    %3447 = vmatpush.msra.mxu0 0.0
    %3448 = vmatpush.msra.mxu0 0.0
    %3449 = vmatpush.msra.mxu0 0.0
    %3450 = vmatpush.msra.mxu0 0.0
    %3451 = vmatpush.msra.mxu0 0.0
    %3452 = vmatpush.msra.mxu0 0.0
    %3453 = vmatpush.msra.mxu0 0.0
    %3454 = vmatpush.msra.mxu0 0.0
    %3455 = vmatpush.msra.mxu0 0.0
    %3456 = vmatpush.msra.mxu0 0.0
    %3457 = vmatpush.msra.mxu0 0.0
    %3458 = vmatpush.msra.mxu0 0.0
    %3459 = vmatpush.msra.mxu0 %v3391
    %3460 = vmatpush.msra.mxu0 %v3390
    %3461 = vmatpush.msra.mxu0 %v3389
    %3462 = vmatpush.msra.mxu0 %v3388
    %3463 = vmatmul.f32.gmra.mxu0 %v3443
    %v3464 = vpop.f32.mrf.mxu0
    %v3465 = vadd.f32 %v3432, %v3464
    %3466 = vmatmul.f32.gmra.mxu0 %v3445
    %v3467 = vpop.f32.mrf.mxu0
    %v3468 = vadd.f32 %v3435, %v3467
    %3469 = vdwg.mxu0
    %v3470 = vld [vmem:[%s9] sm:$0x1]
    %v3472 = vperm.slane %v3470, 0
    %v3474 = vadd.f32 %v3465, %v3472
    %v3475 = vadd.f32 %v3468, %v3472
    %3476 = vmatpush.msra.mxu0 0.0
    %3477 = vmatpush.msra.mxu0 0.0
    %3478 = vmatpush.msra.mxu0 0.0
    %3479 = vmatpush.msra.mxu0 0.0
    %3480 = vmatpush.msra.mxu0 0.0
    %3481 = vmatpush.msra.mxu0 0.0
    %3482 = vmatpush.msra.mxu0 0.0
    %3483 = vmatpush.msra.mxu0 0.0
    %3484 = vmatpush.msra.mxu0 0.0
    %3485 = vmatpush.msra.mxu0 0.0
    %3486 = vmatpush.msra.mxu0 0.0
    %3487 = vmatpush.msra.mxu0 0.0
    %3488 = vmatpush.msra.mxu0 %v3403
    %3489 = vmatpush.msra.mxu0 %v3402
    %3490 = vmatpush.msra.mxu0 %v3401
    %3491 = vmatpush.msra.mxu0 %v3400
    %3492 = vmatmul.f32.gmra.mxu0 %v3410
    %v3493 = vpop.f32.mrf.mxu0
    %v3494 = vadd.f32 0.0, %v3493
    %3495 = vmatmul.f32.gmra.mxu0 %v3412
    %v3496 = vpop.f32.mrf.mxu0
    %v3497 = vadd.f32 0.0, %v3496
    %3498 = vdwg.mxu0
    %3499 = vmatpush.msra.mxu0 0.0
    %3500 = vmatpush.msra.mxu0 0.0
    %3501 = vmatpush.msra.mxu0 0.0
    %3502 = vmatpush.msra.mxu0 0.0
    %3503 = vmatpush.msra.mxu0 0.0
    %3504 = vmatpush.msra.mxu0 0.0
    %3505 = vmatpush.msra.mxu0 0.0
    %3506 = vmatpush.msra.mxu0 0.0
    %3507 = vmatpush.msra.mxu0 0.0
    %3508 = vmatpush.msra.mxu0 0.0
    %3509 = vmatpush.msra.mxu0 0.0
    %3510 = vmatpush.msra.mxu0 0.0
    %3511 = vmatpush.msra.mxu0 %v3399
    %3512 = vmatpush.msra.mxu0 %v3398
    %3513 = vmatpush.msra.mxu0 %v3397
    %3514 = vmatpush.msra.mxu0 %v3396
    %3515 = vmatmul.f32.gmra.mxu0 %v3443
    %v3516 = vpop.f32.mrf.mxu0
    %v3517 = vadd.f32 %v3494, %v3516
    %3518 = vmatmul.f32.gmra.mxu0 %v3445
    %v3519 = vpop.f32.mrf.mxu0
    %v3520 = vadd.f32 %v3497, %v3519
    %3521 = vdwg.mxu0
    %v3522 = vld [vmem:[%s12] sm:$0x1]
    %v3524 = vperm.slane %v3522, 0
    %v3526 = vadd.f32 %v3517, %v3524
    %v3527 = vadd.f32 %v3520, %v3524
    %v3530 = vrot.slane %v3474, 2
    %v3531 = vrot.slane %v3474, 4
    %v3532 = vrot.slane %v3474, 6
    %v3533 = vrot.slane %v3475, 2
    %v3534 = vrot.slane %v3475, 4
    %v3535 = vrot.slane %v3475, 6
    %v3544 = vrot.slane %v3526, 2
    %v3545 = vrot.slane %v3526, 4
    %v3546 = vrot.slane %v3526, 6
    %v3547 = vrot.slane %v3527, 2
    %v3548 = vrot.slane %v3527, 4
    %v3549 = vrot.slane %v3527, 6
    %v3556 = vld [vmem:[%s8] sm:$0xff]
    %v3557 = vld [vmem:[%s8 + $0x8] sm:$0xff]
    %v3558 = vld [vmem:[%s8 + $0x10] sm:$0xff]
    %v3559 = vld [vmem:[%s8 + $0x18] sm:$0xff]
    %s3560 = scalar_lea.vmem %s8, 32
    %v3561 = vld [vmem:[%s3560] sm:$0xff]
    %v3562 = vld [vmem:[%s3560 + $0x8] sm:$0xff]
    %v3563 = vld [vmem:[%s3560 + $0x10] sm:$0xff]
    %v3564 = vld [vmem:[%s3560 + $0x18] sm:$0xff]
    %s3565 = scalar_lea.vmem %s8, 64
    %v3566 = vld [vmem:[%s3565] sm:$0xff]
    %v3567 = vld [vmem:[%s3565 + $0x8] sm:$0xff]
    %v3568 = vld [vmem:[%s3565 + $0x10] sm:$0xff]
    %v3569 = vld [vmem:[%s3565 + $0x18] sm:$0xff]
    %s3570 = scalar_lea.vmem %s8, 96
    %v3571 = vld [vmem:[%s3570] sm:$0xff]
    %v3572 = vld [vmem:[%s3570 + $0x8] sm:$0xff]
    %v3573 = vld [vmem:[%s3570 + $0x10] sm:$0xff]
    %v3574 = vld [vmem:[%s3570 + $0x18] sm:$0xff]
    %3575 = vmatpush.msra.mxu0 0.0
    %3576 = vmatpush.msra.mxu0 0.0
    %3577 = vmatpush.msra.mxu0 0.0
    %3578 = vmatpush.msra.mxu0 0.0
    %3579 = vmatpush.msra.mxu0 0.0
    %3580 = vmatpush.msra.mxu0 0.0
    %3581 = vmatpush.msra.mxu0 0.0
    %3582 = vmatpush.msra.mxu0 0.0
    %3583 = vmatpush.msra.mxu0 0.0
    %3584 = vmatpush.msra.mxu0 0.0
    %3585 = vmatpush.msra.mxu0 0.0
    %3586 = vmatpush.msra.mxu0 0.0
    %3587 = vmatpush.msra.mxu0 %v3559
    %3588 = vmatpush.msra.mxu0 %v3558
    %3589 = vmatpush.msra.mxu0 %v3557
    %3590 = vmatpush.msra.mxu0 %v3556
    %3591 = vmatmul.f32.gmra.mxu0 %v217
    %v3592 = vpop.f32.mrf.mxu0
    %v3593 = vadd.f32 0.0, %v3592
    %3594 = vdwg.mxu0
    %v3595 = vadd.f32 %v3474, %v3593
    %v3596 = vxor.u32 %v3595, 2147483648
    %v3597 = vmul.f32 %v3596, 1.442695
    %v3598 = vpow.pop %v3597
    %v3599 = vadd.f32 %v3598, 1.0
    %v3600 = vrcp.pop %v3599
    %v3601 = vmul.f32 %v3599, %v3600
    %v3602 = vsub.f32 1.0, %v3601
    %v3603 = vmul.f32 %v3600, %v3602
    %v3604 = vadd.f32 %v3600, %v3603
    %vm3605 = vweird.f32 %v3599
    %vm3606 = vweird.f32 %v3600
    %vm3607 = vmor %vm3605, %vm3606
    %v3608 = vsel %vm3607, %v3600, %v3604
    %v3609 = vand.u32 2147483647, %v3599
    %vm3610 = vcmp.eq.f32.partialorder %v3609, 8.507059e+37
    %v3611 = vand.u32 %v3599, 2147483648
    %v3612 = vor.u32 1.1754944e-38, %v3611
    %v3613 = vsel %vm3610, %v3612, %v3608
    %v3614 = vmul.f32 1.0, %v3613
    %3615 = vmatpush.msra.mxu0 0.0
    %3616 = vmatpush.msra.mxu0 0.0
    %3617 = vmatpush.msra.mxu0 0.0
    %3618 = vmatpush.msra.mxu0 0.0
    %3619 = vmatpush.msra.mxu0 0.0
    %3620 = vmatpush.msra.mxu0 0.0
    %3621 = vmatpush.msra.mxu0 0.0
    %3622 = vmatpush.msra.mxu0 0.0
    %3623 = vmatpush.msra.mxu0 0.0
    %3624 = vmatpush.msra.mxu0 0.0
    %3625 = vmatpush.msra.mxu0 0.0
    %3626 = vmatpush.msra.mxu0 0.0
    %3627 = vmatpush.msra.mxu0 %v3564
    %3628 = vmatpush.msra.mxu0 %v3563
    %3629 = vmatpush.msra.mxu0 %v3562
    %3630 = vmatpush.msra.mxu0 %v3561
    %3631 = vmatmul.f32.gmra.mxu0 %v217
    %v3632 = vpop.f32.mrf.mxu0
    %v3633 = vadd.f32 0.0, %v3632
    %3634 = vdwg.mxu0
    %3636 = vrot.lane.b32.xlu0 %v3633, 32
    %v3637 = vpop.permute.xlu0 %3636
    %v3639 = vadd.f32 %v3474, %v3637
    %v3640 = vxor.u32 %v3639, 2147483648
    %v3641 = vmul.f32 %v3640, 1.442695
    %v3642 = vpow.pop %v3641
    %v3643 = vadd.f32 %v3642, 1.0
    %v3644 = vrcp.pop %v3643
    %v3645 = vmul.f32 %v3643, %v3644
    %v3646 = vsub.f32 1.0, %v3645
    %v3647 = vmul.f32 %v3644, %v3646
    %v3648 = vadd.f32 %v3644, %v3647
    %vm3649 = vweird.f32 %v3643
    %vm3650 = vweird.f32 %v3644
    %vm3651 = vmor %vm3649, %vm3650
    %v3652 = vsel %vm3651, %v3644, %v3648
    %v3653 = vand.u32 2147483647, %v3643
    %vm3654 = vcmp.eq.f32.partialorder %v3653, 8.507059e+37
    %v3655 = vand.u32 %v3643, 2147483648
    %v3656 = vor.u32 1.1754944e-38, %v3655
    %v3657 = vsel %vm3654, %v3656, %v3652
    %v3658 = vmul.f32 1.0, %v3657
    %3659 = vmatpush.msra.mxu0 0.0
    %3660 = vmatpush.msra.mxu0 0.0
    %3661 = vmatpush.msra.mxu0 0.0
    %3662 = vmatpush.msra.mxu0 0.0
    %3663 = vmatpush.msra.mxu0 0.0
    %3664 = vmatpush.msra.mxu0 0.0
    %3665 = vmatpush.msra.mxu0 0.0
    %3666 = vmatpush.msra.mxu0 0.0
    %3667 = vmatpush.msra.mxu0 0.0
    %3668 = vmatpush.msra.mxu0 0.0
    %3669 = vmatpush.msra.mxu0 0.0
    %3670 = vmatpush.msra.mxu0 0.0
    %3671 = vmatpush.msra.mxu0 %v3569
    %3672 = vmatpush.msra.mxu0 %v3568
    %3673 = vmatpush.msra.mxu0 %v3567
    %3674 = vmatpush.msra.mxu0 %v3566
    %3675 = vmatmul.f32.gmra.mxu0 %v217
    %v3676 = vpop.f32.mrf.mxu0
    %v3677 = vadd.f32 0.0, %v3676
    %3678 = vdwg.mxu0
    %3680 = vrot.lane.b32.xlu0 %v3677, 64
    %v3681 = vpop.permute.xlu0 %3680
    %v3683 = vadd.f32 %v3474, %v3681
    %v3684 = vtanh.pop %v3683
    %3685 = vmatpush.msra.mxu0 0.0
    %3686 = vmatpush.msra.mxu0 0.0
    %3687 = vmatpush.msra.mxu0 0.0
    %3688 = vmatpush.msra.mxu0 0.0
    %3689 = vmatpush.msra.mxu0 0.0
    %3690 = vmatpush.msra.mxu0 0.0
    %3691 = vmatpush.msra.mxu0 0.0
    %3692 = vmatpush.msra.mxu0 0.0
    %3693 = vmatpush.msra.mxu0 0.0
    %3694 = vmatpush.msra.mxu0 0.0
    %3695 = vmatpush.msra.mxu0 0.0
    %3696 = vmatpush.msra.mxu0 0.0
    %3697 = vmatpush.msra.mxu0 %v3574
    %3698 = vmatpush.msra.mxu0 %v3573
    %3699 = vmatpush.msra.mxu0 %v3572
    %3700 = vmatpush.msra.mxu0 %v3571
    %3701 = vmatmul.f32.gmra.mxu0 %v217
    %v3702 = vpop.f32.mrf.mxu0
    %v3703 = vadd.f32 0.0, %v3702
    %3704 = vdwg.mxu0
    %3706 = vrot.lane.b32.xlu0 %v3703, 96
    %v3707 = vpop.permute.xlu0 %3706
    %v3709 = vadd.f32 %v3474, %v3707
    %v3710 = vxor.u32 %v3709, 2147483648
    %v3711 = vmul.f32 %v3710, 1.442695
    %v3712 = vpow.pop %v3711
    %v3713 = vadd.f32 %v3712, 1.0
    %v3714 = vrcp.pop %v3713
    %v3715 = vmul.f32 %v3713, %v3714
    %v3716 = vsub.f32 1.0, %v3715
    %v3717 = vmul.f32 %v3714, %v3716
    %v3718 = vadd.f32 %v3714, %v3717
    %vm3719 = vweird.f32 %v3713
    %vm3720 = vweird.f32 %v3714
    %vm3721 = vmor %vm3719, %vm3720
    %v3722 = vsel %vm3721, %v3714, %v3718
    %v3723 = vand.u32 2147483647, %v3713
    %vm3724 = vcmp.eq.f32.partialorder %v3723, 8.507059e+37
    %v3725 = vand.u32 %v3713, 2147483648
    %v3726 = vor.u32 1.1754944e-38, %v3725
    %v3727 = vsel %vm3724, %v3726, %v3722
    %v3728 = vmul.f32 1.0, %v3727
    %v3729 = vmul.f32 %v3658, 0.0
    %3731 = vrot.lane.b32.xlu0 %v3684, 64
    %v3732 = vpop.permute.xlu0 %3731
    %v3734 = vmul.f32 %v3614, %v3732
    %3736 = vrot.lane.b32.xlu0 %v3734, 32
    %v3737 = vpop.permute.xlu0 %3736
    %v3739 = vadd.f32 %v3729, %v3737
    %v3740 = vtanh.pop %v3739
    %3742 = vrot.lane.b32.xlu0 %v3740, 64
    %v3743 = vpop.permute.xlu0 %3742
    %v3745 = vmul.f32 %v3728, %v3743
    %3747 = vst [vmem:[#allocation1] ss:$4 sm:$0xff] %v3745
    %v3748 = vld.sshfl [vmem:[#allocation1] sm:$0xff pattern:$0x73625140]
    %3749 = vrot.lane.b32.xlu0 %v3748, 32
    %v3750 = vpop.permute.xlu0 %3749
    %v3751 = vsel %vm215, %v3750, 0
    %3753 = vmatpush.msra.mxu0 0.0
    %3754 = vmatpush.msra.mxu0 0.0
    %3755 = vmatpush.msra.mxu0 0.0
    %3756 = vmatpush.msra.mxu0 0.0
    %3757 = vmatpush.msra.mxu0 0.0
    %3758 = vmatpush.msra.mxu0 0.0
    %3759 = vmatpush.msra.mxu0 0.0
    %3760 = vmatpush.msra.mxu0 0.0
    %3761 = vmatpush.msra.mxu0 0.0
    %3762 = vmatpush.msra.mxu0 0.0
    %3763 = vmatpush.msra.mxu0 0.0
    %3764 = vmatpush.msra.mxu0 0.0
    %3765 = vmatpush.msra.mxu0 %v3559
    %3766 = vmatpush.msra.mxu0 %v3558
    %3767 = vmatpush.msra.mxu0 %v3557
    %3768 = vmatpush.msra.mxu0 %v3556
    %3769 = vmatmul.f32.gmra.mxu0 %v3751
    %v3770 = vpop.f32.mrf.mxu0
    %v3771 = vadd.f32 0.0, %v3770
    %3772 = vdwg.mxu0
    %v3773 = vadd.f32 %v3530, %v3771
    %v3774 = vxor.u32 %v3773, 2147483648
    %v3775 = vmul.f32 %v3774, 1.442695
    %v3776 = vpow.pop %v3775
    %v3777 = vadd.f32 %v3776, 1.0
    %v3778 = vrcp.pop %v3777
    %v3779 = vmul.f32 %v3777, %v3778
    %v3780 = vsub.f32 1.0, %v3779
    %v3781 = vmul.f32 %v3778, %v3780
    %v3782 = vadd.f32 %v3778, %v3781
    %vm3783 = vweird.f32 %v3777
    %vm3784 = vweird.f32 %v3778
    %vm3785 = vmor %vm3783, %vm3784
    %v3786 = vsel %vm3785, %v3778, %v3782
    %v3787 = vand.u32 2147483647, %v3777
    %vm3788 = vcmp.eq.f32.partialorder %v3787, 8.507059e+37
    %v3789 = vand.u32 %v3777, 2147483648
    %v3790 = vor.u32 1.1754944e-38, %v3789
    %v3791 = vsel %vm3788, %v3790, %v3786
    %v3792 = vmul.f32 1.0, %v3791
    %3793 = vst [vmem:[#allocation1] ss:$4 sm:$0xff] %v3745
    %v3794 = vld.sshfl [vmem:[#allocation1] sm:$0xff pattern:$0x73625140]
    %3795 = vrot.lane.b32.xlu0 %v3794, 32
    %v3796 = vpop.permute.xlu0 %3795
    %v3797 = vsel %vm215, %v3796, 0
    %3799 = vmatpush.msra.mxu0 0.0
    %3800 = vmatpush.msra.mxu0 0.0
    %3801 = vmatpush.msra.mxu0 0.0
    %3802 = vmatpush.msra.mxu0 0.0
    %3803 = vmatpush.msra.mxu0 0.0
    %3804 = vmatpush.msra.mxu0 0.0
    %3805 = vmatpush.msra.mxu0 0.0
    %3806 = vmatpush.msra.mxu0 0.0
    %3807 = vmatpush.msra.mxu0 0.0
    %3808 = vmatpush.msra.mxu0 0.0
    %3809 = vmatpush.msra.mxu0 0.0
    %3810 = vmatpush.msra.mxu0 0.0
    %3811 = vmatpush.msra.mxu0 %v3564
    %3812 = vmatpush.msra.mxu0 %v3563
    %3813 = vmatpush.msra.mxu0 %v3562
    %3814 = vmatpush.msra.mxu0 %v3561
    %3815 = vmatmul.f32.gmra.mxu0 %v3797
    %v3816 = vpop.f32.mrf.mxu0
    %v3817 = vadd.f32 0.0, %v3816
    %3818 = vdwg.mxu0
    %3820 = vrot.lane.b32.xlu0 %v3817, 32
    %v3821 = vpop.permute.xlu0 %3820
    %v3823 = vadd.f32 %v3530, %v3821
    %v3824 = vxor.u32 %v3823, 2147483648
    %v3825 = vmul.f32 %v3824, 1.442695
    %v3826 = vpow.pop %v3825
    %v3827 = vadd.f32 %v3826, 1.0
    %v3828 = vrcp.pop %v3827
    %v3829 = vmul.f32 %v3827, %v3828
    %v3830 = vsub.f32 1.0, %v3829
    %v3831 = vmul.f32 %v3828, %v3830
    %v3832 = vadd.f32 %v3828, %v3831
    %vm3833 = vweird.f32 %v3827
    %vm3834 = vweird.f32 %v3828
    %vm3835 = vmor %vm3833, %vm3834
    %v3836 = vsel %vm3835, %v3828, %v3832
    %v3837 = vand.u32 2147483647, %v3827
    %vm3838 = vcmp.eq.f32.partialorder %v3837, 8.507059e+37
    %v3839 = vand.u32 %v3827, 2147483648
    %v3840 = vor.u32 1.1754944e-38, %v3839
    %v3841 = vsel %vm3838, %v3840, %v3836
    %v3842 = vmul.f32 1.0, %v3841
    %3843 = vst [vmem:[#allocation1] ss:$4 sm:$0xff] %v3745
    %v3844 = vld.sshfl [vmem:[#allocation1] sm:$0xff pattern:$0x73625140]
    %3845 = vrot.lane.b32.xlu0 %v3844, 32
    %v3846 = vpop.permute.xlu0 %3845
    %v3847 = vsel %vm215, %v3846, 0
    %3849 = vmatpush.msra.mxu0 0.0
    %3850 = vmatpush.msra.mxu0 0.0
    %3851 = vmatpush.msra.mxu0 0.0
    %3852 = vmatpush.msra.mxu0 0.0
    %3853 = vmatpush.msra.mxu0 0.0
    %3854 = vmatpush.msra.mxu0 0.0
    %3855 = vmatpush.msra.mxu0 0.0
    %3856 = vmatpush.msra.mxu0 0.0
    %3857 = vmatpush.msra.mxu0 0.0
    %3858 = vmatpush.msra.mxu0 0.0
    %3859 = vmatpush.msra.mxu0 0.0
    %3860 = vmatpush.msra.mxu0 0.0
    %3861 = vmatpush.msra.mxu0 %v3569
    %3862 = vmatpush.msra.mxu0 %v3568
    %3863 = vmatpush.msra.mxu0 %v3567
    %3864 = vmatpush.msra.mxu0 %v3566
    %3865 = vmatmul.f32.gmra.mxu0 %v3847
    %v3866 = vpop.f32.mrf.mxu0
    %v3867 = vadd.f32 0.0, %v3866
    %3868 = vdwg.mxu0
    %3870 = vrot.lane.b32.xlu0 %v3867, 64
    %v3871 = vpop.permute.xlu0 %3870
    %v3873 = vadd.f32 %v3530, %v3871
    %v3874 = vtanh.pop %v3873
    %3875 = vst [vmem:[#allocation1] ss:$4 sm:$0xff] %v3745
    %v3876 = vld.sshfl [vmem:[#allocation1] sm:$0xff pattern:$0x73625140]
    %3877 = vrot.lane.b32.xlu0 %v3876, 32
    %v3878 = vpop.permute.xlu0 %3877
    %v3879 = vsel %vm215, %v3878, 0
    %3881 = vmatpush.msra.mxu0 0.0
    %3882 = vmatpush.msra.mxu0 0.0
    %3883 = vmatpush.msra.mxu0 0.0
    %3884 = vmatpush.msra.mxu0 0.0
    %3885 = vmatpush.msra.mxu0 0.0
    %3886 = vmatpush.msra.mxu0 0.0
    %3887 = vmatpush.msra.mxu0 0.0
    %3888 = vmatpush.msra.mxu0 0.0
    %3889 = vmatpush.msra.mxu0 0.0
    %3890 = vmatpush.msra.mxu0 0.0
    %3891 = vmatpush.msra.mxu0 0.0
    %3892 = vmatpush.msra.mxu0 0.0
    %3893 = vmatpush.msra.mxu0 %v3574
    %3894 = vmatpush.msra.mxu0 %v3573
    %3895 = vmatpush.msra.mxu0 %v3572
    %3896 = vmatpush.msra.mxu0 %v3571
    %3897 = vmatmul.f32.gmra.mxu0 %v3879
    %v3898 = vpop.f32.mrf.mxu0
    %v3899 = vadd.f32 0.0, %v3898
    %3900 = vdwg.mxu0
    %3902 = vrot.lane.b32.xlu0 %v3899, 96
    %v3903 = vpop.permute.xlu0 %3902
    %v3905 = vadd.f32 %v3530, %v3903
    %v3906 = vxor.u32 %v3905, 2147483648
    %v3907 = vmul.f32 %v3906, 1.442695
    %v3908 = vpow.pop %v3907
    %v3909 = vadd.f32 %v3908, 1.0
    %v3910 = vrcp.pop %v3909
    %v3911 = vmul.f32 %v3909, %v3910
    %v3912 = vsub.f32 1.0, %v3911
    %v3913 = vmul.f32 %v3910, %v3912
    %v3914 = vadd.f32 %v3910, %v3913
    %vm3915 = vweird.f32 %v3909
    %vm3916 = vweird.f32 %v3910
    %vm3917 = vmor %vm3915, %vm3916
    %v3918 = vsel %vm3917, %v3910, %v3914
    %v3919 = vand.u32 2147483647, %v3909
    %vm3920 = vcmp.eq.f32.partialorder %v3919, 8.507059e+37
    %v3921 = vand.u32 %v3909, 2147483648
    %v3922 = vor.u32 1.1754944e-38, %v3921
    %v3923 = vsel %vm3920, %v3922, %v3918
    %v3924 = vmul.f32 1.0, %v3923
    %v3925 = vmul.f32 %v3842, %v3739
    %3927 = vrot.lane.b32.xlu0 %v3874, 64
    %v3928 = vpop.permute.xlu0 %3927
    %v3930 = vmul.f32 %v3792, %v3928
    %3932 = vrot.lane.b32.xlu0 %v3930, 32
    %v3933 = vpop.permute.xlu0 %3932
    %v3935 = vadd.f32 %v3925, %v3933
    %v3936 = vtanh.pop %v3935
    %3938 = vrot.lane.b32.xlu0 %v3936, 64
    %v3939 = vpop.permute.xlu0 %3938
    %v3941 = vmul.f32 %v3924, %v3939
    %3943 = vst [vmem:[#allocation1] ss:$4 sm:$0xff] %v3941
    %v3944 = vld.sshfl [vmem:[#allocation1] sm:$0xff pattern:$0x73625140]
    %3945 = vrot.lane.b32.xlu0 %v3944, 32
    %v3946 = vpop.permute.xlu0 %3945
    %v3947 = vsel %vm215, %v3946, 0
    %3949 = vmatpush.msra.mxu0 0.0
    %3950 = vmatpush.msra.mxu0 0.0
    %3951 = vmatpush.msra.mxu0 0.0
    %3952 = vmatpush.msra.mxu0 0.0
    %3953 = vmatpush.msra.mxu0 0.0
    %3954 = vmatpush.msra.mxu0 0.0
    %3955 = vmatpush.msra.mxu0 0.0
    %3956 = vmatpush.msra.mxu0 0.0
    %3957 = vmatpush.msra.mxu0 0.0
    %3958 = vmatpush.msra.mxu0 0.0
    %3959 = vmatpush.msra.mxu0 0.0
    %3960 = vmatpush.msra.mxu0 0.0
    %3961 = vmatpush.msra.mxu0 %v3559
    %3962 = vmatpush.msra.mxu0 %v3558
    %3963 = vmatpush.msra.mxu0 %v3557
    %3964 = vmatpush.msra.mxu0 %v3556
    %3965 = vmatmul.f32.gmra.mxu0 %v3947
    %v3966 = vpop.f32.mrf.mxu0
    %v3967 = vadd.f32 0.0, %v3966
    %3968 = vdwg.mxu0
    %v3969 = vadd.f32 %v3531, %v3967
    %v3970 = vxor.u32 %v3969, 2147483648
    %v3971 = vmul.f32 %v3970, 1.442695
    %v3972 = vpow.pop %v3971
    %v3973 = vadd.f32 %v3972, 1.0
    %v3974 = vrcp.pop %v3973
    %v3975 = vmul.f32 %v3973, %v3974
    %v3976 = vsub.f32 1.0, %v3975
    %v3977 = vmul.f32 %v3974, %v3976
    %v3978 = vadd.f32 %v3974, %v3977
    %vm3979 = vweird.f32 %v3973
    %vm3980 = vweird.f32 %v3974
    %vm3981 = vmor %vm3979, %vm3980
    %v3982 = vsel %vm3981, %v3974, %v3978
    %v3983 = vand.u32 2147483647, %v3973
    %vm3984 = vcmp.eq.f32.partialorder %v3983, 8.507059e+37
    %v3985 = vand.u32 %v3973, 2147483648
    %v3986 = vor.u32 1.1754944e-38, %v3985
    %v3987 = vsel %vm3984, %v3986, %v3982
    %v3988 = vmul.f32 1.0, %v3987
    %3989 = vst [vmem:[#allocation1] ss:$4 sm:$0xff] %v3941
    %v3990 = vld.sshfl [vmem:[#allocation1] sm:$0xff pattern:$0x73625140]
    %3991 = vrot.lane.b32.xlu0 %v3990, 32
    %v3992 = vpop.permute.xlu0 %3991
    %v3993 = vsel %vm215, %v3992, 0
    %3995 = vmatpush.msra.mxu0 0.0
    %3996 = vmatpush.msra.mxu0 0.0
    %3997 = vmatpush.msra.mxu0 0.0
    %3998 = vmatpush.msra.mxu0 0.0
    %3999 = vmatpush.msra.mxu0 0.0
    %4000 = vmatpush.msra.mxu0 0.0
    %4001 = vmatpush.msra.mxu0 0.0
    %4002 = vmatpush.msra.mxu0 0.0
    %4003 = vmatpush.msra.mxu0 0.0
    %4004 = vmatpush.msra.mxu0 0.0
    %4005 = vmatpush.msra.mxu0 0.0
    %4006 = vmatpush.msra.mxu0 0.0
    %4007 = vmatpush.msra.mxu0 %v3564
    %4008 = vmatpush.msra.mxu0 %v3563
    %4009 = vmatpush.msra.mxu0 %v3562
    %4010 = vmatpush.msra.mxu0 %v3561
    %4011 = vmatmul.f32.gmra.mxu0 %v3993
    %v4012 = vpop.f32.mrf.mxu0
    %v4013 = vadd.f32 0.0, %v4012
    %4014 = vdwg.mxu0
    %4016 = vrot.lane.b32.xlu0 %v4013, 32
    %v4017 = vpop.permute.xlu0 %4016
    %v4019 = vadd.f32 %v3531, %v4017
    %v4020 = vxor.u32 %v4019, 2147483648
    %v4021 = vmul.f32 %v4020, 1.442695
    %v4022 = vpow.pop %v4021
    %v4023 = vadd.f32 %v4022, 1.0
    %v4024 = vrcp.pop %v4023
    %v4025 = vmul.f32 %v4023, %v4024
    %v4026 = vsub.f32 1.0, %v4025
    %v4027 = vmul.f32 %v4024, %v4026
    %v4028 = vadd.f32 %v4024, %v4027
    %vm4029 = vweird.f32 %v4023
    %vm4030 = vweird.f32 %v4024
    %vm4031 = vmor %vm4029, %vm4030
    %v4032 = vsel %vm4031, %v4024, %v4028
    %v4033 = vand.u32 2147483647, %v4023
    %vm4034 = vcmp.eq.f32.partialorder %v4033, 8.507059e+37
    %v4035 = vand.u32 %v4023, 2147483648
    %v4036 = vor.u32 1.1754944e-38, %v4035
    %v4037 = vsel %vm4034, %v4036, %v4032
    %v4038 = vmul.f32 1.0, %v4037
    %4039 = vst [vmem:[#allocation1] ss:$4 sm:$0xff] %v3941
    %v4040 = vld.sshfl [vmem:[#allocation1] sm:$0xff pattern:$0x73625140]
    %4041 = vrot.lane.b32.xlu0 %v4040, 32
    %v4042 = vpop.permute.xlu0 %4041
    %v4043 = vsel %vm215, %v4042, 0
    %4045 = vmatpush.msra.mxu0 0.0
    %4046 = vmatpush.msra.mxu0 0.0
    %4047 = vmatpush.msra.mxu0 0.0
    %4048 = vmatpush.msra.mxu0 0.0
    %4049 = vmatpush.msra.mxu0 0.0
    %4050 = vmatpush.msra.mxu0 0.0
    %4051 = vmatpush.msra.mxu0 0.0
    %4052 = vmatpush.msra.mxu0 0.0
    %4053 = vmatpush.msra.mxu0 0.0
    %4054 = vmatpush.msra.mxu0 0.0
    %4055 = vmatpush.msra.mxu0 0.0
    %4056 = vmatpush.msra.mxu0 0.0
    %4057 = vmatpush.msra.mxu0 %v3569
    %4058 = vmatpush.msra.mxu0 %v3568
    %4059 = vmatpush.msra.mxu0 %v3567
    %4060 = vmatpush.msra.mxu0 %v3566
    %4061 = vmatmul.f32.gmra.mxu0 %v4043
    %v4062 = vpop.f32.mrf.mxu0
    %v4063 = vadd.f32 0.0, %v4062
    %4064 = vdwg.mxu0
    %4066 = vrot.lane.b32.xlu0 %v4063, 64
    %v4067 = vpop.permute.xlu0 %4066
    %v4069 = vadd.f32 %v3531, %v4067
    %v4070 = vtanh.pop %v4069
    %4071 = vst [vmem:[#allocation1] ss:$4 sm:$0xff] %v3941
    %v4072 = vld.sshfl [vmem:[#allocation1] sm:$0xff pattern:$0x73625140]
    %4073 = vrot.lane.b32.xlu0 %v4072, 32
    %v4074 = vpop.permute.xlu0 %4073
    %v4075 = vsel %vm215, %v4074, 0
    %4077 = vmatpush.msra.mxu0 0.0
    %4078 = vmatpush.msra.mxu0 0.0
    %4079 = vmatpush.msra.mxu0 0.0
    %4080 = vmatpush.msra.mxu0 0.0
    %4081 = vmatpush.msra.mxu0 0.0
    %4082 = vmatpush.msra.mxu0 0.0
    %4083 = vmatpush.msra.mxu0 0.0
    %4084 = vmatpush.msra.mxu0 0.0
    %4085 = vmatpush.msra.mxu0 0.0
    %4086 = vmatpush.msra.mxu0 0.0
    %4087 = vmatpush.msra.mxu0 0.0
    %4088 = vmatpush.msra.mxu0 0.0
    %4089 = vmatpush.msra.mxu0 %v3574
    %4090 = vmatpush.msra.mxu0 %v3573
    %4091 = vmatpush.msra.mxu0 %v3572
    %4092 = vmatpush.msra.mxu0 %v3571
    %4093 = vmatmul.f32.gmra.mxu0 %v4075
    %v4094 = vpop.f32.mrf.mxu0
    %v4095 = vadd.f32 0.0, %v4094
    %4096 = vdwg.mxu0
    %4098 = vrot.lane.b32.xlu0 %v4095, 96
    %v4099 = vpop.permute.xlu0 %4098
    %v4101 = vadd.f32 %v3531, %v4099
    %v4102 = vxor.u32 %v4101, 2147483648
    %v4103 = vmul.f32 %v4102, 1.442695
    %v4104 = vpow.pop %v4103
    %v4105 = vadd.f32 %v4104, 1.0
    %v4106 = vrcp.pop %v4105
    %v4107 = vmul.f32 %v4105, %v4106
    %v4108 = vsub.f32 1.0, %v4107
    %v4109 = vmul.f32 %v4106, %v4108
    %v4110 = vadd.f32 %v4106, %v4109
    %vm4111 = vweird.f32 %v4105
    %vm4112 = vweird.f32 %v4106
    %vm4113 = vmor %vm4111, %vm4112
    %v4114 = vsel %vm4113, %v4106, %v4110
    %v4115 = vand.u32 2147483647, %v4105
    %vm4116 = vcmp.eq.f32.partialorder %v4115, 8.507059e+37
    %v4117 = vand.u32 %v4105, 2147483648
    %v4118 = vor.u32 1.1754944e-38, %v4117
    %v4119 = vsel %vm4116, %v4118, %v4114
    %v4120 = vmul.f32 1.0, %v4119
    %v4121 = vmul.f32 %v4038, %v3935
    %4123 = vrot.lane.b32.xlu0 %v4070, 64
    %v4124 = vpop.permute.xlu0 %4123
    %v4126 = vmul.f32 %v3988, %v4124
    %4128 = vrot.lane.b32.xlu0 %v4126, 32
    %v4129 = vpop.permute.xlu0 %4128
    %v4131 = vadd.f32 %v4121, %v4129
    %v4132 = vtanh.pop %v4131
    %4134 = vrot.lane.b32.xlu0 %v4132, 64
    %v4135 = vpop.permute.xlu0 %4134
    %v4137 = vmul.f32 %v4120, %v4135
    %4139 = vst [vmem:[#allocation1] ss:$4 sm:$0xff] %v4137
    %v4140 = vld.sshfl [vmem:[#allocation1] sm:$0xff pattern:$0x73625140]
    %4141 = vrot.lane.b32.xlu0 %v4140, 32
    %v4142 = vpop.permute.xlu0 %4141
    %v4143 = vsel %vm215, %v4142, 0
    %4145 = vmatpush.msra.mxu0 0.0
    %4146 = vmatpush.msra.mxu0 0.0
    %4147 = vmatpush.msra.mxu0 0.0
    %4148 = vmatpush.msra.mxu0 0.0
    %4149 = vmatpush.msra.mxu0 0.0
    %4150 = vmatpush.msra.mxu0 0.0
    %4151 = vmatpush.msra.mxu0 0.0
    %4152 = vmatpush.msra.mxu0 0.0
    %4153 = vmatpush.msra.mxu0 0.0
    %4154 = vmatpush.msra.mxu0 0.0
    %4155 = vmatpush.msra.mxu0 0.0
    %4156 = vmatpush.msra.mxu0 0.0
    %4157 = vmatpush.msra.mxu0 %v3559
    %4158 = vmatpush.msra.mxu0 %v3558
    %4159 = vmatpush.msra.mxu0 %v3557
    %4160 = vmatpush.msra.mxu0 %v3556
    %4161 = vmatmul.f32.gmra.mxu0 %v4143
    %v4162 = vpop.f32.mrf.mxu0
    %v4163 = vadd.f32 0.0, %v4162
    %4164 = vdwg.mxu0
    %v4165 = vadd.f32 %v3532, %v4163
    %v4166 = vxor.u32 %v4165, 2147483648
    %v4167 = vmul.f32 %v4166, 1.442695
    %v4168 = vpow.pop %v4167
    %v4169 = vadd.f32 %v4168, 1.0
    %v4170 = vrcp.pop %v4169
    %v4171 = vmul.f32 %v4169, %v4170
    %v4172 = vsub.f32 1.0, %v4171
    %v4173 = vmul.f32 %v4170, %v4172
    %v4174 = vadd.f32 %v4170, %v4173
    %vm4175 = vweird.f32 %v4169
    %vm4176 = vweird.f32 %v4170
    %vm4177 = vmor %vm4175, %vm4176
    %v4178 = vsel %vm4177, %v4170, %v4174
    %v4179 = vand.u32 2147483647, %v4169
    %vm4180 = vcmp.eq.f32.partialorder %v4179, 8.507059e+37
    %v4181 = vand.u32 %v4169, 2147483648
    %v4182 = vor.u32 1.1754944e-38, %v4181
    %v4183 = vsel %vm4180, %v4182, %v4178
    %v4184 = vmul.f32 1.0, %v4183
    %4185 = vst [vmem:[#allocation1] ss:$4 sm:$0xff] %v4137
    %v4186 = vld.sshfl [vmem:[#allocation1] sm:$0xff pattern:$0x73625140]
    %4187 = vrot.lane.b32.xlu0 %v4186, 32
    %v4188 = vpop.permute.xlu0 %4187
    %v4189 = vsel %vm215, %v4188, 0
    %4191 = vmatpush.msra.mxu0 0.0
    %4192 = vmatpush.msra.mxu0 0.0
    %4193 = vmatpush.msra.mxu0 0.0
    %4194 = vmatpush.msra.mxu0 0.0
    %4195 = vmatpush.msra.mxu0 0.0
    %4196 = vmatpush.msra.mxu0 0.0
    %4197 = vmatpush.msra.mxu0 0.0
    %4198 = vmatpush.msra.mxu0 0.0
    %4199 = vmatpush.msra.mxu0 0.0
    %4200 = vmatpush.msra.mxu0 0.0
    %4201 = vmatpush.msra.mxu0 0.0
    %4202 = vmatpush.msra.mxu0 0.0
    %4203 = vmatpush.msra.mxu0 %v3564
    %4204 = vmatpush.msra.mxu0 %v3563
    %4205 = vmatpush.msra.mxu0 %v3562
    %4206 = vmatpush.msra.mxu0 %v3561
    %4207 = vmatmul.f32.gmra.mxu0 %v4189
    %v4208 = vpop.f32.mrf.mxu0
    %v4209 = vadd.f32 0.0, %v4208
    %4210 = vdwg.mxu0
    %4212 = vrot.lane.b32.xlu0 %v4209, 32
    %v4213 = vpop.permute.xlu0 %4212
    %v4215 = vadd.f32 %v3532, %v4213
    %v4216 = vxor.u32 %v4215, 2147483648
    %v4217 = vmul.f32 %v4216, 1.442695
    %v4218 = vpow.pop %v4217
    %v4219 = vadd.f32 %v4218, 1.0
    %v4220 = vrcp.pop %v4219
    %v4221 = vmul.f32 %v4219, %v4220
    %v4222 = vsub.f32 1.0, %v4221
    %v4223 = vmul.f32 %v4220, %v4222
    %v4224 = vadd.f32 %v4220, %v4223
    %vm4225 = vweird.f32 %v4219
    %vm4226 = vweird.f32 %v4220
    %vm4227 = vmor %vm4225, %vm4226
    %v4228 = vsel %vm4227, %v4220, %v4224
    %v4229 = vand.u32 2147483647, %v4219
    %vm4230 = vcmp.eq.f32.partialorder %v4229, 8.507059e+37
    %v4231 = vand.u32 %v4219, 2147483648
    %v4232 = vor.u32 1.1754944e-38, %v4231
    %v4233 = vsel %vm4230, %v4232, %v4228
    %v4234 = vmul.f32 1.0, %v4233
    %4235 = vst [vmem:[#allocation1] ss:$4 sm:$0xff] %v4137
    %v4236 = vld.sshfl [vmem:[#allocation1] sm:$0xff pattern:$0x73625140]
    %4237 = vrot.lane.b32.xlu0 %v4236, 32
    %v4238 = vpop.permute.xlu0 %4237
    %v4239 = vsel %vm215, %v4238, 0
    %4241 = vmatpush.msra.mxu0 0.0
    %4242 = vmatpush.msra.mxu0 0.0
    %4243 = vmatpush.msra.mxu0 0.0
    %4244 = vmatpush.msra.mxu0 0.0
    %4245 = vmatpush.msra.mxu0 0.0
    %4246 = vmatpush.msra.mxu0 0.0
    %4247 = vmatpush.msra.mxu0 0.0
    %4248 = vmatpush.msra.mxu0 0.0
    %4249 = vmatpush.msra.mxu0 0.0
    %4250 = vmatpush.msra.mxu0 0.0
    %4251 = vmatpush.msra.mxu0 0.0
    %4252 = vmatpush.msra.mxu0 0.0
    %4253 = vmatpush.msra.mxu0 %v3569
    %4254 = vmatpush.msra.mxu0 %v3568
    %4255 = vmatpush.msra.mxu0 %v3567
    %4256 = vmatpush.msra.mxu0 %v3566
    %4257 = vmatmul.f32.gmra.mxu0 %v4239
    %v4258 = vpop.f32.mrf.mxu0
    %v4259 = vadd.f32 0.0, %v4258
    %4260 = vdwg.mxu0
    %4262 = vrot.lane.b32.xlu0 %v4259, 64
    %v4263 = vpop.permute.xlu0 %4262
    %v4265 = vadd.f32 %v3532, %v4263
    %v4266 = vtanh.pop %v4265
    %4267 = vst [vmem:[#allocation1] ss:$4 sm:$0xff] %v4137
    %v4268 = vld.sshfl [vmem:[#allocation1] sm:$0xff pattern:$0x73625140]
    %4269 = vrot.lane.b32.xlu0 %v4268, 32
    %v4270 = vpop.permute.xlu0 %4269
    %v4271 = vsel %vm215, %v4270, 0
    %4273 = vmatpush.msra.mxu0 0.0
    %4274 = vmatpush.msra.mxu0 0.0
    %4275 = vmatpush.msra.mxu0 0.0
    %4276 = vmatpush.msra.mxu0 0.0
    %4277 = vmatpush.msra.mxu0 0.0
    %4278 = vmatpush.msra.mxu0 0.0
    %4279 = vmatpush.msra.mxu0 0.0
    %4280 = vmatpush.msra.mxu0 0.0
    %4281 = vmatpush.msra.mxu0 0.0
    %4282 = vmatpush.msra.mxu0 0.0
    %4283 = vmatpush.msra.mxu0 0.0
    %4284 = vmatpush.msra.mxu0 0.0
    %4285 = vmatpush.msra.mxu0 %v3574
    %4286 = vmatpush.msra.mxu0 %v3573
    %4287 = vmatpush.msra.mxu0 %v3572
    %4288 = vmatpush.msra.mxu0 %v3571
    %4289 = vmatmul.f32.gmra.mxu0 %v4271
    %v4290 = vpop.f32.mrf.mxu0
    %v4291 = vadd.f32 0.0, %v4290
    %4292 = vdwg.mxu0
    %4294 = vrot.lane.b32.xlu0 %v4291, 96
    %v4295 = vpop.permute.xlu0 %4294
    %v4297 = vadd.f32 %v3532, %v4295
    %v4298 = vxor.u32 %v4297, 2147483648
    %v4299 = vmul.f32 %v4298, 1.442695
    %v4300 = vpow.pop %v4299
    %v4301 = vadd.f32 %v4300, 1.0
    %v4302 = vrcp.pop %v4301
    %v4303 = vmul.f32 %v4301, %v4302
    %v4304 = vsub.f32 1.0, %v4303
    %v4305 = vmul.f32 %v4302, %v4304
    %v4306 = vadd.f32 %v4302, %v4305
    %vm4307 = vweird.f32 %v4301
    %vm4308 = vweird.f32 %v4302
    %vm4309 = vmor %vm4307, %vm4308
    %v4310 = vsel %vm4309, %v4302, %v4306
    %v4311 = vand.u32 2147483647, %v4301
    %vm4312 = vcmp.eq.f32.partialorder %v4311, 8.507059e+37
    %v4313 = vand.u32 %v4301, 2147483648
    %v4314 = vor.u32 1.1754944e-38, %v4313
    %v4315 = vsel %vm4312, %v4314, %v4310
    %v4316 = vmul.f32 1.0, %v4315
    %v4317 = vmul.f32 %v4234, %v4131
    %4319 = vrot.lane.b32.xlu0 %v4266, 64
    %v4320 = vpop.permute.xlu0 %4319
    %v4322 = vmul.f32 %v4184, %v4320
    %4324 = vrot.lane.b32.xlu0 %v4322, 32
    %v4325 = vpop.permute.xlu0 %4324
    %v4327 = vadd.f32 %v4317, %v4325
    %v4328 = vtanh.pop %v4327
    %4330 = vrot.lane.b32.xlu0 %v4328, 64
    %v4331 = vpop.permute.xlu0 %4330
    %v4333 = vmul.f32 %v4316, %v4331
    %4335 = vst [vmem:[#allocation1] ss:$4 sm:$0xff] %v4333
    %v4336 = vld.sshfl [vmem:[#allocation1] sm:$0xff pattern:$0x73625140]
    %4337 = vrot.lane.b32.xlu0 %v4336, 32
    %v4338 = vpop.permute.xlu0 %4337
    %v4339 = vsel %vm215, %v4338, 0
    %4341 = vmatpush.msra.mxu0 0.0
    %4342 = vmatpush.msra.mxu0 0.0
    %4343 = vmatpush.msra.mxu0 0.0
    %4344 = vmatpush.msra.mxu0 0.0
    %4345 = vmatpush.msra.mxu0 0.0
    %4346 = vmatpush.msra.mxu0 0.0
    %4347 = vmatpush.msra.mxu0 0.0
    %4348 = vmatpush.msra.mxu0 0.0
    %4349 = vmatpush.msra.mxu0 0.0
    %4350 = vmatpush.msra.mxu0 0.0
    %4351 = vmatpush.msra.mxu0 0.0
    %4352 = vmatpush.msra.mxu0 0.0
    %4353 = vmatpush.msra.mxu0 %v3559
    %4354 = vmatpush.msra.mxu0 %v3558
    %4355 = vmatpush.msra.mxu0 %v3557
    %4356 = vmatpush.msra.mxu0 %v3556
    %4357 = vmatmul.f32.gmra.mxu0 %v4339
    %v4358 = vpop.f32.mrf.mxu0
    %v4359 = vadd.f32 0.0, %v4358
    %4360 = vdwg.mxu0
    %v4361 = vadd.f32 %v3475, %v4359
    %v4362 = vxor.u32 %v4361, 2147483648
    %v4363 = vmul.f32 %v4362, 1.442695
    %v4364 = vpow.pop %v4363
    %v4365 = vadd.f32 %v4364, 1.0
    %v4366 = vrcp.pop %v4365
    %v4367 = vmul.f32 %v4365, %v4366
    %v4368 = vsub.f32 1.0, %v4367
    %v4369 = vmul.f32 %v4366, %v4368
    %v4370 = vadd.f32 %v4366, %v4369
    %vm4371 = vweird.f32 %v4365
    %vm4372 = vweird.f32 %v4366
    %vm4373 = vmor %vm4371, %vm4372
    %v4374 = vsel %vm4373, %v4366, %v4370
    %v4375 = vand.u32 2147483647, %v4365
    %vm4376 = vcmp.eq.f32.partialorder %v4375, 8.507059e+37
    %v4377 = vand.u32 %v4365, 2147483648
    %v4378 = vor.u32 1.1754944e-38, %v4377
    %v4379 = vsel %vm4376, %v4378, %v4374
    %v4380 = vmul.f32 1.0, %v4379
    %4381 = vst [vmem:[#allocation1] ss:$4 sm:$0xff] %v4333
    %v4382 = vld.sshfl [vmem:[#allocation1] sm:$0xff pattern:$0x73625140]
    %4383 = vrot.lane.b32.xlu0 %v4382, 32
    %v4384 = vpop.permute.xlu0 %4383
    %v4385 = vsel %vm215, %v4384, 0
    %4387 = vmatpush.msra.mxu0 0.0
    %4388 = vmatpush.msra.mxu0 0.0
    %4389 = vmatpush.msra.mxu0 0.0
    %4390 = vmatpush.msra.mxu0 0.0
    %4391 = vmatpush.msra.mxu0 0.0
    %4392 = vmatpush.msra.mxu0 0.0
    %4393 = vmatpush.msra.mxu0 0.0
    %4394 = vmatpush.msra.mxu0 0.0
    %4395 = vmatpush.msra.mxu0 0.0
    %4396 = vmatpush.msra.mxu0 0.0
    %4397 = vmatpush.msra.mxu0 0.0
    %4398 = vmatpush.msra.mxu0 0.0
    %4399 = vmatpush.msra.mxu0 %v3564
    %4400 = vmatpush.msra.mxu0 %v3563
    %4401 = vmatpush.msra.mxu0 %v3562
    %4402 = vmatpush.msra.mxu0 %v3561
    %4403 = vmatmul.f32.gmra.mxu0 %v4385
    %v4404 = vpop.f32.mrf.mxu0
    %v4405 = vadd.f32 0.0, %v4404
    %4406 = vdwg.mxu0
    %4408 = vrot.lane.b32.xlu0 %v4405, 32
    %v4409 = vpop.permute.xlu0 %4408
    %v4411 = vadd.f32 %v3475, %v4409
    %v4412 = vxor.u32 %v4411, 2147483648
    %v4413 = vmul.f32 %v4412, 1.442695
    %v4414 = vpow.pop %v4413
    %v4415 = vadd.f32 %v4414, 1.0
    %v4416 = vrcp.pop %v4415
    %v4417 = vmul.f32 %v4415, %v4416
    %v4418 = vsub.f32 1.0, %v4417
    %v4419 = vmul.f32 %v4416, %v4418
    %v4420 = vadd.f32 %v4416, %v4419
    %vm4421 = vweird.f32 %v4415
    %vm4422 = vweird.f32 %v4416
    %vm4423 = vmor %vm4421, %vm4422
    %v4424 = vsel %vm4423, %v4416, %v4420
    %v4425 = vand.u32 2147483647, %v4415
    %vm4426 = vcmp.eq.f32.partialorder %v4425, 8.507059e+37
    %v4427 = vand.u32 %v4415, 2147483648
    %v4428 = vor.u32 1.1754944e-38, %v4427
    %v4429 = vsel %vm4426, %v4428, %v4424
    %v4430 = vmul.f32 1.0, %v4429
    %4431 = vst [vmem:[#allocation1] ss:$4 sm:$0xff] %v4333
    %v4432 = vld.sshfl [vmem:[#allocation1] sm:$0xff pattern:$0x73625140]
    %4433 = vrot.lane.b32.xlu0 %v4432, 32
    %v4434 = vpop.permute.xlu0 %4433
    %v4435 = vsel %vm215, %v4434, 0
    %4437 = vmatpush.msra.mxu0 0.0
    %4438 = vmatpush.msra.mxu0 0.0
    %4439 = vmatpush.msra.mxu0 0.0
    %4440 = vmatpush.msra.mxu0 0.0
    %4441 = vmatpush.msra.mxu0 0.0
    %4442 = vmatpush.msra.mxu0 0.0
    %4443 = vmatpush.msra.mxu0 0.0
    %4444 = vmatpush.msra.mxu0 0.0
    %4445 = vmatpush.msra.mxu0 0.0
    %4446 = vmatpush.msra.mxu0 0.0
    %4447 = vmatpush.msra.mxu0 0.0
    %4448 = vmatpush.msra.mxu0 0.0
    %4449 = vmatpush.msra.mxu0 %v3569
    %4450 = vmatpush.msra.mxu0 %v3568
    %4451 = vmatpush.msra.mxu0 %v3567
    %4452 = vmatpush.msra.mxu0 %v3566
    %4453 = vmatmul.f32.gmra.mxu0 %v4435
    %v4454 = vpop.f32.mrf.mxu0
    %v4455 = vadd.f32 0.0, %v4454
    %4456 = vdwg.mxu0
    %4458 = vrot.lane.b32.xlu0 %v4455, 64
    %v4459 = vpop.permute.xlu0 %4458
    %v4461 = vadd.f32 %v3475, %v4459
    %v4462 = vtanh.pop %v4461
    %4463 = vst [vmem:[#allocation1] ss:$4 sm:$0xff] %v4333
    %v4464 = vld.sshfl [vmem:[#allocation1] sm:$0xff pattern:$0x73625140]
    %4465 = vrot.lane.b32.xlu0 %v4464, 32
    %v4466 = vpop.permute.xlu0 %4465
    %v4467 = vsel %vm215, %v4466, 0
    %4469 = vmatpush.msra.mxu0 0.0
    %4470 = vmatpush.msra.mxu0 0.0
    %4471 = vmatpush.msra.mxu0 0.0
    %4472 = vmatpush.msra.mxu0 0.0
    %4473 = vmatpush.msra.mxu0 0.0
    %4474 = vmatpush.msra.mxu0 0.0
    %4475 = vmatpush.msra.mxu0 0.0
    %4476 = vmatpush.msra.mxu0 0.0
    %4477 = vmatpush.msra.mxu0 0.0
    %4478 = vmatpush.msra.mxu0 0.0
    %4479 = vmatpush.msra.mxu0 0.0
    %4480 = vmatpush.msra.mxu0 0.0
    %4481 = vmatpush.msra.mxu0 %v3574
    %4482 = vmatpush.msra.mxu0 %v3573
    %4483 = vmatpush.msra.mxu0 %v3572
    %4484 = vmatpush.msra.mxu0 %v3571
    %4485 = vmatmul.f32.gmra.mxu0 %v4467
    %v4486 = vpop.f32.mrf.mxu0
    %v4487 = vadd.f32 0.0, %v4486
    %4488 = vdwg.mxu0
    %4490 = vrot.lane.b32.xlu0 %v4487, 96
    %v4491 = vpop.permute.xlu0 %4490
    %v4493 = vadd.f32 %v3475, %v4491
    %v4494 = vxor.u32 %v4493, 2147483648
    %v4495 = vmul.f32 %v4494, 1.442695
    %v4496 = vpow.pop %v4495
    %v4497 = vadd.f32 %v4496, 1.0
    %v4498 = vrcp.pop %v4497
    %v4499 = vmul.f32 %v4497, %v4498
    %v4500 = vsub.f32 1.0, %v4499
    %v4501 = vmul.f32 %v4498, %v4500
    %v4502 = vadd.f32 %v4498, %v4501
    %vm4503 = vweird.f32 %v4497
    %vm4504 = vweird.f32 %v4498
    %vm4505 = vmor %vm4503, %vm4504
    %v4506 = vsel %vm4505, %v4498, %v4502
    %v4507 = vand.u32 2147483647, %v4497
    %vm4508 = vcmp.eq.f32.partialorder %v4507, 8.507059e+37
    %v4509 = vand.u32 %v4497, 2147483648
    %v4510 = vor.u32 1.1754944e-38, %v4509
    %v4511 = vsel %vm4508, %v4510, %v4506
    %v4512 = vmul.f32 1.0, %v4511
    %v4513 = vmul.f32 %v4430, %v4327
    %4515 = vrot.lane.b32.xlu0 %v4462, 64
    %v4516 = vpop.permute.xlu0 %4515
    %v4518 = vmul.f32 %v4380, %v4516
    %4520 = vrot.lane.b32.xlu0 %v4518, 32
    %v4521 = vpop.permute.xlu0 %4520
    %v4523 = vadd.f32 %v4513, %v4521
    %v4524 = vtanh.pop %v4523
    %4526 = vrot.lane.b32.xlu0 %v4524, 64
    %v4527 = vpop.permute.xlu0 %4526
    %v4529 = vmul.f32 %v4512, %v4527
    %4531 = vst [vmem:[#allocation1] ss:$4 sm:$0xff] %v4529
    %v4532 = vld.sshfl [vmem:[#allocation1] sm:$0xff pattern:$0x73625140]
    %4533 = vrot.lane.b32.xlu0 %v4532, 32
    %v4534 = vpop.permute.xlu0 %4533
    %v4535 = vsel %vm215, %v4534, 0
    %4537 = vmatpush.msra.mxu0 0.0
    %4538 = vmatpush.msra.mxu0 0.0
    %4539 = vmatpush.msra.mxu0 0.0
    %4540 = vmatpush.msra.mxu0 0.0
    %4541 = vmatpush.msra.mxu0 0.0
    %4542 = vmatpush.msra.mxu0 0.0
    %4543 = vmatpush.msra.mxu0 0.0
    %4544 = vmatpush.msra.mxu0 0.0
    %4545 = vmatpush.msra.mxu0 0.0
    %4546 = vmatpush.msra.mxu0 0.0
    %4547 = vmatpush.msra.mxu0 0.0
    %4548 = vmatpush.msra.mxu0 0.0
    %4549 = vmatpush.msra.mxu0 %v3559
    %4550 = vmatpush.msra.mxu0 %v3558
    %4551 = vmatpush.msra.mxu0 %v3557
    %4552 = vmatpush.msra.mxu0 %v3556
    %4553 = vmatmul.f32.gmra.mxu0 %v4535
    %v4554 = vpop.f32.mrf.mxu0
    %v4555 = vadd.f32 0.0, %v4554
    %4556 = vdwg.mxu0
    %v4557 = vadd.f32 %v3533, %v4555
    %v4558 = vxor.u32 %v4557, 2147483648
    %v4559 = vmul.f32 %v4558, 1.442695
    %v4560 = vpow.pop %v4559
    %v4561 = vadd.f32 %v4560, 1.0
    %v4562 = vrcp.pop %v4561
    %v4563 = vmul.f32 %v4561, %v4562
    %v4564 = vsub.f32 1.0, %v4563
    %v4565 = vmul.f32 %v4562, %v4564
    %v4566 = vadd.f32 %v4562, %v4565
    %vm4567 = vweird.f32 %v4561
    %vm4568 = vweird.f32 %v4562
    %vm4569 = vmor %vm4567, %vm4568
    %v4570 = vsel %vm4569, %v4562, %v4566
    %v4571 = vand.u32 2147483647, %v4561
    %vm4572 = vcmp.eq.f32.partialorder %v4571, 8.507059e+37
    %v4573 = vand.u32 %v4561, 2147483648
    %v4574 = vor.u32 1.1754944e-38, %v4573
    %v4575 = vsel %vm4572, %v4574, %v4570
    %v4576 = vmul.f32 1.0, %v4575
    %4577 = vst [vmem:[#allocation1] ss:$4 sm:$0xff] %v4529
    %v4578 = vld.sshfl [vmem:[#allocation1] sm:$0xff pattern:$0x73625140]
    %4579 = vrot.lane.b32.xlu0 %v4578, 32
    %v4580 = vpop.permute.xlu0 %4579
    %v4581 = vsel %vm215, %v4580, 0
    %4583 = vmatpush.msra.mxu0 0.0
    %4584 = vmatpush.msra.mxu0 0.0
    %4585 = vmatpush.msra.mxu0 0.0
    %4586 = vmatpush.msra.mxu0 0.0
    %4587 = vmatpush.msra.mxu0 0.0
    %4588 = vmatpush.msra.mxu0 0.0
    %4589 = vmatpush.msra.mxu0 0.0
    %4590 = vmatpush.msra.mxu0 0.0
    %4591 = vmatpush.msra.mxu0 0.0
    %4592 = vmatpush.msra.mxu0 0.0
    %4593 = vmatpush.msra.mxu0 0.0
    %4594 = vmatpush.msra.mxu0 0.0
    %4595 = vmatpush.msra.mxu0 %v3564
    %4596 = vmatpush.msra.mxu0 %v3563
    %4597 = vmatpush.msra.mxu0 %v3562
    %4598 = vmatpush.msra.mxu0 %v3561
    %4599 = vmatmul.f32.gmra.mxu0 %v4581
    %v4600 = vpop.f32.mrf.mxu0
    %v4601 = vadd.f32 0.0, %v4600
    %4602 = vdwg.mxu0
    %4604 = vrot.lane.b32.xlu0 %v4601, 32
    %v4605 = vpop.permute.xlu0 %4604
    %v4607 = vadd.f32 %v3533, %v4605
    %v4608 = vxor.u32 %v4607, 2147483648
    %v4609 = vmul.f32 %v4608, 1.442695
    %v4610 = vpow.pop %v4609
    %v4611 = vadd.f32 %v4610, 1.0
    %v4612 = vrcp.pop %v4611
    %v4613 = vmul.f32 %v4611, %v4612
    %v4614 = vsub.f32 1.0, %v4613
    %v4615 = vmul.f32 %v4612, %v4614
    %v4616 = vadd.f32 %v4612, %v4615
    %vm4617 = vweird.f32 %v4611
    %vm4618 = vweird.f32 %v4612
    %vm4619 = vmor %vm4617, %vm4618
    %v4620 = vsel %vm4619, %v4612, %v4616
    %v4621 = vand.u32 2147483647, %v4611
    %vm4622 = vcmp.eq.f32.partialorder %v4621, 8.507059e+37
    %v4623 = vand.u32 %v4611, 2147483648
    %v4624 = vor.u32 1.1754944e-38, %v4623
    %v4625 = vsel %vm4622, %v4624, %v4620
    %v4626 = vmul.f32 1.0, %v4625
    %4627 = vst [vmem:[#allocation1] ss:$4 sm:$0xff] %v4529
    %v4628 = vld.sshfl [vmem:[#allocation1] sm:$0xff pattern:$0x73625140]
    %4629 = vrot.lane.b32.xlu0 %v4628, 32
    %v4630 = vpop.permute.xlu0 %4629
    %v4631 = vsel %vm215, %v4630, 0
    %4633 = vmatpush.msra.mxu0 0.0
    %4634 = vmatpush.msra.mxu0 0.0
    %4635 = vmatpush.msra.mxu0 0.0
    %4636 = vmatpush.msra.mxu0 0.0
    %4637 = vmatpush.msra.mxu0 0.0
    %4638 = vmatpush.msra.mxu0 0.0
    %4639 = vmatpush.msra.mxu0 0.0
    %4640 = vmatpush.msra.mxu0 0.0
    %4641 = vmatpush.msra.mxu0 0.0
    %4642 = vmatpush.msra.mxu0 0.0
    %4643 = vmatpush.msra.mxu0 0.0
    %4644 = vmatpush.msra.mxu0 0.0
    %4645 = vmatpush.msra.mxu0 %v3569
    %4646 = vmatpush.msra.mxu0 %v3568
    %4647 = vmatpush.msra.mxu0 %v3567
    %4648 = vmatpush.msra.mxu0 %v3566
    %4649 = vmatmul.f32.gmra.mxu0 %v4631
    %v4650 = vpop.f32.mrf.mxu0
    %v4651 = vadd.f32 0.0, %v4650
    %4652 = vdwg.mxu0
    %4654 = vrot.lane.b32.xlu0 %v4651, 64
    %v4655 = vpop.permute.xlu0 %4654
    %v4657 = vadd.f32 %v3533, %v4655
    %v4658 = vtanh.pop %v4657
    %4659 = vst [vmem:[#allocation1] ss:$4 sm:$0xff] %v4529
    %v4660 = vld.sshfl [vmem:[#allocation1] sm:$0xff pattern:$0x73625140]
    %4661 = vrot.lane.b32.xlu0 %v4660, 32
    %v4662 = vpop.permute.xlu0 %4661
    %v4663 = vsel %vm215, %v4662, 0
    %4665 = vmatpush.msra.mxu0 0.0
    %4666 = vmatpush.msra.mxu0 0.0
    %4667 = vmatpush.msra.mxu0 0.0
    %4668 = vmatpush.msra.mxu0 0.0
    %4669 = vmatpush.msra.mxu0 0.0
    %4670 = vmatpush.msra.mxu0 0.0
    %4671 = vmatpush.msra.mxu0 0.0
    %4672 = vmatpush.msra.mxu0 0.0
    %4673 = vmatpush.msra.mxu0 0.0
    %4674 = vmatpush.msra.mxu0 0.0
    %4675 = vmatpush.msra.mxu0 0.0
    %4676 = vmatpush.msra.mxu0 0.0
    %4677 = vmatpush.msra.mxu0 %v3574
    %4678 = vmatpush.msra.mxu0 %v3573
    %4679 = vmatpush.msra.mxu0 %v3572
    %4680 = vmatpush.msra.mxu0 %v3571
    %4681 = vmatmul.f32.gmra.mxu0 %v4663
    %v4682 = vpop.f32.mrf.mxu0
    %v4683 = vadd.f32 0.0, %v4682
    %4684 = vdwg.mxu0
    %4686 = vrot.lane.b32.xlu0 %v4683, 96
    %v4687 = vpop.permute.xlu0 %4686
    %v4689 = vadd.f32 %v3533, %v4687
    %v4690 = vxor.u32 %v4689, 2147483648
    %v4691 = vmul.f32 %v4690, 1.442695
    %v4692 = vpow.pop %v4691
    %v4693 = vadd.f32 %v4692, 1.0
    %v4694 = vrcp.pop %v4693
    %v4695 = vmul.f32 %v4693, %v4694
    %v4696 = vsub.f32 1.0, %v4695
    %v4697 = vmul.f32 %v4694, %v4696
    %v4698 = vadd.f32 %v4694, %v4697
    %vm4699 = vweird.f32 %v4693
    %vm4700 = vweird.f32 %v4694
    %vm4701 = vmor %vm4699, %vm4700
    %v4702 = vsel %vm4701, %v4694, %v4698
    %v4703 = vand.u32 2147483647, %v4693
    %vm4704 = vcmp.eq.f32.partialorder %v4703, 8.507059e+37
    %v4705 = vand.u32 %v4693, 2147483648
    %v4706 = vor.u32 1.1754944e-38, %v4705
    %v4707 = vsel %vm4704, %v4706, %v4702
    %v4708 = vmul.f32 1.0, %v4707
    %v4709 = vmul.f32 %v4626, %v4523
    %4711 = vrot.lane.b32.xlu0 %v4658, 64
    %v4712 = vpop.permute.xlu0 %4711
    %v4714 = vmul.f32 %v4576, %v4712
    %4716 = vrot.lane.b32.xlu0 %v4714, 32
    %v4717 = vpop.permute.xlu0 %4716
    %v4719 = vadd.f32 %v4709, %v4717
    %v4720 = vtanh.pop %v4719
    %4722 = vrot.lane.b32.xlu0 %v4720, 64
    %v4723 = vpop.permute.xlu0 %4722
    %v4725 = vmul.f32 %v4708, %v4723
    %4727 = vst [vmem:[#allocation1] ss:$4 sm:$0xff] %v4725
    %v4728 = vld.sshfl [vmem:[#allocation1] sm:$0xff pattern:$0x73625140]
    %4729 = vrot.lane.b32.xlu0 %v4728, 32
    %v4730 = vpop.permute.xlu0 %4729
    %v4731 = vsel %vm215, %v4730, 0
    %4733 = vmatpush.msra.mxu0 0.0
    %4734 = vmatpush.msra.mxu0 0.0
    %4735 = vmatpush.msra.mxu0 0.0
    %4736 = vmatpush.msra.mxu0 0.0
    %4737 = vmatpush.msra.mxu0 0.0
    %4738 = vmatpush.msra.mxu0 0.0
    %4739 = vmatpush.msra.mxu0 0.0
    %4740 = vmatpush.msra.mxu0 0.0
    %4741 = vmatpush.msra.mxu0 0.0
    %4742 = vmatpush.msra.mxu0 0.0
    %4743 = vmatpush.msra.mxu0 0.0
    %4744 = vmatpush.msra.mxu0 0.0
    %4745 = vmatpush.msra.mxu0 %v3559
    %4746 = vmatpush.msra.mxu0 %v3558
    %4747 = vmatpush.msra.mxu0 %v3557
    %4748 = vmatpush.msra.mxu0 %v3556
    %4749 = vmatmul.f32.gmra.mxu0 %v4731
    %v4750 = vpop.f32.mrf.mxu0
    %v4751 = vadd.f32 0.0, %v4750
    %4752 = vdwg.mxu0
    %v4753 = vadd.f32 %v3534, %v4751
    %v4754 = vxor.u32 %v4753, 2147483648
    %v4755 = vmul.f32 %v4754, 1.442695
    %v4756 = vpow.pop %v4755
    %v4757 = vadd.f32 %v4756, 1.0
    %v4758 = vrcp.pop %v4757
    %v4759 = vmul.f32 %v4757, %v4758
    %v4760 = vsub.f32 1.0, %v4759
    %v4761 = vmul.f32 %v4758, %v4760
    %v4762 = vadd.f32 %v4758, %v4761
    %vm4763 = vweird.f32 %v4757
    %vm4764 = vweird.f32 %v4758
    %vm4765 = vmor %vm4763, %vm4764
    %v4766 = vsel %vm4765, %v4758, %v4762
    %v4767 = vand.u32 2147483647, %v4757
    %vm4768 = vcmp.eq.f32.partialorder %v4767, 8.507059e+37
    %v4769 = vand.u32 %v4757, 2147483648
    %v4770 = vor.u32 1.1754944e-38, %v4769
    %v4771 = vsel %vm4768, %v4770, %v4766
    %v4772 = vmul.f32 1.0, %v4771
    %4773 = vst [vmem:[#allocation1] ss:$4 sm:$0xff] %v4725
    %v4774 = vld.sshfl [vmem:[#allocation1] sm:$0xff pattern:$0x73625140]
    %4775 = vrot.lane.b32.xlu0 %v4774, 32
    %v4776 = vpop.permute.xlu0 %4775
    %v4777 = vsel %vm215, %v4776, 0
    %4779 = vmatpush.msra.mxu0 0.0
    %4780 = vmatpush.msra.mxu0 0.0
    %4781 = vmatpush.msra.mxu0 0.0
    %4782 = vmatpush.msra.mxu0 0.0
    %4783 = vmatpush.msra.mxu0 0.0
    %4784 = vmatpush.msra.mxu0 0.0
    %4785 = vmatpush.msra.mxu0 0.0
    %4786 = vmatpush.msra.mxu0 0.0
    %4787 = vmatpush.msra.mxu0 0.0
    %4788 = vmatpush.msra.mxu0 0.0
    %4789 = vmatpush.msra.mxu0 0.0
    %4790 = vmatpush.msra.mxu0 0.0
    %4791 = vmatpush.msra.mxu0 %v3564
    %4792 = vmatpush.msra.mxu0 %v3563
    %4793 = vmatpush.msra.mxu0 %v3562
    %4794 = vmatpush.msra.mxu0 %v3561
    %4795 = vmatmul.f32.gmra.mxu0 %v4777
    %v4796 = vpop.f32.mrf.mxu0
    %v4797 = vadd.f32 0.0, %v4796
    %4798 = vdwg.mxu0
    %4800 = vrot.lane.b32.xlu0 %v4797, 32
    %v4801 = vpop.permute.xlu0 %4800
    %v4803 = vadd.f32 %v3534, %v4801
    %v4804 = vxor.u32 %v4803, 2147483648
    %v4805 = vmul.f32 %v4804, 1.442695
    %v4806 = vpow.pop %v4805
    %v4807 = vadd.f32 %v4806, 1.0
    %v4808 = vrcp.pop %v4807
    %v4809 = vmul.f32 %v4807, %v4808
    %v4810 = vsub.f32 1.0, %v4809
    %v4811 = vmul.f32 %v4808, %v4810
    %v4812 = vadd.f32 %v4808, %v4811
    %vm4813 = vweird.f32 %v4807
    %vm4814 = vweird.f32 %v4808
    %vm4815 = vmor %vm4813, %vm4814
    %v4816 = vsel %vm4815, %v4808, %v4812
    %v4817 = vand.u32 2147483647, %v4807
    %vm4818 = vcmp.eq.f32.partialorder %v4817, 8.507059e+37
    %v4819 = vand.u32 %v4807, 2147483648
    %v4820 = vor.u32 1.1754944e-38, %v4819
    %v4821 = vsel %vm4818, %v4820, %v4816
    %v4822 = vmul.f32 1.0, %v4821
    %4823 = vst [vmem:[#allocation1] ss:$4 sm:$0xff] %v4725
    %v4824 = vld.sshfl [vmem:[#allocation1] sm:$0xff pattern:$0x73625140]
    %4825 = vrot.lane.b32.xlu0 %v4824, 32
    %v4826 = vpop.permute.xlu0 %4825
    %v4827 = vsel %vm215, %v4826, 0
    %4829 = vmatpush.msra.mxu0 0.0
    %4830 = vmatpush.msra.mxu0 0.0
    %4831 = vmatpush.msra.mxu0 0.0
    %4832 = vmatpush.msra.mxu0 0.0
    %4833 = vmatpush.msra.mxu0 0.0
    %4834 = vmatpush.msra.mxu0 0.0
    %4835 = vmatpush.msra.mxu0 0.0
    %4836 = vmatpush.msra.mxu0 0.0
    %4837 = vmatpush.msra.mxu0 0.0
    %4838 = vmatpush.msra.mxu0 0.0
    %4839 = vmatpush.msra.mxu0 0.0
    %4840 = vmatpush.msra.mxu0 0.0
    %4841 = vmatpush.msra.mxu0 %v3569
    %4842 = vmatpush.msra.mxu0 %v3568
    %4843 = vmatpush.msra.mxu0 %v3567
    %4844 = vmatpush.msra.mxu0 %v3566
    %4845 = vmatmul.f32.gmra.mxu0 %v4827
    %v4846 = vpop.f32.mrf.mxu0
    %v4847 = vadd.f32 0.0, %v4846
    %4848 = vdwg.mxu0
    %4850 = vrot.lane.b32.xlu0 %v4847, 64
    %v4851 = vpop.permute.xlu0 %4850
    %v4853 = vadd.f32 %v3534, %v4851
    %v4854 = vtanh.pop %v4853
    %4855 = vst [vmem:[#allocation1] ss:$4 sm:$0xff] %v4725
    %v4856 = vld.sshfl [vmem:[#allocation1] sm:$0xff pattern:$0x73625140]
    %4857 = vrot.lane.b32.xlu0 %v4856, 32
    %v4858 = vpop.permute.xlu0 %4857
    %v4859 = vsel %vm215, %v4858, 0
    %4861 = vmatpush.msra.mxu0 0.0
    %4862 = vmatpush.msra.mxu0 0.0
    %4863 = vmatpush.msra.mxu0 0.0
    %4864 = vmatpush.msra.mxu0 0.0
    %4865 = vmatpush.msra.mxu0 0.0
    %4866 = vmatpush.msra.mxu0 0.0
    %4867 = vmatpush.msra.mxu0 0.0
    %4868 = vmatpush.msra.mxu0 0.0
    %4869 = vmatpush.msra.mxu0 0.0
    %4870 = vmatpush.msra.mxu0 0.0
    %4871 = vmatpush.msra.mxu0 0.0
    %4872 = vmatpush.msra.mxu0 0.0
    %4873 = vmatpush.msra.mxu0 %v3574
    %4874 = vmatpush.msra.mxu0 %v3573
    %4875 = vmatpush.msra.mxu0 %v3572
    %4876 = vmatpush.msra.mxu0 %v3571
    %4877 = vmatmul.f32.gmra.mxu0 %v4859
    %v4878 = vpop.f32.mrf.mxu0
    %v4879 = vadd.f32 0.0, %v4878
    %4880 = vdwg.mxu0
    %4882 = vrot.lane.b32.xlu0 %v4879, 96
    %v4883 = vpop.permute.xlu0 %4882
    %v4885 = vadd.f32 %v3534, %v4883
    %v4886 = vxor.u32 %v4885, 2147483648
    %v4887 = vmul.f32 %v4886, 1.442695
    %v4888 = vpow.pop %v4887
    %v4889 = vadd.f32 %v4888, 1.0
    %v4890 = vrcp.pop %v4889
    %v4891 = vmul.f32 %v4889, %v4890
    %v4892 = vsub.f32 1.0, %v4891
    %v4893 = vmul.f32 %v4890, %v4892
    %v4894 = vadd.f32 %v4890, %v4893
    %vm4895 = vweird.f32 %v4889
    %vm4896 = vweird.f32 %v4890
    %vm4897 = vmor %vm4895, %vm4896
    %v4898 = vsel %vm4897, %v4890, %v4894
    %v4899 = vand.u32 2147483647, %v4889
    %vm4900 = vcmp.eq.f32.partialorder %v4899, 8.507059e+37
    %v4901 = vand.u32 %v4889, 2147483648
    %v4902 = vor.u32 1.1754944e-38, %v4901
    %v4903 = vsel %vm4900, %v4902, %v4898
    %v4904 = vmul.f32 1.0, %v4903
    %v4905 = vmul.f32 %v4822, %v4719
    %4907 = vrot.lane.b32.xlu0 %v4854, 64
    %v4908 = vpop.permute.xlu0 %4907
    %v4910 = vmul.f32 %v4772, %v4908
    %4912 = vrot.lane.b32.xlu0 %v4910, 32
    %v4913 = vpop.permute.xlu0 %4912
    %v4915 = vadd.f32 %v4905, %v4913
    %v4916 = vtanh.pop %v4915
    %4918 = vrot.lane.b32.xlu0 %v4916, 64
    %v4919 = vpop.permute.xlu0 %4918
    %v4921 = vmul.f32 %v4904, %v4919
    %4923 = vst [vmem:[#allocation1] ss:$4 sm:$0xff] %v4921
    %v4924 = vld.sshfl [vmem:[#allocation1] sm:$0xff pattern:$0x73625140]
    %4925 = vrot.lane.b32.xlu0 %v4924, 32
    %v4926 = vpop.permute.xlu0 %4925
    %v4927 = vsel %vm215, %v4926, 0
    %4929 = vmatpush.msra.mxu0 0.0
    %4930 = vmatpush.msra.mxu0 0.0
    %4931 = vmatpush.msra.mxu0 0.0
    %4932 = vmatpush.msra.mxu0 0.0
    %4933 = vmatpush.msra.mxu0 0.0
    %4934 = vmatpush.msra.mxu0 0.0
    %4935 = vmatpush.msra.mxu0 0.0
    %4936 = vmatpush.msra.mxu0 0.0
    %4937 = vmatpush.msra.mxu0 0.0
    %4938 = vmatpush.msra.mxu0 0.0
    %4939 = vmatpush.msra.mxu0 0.0
    %4940 = vmatpush.msra.mxu0 0.0
    %4941 = vmatpush.msra.mxu0 %v3559
    %4942 = vmatpush.msra.mxu0 %v3558
    %4943 = vmatpush.msra.mxu0 %v3557
    %4944 = vmatpush.msra.mxu0 %v3556
    %4945 = vmatmul.f32.gmra.mxu0 %v4927
    %v4946 = vpop.f32.mrf.mxu0
    %v4947 = vadd.f32 0.0, %v4946
    %4948 = vdwg.mxu0
    %v4949 = vadd.f32 %v3535, %v4947
    %v4950 = vxor.u32 %v4949, 2147483648
    %v4951 = vmul.f32 %v4950, 1.442695
    %v4952 = vpow.pop %v4951
    %v4953 = vadd.f32 %v4952, 1.0
    %v4954 = vrcp.pop %v4953
    %v4955 = vmul.f32 %v4953, %v4954
    %v4956 = vsub.f32 1.0, %v4955
    %v4957 = vmul.f32 %v4954, %v4956
    %v4958 = vadd.f32 %v4954, %v4957
    %vm4959 = vweird.f32 %v4953
    %vm4960 = vweird.f32 %v4954
    %vm4961 = vmor %vm4959, %vm4960
    %v4962 = vsel %vm4961, %v4954, %v4958
    %v4963 = vand.u32 2147483647, %v4953
    %vm4964 = vcmp.eq.f32.partialorder %v4963, 8.507059e+37
    %v4965 = vand.u32 %v4953, 2147483648
    %v4966 = vor.u32 1.1754944e-38, %v4965
    %v4967 = vsel %vm4964, %v4966, %v4962
    %v4968 = vmul.f32 1.0, %v4967
    %4969 = vst [vmem:[#allocation1] ss:$4 sm:$0xff] %v4921
    %v4970 = vld.sshfl [vmem:[#allocation1] sm:$0xff pattern:$0x73625140]
    %4971 = vrot.lane.b32.xlu0 %v4970, 32
    %v4972 = vpop.permute.xlu0 %4971
    %v4973 = vsel %vm215, %v4972, 0
    %4975 = vmatpush.msra.mxu0 0.0
    %4976 = vmatpush.msra.mxu0 0.0
    %4977 = vmatpush.msra.mxu0 0.0
    %4978 = vmatpush.msra.mxu0 0.0
    %4979 = vmatpush.msra.mxu0 0.0
    %4980 = vmatpush.msra.mxu0 0.0
    %4981 = vmatpush.msra.mxu0 0.0
    %4982 = vmatpush.msra.mxu0 0.0
    %4983 = vmatpush.msra.mxu0 0.0
    %4984 = vmatpush.msra.mxu0 0.0
    %4985 = vmatpush.msra.mxu0 0.0
    %4986 = vmatpush.msra.mxu0 0.0
    %4987 = vmatpush.msra.mxu0 %v3564
    %4988 = vmatpush.msra.mxu0 %v3563
    %4989 = vmatpush.msra.mxu0 %v3562
    %4990 = vmatpush.msra.mxu0 %v3561
    %4991 = vmatmul.f32.gmra.mxu0 %v4973
    %v4992 = vpop.f32.mrf.mxu0
    %v4993 = vadd.f32 0.0, %v4992
    %4994 = vdwg.mxu0
    %4996 = vrot.lane.b32.xlu0 %v4993, 32
    %v4997 = vpop.permute.xlu0 %4996
    %v4999 = vadd.f32 %v3535, %v4997
    %v5000 = vxor.u32 %v4999, 2147483648
    %v5001 = vmul.f32 %v5000, 1.442695
    %v5002 = vpow.pop %v5001
    %v5003 = vadd.f32 %v5002, 1.0
    %v5004 = vrcp.pop %v5003
    %v5005 = vmul.f32 %v5003, %v5004
    %v5006 = vsub.f32 1.0, %v5005
    %v5007 = vmul.f32 %v5004, %v5006
    %v5008 = vadd.f32 %v5004, %v5007
    %vm5009 = vweird.f32 %v5003
    %vm5010 = vweird.f32 %v5004
    %vm5011 = vmor %vm5009, %vm5010
    %v5012 = vsel %vm5011, %v5004, %v5008
    %v5013 = vand.u32 2147483647, %v5003
    %vm5014 = vcmp.eq.f32.partialorder %v5013, 8.507059e+37
    %v5015 = vand.u32 %v5003, 2147483648
    %v5016 = vor.u32 1.1754944e-38, %v5015
    %v5017 = vsel %vm5014, %v5016, %v5012
    %v5018 = vmul.f32 1.0, %v5017
    %5019 = vst [vmem:[#allocation1] ss:$4 sm:$0xff] %v4921
    %v5020 = vld.sshfl [vmem:[#allocation1] sm:$0xff pattern:$0x73625140]
    %5021 = vrot.lane.b32.xlu0 %v5020, 32
    %v5022 = vpop.permute.xlu0 %5021
    %v5023 = vsel %vm215, %v5022, 0
    %5025 = vmatpush.msra.mxu0 0.0
    %5026 = vmatpush.msra.mxu0 0.0
    %5027 = vmatpush.msra.mxu0 0.0
    %5028 = vmatpush.msra.mxu0 0.0
    %5029 = vmatpush.msra.mxu0 0.0
    %5030 = vmatpush.msra.mxu0 0.0
    %5031 = vmatpush.msra.mxu0 0.0
    %5032 = vmatpush.msra.mxu0 0.0
    %5033 = vmatpush.msra.mxu0 0.0
    %5034 = vmatpush.msra.mxu0 0.0
    %5035 = vmatpush.msra.mxu0 0.0
    %5036 = vmatpush.msra.mxu0 0.0
    %5037 = vmatpush.msra.mxu0 %v3569
    %5038 = vmatpush.msra.mxu0 %v3568
    %5039 = vmatpush.msra.mxu0 %v3567
    %5040 = vmatpush.msra.mxu0 %v3566
    %5041 = vmatmul.f32.gmra.mxu0 %v5023
    %v5042 = vpop.f32.mrf.mxu0
    %v5043 = vadd.f32 0.0, %v5042
    %5044 = vdwg.mxu0
    %5046 = vrot.lane.b32.xlu0 %v5043, 64
    %v5047 = vpop.permute.xlu0 %5046
    %v5049 = vadd.f32 %v3535, %v5047
    %v5050 = vtanh.pop %v5049
    %5051 = vst [vmem:[#allocation1] ss:$4 sm:$0xff] %v4921
    %v5052 = vld.sshfl [vmem:[#allocation1] sm:$0xff pattern:$0x73625140]
    %5053 = vrot.lane.b32.xlu0 %v5052, 32
    %v5054 = vpop.permute.xlu0 %5053
    %v5055 = vsel %vm215, %v5054, 0
    %5057 = vmatpush.msra.mxu0 0.0
    %5058 = vmatpush.msra.mxu0 0.0
    %5059 = vmatpush.msra.mxu0 0.0
    %5060 = vmatpush.msra.mxu0 0.0
    %5061 = vmatpush.msra.mxu0 0.0
    %5062 = vmatpush.msra.mxu0 0.0
    %5063 = vmatpush.msra.mxu0 0.0
    %5064 = vmatpush.msra.mxu0 0.0
    %5065 = vmatpush.msra.mxu0 0.0
    %5066 = vmatpush.msra.mxu0 0.0
    %5067 = vmatpush.msra.mxu0 0.0
    %5068 = vmatpush.msra.mxu0 0.0
    %5069 = vmatpush.msra.mxu0 %v3574
    %5070 = vmatpush.msra.mxu0 %v3573
    %5071 = vmatpush.msra.mxu0 %v3572
    %5072 = vmatpush.msra.mxu0 %v3571
    %5073 = vmatmul.f32.gmra.mxu0 %v5055
    %v5074 = vpop.f32.mrf.mxu0
    %v5075 = vadd.f32 0.0, %v5074
    %5076 = vdwg.mxu0
    %5078 = vrot.lane.b32.xlu0 %v5075, 96
    %v5079 = vpop.permute.xlu0 %5078
    %v5081 = vadd.f32 %v3535, %v5079
    %v5082 = vxor.u32 %v5081, 2147483648
    %v5083 = vmul.f32 %v5082, 1.442695
    %v5084 = vpow.pop %v5083
    %v5085 = vadd.f32 %v5084, 1.0
    %v5086 = vrcp.pop %v5085
    %v5087 = vmul.f32 %v5085, %v5086
    %v5088 = vsub.f32 1.0, %v5087
    %v5089 = vmul.f32 %v5086, %v5088
    %v5090 = vadd.f32 %v5086, %v5089
    %vm5091 = vweird.f32 %v5085
    %vm5092 = vweird.f32 %v5086
    %vm5093 = vmor %vm5091, %vm5092
    %v5094 = vsel %vm5093, %v5086, %v5090
    %v5095 = vand.u32 2147483647, %v5085
    %vm5096 = vcmp.eq.f32.partialorder %v5095, 8.507059e+37
    %v5097 = vand.u32 %v5085, 2147483648
    %v5098 = vor.u32 1.1754944e-38, %v5097
    %v5099 = vsel %vm5096, %v5098, %v5094
    %v5100 = vmul.f32 1.0, %v5099
    %v5101 = vmul.f32 %v5018, %v4915
    %5103 = vrot.lane.b32.xlu0 %v5050, 64
    %v5104 = vpop.permute.xlu0 %5103
    %v5106 = vmul.f32 %v4968, %v5104
    %5108 = vrot.lane.b32.xlu0 %v5106, 32
    %v5109 = vpop.permute.xlu0 %5108
    %v5111 = vadd.f32 %v5101, %v5109
    %v5112 = vtanh.pop %v5111
    %5114 = vrot.lane.b32.xlu0 %v5112, 64
    %v5115 = vpop.permute.xlu0 %5114
    %v5117 = vmul.f32 %v5100, %v5115
    %v5118 = vld [vmem:[%s11] sm:$0xff]
    %v5119 = vld [vmem:[%s11 + $0x8] sm:$0xff]
    %v5120 = vld [vmem:[%s11 + $0x10] sm:$0xff]
    %v5121 = vld [vmem:[%s11 + $0x18] sm:$0xff]
    %s5122 = scalar_lea.vmem %s11, 32
    %v5123 = vld [vmem:[%s5122] sm:$0xff]
    %v5124 = vld [vmem:[%s5122 + $0x8] sm:$0xff]
    %v5125 = vld [vmem:[%s5122 + $0x10] sm:$0xff]
    %v5126 = vld [vmem:[%s5122 + $0x18] sm:$0xff]
    %s5127 = scalar_lea.vmem %s11, 64
    %v5128 = vld [vmem:[%s5127] sm:$0xff]
    %v5129 = vld [vmem:[%s5127 + $0x8] sm:$0xff]
    %v5130 = vld [vmem:[%s5127 + $0x10] sm:$0xff]
    %v5131 = vld [vmem:[%s5127 + $0x18] sm:$0xff]
    %s5132 = scalar_lea.vmem %s11, 96
    %v5133 = vld [vmem:[%s5132] sm:$0xff]
    %v5134 = vld [vmem:[%s5132 + $0x8] sm:$0xff]
    %v5135 = vld [vmem:[%s5132 + $0x10] sm:$0xff]
    %v5136 = vld [vmem:[%s5132 + $0x18] sm:$0xff]
    %5137 = vmatpush.msra.mxu0 0.0
    %5138 = vmatpush.msra.mxu0 0.0
    %5139 = vmatpush.msra.mxu0 0.0
    %5140 = vmatpush.msra.mxu0 0.0
    %5141 = vmatpush.msra.mxu0 0.0
    %5142 = vmatpush.msra.mxu0 0.0
    %5143 = vmatpush.msra.mxu0 0.0
    %5144 = vmatpush.msra.mxu0 0.0
    %5145 = vmatpush.msra.mxu0 0.0
    %5146 = vmatpush.msra.mxu0 0.0
    %5147 = vmatpush.msra.mxu0 0.0
    %5148 = vmatpush.msra.mxu0 0.0
    %5149 = vmatpush.msra.mxu0 %v5121
    %5150 = vmatpush.msra.mxu0 %v5120
    %5151 = vmatpush.msra.mxu0 %v5119
    %5152 = vmatpush.msra.mxu0 %v5118
    %5153 = vmatmul.f32.gmra.mxu0 %v217
    %v5154 = vpop.f32.mrf.mxu0
    %v5155 = vadd.f32 0.0, %v5154
    %5156 = vdwg.mxu0
    %v5157 = vadd.f32 %v3549, %v5155
    %v5158 = vxor.u32 %v5157, 2147483648
    %v5159 = vmul.f32 %v5158, 1.442695
    %v5160 = vpow.pop %v5159
    %v5161 = vadd.f32 %v5160, 1.0
    %v5162 = vrcp.pop %v5161
    %v5163 = vmul.f32 %v5161, %v5162
    %v5164 = vsub.f32 1.0, %v5163
    %v5165 = vmul.f32 %v5162, %v5164
    %v5166 = vadd.f32 %v5162, %v5165
    %vm5167 = vweird.f32 %v5161
    %vm5168 = vweird.f32 %v5162
    %vm5169 = vmor %vm5167, %vm5168
    %v5170 = vsel %vm5169, %v5162, %v5166
    %v5171 = vand.u32 2147483647, %v5161
    %vm5172 = vcmp.eq.f32.partialorder %v5171, 8.507059e+37
    %v5173 = vand.u32 %v5161, 2147483648
    %v5174 = vor.u32 1.1754944e-38, %v5173
    %v5175 = vsel %vm5172, %v5174, %v5170
    %v5176 = vmul.f32 1.0, %v5175
    %5177 = vmatpush.msra.mxu0 0.0
    %5178 = vmatpush.msra.mxu0 0.0
    %5179 = vmatpush.msra.mxu0 0.0
    %5180 = vmatpush.msra.mxu0 0.0
    %5181 = vmatpush.msra.mxu0 0.0
    %5182 = vmatpush.msra.mxu0 0.0
    %5183 = vmatpush.msra.mxu0 0.0
    %5184 = vmatpush.msra.mxu0 0.0
    %5185 = vmatpush.msra.mxu0 0.0
    %5186 = vmatpush.msra.mxu0 0.0
    %5187 = vmatpush.msra.mxu0 0.0
    %5188 = vmatpush.msra.mxu0 0.0
    %5189 = vmatpush.msra.mxu0 %v5126
    %5190 = vmatpush.msra.mxu0 %v5125
    %5191 = vmatpush.msra.mxu0 %v5124
    %5192 = vmatpush.msra.mxu0 %v5123
    %5193 = vmatmul.f32.gmra.mxu0 %v217
    %v5194 = vpop.f32.mrf.mxu0
    %v5195 = vadd.f32 0.0, %v5194
    %5196 = vdwg.mxu0
    %5198 = vrot.lane.b32.xlu0 %v5195, 32
    %v5199 = vpop.permute.xlu0 %5198
    %v5201 = vadd.f32 %v3549, %v5199
    %v5202 = vxor.u32 %v5201, 2147483648
    %v5203 = vmul.f32 %v5202, 1.442695
    %v5204 = vpow.pop %v5203
    %v5205 = vadd.f32 %v5204, 1.0
    %v5206 = vrcp.pop %v5205
    %v5207 = vmul.f32 %v5205, %v5206
    %v5208 = vsub.f32 1.0, %v5207
    %v5209 = vmul.f32 %v5206, %v5208
    %v5210 = vadd.f32 %v5206, %v5209
    %vm5211 = vweird.f32 %v5205
    %vm5212 = vweird.f32 %v5206
    %vm5213 = vmor %vm5211, %vm5212
    %v5214 = vsel %vm5213, %v5206, %v5210
    %v5215 = vand.u32 2147483647, %v5205
    %vm5216 = vcmp.eq.f32.partialorder %v5215, 8.507059e+37
    %v5217 = vand.u32 %v5205, 2147483648
    %v5218 = vor.u32 1.1754944e-38, %v5217
    %v5219 = vsel %vm5216, %v5218, %v5214
    %v5220 = vmul.f32 1.0, %v5219
    %5221 = vmatpush.msra.mxu0 0.0
    %5222 = vmatpush.msra.mxu0 0.0
    %5223 = vmatpush.msra.mxu0 0.0
    %5224 = vmatpush.msra.mxu0 0.0
    %5225 = vmatpush.msra.mxu0 0.0
    %5226 = vmatpush.msra.mxu0 0.0
    %5227 = vmatpush.msra.mxu0 0.0
    %5228 = vmatpush.msra.mxu0 0.0
    %5229 = vmatpush.msra.mxu0 0.0
    %5230 = vmatpush.msra.mxu0 0.0
    %5231 = vmatpush.msra.mxu0 0.0
    %5232 = vmatpush.msra.mxu0 0.0
    %5233 = vmatpush.msra.mxu0 %v5131
    %5234 = vmatpush.msra.mxu0 %v5130
    %5235 = vmatpush.msra.mxu0 %v5129
    %5236 = vmatpush.msra.mxu0 %v5128
    %5237 = vmatmul.f32.gmra.mxu0 %v217
    %v5238 = vpop.f32.mrf.mxu0
    %v5239 = vadd.f32 0.0, %v5238
    %5240 = vdwg.mxu0
    %5242 = vrot.lane.b32.xlu0 %v5239, 64
    %v5243 = vpop.permute.xlu0 %5242
    %v5245 = vadd.f32 %v3549, %v5243
    %v5246 = vtanh.pop %v5245
    %5247 = vmatpush.msra.mxu0 0.0
    %5248 = vmatpush.msra.mxu0 0.0
    %5249 = vmatpush.msra.mxu0 0.0
    %5250 = vmatpush.msra.mxu0 0.0
    %5251 = vmatpush.msra.mxu0 0.0
    %5252 = vmatpush.msra.mxu0 0.0
    %5253 = vmatpush.msra.mxu0 0.0
    %5254 = vmatpush.msra.mxu0 0.0
    %5255 = vmatpush.msra.mxu0 0.0
    %5256 = vmatpush.msra.mxu0 0.0
    %5257 = vmatpush.msra.mxu0 0.0
    %5258 = vmatpush.msra.mxu0 0.0
    %5259 = vmatpush.msra.mxu0 %v5136
    %5260 = vmatpush.msra.mxu0 %v5135
    %5261 = vmatpush.msra.mxu0 %v5134
    %5262 = vmatpush.msra.mxu0 %v5133
    %5263 = vmatmul.f32.gmra.mxu0 %v217
    %v5264 = vpop.f32.mrf.mxu0
    %v5265 = vadd.f32 0.0, %v5264
    %5266 = vdwg.mxu0
    %5268 = vrot.lane.b32.xlu0 %v5265, 96
    %v5269 = vpop.permute.xlu0 %5268
    %v5271 = vadd.f32 %v3549, %v5269
    %v5272 = vxor.u32 %v5271, 2147483648
    %v5273 = vmul.f32 %v5272, 1.442695
    %v5274 = vpow.pop %v5273
    %v5275 = vadd.f32 %v5274, 1.0
    %v5276 = vrcp.pop %v5275
    %v5277 = vmul.f32 %v5275, %v5276
    %v5278 = vsub.f32 1.0, %v5277
    %v5279 = vmul.f32 %v5276, %v5278
    %v5280 = vadd.f32 %v5276, %v5279
    %vm5281 = vweird.f32 %v5275
    %vm5282 = vweird.f32 %v5276
    %vm5283 = vmor %vm5281, %vm5282
    %v5284 = vsel %vm5283, %v5276, %v5280
    %v5285 = vand.u32 2147483647, %v5275
    %vm5286 = vcmp.eq.f32.partialorder %v5285, 8.507059e+37
    %v5287 = vand.u32 %v5275, 2147483648
    %v5288 = vor.u32 1.1754944e-38, %v5287
    %v5289 = vsel %vm5286, %v5288, %v5284
    %v5290 = vmul.f32 1.0, %v5289
    %v5291 = vmul.f32 %v5220, 0.0
    %5293 = vrot.lane.b32.xlu0 %v5246, 64
    %v5294 = vpop.permute.xlu0 %5293
    %v5296 = vmul.f32 %v5176, %v5294
    %5298 = vrot.lane.b32.xlu0 %v5296, 32
    %v5299 = vpop.permute.xlu0 %5298
    %v5301 = vadd.f32 %v5291, %v5299
    %v5302 = vtanh.pop %v5301
    %5304 = vrot.lane.b32.xlu0 %v5302, 64
    %v5305 = vpop.permute.xlu0 %5304
    %v5307 = vmul.f32 %v5290, %v5305
    %5309 = vst [vmem:[#allocation1] ss:$4 sm:$0xff] %v5307
    %v5310 = vld.sshfl [vmem:[#allocation1] sm:$0xff pattern:$0x73625140]
    %5311 = vrot.lane.b32.xlu0 %v5310, 32
    %v5312 = vpop.permute.xlu0 %5311
    %v5313 = vsel %vm215, %v5312, 0
    %5315 = vmatpush.msra.mxu0 0.0
    %5316 = vmatpush.msra.mxu0 0.0
    %5317 = vmatpush.msra.mxu0 0.0
    %5318 = vmatpush.msra.mxu0 0.0
    %5319 = vmatpush.msra.mxu0 0.0
    %5320 = vmatpush.msra.mxu0 0.0
    %5321 = vmatpush.msra.mxu0 0.0
    %5322 = vmatpush.msra.mxu0 0.0
    %5323 = vmatpush.msra.mxu0 0.0
    %5324 = vmatpush.msra.mxu0 0.0
    %5325 = vmatpush.msra.mxu0 0.0
    %5326 = vmatpush.msra.mxu0 0.0
    %5327 = vmatpush.msra.mxu0 %v5121
    %5328 = vmatpush.msra.mxu0 %v5120
    %5329 = vmatpush.msra.mxu0 %v5119
    %5330 = vmatpush.msra.mxu0 %v5118
    %5331 = vmatmul.f32.gmra.mxu0 %v5313
    %v5332 = vpop.f32.mrf.mxu0
    %v5333 = vadd.f32 0.0, %v5332
    %5334 = vdwg.mxu0
    %v5335 = vadd.f32 %v3548, %v5333
    %v5336 = vxor.u32 %v5335, 2147483648
    %v5337 = vmul.f32 %v5336, 1.442695
    %v5338 = vpow.pop %v5337
    %v5339 = vadd.f32 %v5338, 1.0
    %v5340 = vrcp.pop %v5339
    %v5341 = vmul.f32 %v5339, %v5340
    %v5342 = vsub.f32 1.0, %v5341
    %v5343 = vmul.f32 %v5340, %v5342
    %v5344 = vadd.f32 %v5340, %v5343
    %vm5345 = vweird.f32 %v5339
    %vm5346 = vweird.f32 %v5340
    %vm5347 = vmor %vm5345, %vm5346
    %v5348 = vsel %vm5347, %v5340, %v5344
    %v5349 = vand.u32 2147483647, %v5339
    %vm5350 = vcmp.eq.f32.partialorder %v5349, 8.507059e+37
    %v5351 = vand.u32 %v5339, 2147483648
    %v5352 = vor.u32 1.1754944e-38, %v5351
    %v5353 = vsel %vm5350, %v5352, %v5348
    %v5354 = vmul.f32 1.0, %v5353
    %5355 = vst [vmem:[#allocation1] ss:$4 sm:$0xff] %v5307
    %v5356 = vld.sshfl [vmem:[#allocation1] sm:$0xff pattern:$0x73625140]
    %5357 = vrot.lane.b32.xlu0 %v5356, 32
    %v5358 = vpop.permute.xlu0 %5357
    %v5359 = vsel %vm215, %v5358, 0
    %5361 = vmatpush.msra.mxu0 0.0
    %5362 = vmatpush.msra.mxu0 0.0
    %5363 = vmatpush.msra.mxu0 0.0
    %5364 = vmatpush.msra.mxu0 0.0
    %5365 = vmatpush.msra.mxu0 0.0
    %5366 = vmatpush.msra.mxu0 0.0
    %5367 = vmatpush.msra.mxu0 0.0
    %5368 = vmatpush.msra.mxu0 0.0
    %5369 = vmatpush.msra.mxu0 0.0
    %5370 = vmatpush.msra.mxu0 0.0
    %5371 = vmatpush.msra.mxu0 0.0
    %5372 = vmatpush.msra.mxu0 0.0
    %5373 = vmatpush.msra.mxu0 %v5126
    %5374 = vmatpush.msra.mxu0 %v5125
    %5375 = vmatpush.msra.mxu0 %v5124
    %5376 = vmatpush.msra.mxu0 %v5123
    %5377 = vmatmul.f32.gmra.mxu0 %v5359
    %v5378 = vpop.f32.mrf.mxu0
    %v5379 = vadd.f32 0.0, %v5378
    %5380 = vdwg.mxu0
    %5382 = vrot.lane.b32.xlu0 %v5379, 32
    %v5383 = vpop.permute.xlu0 %5382
    %v5385 = vadd.f32 %v3548, %v5383
    %v5386 = vxor.u32 %v5385, 2147483648
    %v5387 = vmul.f32 %v5386, 1.442695
    %v5388 = vpow.pop %v5387
    %v5389 = vadd.f32 %v5388, 1.0
    %v5390 = vrcp.pop %v5389
    %v5391 = vmul.f32 %v5389, %v5390
    %v5392 = vsub.f32 1.0, %v5391
    %v5393 = vmul.f32 %v5390, %v5392
    %v5394 = vadd.f32 %v5390, %v5393
    %vm5395 = vweird.f32 %v5389
    %vm5396 = vweird.f32 %v5390
    %vm5397 = vmor %vm5395, %vm5396
    %v5398 = vsel %vm5397, %v5390, %v5394
    %v5399 = vand.u32 2147483647, %v5389
    %vm5400 = vcmp.eq.f32.partialorder %v5399, 8.507059e+37
    %v5401 = vand.u32 %v5389, 2147483648
    %v5402 = vor.u32 1.1754944e-38, %v5401
    %v5403 = vsel %vm5400, %v5402, %v5398
    %v5404 = vmul.f32 1.0, %v5403
    %5405 = vst [vmem:[#allocation1] ss:$4 sm:$0xff] %v5307
    %v5406 = vld.sshfl [vmem:[#allocation1] sm:$0xff pattern:$0x73625140]
    %5407 = vrot.lane.b32.xlu0 %v5406, 32
    %v5408 = vpop.permute.xlu0 %5407
    %v5409 = vsel %vm215, %v5408, 0
    %5411 = vmatpush.msra.mxu0 0.0
    %5412 = vmatpush.msra.mxu0 0.0
    %5413 = vmatpush.msra.mxu0 0.0
    %5414 = vmatpush.msra.mxu0 0.0
    %5415 = vmatpush.msra.mxu0 0.0
    %5416 = vmatpush.msra.mxu0 0.0
    %5417 = vmatpush.msra.mxu0 0.0
    %5418 = vmatpush.msra.mxu0 0.0
    %5419 = vmatpush.msra.mxu0 0.0
    %5420 = vmatpush.msra.mxu0 0.0
    %5421 = vmatpush.msra.mxu0 0.0
    %5422 = vmatpush.msra.mxu0 0.0
    %5423 = vmatpush.msra.mxu0 %v5131
    %5424 = vmatpush.msra.mxu0 %v5130
    %5425 = vmatpush.msra.mxu0 %v5129
    %5426 = vmatpush.msra.mxu0 %v5128
    %5427 = vmatmul.f32.gmra.mxu0 %v5409
    %v5428 = vpop.f32.mrf.mxu0
    %v5429 = vadd.f32 0.0, %v5428
    %5430 = vdwg.mxu0
    %5432 = vrot.lane.b32.xlu0 %v5429, 64
    %v5433 = vpop.permute.xlu0 %5432
    %v5435 = vadd.f32 %v3548, %v5433
    %v5436 = vtanh.pop %v5435
    %5437 = vst [vmem:[#allocation1] ss:$4 sm:$0xff] %v5307
    %v5438 = vld.sshfl [vmem:[#allocation1] sm:$0xff pattern:$0x73625140]
    %5439 = vrot.lane.b32.xlu0 %v5438, 32
    %v5440 = vpop.permute.xlu0 %5439
    %v5441 = vsel %vm215, %v5440, 0
    %5443 = vmatpush.msra.mxu0 0.0
    %5444 = vmatpush.msra.mxu0 0.0
    %5445 = vmatpush.msra.mxu0 0.0
    %5446 = vmatpush.msra.mxu0 0.0
    %5447 = vmatpush.msra.mxu0 0.0
    %5448 = vmatpush.msra.mxu0 0.0
    %5449 = vmatpush.msra.mxu0 0.0
    %5450 = vmatpush.msra.mxu0 0.0
    %5451 = vmatpush.msra.mxu0 0.0
    %5452 = vmatpush.msra.mxu0 0.0
    %5453 = vmatpush.msra.mxu0 0.0
    %5454 = vmatpush.msra.mxu0 0.0
    %5455 = vmatpush.msra.mxu0 %v5136
    %5456 = vmatpush.msra.mxu0 %v5135
    %5457 = vmatpush.msra.mxu0 %v5134
    %5458 = vmatpush.msra.mxu0 %v5133
    %5459 = vmatmul.f32.gmra.mxu0 %v5441
    %v5460 = vpop.f32.mrf.mxu0
    %v5461 = vadd.f32 0.0, %v5460
    %5462 = vdwg.mxu0
    %5464 = vrot.lane.b32.xlu0 %v5461, 96
    %v5465 = vpop.permute.xlu0 %5464
    %v5467 = vadd.f32 %v3548, %v5465
    %v5468 = vxor.u32 %v5467, 2147483648
    %v5469 = vmul.f32 %v5468, 1.442695
    %v5470 = vpow.pop %v5469
    %v5471 = vadd.f32 %v5470, 1.0
    %v5472 = vrcp.pop %v5471
    %v5473 = vmul.f32 %v5471, %v5472
    %v5474 = vsub.f32 1.0, %v5473
    %v5475 = vmul.f32 %v5472, %v5474
    %v5476 = vadd.f32 %v5472, %v5475
    %vm5477 = vweird.f32 %v5471
    %vm5478 = vweird.f32 %v5472
    %vm5479 = vmor %vm5477, %vm5478
    %v5480 = vsel %vm5479, %v5472, %v5476
    %v5481 = vand.u32 2147483647, %v5471
    %vm5482 = vcmp.eq.f32.partialorder %v5481, 8.507059e+37
    %v5483 = vand.u32 %v5471, 2147483648
    %v5484 = vor.u32 1.1754944e-38, %v5483
    %v5485 = vsel %vm5482, %v5484, %v5480
    %v5486 = vmul.f32 1.0, %v5485
    %v5487 = vmul.f32 %v5404, %v5301
    %5489 = vrot.lane.b32.xlu0 %v5436, 64
    %v5490 = vpop.permute.xlu0 %5489
    %v5492 = vmul.f32 %v5354, %v5490
    %5494 = vrot.lane.b32.xlu0 %v5492, 32
    %v5495 = vpop.permute.xlu0 %5494
    %v5497 = vadd.f32 %v5487, %v5495
    %v5498 = vtanh.pop %v5497
    %5500 = vrot.lane.b32.xlu0 %v5498, 64
    %v5501 = vpop.permute.xlu0 %5500
    %v5503 = vmul.f32 %v5486, %v5501
    %5505 = vst [vmem:[#allocation1] ss:$4 sm:$0xff] %v5503
    %v5506 = vld.sshfl [vmem:[#allocation1] sm:$0xff pattern:$0x73625140]
    %5507 = vrot.lane.b32.xlu0 %v5506, 32
    %v5508 = vpop.permute.xlu0 %5507
    %v5509 = vsel %vm215, %v5508, 0
    %5511 = vmatpush.msra.mxu0 0.0
    %5512 = vmatpush.msra.mxu0 0.0
    %5513 = vmatpush.msra.mxu0 0.0
    %5514 = vmatpush.msra.mxu0 0.0
    %5515 = vmatpush.msra.mxu0 0.0
    %5516 = vmatpush.msra.mxu0 0.0
    %5517 = vmatpush.msra.mxu0 0.0
    %5518 = vmatpush.msra.mxu0 0.0
    %5519 = vmatpush.msra.mxu0 0.0
    %5520 = vmatpush.msra.mxu0 0.0
    %5521 = vmatpush.msra.mxu0 0.0
    %5522 = vmatpush.msra.mxu0 0.0
    %5523 = vmatpush.msra.mxu0 %v5121
    %5524 = vmatpush.msra.mxu0 %v5120
    %5525 = vmatpush.msra.mxu0 %v5119
    %5526 = vmatpush.msra.mxu0 %v5118
    %5527 = vmatmul.f32.gmra.mxu0 %v5509
    %v5528 = vpop.f32.mrf.mxu0
    %v5529 = vadd.f32 0.0, %v5528
    %5530 = vdwg.mxu0
    %v5531 = vadd.f32 %v3547, %v5529
    %v5532 = vxor.u32 %v5531, 2147483648
    %v5533 = vmul.f32 %v5532, 1.442695
    %v5534 = vpow.pop %v5533
    %v5535 = vadd.f32 %v5534, 1.0
    %v5536 = vrcp.pop %v5535
    %v5537 = vmul.f32 %v5535, %v5536
    %v5538 = vsub.f32 1.0, %v5537
    %v5539 = vmul.f32 %v5536, %v5538
    %v5540 = vadd.f32 %v5536, %v5539
    %vm5541 = vweird.f32 %v5535
    %vm5542 = vweird.f32 %v5536
    %vm5543 = vmor %vm5541, %vm5542
    %v5544 = vsel %vm5543, %v5536, %v5540
    %v5545 = vand.u32 2147483647, %v5535
    %vm5546 = vcmp.eq.f32.partialorder %v5545, 8.507059e+37
    %v5547 = vand.u32 %v5535, 2147483648
    %v5548 = vor.u32 1.1754944e-38, %v5547
    %v5549 = vsel %vm5546, %v5548, %v5544
    %v5550 = vmul.f32 1.0, %v5549
    %5551 = vst [vmem:[#allocation1] ss:$4 sm:$0xff] %v5503
    %v5552 = vld.sshfl [vmem:[#allocation1] sm:$0xff pattern:$0x73625140]
    %5553 = vrot.lane.b32.xlu0 %v5552, 32
    %v5554 = vpop.permute.xlu0 %5553
    %v5555 = vsel %vm215, %v5554, 0
    %5557 = vmatpush.msra.mxu0 0.0
    %5558 = vmatpush.msra.mxu0 0.0
    %5559 = vmatpush.msra.mxu0 0.0
    %5560 = vmatpush.msra.mxu0 0.0
    %5561 = vmatpush.msra.mxu0 0.0
    %5562 = vmatpush.msra.mxu0 0.0
    %5563 = vmatpush.msra.mxu0 0.0
    %5564 = vmatpush.msra.mxu0 0.0
    %5565 = vmatpush.msra.mxu0 0.0
    %5566 = vmatpush.msra.mxu0 0.0
    %5567 = vmatpush.msra.mxu0 0.0
    %5568 = vmatpush.msra.mxu0 0.0
    %5569 = vmatpush.msra.mxu0 %v5126
    %5570 = vmatpush.msra.mxu0 %v5125
    %5571 = vmatpush.msra.mxu0 %v5124
    %5572 = vmatpush.msra.mxu0 %v5123
    %5573 = vmatmul.f32.gmra.mxu0 %v5555
    %v5574 = vpop.f32.mrf.mxu0
    %v5575 = vadd.f32 0.0, %v5574
    %5576 = vdwg.mxu0
    %5578 = vrot.lane.b32.xlu0 %v5575, 32
    %v5579 = vpop.permute.xlu0 %5578
    %v5581 = vadd.f32 %v3547, %v5579
    %v5582 = vxor.u32 %v5581, 2147483648
    %v5583 = vmul.f32 %v5582, 1.442695
    %v5584 = vpow.pop %v5583
    %v5585 = vadd.f32 %v5584, 1.0
    %v5586 = vrcp.pop %v5585
    %v5587 = vmul.f32 %v5585, %v5586
    %v5588 = vsub.f32 1.0, %v5587
    %v5589 = vmul.f32 %v5586, %v5588
    %v5590 = vadd.f32 %v5586, %v5589
    %vm5591 = vweird.f32 %v5585
    %vm5592 = vweird.f32 %v5586
    %vm5593 = vmor %vm5591, %vm5592
    %v5594 = vsel %vm5593, %v5586, %v5590
    %v5595 = vand.u32 2147483647, %v5585
    %vm5596 = vcmp.eq.f32.partialorder %v5595, 8.507059e+37
    %v5597 = vand.u32 %v5585, 2147483648
    %v5598 = vor.u32 1.1754944e-38, %v5597
    %v5599 = vsel %vm5596, %v5598, %v5594
    %v5600 = vmul.f32 1.0, %v5599
    %5601 = vst [vmem:[#allocation1] ss:$4 sm:$0xff] %v5503
    %v5602 = vld.sshfl [vmem:[#allocation1] sm:$0xff pattern:$0x73625140]
    %5603 = vrot.lane.b32.xlu0 %v5602, 32
    %v5604 = vpop.permute.xlu0 %5603
    %v5605 = vsel %vm215, %v5604, 0
    %5607 = vmatpush.msra.mxu0 0.0
    %5608 = vmatpush.msra.mxu0 0.0
    %5609 = vmatpush.msra.mxu0 0.0
    %5610 = vmatpush.msra.mxu0 0.0
    %5611 = vmatpush.msra.mxu0 0.0
    %5612 = vmatpush.msra.mxu0 0.0
    %5613 = vmatpush.msra.mxu0 0.0
    %5614 = vmatpush.msra.mxu0 0.0
    %5615 = vmatpush.msra.mxu0 0.0
    %5616 = vmatpush.msra.mxu0 0.0
    %5617 = vmatpush.msra.mxu0 0.0
    %5618 = vmatpush.msra.mxu0 0.0
    %5619 = vmatpush.msra.mxu0 %v5131
    %5620 = vmatpush.msra.mxu0 %v5130
    %5621 = vmatpush.msra.mxu0 %v5129
    %5622 = vmatpush.msra.mxu0 %v5128
    %5623 = vmatmul.f32.gmra.mxu0 %v5605
    %v5624 = vpop.f32.mrf.mxu0
    %v5625 = vadd.f32 0.0, %v5624
    %5626 = vdwg.mxu0
    %5628 = vrot.lane.b32.xlu0 %v5625, 64
    %v5629 = vpop.permute.xlu0 %5628
    %v5631 = vadd.f32 %v3547, %v5629
    %v5632 = vtanh.pop %v5631
    %5633 = vst [vmem:[#allocation1] ss:$4 sm:$0xff] %v5503
    %v5634 = vld.sshfl [vmem:[#allocation1] sm:$0xff pattern:$0x73625140]
    %5635 = vrot.lane.b32.xlu0 %v5634, 32
    %v5636 = vpop.permute.xlu0 %5635
    %v5637 = vsel %vm215, %v5636, 0
    %5639 = vmatpush.msra.mxu0 0.0
    %5640 = vmatpush.msra.mxu0 0.0
    %5641 = vmatpush.msra.mxu0 0.0
    %5642 = vmatpush.msra.mxu0 0.0
    %5643 = vmatpush.msra.mxu0 0.0
    %5644 = vmatpush.msra.mxu0 0.0
    %5645 = vmatpush.msra.mxu0 0.0
    %5646 = vmatpush.msra.mxu0 0.0
    %5647 = vmatpush.msra.mxu0 0.0
    %5648 = vmatpush.msra.mxu0 0.0
    %5649 = vmatpush.msra.mxu0 0.0
    %5650 = vmatpush.msra.mxu0 0.0
    %5651 = vmatpush.msra.mxu0 %v5136
    %5652 = vmatpush.msra.mxu0 %v5135
    %5653 = vmatpush.msra.mxu0 %v5134
    %5654 = vmatpush.msra.mxu0 %v5133
    %5655 = vmatmul.f32.gmra.mxu0 %v5637
    %v5656 = vpop.f32.mrf.mxu0
    %v5657 = vadd.f32 0.0, %v5656
    %5658 = vdwg.mxu0
    %5660 = vrot.lane.b32.xlu0 %v5657, 96
    %v5661 = vpop.permute.xlu0 %5660
    %v5663 = vadd.f32 %v3547, %v5661
    %v5664 = vxor.u32 %v5663, 2147483648
    %v5665 = vmul.f32 %v5664, 1.442695
    %v5666 = vpow.pop %v5665
    %v5667 = vadd.f32 %v5666, 1.0
    %v5668 = vrcp.pop %v5667
    %v5669 = vmul.f32 %v5667, %v5668
    %v5670 = vsub.f32 1.0, %v5669
    %v5671 = vmul.f32 %v5668, %v5670
    %v5672 = vadd.f32 %v5668, %v5671
    %vm5673 = vweird.f32 %v5667
    %vm5674 = vweird.f32 %v5668
    %vm5675 = vmor %vm5673, %vm5674
    %v5676 = vsel %vm5675, %v5668, %v5672
    %v5677 = vand.u32 2147483647, %v5667
    %vm5678 = vcmp.eq.f32.partialorder %v5677, 8.507059e+37
    %v5679 = vand.u32 %v5667, 2147483648
    %v5680 = vor.u32 1.1754944e-38, %v5679
    %v5681 = vsel %vm5678, %v5680, %v5676
    %v5682 = vmul.f32 1.0, %v5681
    %v5683 = vmul.f32 %v5600, %v5497
    %5685 = vrot.lane.b32.xlu0 %v5632, 64
    %v5686 = vpop.permute.xlu0 %5685
    %v5688 = vmul.f32 %v5550, %v5686
    %5690 = vrot.lane.b32.xlu0 %v5688, 32
    %v5691 = vpop.permute.xlu0 %5690
    %v5693 = vadd.f32 %v5683, %v5691
    %v5694 = vtanh.pop %v5693
    %5696 = vrot.lane.b32.xlu0 %v5694, 64
    %v5697 = vpop.permute.xlu0 %5696
    %v5699 = vmul.f32 %v5682, %v5697
    %5701 = vst [vmem:[#allocation1] ss:$4 sm:$0xff] %v5699
    %v5702 = vld.sshfl [vmem:[#allocation1] sm:$0xff pattern:$0x73625140]
    %5703 = vrot.lane.b32.xlu0 %v5702, 32
    %v5704 = vpop.permute.xlu0 %5703
    %v5705 = vsel %vm215, %v5704, 0
    %5707 = vmatpush.msra.mxu0 0.0
    %5708 = vmatpush.msra.mxu0 0.0
    %5709 = vmatpush.msra.mxu0 0.0
    %5710 = vmatpush.msra.mxu0 0.0
    %5711 = vmatpush.msra.mxu0 0.0
    %5712 = vmatpush.msra.mxu0 0.0
    %5713 = vmatpush.msra.mxu0 0.0
    %5714 = vmatpush.msra.mxu0 0.0
    %5715 = vmatpush.msra.mxu0 0.0
    %5716 = vmatpush.msra.mxu0 0.0
    %5717 = vmatpush.msra.mxu0 0.0
    %5718 = vmatpush.msra.mxu0 0.0
    %5719 = vmatpush.msra.mxu0 %v5121
    %5720 = vmatpush.msra.mxu0 %v5120
    %5721 = vmatpush.msra.mxu0 %v5119
    %5722 = vmatpush.msra.mxu0 %v5118
    %5723 = vmatmul.f32.gmra.mxu0 %v5705
    %v5724 = vpop.f32.mrf.mxu0
    %v5725 = vadd.f32 0.0, %v5724
    %5726 = vdwg.mxu0
    %v5727 = vadd.f32 %v3527, %v5725
    %v5728 = vxor.u32 %v5727, 2147483648
    %v5729 = vmul.f32 %v5728, 1.442695
    %v5730 = vpow.pop %v5729
    %v5731 = vadd.f32 %v5730, 1.0
    %v5732 = vrcp.pop %v5731
    %v5733 = vmul.f32 %v5731, %v5732
    %v5734 = vsub.f32 1.0, %v5733
    %v5735 = vmul.f32 %v5732, %v5734
    %v5736 = vadd.f32 %v5732, %v5735
    %vm5737 = vweird.f32 %v5731
    %vm5738 = vweird.f32 %v5732
    %vm5739 = vmor %vm5737, %vm5738
    %v5740 = vsel %vm5739, %v5732, %v5736
    %v5741 = vand.u32 2147483647, %v5731
    %vm5742 = vcmp.eq.f32.partialorder %v5741, 8.507059e+37
    %v5743 = vand.u32 %v5731, 2147483648
    %v5744 = vor.u32 1.1754944e-38, %v5743
    %v5745 = vsel %vm5742, %v5744, %v5740
    %v5746 = vmul.f32 1.0, %v5745
    %5747 = vst [vmem:[#allocation1] ss:$4 sm:$0xff] %v5699
    %v5748 = vld.sshfl [vmem:[#allocation1] sm:$0xff pattern:$0x73625140]
    %5749 = vrot.lane.b32.xlu0 %v5748, 32
    %v5750 = vpop.permute.xlu0 %5749
    %v5751 = vsel %vm215, %v5750, 0
    %5753 = vmatpush.msra.mxu0 0.0
    %5754 = vmatpush.msra.mxu0 0.0
    %5755 = vmatpush.msra.mxu0 0.0
    %5756 = vmatpush.msra.mxu0 0.0
    %5757 = vmatpush.msra.mxu0 0.0
    %5758 = vmatpush.msra.mxu0 0.0
    %5759 = vmatpush.msra.mxu0 0.0
    %5760 = vmatpush.msra.mxu0 0.0
    %5761 = vmatpush.msra.mxu0 0.0
    %5762 = vmatpush.msra.mxu0 0.0
    %5763 = vmatpush.msra.mxu0 0.0
    %5764 = vmatpush.msra.mxu0 0.0
    %5765 = vmatpush.msra.mxu0 %v5126
    %5766 = vmatpush.msra.mxu0 %v5125
    %5767 = vmatpush.msra.mxu0 %v5124
    %5768 = vmatpush.msra.mxu0 %v5123
    %5769 = vmatmul.f32.gmra.mxu0 %v5751
    %v5770 = vpop.f32.mrf.mxu0
    %v5771 = vadd.f32 0.0, %v5770
    %5772 = vdwg.mxu0
    %5774 = vrot.lane.b32.xlu0 %v5771, 32
    %v5775 = vpop.permute.xlu0 %5774
    %v5777 = vadd.f32 %v3527, %v5775
    %v5778 = vxor.u32 %v5777, 2147483648
    %v5779 = vmul.f32 %v5778, 1.442695
    %v5780 = vpow.pop %v5779
    %v5781 = vadd.f32 %v5780, 1.0
    %v5782 = vrcp.pop %v5781
    %v5783 = vmul.f32 %v5781, %v5782
    %v5784 = vsub.f32 1.0, %v5783
    %v5785 = vmul.f32 %v5782, %v5784
    %v5786 = vadd.f32 %v5782, %v5785
    %vm5787 = vweird.f32 %v5781
    %vm5788 = vweird.f32 %v5782
    %vm5789 = vmor %vm5787, %vm5788
    %v5790 = vsel %vm5789, %v5782, %v5786
    %v5791 = vand.u32 2147483647, %v5781
    %vm5792 = vcmp.eq.f32.partialorder %v5791, 8.507059e+37
    %v5793 = vand.u32 %v5781, 2147483648
    %v5794 = vor.u32 1.1754944e-38, %v5793
    %v5795 = vsel %vm5792, %v5794, %v5790
    %v5796 = vmul.f32 1.0, %v5795
    %5797 = vst [vmem:[#allocation1] ss:$4 sm:$0xff] %v5699
    %v5798 = vld.sshfl [vmem:[#allocation1] sm:$0xff pattern:$0x73625140]
    %5799 = vrot.lane.b32.xlu0 %v5798, 32
    %v5800 = vpop.permute.xlu0 %5799
    %v5801 = vsel %vm215, %v5800, 0
    %5803 = vmatpush.msra.mxu0 0.0
    %5804 = vmatpush.msra.mxu0 0.0
    %5805 = vmatpush.msra.mxu0 0.0
    %5806 = vmatpush.msra.mxu0 0.0
    %5807 = vmatpush.msra.mxu0 0.0
    %5808 = vmatpush.msra.mxu0 0.0
    %5809 = vmatpush.msra.mxu0 0.0
    %5810 = vmatpush.msra.mxu0 0.0
    %5811 = vmatpush.msra.mxu0 0.0
    %5812 = vmatpush.msra.mxu0 0.0
    %5813 = vmatpush.msra.mxu0 0.0
    %5814 = vmatpush.msra.mxu0 0.0
    %5815 = vmatpush.msra.mxu0 %v5131
    %5816 = vmatpush.msra.mxu0 %v5130
    %5817 = vmatpush.msra.mxu0 %v5129
    %5818 = vmatpush.msra.mxu0 %v5128
    %5819 = vmatmul.f32.gmra.mxu0 %v5801
    %v5820 = vpop.f32.mrf.mxu0
    %v5821 = vadd.f32 0.0, %v5820
    %5822 = vdwg.mxu0
    %5824 = vrot.lane.b32.xlu0 %v5821, 64
    %v5825 = vpop.permute.xlu0 %5824
    %v5827 = vadd.f32 %v3527, %v5825
    %v5828 = vtanh.pop %v5827
    %5829 = vst [vmem:[#allocation1] ss:$4 sm:$0xff] %v5699
    %v5830 = vld.sshfl [vmem:[#allocation1] sm:$0xff pattern:$0x73625140]
    %5831 = vrot.lane.b32.xlu0 %v5830, 32
    %v5832 = vpop.permute.xlu0 %5831
    %v5833 = vsel %vm215, %v5832, 0
    %5835 = vmatpush.msra.mxu0 0.0
    %5836 = vmatpush.msra.mxu0 0.0
    %5837 = vmatpush.msra.mxu0 0.0
    %5838 = vmatpush.msra.mxu0 0.0
    %5839 = vmatpush.msra.mxu0 0.0
    %5840 = vmatpush.msra.mxu0 0.0
    %5841 = vmatpush.msra.mxu0 0.0
    %5842 = vmatpush.msra.mxu0 0.0
    %5843 = vmatpush.msra.mxu0 0.0
    %5844 = vmatpush.msra.mxu0 0.0
    %5845 = vmatpush.msra.mxu0 0.0
    %5846 = vmatpush.msra.mxu0 0.0
    %5847 = vmatpush.msra.mxu0 %v5136
    %5848 = vmatpush.msra.mxu0 %v5135
    %5849 = vmatpush.msra.mxu0 %v5134
    %5850 = vmatpush.msra.mxu0 %v5133
    %5851 = vmatmul.f32.gmra.mxu0 %v5833
    %v5852 = vpop.f32.mrf.mxu0
    %v5853 = vadd.f32 0.0, %v5852
    %5854 = vdwg.mxu0
    %5856 = vrot.lane.b32.xlu0 %v5853, 96
    %v5857 = vpop.permute.xlu0 %5856
    %v5859 = vadd.f32 %v3527, %v5857
    %v5860 = vxor.u32 %v5859, 2147483648
    %v5861 = vmul.f32 %v5860, 1.442695
    %v5862 = vpow.pop %v5861
    %v5863 = vadd.f32 %v5862, 1.0
    %v5864 = vrcp.pop %v5863
    %v5865 = vmul.f32 %v5863, %v5864
    %v5866 = vsub.f32 1.0, %v5865
    %v5867 = vmul.f32 %v5864, %v5866
    %v5868 = vadd.f32 %v5864, %v5867
    %vm5869 = vweird.f32 %v5863
    %vm5870 = vweird.f32 %v5864
    %vm5871 = vmor %vm5869, %vm5870
    %v5872 = vsel %vm5871, %v5864, %v5868
    %v5873 = vand.u32 2147483647, %v5863
    %vm5874 = vcmp.eq.f32.partialorder %v5873, 8.507059e+37
    %v5875 = vand.u32 %v5863, 2147483648
    %v5876 = vor.u32 1.1754944e-38, %v5875
    %v5877 = vsel %vm5874, %v5876, %v5872
    %v5878 = vmul.f32 1.0, %v5877
    %v5879 = vmul.f32 %v5796, %v5693
    %5881 = vrot.lane.b32.xlu0 %v5828, 64
    %v5882 = vpop.permute.xlu0 %5881
    %v5884 = vmul.f32 %v5746, %v5882
    %5886 = vrot.lane.b32.xlu0 %v5884, 32
    %v5887 = vpop.permute.xlu0 %5886
    %v5889 = vadd.f32 %v5879, %v5887
    %v5890 = vtanh.pop %v5889
    %5892 = vrot.lane.b32.xlu0 %v5890, 64
    %v5893 = vpop.permute.xlu0 %5892
    %v5895 = vmul.f32 %v5878, %v5893
    %5897 = vst [vmem:[#allocation1] ss:$4 sm:$0xff] %v5895
    %v5898 = vld.sshfl [vmem:[#allocation1] sm:$0xff pattern:$0x73625140]
    %5899 = vrot.lane.b32.xlu0 %v5898, 32
    %v5900 = vpop.permute.xlu0 %5899
    %v5901 = vsel %vm215, %v5900, 0
    %5903 = vmatpush.msra.mxu0 0.0
    %5904 = vmatpush.msra.mxu0 0.0
    %5905 = vmatpush.msra.mxu0 0.0
    %5906 = vmatpush.msra.mxu0 0.0
    %5907 = vmatpush.msra.mxu0 0.0
    %5908 = vmatpush.msra.mxu0 0.0
    %5909 = vmatpush.msra.mxu0 0.0
    %5910 = vmatpush.msra.mxu0 0.0
    %5911 = vmatpush.msra.mxu0 0.0
    %5912 = vmatpush.msra.mxu0 0.0
    %5913 = vmatpush.msra.mxu0 0.0
    %5914 = vmatpush.msra.mxu0 0.0
    %5915 = vmatpush.msra.mxu0 %v5121
    %5916 = vmatpush.msra.mxu0 %v5120
    %5917 = vmatpush.msra.mxu0 %v5119
    %5918 = vmatpush.msra.mxu0 %v5118
    %5919 = vmatmul.f32.gmra.mxu0 %v5901
    %v5920 = vpop.f32.mrf.mxu0
    %v5921 = vadd.f32 0.0, %v5920
    %5922 = vdwg.mxu0
    %v5923 = vadd.f32 %v3546, %v5921
    %v5924 = vxor.u32 %v5923, 2147483648
    %v5925 = vmul.f32 %v5924, 1.442695
    %v5926 = vpow.pop %v5925
    %v5927 = vadd.f32 %v5926, 1.0
    %v5928 = vrcp.pop %v5927
    %v5929 = vmul.f32 %v5927, %v5928
    %v5930 = vsub.f32 1.0, %v5929
    %v5931 = vmul.f32 %v5928, %v5930
    %v5932 = vadd.f32 %v5928, %v5931
    %vm5933 = vweird.f32 %v5927
    %vm5934 = vweird.f32 %v5928
    %vm5935 = vmor %vm5933, %vm5934
    %v5936 = vsel %vm5935, %v5928, %v5932
    %v5937 = vand.u32 2147483647, %v5927
    %vm5938 = vcmp.eq.f32.partialorder %v5937, 8.507059e+37
    %v5939 = vand.u32 %v5927, 2147483648
    %v5940 = vor.u32 1.1754944e-38, %v5939
    %v5941 = vsel %vm5938, %v5940, %v5936
    %v5942 = vmul.f32 1.0, %v5941
    %5943 = vst [vmem:[#allocation1] ss:$4 sm:$0xff] %v5895
    %v5944 = vld.sshfl [vmem:[#allocation1] sm:$0xff pattern:$0x73625140]
    %5945 = vrot.lane.b32.xlu0 %v5944, 32
    %v5946 = vpop.permute.xlu0 %5945
    %v5947 = vsel %vm215, %v5946, 0
    %5949 = vmatpush.msra.mxu0 0.0
    %5950 = vmatpush.msra.mxu0 0.0
    %5951 = vmatpush.msra.mxu0 0.0
    %5952 = vmatpush.msra.mxu0 0.0
    %5953 = vmatpush.msra.mxu0 0.0
    %5954 = vmatpush.msra.mxu0 0.0
    %5955 = vmatpush.msra.mxu0 0.0
    %5956 = vmatpush.msra.mxu0 0.0
    %5957 = vmatpush.msra.mxu0 0.0
    %5958 = vmatpush.msra.mxu0 0.0
    %5959 = vmatpush.msra.mxu0 0.0
    %5960 = vmatpush.msra.mxu0 0.0
    %5961 = vmatpush.msra.mxu0 %v5126
    %5962 = vmatpush.msra.mxu0 %v5125
    %5963 = vmatpush.msra.mxu0 %v5124
    %5964 = vmatpush.msra.mxu0 %v5123
    %5965 = vmatmul.f32.gmra.mxu0 %v5947
    %v5966 = vpop.f32.mrf.mxu0
    %v5967 = vadd.f32 0.0, %v5966
    %5968 = vdwg.mxu0
    %5970 = vrot.lane.b32.xlu0 %v5967, 32
    %v5971 = vpop.permute.xlu0 %5970
    %v5973 = vadd.f32 %v3546, %v5971
    %v5974 = vxor.u32 %v5973, 2147483648
    %v5975 = vmul.f32 %v5974, 1.442695
    %v5976 = vpow.pop %v5975
    %v5977 = vadd.f32 %v5976, 1.0
    %v5978 = vrcp.pop %v5977
    %v5979 = vmul.f32 %v5977, %v5978
    %v5980 = vsub.f32 1.0, %v5979
    %v5981 = vmul.f32 %v5978, %v5980
    %v5982 = vadd.f32 %v5978, %v5981
    %vm5983 = vweird.f32 %v5977
    %vm5984 = vweird.f32 %v5978
    %vm5985 = vmor %vm5983, %vm5984
    %v5986 = vsel %vm5985, %v5978, %v5982
    %v5987 = vand.u32 2147483647, %v5977
    %vm5988 = vcmp.eq.f32.partialorder %v5987, 8.507059e+37
    %v5989 = vand.u32 %v5977, 2147483648
    %v5990 = vor.u32 1.1754944e-38, %v5989
    %v5991 = vsel %vm5988, %v5990, %v5986
    %v5992 = vmul.f32 1.0, %v5991
    %5993 = vst [vmem:[#allocation1] ss:$4 sm:$0xff] %v5895
    %v5994 = vld.sshfl [vmem:[#allocation1] sm:$0xff pattern:$0x73625140]
    %5995 = vrot.lane.b32.xlu0 %v5994, 32
    %v5996 = vpop.permute.xlu0 %5995
    %v5997 = vsel %vm215, %v5996, 0
    %5999 = vmatpush.msra.mxu0 0.0
    %6000 = vmatpush.msra.mxu0 0.0
    %6001 = vmatpush.msra.mxu0 0.0
    %6002 = vmatpush.msra.mxu0 0.0
    %6003 = vmatpush.msra.mxu0 0.0
    %6004 = vmatpush.msra.mxu0 0.0
    %6005 = vmatpush.msra.mxu0 0.0
    %6006 = vmatpush.msra.mxu0 0.0
    %6007 = vmatpush.msra.mxu0 0.0
    %6008 = vmatpush.msra.mxu0 0.0
    %6009 = vmatpush.msra.mxu0 0.0
    %6010 = vmatpush.msra.mxu0 0.0
    %6011 = vmatpush.msra.mxu0 %v5131
    %6012 = vmatpush.msra.mxu0 %v5130
    %6013 = vmatpush.msra.mxu0 %v5129
    %6014 = vmatpush.msra.mxu0 %v5128
    %6015 = vmatmul.f32.gmra.mxu0 %v5997
    %v6016 = vpop.f32.mrf.mxu0
    %v6017 = vadd.f32 0.0, %v6016
    %6018 = vdwg.mxu0
    %6020 = vrot.lane.b32.xlu0 %v6017, 64
    %v6021 = vpop.permute.xlu0 %6020
    %v6023 = vadd.f32 %v3546, %v6021
    %v6024 = vtanh.pop %v6023
    %6025 = vst [vmem:[#allocation1] ss:$4 sm:$0xff] %v5895
    %v6026 = vld.sshfl [vmem:[#allocation1] sm:$0xff pattern:$0x73625140]
    %6027 = vrot.lane.b32.xlu0 %v6026, 32
    %v6028 = vpop.permute.xlu0 %6027
    %v6029 = vsel %vm215, %v6028, 0
    %6031 = vmatpush.msra.mxu0 0.0
    %6032 = vmatpush.msra.mxu0 0.0
    %6033 = vmatpush.msra.mxu0 0.0
    %6034 = vmatpush.msra.mxu0 0.0
    %6035 = vmatpush.msra.mxu0 0.0
    %6036 = vmatpush.msra.mxu0 0.0
    %6037 = vmatpush.msra.mxu0 0.0
    %6038 = vmatpush.msra.mxu0 0.0
    %6039 = vmatpush.msra.mxu0 0.0
    %6040 = vmatpush.msra.mxu0 0.0
    %6041 = vmatpush.msra.mxu0 0.0
    %6042 = vmatpush.msra.mxu0 0.0
    %6043 = vmatpush.msra.mxu0 %v5136
    %6044 = vmatpush.msra.mxu0 %v5135
    %6045 = vmatpush.msra.mxu0 %v5134
    %6046 = vmatpush.msra.mxu0 %v5133
    %6047 = vmatmul.f32.gmra.mxu0 %v6029
    %v6048 = vpop.f32.mrf.mxu0
    %v6049 = vadd.f32 0.0, %v6048
    %6050 = vdwg.mxu0
    %6052 = vrot.lane.b32.xlu0 %v6049, 96
    %v6053 = vpop.permute.xlu0 %6052
    %v6055 = vadd.f32 %v3546, %v6053
    %v6056 = vxor.u32 %v6055, 2147483648
    %v6057 = vmul.f32 %v6056, 1.442695
    %v6058 = vpow.pop %v6057
    %v6059 = vadd.f32 %v6058, 1.0
    %v6060 = vrcp.pop %v6059
    %v6061 = vmul.f32 %v6059, %v6060
    %v6062 = vsub.f32 1.0, %v6061
    %v6063 = vmul.f32 %v6060, %v6062
    %v6064 = vadd.f32 %v6060, %v6063
    %vm6065 = vweird.f32 %v6059
    %vm6066 = vweird.f32 %v6060
    %vm6067 = vmor %vm6065, %vm6066
    %v6068 = vsel %vm6067, %v6060, %v6064
    %v6069 = vand.u32 2147483647, %v6059
    %vm6070 = vcmp.eq.f32.partialorder %v6069, 8.507059e+37
    %v6071 = vand.u32 %v6059, 2147483648
    %v6072 = vor.u32 1.1754944e-38, %v6071
    %v6073 = vsel %vm6070, %v6072, %v6068
    %v6074 = vmul.f32 1.0, %v6073
    %v6075 = vmul.f32 %v5992, %v5889
    %6077 = vrot.lane.b32.xlu0 %v6024, 64
    %v6078 = vpop.permute.xlu0 %6077
    %v6080 = vmul.f32 %v5942, %v6078
    %6082 = vrot.lane.b32.xlu0 %v6080, 32
    %v6083 = vpop.permute.xlu0 %6082
    %v6085 = vadd.f32 %v6075, %v6083
    %v6086 = vtanh.pop %v6085
    %6088 = vrot.lane.b32.xlu0 %v6086, 64
    %v6089 = vpop.permute.xlu0 %6088
    %v6091 = vmul.f32 %v6074, %v6089
    %6093 = vst [vmem:[#allocation1] ss:$4 sm:$0xff] %v6091
    %v6094 = vld.sshfl [vmem:[#allocation1] sm:$0xff pattern:$0x73625140]
    %6095 = vrot.lane.b32.xlu0 %v6094, 32
    %v6096 = vpop.permute.xlu0 %6095
    %v6097 = vsel %vm215, %v6096, 0
    %6099 = vmatpush.msra.mxu0 0.0
    %6100 = vmatpush.msra.mxu0 0.0
    %6101 = vmatpush.msra.mxu0 0.0
    %6102 = vmatpush.msra.mxu0 0.0
    %6103 = vmatpush.msra.mxu0 0.0
    %6104 = vmatpush.msra.mxu0 0.0
    %6105 = vmatpush.msra.mxu0 0.0
    %6106 = vmatpush.msra.mxu0 0.0
    %6107 = vmatpush.msra.mxu0 0.0
    %6108 = vmatpush.msra.mxu0 0.0
    %6109 = vmatpush.msra.mxu0 0.0
    %6110 = vmatpush.msra.mxu0 0.0
    %6111 = vmatpush.msra.mxu0 %v5121
    %6112 = vmatpush.msra.mxu0 %v5120
    %6113 = vmatpush.msra.mxu0 %v5119
    %6114 = vmatpush.msra.mxu0 %v5118
    %6115 = vmatmul.f32.gmra.mxu0 %v6097
    %v6116 = vpop.f32.mrf.mxu0
    %v6117 = vadd.f32 0.0, %v6116
    %6118 = vdwg.mxu0
    %v6119 = vadd.f32 %v3545, %v6117
    %v6120 = vxor.u32 %v6119, 2147483648
    %v6121 = vmul.f32 %v6120, 1.442695
    %v6122 = vpow.pop %v6121
    %v6123 = vadd.f32 %v6122, 1.0
    %v6124 = vrcp.pop %v6123
    %v6125 = vmul.f32 %v6123, %v6124
    %v6126 = vsub.f32 1.0, %v6125
    %v6127 = vmul.f32 %v6124, %v6126
    %v6128 = vadd.f32 %v6124, %v6127
    %vm6129 = vweird.f32 %v6123
    %vm6130 = vweird.f32 %v6124
    %vm6131 = vmor %vm6129, %vm6130
    %v6132 = vsel %vm6131, %v6124, %v6128
    %v6133 = vand.u32 2147483647, %v6123
    %vm6134 = vcmp.eq.f32.partialorder %v6133, 8.507059e+37
    %v6135 = vand.u32 %v6123, 2147483648
    %v6136 = vor.u32 1.1754944e-38, %v6135
    %v6137 = vsel %vm6134, %v6136, %v6132
    %v6138 = vmul.f32 1.0, %v6137
    %6139 = vst [vmem:[#allocation1] ss:$4 sm:$0xff] %v6091
    %v6140 = vld.sshfl [vmem:[#allocation1] sm:$0xff pattern:$0x73625140]
    %6141 = vrot.lane.b32.xlu0 %v6140, 32
    %v6142 = vpop.permute.xlu0 %6141
    %v6143 = vsel %vm215, %v6142, 0
    %6145 = vmatpush.msra.mxu0 0.0
    %6146 = vmatpush.msra.mxu0 0.0
    %6147 = vmatpush.msra.mxu0 0.0
    %6148 = vmatpush.msra.mxu0 0.0
    %6149 = vmatpush.msra.mxu0 0.0
    %6150 = vmatpush.msra.mxu0 0.0
    %6151 = vmatpush.msra.mxu0 0.0
    %6152 = vmatpush.msra.mxu0 0.0
    %6153 = vmatpush.msra.mxu0 0.0
    %6154 = vmatpush.msra.mxu0 0.0
    %6155 = vmatpush.msra.mxu0 0.0
    %6156 = vmatpush.msra.mxu0 0.0
    %6157 = vmatpush.msra.mxu0 %v5126
    %6158 = vmatpush.msra.mxu0 %v5125
    %6159 = vmatpush.msra.mxu0 %v5124
    %6160 = vmatpush.msra.mxu0 %v5123
    %6161 = vmatmul.f32.gmra.mxu0 %v6143
    %v6162 = vpop.f32.mrf.mxu0
    %v6163 = vadd.f32 0.0, %v6162
    %6164 = vdwg.mxu0
    %6166 = vrot.lane.b32.xlu0 %v6163, 32
    %v6167 = vpop.permute.xlu0 %6166
    %v6169 = vadd.f32 %v3545, %v6167
    %v6170 = vxor.u32 %v6169, 2147483648
    %v6171 = vmul.f32 %v6170, 1.442695
    %v6172 = vpow.pop %v6171
    %v6173 = vadd.f32 %v6172, 1.0
    %v6174 = vrcp.pop %v6173
    %v6175 = vmul.f32 %v6173, %v6174
    %v6176 = vsub.f32 1.0, %v6175
    %v6177 = vmul.f32 %v6174, %v6176
    %v6178 = vadd.f32 %v6174, %v6177
    %vm6179 = vweird.f32 %v6173
    %vm6180 = vweird.f32 %v6174
    %vm6181 = vmor %vm6179, %vm6180
    %v6182 = vsel %vm6181, %v6174, %v6178
    %v6183 = vand.u32 2147483647, %v6173
    %vm6184 = vcmp.eq.f32.partialorder %v6183, 8.507059e+37
    %v6185 = vand.u32 %v6173, 2147483648
    %v6186 = vor.u32 1.1754944e-38, %v6185
    %v6187 = vsel %vm6184, %v6186, %v6182
    %v6188 = vmul.f32 1.0, %v6187
    %6189 = vst [vmem:[#allocation1] ss:$4 sm:$0xff] %v6091
    %v6190 = vld.sshfl [vmem:[#allocation1] sm:$0xff pattern:$0x73625140]
    %6191 = vrot.lane.b32.xlu0 %v6190, 32
    %v6192 = vpop.permute.xlu0 %6191
    %v6193 = vsel %vm215, %v6192, 0
    %6195 = vmatpush.msra.mxu0 0.0
    %6196 = vmatpush.msra.mxu0 0.0
    %6197 = vmatpush.msra.mxu0 0.0
    %6198 = vmatpush.msra.mxu0 0.0
    %6199 = vmatpush.msra.mxu0 0.0
    %6200 = vmatpush.msra.mxu0 0.0
    %6201 = vmatpush.msra.mxu0 0.0
    %6202 = vmatpush.msra.mxu0 0.0
    %6203 = vmatpush.msra.mxu0 0.0
    %6204 = vmatpush.msra.mxu0 0.0
    %6205 = vmatpush.msra.mxu0 0.0
    %6206 = vmatpush.msra.mxu0 0.0
    %6207 = vmatpush.msra.mxu0 %v5131
    %6208 = vmatpush.msra.mxu0 %v5130
    %6209 = vmatpush.msra.mxu0 %v5129
    %6210 = vmatpush.msra.mxu0 %v5128
    %6211 = vmatmul.f32.gmra.mxu0 %v6193
    %v6212 = vpop.f32.mrf.mxu0
    %v6213 = vadd.f32 0.0, %v6212
    %6214 = vdwg.mxu0
    %6216 = vrot.lane.b32.xlu0 %v6213, 64
    %v6217 = vpop.permute.xlu0 %6216
    %v6219 = vadd.f32 %v3545, %v6217
    %v6220 = vtanh.pop %v6219
    %6221 = vst [vmem:[#allocation1] ss:$4 sm:$0xff] %v6091
    %v6222 = vld.sshfl [vmem:[#allocation1] sm:$0xff pattern:$0x73625140]
    %6223 = vrot.lane.b32.xlu0 %v6222, 32
    %v6224 = vpop.permute.xlu0 %6223
    %v6225 = vsel %vm215, %v6224, 0
    %6227 = vmatpush.msra.mxu0 0.0
    %6228 = vmatpush.msra.mxu0 0.0
    %6229 = vmatpush.msra.mxu0 0.0
    %6230 = vmatpush.msra.mxu0 0.0
    %6231 = vmatpush.msra.mxu0 0.0
    %6232 = vmatpush.msra.mxu0 0.0
    %6233 = vmatpush.msra.mxu0 0.0
    %6234 = vmatpush.msra.mxu0 0.0
    %6235 = vmatpush.msra.mxu0 0.0
    %6236 = vmatpush.msra.mxu0 0.0
    %6237 = vmatpush.msra.mxu0 0.0
    %6238 = vmatpush.msra.mxu0 0.0
    %6239 = vmatpush.msra.mxu0 %v5136
    %6240 = vmatpush.msra.mxu0 %v5135
    %6241 = vmatpush.msra.mxu0 %v5134
    %6242 = vmatpush.msra.mxu0 %v5133
    %6243 = vmatmul.f32.gmra.mxu0 %v6225
    %v6244 = vpop.f32.mrf.mxu0
    %v6245 = vadd.f32 0.0, %v6244
    %6246 = vdwg.mxu0
    %6248 = vrot.lane.b32.xlu0 %v6245, 96
    %v6249 = vpop.permute.xlu0 %6248
    %v6251 = vadd.f32 %v3545, %v6249
    %v6252 = vxor.u32 %v6251, 2147483648
    %v6253 = vmul.f32 %v6252, 1.442695
    %v6254 = vpow.pop %v6253
    %v6255 = vadd.f32 %v6254, 1.0
    %v6256 = vrcp.pop %v6255
    %v6257 = vmul.f32 %v6255, %v6256
    %v6258 = vsub.f32 1.0, %v6257
    %v6259 = vmul.f32 %v6256, %v6258
    %v6260 = vadd.f32 %v6256, %v6259
    %vm6261 = vweird.f32 %v6255
    %vm6262 = vweird.f32 %v6256
    %vm6263 = vmor %vm6261, %vm6262
    %v6264 = vsel %vm6263, %v6256, %v6260
    %v6265 = vand.u32 2147483647, %v6255
    %vm6266 = vcmp.eq.f32.partialorder %v6265, 8.507059e+37
    %v6267 = vand.u32 %v6255, 2147483648
    %v6268 = vor.u32 1.1754944e-38, %v6267
    %v6269 = vsel %vm6266, %v6268, %v6264
    %v6270 = vmul.f32 1.0, %v6269
    %v6271 = vmul.f32 %v6188, %v6085
    %6273 = vrot.lane.b32.xlu0 %v6220, 64
    %v6274 = vpop.permute.xlu0 %6273
    %v6276 = vmul.f32 %v6138, %v6274
    %6278 = vrot.lane.b32.xlu0 %v6276, 32
    %v6279 = vpop.permute.xlu0 %6278
    %v6281 = vadd.f32 %v6271, %v6279
    %v6282 = vtanh.pop %v6281
    %6284 = vrot.lane.b32.xlu0 %v6282, 64
    %v6285 = vpop.permute.xlu0 %6284
    %v6287 = vmul.f32 %v6270, %v6285
    %6289 = vst [vmem:[#allocation1] ss:$4 sm:$0xff] %v6287
    %v6290 = vld.sshfl [vmem:[#allocation1] sm:$0xff pattern:$0x73625140]
    %6291 = vrot.lane.b32.xlu0 %v6290, 32
    %v6292 = vpop.permute.xlu0 %6291
    %v6293 = vsel %vm215, %v6292, 0
    %6295 = vmatpush.msra.mxu0 0.0
    %6296 = vmatpush.msra.mxu0 0.0
    %6297 = vmatpush.msra.mxu0 0.0
    %6298 = vmatpush.msra.mxu0 0.0
    %6299 = vmatpush.msra.mxu0 0.0
    %6300 = vmatpush.msra.mxu0 0.0
    %6301 = vmatpush.msra.mxu0 0.0
    %6302 = vmatpush.msra.mxu0 0.0
    %6303 = vmatpush.msra.mxu0 0.0
    %6304 = vmatpush.msra.mxu0 0.0
    %6305 = vmatpush.msra.mxu0 0.0
    %6306 = vmatpush.msra.mxu0 0.0
    %6307 = vmatpush.msra.mxu0 %v5121
    %6308 = vmatpush.msra.mxu0 %v5120
    %6309 = vmatpush.msra.mxu0 %v5119
    %6310 = vmatpush.msra.mxu0 %v5118
    %6311 = vmatmul.f32.gmra.mxu0 %v6293
    %v6312 = vpop.f32.mrf.mxu0
    %v6313 = vadd.f32 0.0, %v6312
    %6314 = vdwg.mxu0
    %v6315 = vadd.f32 %v3544, %v6313
    %v6316 = vxor.u32 %v6315, 2147483648
    %v6317 = vmul.f32 %v6316, 1.442695
    %v6318 = vpow.pop %v6317
    %v6319 = vadd.f32 %v6318, 1.0
    %v6320 = vrcp.pop %v6319
    %v6321 = vmul.f32 %v6319, %v6320
    %v6322 = vsub.f32 1.0, %v6321
    %v6323 = vmul.f32 %v6320, %v6322
    %v6324 = vadd.f32 %v6320, %v6323
    %vm6325 = vweird.f32 %v6319
    %vm6326 = vweird.f32 %v6320
    %vm6327 = vmor %vm6325, %vm6326
    %v6328 = vsel %vm6327, %v6320, %v6324
    %v6329 = vand.u32 2147483647, %v6319
    %vm6330 = vcmp.eq.f32.partialorder %v6329, 8.507059e+37
    %v6331 = vand.u32 %v6319, 2147483648
    %v6332 = vor.u32 1.1754944e-38, %v6331
    %v6333 = vsel %vm6330, %v6332, %v6328
    %v6334 = vmul.f32 1.0, %v6333
    %6335 = vst [vmem:[#allocation1] ss:$4 sm:$0xff] %v6287
    %v6336 = vld.sshfl [vmem:[#allocation1] sm:$0xff pattern:$0x73625140]
    %6337 = vrot.lane.b32.xlu0 %v6336, 32
    %v6338 = vpop.permute.xlu0 %6337
    %v6339 = vsel %vm215, %v6338, 0
    %6341 = vmatpush.msra.mxu0 0.0
    %6342 = vmatpush.msra.mxu0 0.0
    %6343 = vmatpush.msra.mxu0 0.0
    %6344 = vmatpush.msra.mxu0 0.0
    %6345 = vmatpush.msra.mxu0 0.0
    %6346 = vmatpush.msra.mxu0 0.0
    %6347 = vmatpush.msra.mxu0 0.0
    %6348 = vmatpush.msra.mxu0 0.0
    %6349 = vmatpush.msra.mxu0 0.0
    %6350 = vmatpush.msra.mxu0 0.0
    %6351 = vmatpush.msra.mxu0 0.0
    %6352 = vmatpush.msra.mxu0 0.0
    %6353 = vmatpush.msra.mxu0 %v5126
    %6354 = vmatpush.msra.mxu0 %v5125
    %6355 = vmatpush.msra.mxu0 %v5124
    %6356 = vmatpush.msra.mxu0 %v5123
    %6357 = vmatmul.f32.gmra.mxu0 %v6339
    %v6358 = vpop.f32.mrf.mxu0
    %v6359 = vadd.f32 0.0, %v6358
    %6360 = vdwg.mxu0
    %6362 = vrot.lane.b32.xlu0 %v6359, 32
    %v6363 = vpop.permute.xlu0 %6362
    %v6365 = vadd.f32 %v3544, %v6363
    %v6366 = vxor.u32 %v6365, 2147483648
    %v6367 = vmul.f32 %v6366, 1.442695
    %v6368 = vpow.pop %v6367
    %v6369 = vadd.f32 %v6368, 1.0
    %v6370 = vrcp.pop %v6369
    %v6371 = vmul.f32 %v6369, %v6370
    %v6372 = vsub.f32 1.0, %v6371
    %v6373 = vmul.f32 %v6370, %v6372
    %v6374 = vadd.f32 %v6370, %v6373
    %vm6375 = vweird.f32 %v6369
    %vm6376 = vweird.f32 %v6370
    %vm6377 = vmor %vm6375, %vm6376
    %v6378 = vsel %vm6377, %v6370, %v6374
    %v6379 = vand.u32 2147483647, %v6369
    %vm6380 = vcmp.eq.f32.partialorder %v6379, 8.507059e+37
    %v6381 = vand.u32 %v6369, 2147483648
    %v6382 = vor.u32 1.1754944e-38, %v6381
    %v6383 = vsel %vm6380, %v6382, %v6378
    %v6384 = vmul.f32 1.0, %v6383
    %6385 = vst [vmem:[#allocation1] ss:$4 sm:$0xff] %v6287
    %v6386 = vld.sshfl [vmem:[#allocation1] sm:$0xff pattern:$0x73625140]
    %6387 = vrot.lane.b32.xlu0 %v6386, 32
    %v6388 = vpop.permute.xlu0 %6387
    %v6389 = vsel %vm215, %v6388, 0
    %6391 = vmatpush.msra.mxu0 0.0
    %6392 = vmatpush.msra.mxu0 0.0
    %6393 = vmatpush.msra.mxu0 0.0
    %6394 = vmatpush.msra.mxu0 0.0
    %6395 = vmatpush.msra.mxu0 0.0
    %6396 = vmatpush.msra.mxu0 0.0
    %6397 = vmatpush.msra.mxu0 0.0
    %6398 = vmatpush.msra.mxu0 0.0
    %6399 = vmatpush.msra.mxu0 0.0
    %6400 = vmatpush.msra.mxu0 0.0
    %6401 = vmatpush.msra.mxu0 0.0
    %6402 = vmatpush.msra.mxu0 0.0
    %6403 = vmatpush.msra.mxu0 %v5131
    %6404 = vmatpush.msra.mxu0 %v5130
    %6405 = vmatpush.msra.mxu0 %v5129
    %6406 = vmatpush.msra.mxu0 %v5128
    %6407 = vmatmul.f32.gmra.mxu0 %v6389
    %v6408 = vpop.f32.mrf.mxu0
    %v6409 = vadd.f32 0.0, %v6408
    %6410 = vdwg.mxu0
    %6412 = vrot.lane.b32.xlu0 %v6409, 64
    %v6413 = vpop.permute.xlu0 %6412
    %v6415 = vadd.f32 %v3544, %v6413
    %v6416 = vtanh.pop %v6415
    %6417 = vst [vmem:[#allocation1] ss:$4 sm:$0xff] %v6287
    %v6418 = vld.sshfl [vmem:[#allocation1] sm:$0xff pattern:$0x73625140]
    %6419 = vrot.lane.b32.xlu0 %v6418, 32
    %v6420 = vpop.permute.xlu0 %6419
    %v6421 = vsel %vm215, %v6420, 0
    %6423 = vmatpush.msra.mxu0 0.0
    %6424 = vmatpush.msra.mxu0 0.0
    %6425 = vmatpush.msra.mxu0 0.0
    %6426 = vmatpush.msra.mxu0 0.0
    %6427 = vmatpush.msra.mxu0 0.0
    %6428 = vmatpush.msra.mxu0 0.0
    %6429 = vmatpush.msra.mxu0 0.0
    %6430 = vmatpush.msra.mxu0 0.0
    %6431 = vmatpush.msra.mxu0 0.0
    %6432 = vmatpush.msra.mxu0 0.0
    %6433 = vmatpush.msra.mxu0 0.0
    %6434 = vmatpush.msra.mxu0 0.0
    %6435 = vmatpush.msra.mxu0 %v5136
    %6436 = vmatpush.msra.mxu0 %v5135
    %6437 = vmatpush.msra.mxu0 %v5134
    %6438 = vmatpush.msra.mxu0 %v5133
    %6439 = vmatmul.f32.gmra.mxu0 %v6421
    %v6440 = vpop.f32.mrf.mxu0
    %v6441 = vadd.f32 0.0, %v6440
    %6442 = vdwg.mxu0
    %6444 = vrot.lane.b32.xlu0 %v6441, 96
    %v6445 = vpop.permute.xlu0 %6444
    %v6447 = vadd.f32 %v3544, %v6445
    %v6448 = vxor.u32 %v6447, 2147483648
    %v6449 = vmul.f32 %v6448, 1.442695
    %v6450 = vpow.pop %v6449
    %v6451 = vadd.f32 %v6450, 1.0
    %v6452 = vrcp.pop %v6451
    %v6453 = vmul.f32 %v6451, %v6452
    %v6454 = vsub.f32 1.0, %v6453
    %v6455 = vmul.f32 %v6452, %v6454
    %v6456 = vadd.f32 %v6452, %v6455
    %vm6457 = vweird.f32 %v6451
    %vm6458 = vweird.f32 %v6452
    %vm6459 = vmor %vm6457, %vm6458
    %v6460 = vsel %vm6459, %v6452, %v6456
    %v6461 = vand.u32 2147483647, %v6451
    %vm6462 = vcmp.eq.f32.partialorder %v6461, 8.507059e+37
    %v6463 = vand.u32 %v6451, 2147483648
    %v6464 = vor.u32 1.1754944e-38, %v6463
    %v6465 = vsel %vm6462, %v6464, %v6460
    %v6466 = vmul.f32 1.0, %v6465
    %v6467 = vmul.f32 %v6384, %v6281
    %6469 = vrot.lane.b32.xlu0 %v6416, 64
    %v6470 = vpop.permute.xlu0 %6469
    %v6472 = vmul.f32 %v6334, %v6470
    %6474 = vrot.lane.b32.xlu0 %v6472, 32
    %v6475 = vpop.permute.xlu0 %6474
    %v6477 = vadd.f32 %v6467, %v6475
    %v6478 = vtanh.pop %v6477
    %6480 = vrot.lane.b32.xlu0 %v6478, 64
    %v6481 = vpop.permute.xlu0 %6480
    %v6483 = vmul.f32 %v6466, %v6481
    %6485 = vst [vmem:[#allocation1] ss:$4 sm:$0xff] %v6483
    %v6486 = vld.sshfl [vmem:[#allocation1] sm:$0xff pattern:$0x73625140]
    %6487 = vrot.lane.b32.xlu0 %v6486, 32
    %v6488 = vpop.permute.xlu0 %6487
    %v6489 = vsel %vm215, %v6488, 0
    %6491 = vmatpush.msra.mxu0 0.0
    %6492 = vmatpush.msra.mxu0 0.0
    %6493 = vmatpush.msra.mxu0 0.0
    %6494 = vmatpush.msra.mxu0 0.0
    %6495 = vmatpush.msra.mxu0 0.0
    %6496 = vmatpush.msra.mxu0 0.0
    %6497 = vmatpush.msra.mxu0 0.0
    %6498 = vmatpush.msra.mxu0 0.0
    %6499 = vmatpush.msra.mxu0 0.0
    %6500 = vmatpush.msra.mxu0 0.0
    %6501 = vmatpush.msra.mxu0 0.0
    %6502 = vmatpush.msra.mxu0 0.0
    %6503 = vmatpush.msra.mxu0 %v5121
    %6504 = vmatpush.msra.mxu0 %v5120
    %6505 = vmatpush.msra.mxu0 %v5119
    %6506 = vmatpush.msra.mxu0 %v5118
    %6507 = vmatmul.f32.gmra.mxu0 %v6489
    %v6508 = vpop.f32.mrf.mxu0
    %v6509 = vadd.f32 0.0, %v6508
    %6510 = vdwg.mxu0
    %v6511 = vadd.f32 %v3526, %v6509
    %v6512 = vxor.u32 %v6511, 2147483648
    %v6513 = vmul.f32 %v6512, 1.442695
    %v6514 = vpow.pop %v6513
    %v6515 = vadd.f32 %v6514, 1.0
    %v6516 = vrcp.pop %v6515
    %v6517 = vmul.f32 %v6515, %v6516
    %v6518 = vsub.f32 1.0, %v6517
    %v6519 = vmul.f32 %v6516, %v6518
    %v6520 = vadd.f32 %v6516, %v6519
    %vm6521 = vweird.f32 %v6515
    %vm6522 = vweird.f32 %v6516
    %vm6523 = vmor %vm6521, %vm6522
    %v6524 = vsel %vm6523, %v6516, %v6520
    %v6525 = vand.u32 2147483647, %v6515
    %vm6526 = vcmp.eq.f32.partialorder %v6525, 8.507059e+37
    %v6527 = vand.u32 %v6515, 2147483648
    %v6528 = vor.u32 1.1754944e-38, %v6527
    %v6529 = vsel %vm6526, %v6528, %v6524
    %v6530 = vmul.f32 1.0, %v6529
    %6531 = vst [vmem:[#allocation1] ss:$4 sm:$0xff] %v6483
    %v6532 = vld.sshfl [vmem:[#allocation1] sm:$0xff pattern:$0x73625140]
    %6533 = vrot.lane.b32.xlu0 %v6532, 32
    %v6534 = vpop.permute.xlu0 %6533
    %v6535 = vsel %vm215, %v6534, 0
    %6537 = vmatpush.msra.mxu0 0.0
    %6538 = vmatpush.msra.mxu0 0.0
    %6539 = vmatpush.msra.mxu0 0.0
    %6540 = vmatpush.msra.mxu0 0.0
    %6541 = vmatpush.msra.mxu0 0.0
    %6542 = vmatpush.msra.mxu0 0.0
    %6543 = vmatpush.msra.mxu0 0.0
    %6544 = vmatpush.msra.mxu0 0.0
    %6545 = vmatpush.msra.mxu0 0.0
    %6546 = vmatpush.msra.mxu0 0.0
    %6547 = vmatpush.msra.mxu0 0.0
    %6548 = vmatpush.msra.mxu0 0.0
    %6549 = vmatpush.msra.mxu0 %v5126
    %6550 = vmatpush.msra.mxu0 %v5125
    %6551 = vmatpush.msra.mxu0 %v5124
    %6552 = vmatpush.msra.mxu0 %v5123
    %6553 = vmatmul.f32.gmra.mxu0 %v6535
    %v6554 = vpop.f32.mrf.mxu0
    %v6555 = vadd.f32 0.0, %v6554
    %6556 = vdwg.mxu0
    %6558 = vrot.lane.b32.xlu0 %v6555, 32
    %v6559 = vpop.permute.xlu0 %6558
    %v6561 = vadd.f32 %v3526, %v6559
    %v6562 = vxor.u32 %v6561, 2147483648
    %v6563 = vmul.f32 %v6562, 1.442695
    %v6564 = vpow.pop %v6563
    %v6565 = vadd.f32 %v6564, 1.0
    %v6566 = vrcp.pop %v6565
    %v6567 = vmul.f32 %v6565, %v6566
    %v6568 = vsub.f32 1.0, %v6567
    %v6569 = vmul.f32 %v6566, %v6568
    %v6570 = vadd.f32 %v6566, %v6569
    %vm6571 = vweird.f32 %v6565
    %vm6572 = vweird.f32 %v6566
    %vm6573 = vmor %vm6571, %vm6572
    %v6574 = vsel %vm6573, %v6566, %v6570
    %v6575 = vand.u32 2147483647, %v6565
    %vm6576 = vcmp.eq.f32.partialorder %v6575, 8.507059e+37
    %v6577 = vand.u32 %v6565, 2147483648
    %v6578 = vor.u32 1.1754944e-38, %v6577
    %v6579 = vsel %vm6576, %v6578, %v6574
    %v6580 = vmul.f32 1.0, %v6579
    %6581 = vst [vmem:[#allocation1] ss:$4 sm:$0xff] %v6483
    %v6582 = vld.sshfl [vmem:[#allocation1] sm:$0xff pattern:$0x73625140]
    %6583 = vrot.lane.b32.xlu0 %v6582, 32
    %v6584 = vpop.permute.xlu0 %6583
    %v6585 = vsel %vm215, %v6584, 0
    %6587 = vmatpush.msra.mxu0 0.0
    %6588 = vmatpush.msra.mxu0 0.0
    %6589 = vmatpush.msra.mxu0 0.0
    %6590 = vmatpush.msra.mxu0 0.0
    %6591 = vmatpush.msra.mxu0 0.0
    %6592 = vmatpush.msra.mxu0 0.0
    %6593 = vmatpush.msra.mxu0 0.0
    %6594 = vmatpush.msra.mxu0 0.0
    %6595 = vmatpush.msra.mxu0 0.0
    %6596 = vmatpush.msra.mxu0 0.0
    %6597 = vmatpush.msra.mxu0 0.0
    %6598 = vmatpush.msra.mxu0 0.0
    %6599 = vmatpush.msra.mxu0 %v5131
    %6600 = vmatpush.msra.mxu0 %v5130
    %6601 = vmatpush.msra.mxu0 %v5129
    %6602 = vmatpush.msra.mxu0 %v5128
    %6603 = vmatmul.f32.gmra.mxu0 %v6585
    %v6604 = vpop.f32.mrf.mxu0
    %v6605 = vadd.f32 0.0, %v6604
    %6606 = vdwg.mxu0
    %6608 = vrot.lane.b32.xlu0 %v6605, 64
    %v6609 = vpop.permute.xlu0 %6608
    %v6611 = vadd.f32 %v3526, %v6609
    %v6612 = vtanh.pop %v6611
    %6613 = vst [vmem:[#allocation1] ss:$4 sm:$0xff] %v6483
    %v6614 = vld.sshfl [vmem:[#allocation1] sm:$0xff pattern:$0x73625140]
    %6615 = vrot.lane.b32.xlu0 %v6614, 32
    %v6616 = vpop.permute.xlu0 %6615
    %v6617 = vsel %vm215, %v6616, 0
    %6619 = vmatpush.msra.mxu0 0.0
    %6620 = vmatpush.msra.mxu0 0.0
    %6621 = vmatpush.msra.mxu0 0.0
    %6622 = vmatpush.msra.mxu0 0.0
    %6623 = vmatpush.msra.mxu0 0.0
    %6624 = vmatpush.msra.mxu0 0.0
    %6625 = vmatpush.msra.mxu0 0.0
    %6626 = vmatpush.msra.mxu0 0.0
    %6627 = vmatpush.msra.mxu0 0.0
    %6628 = vmatpush.msra.mxu0 0.0
    %6629 = vmatpush.msra.mxu0 0.0
    %6630 = vmatpush.msra.mxu0 0.0
    %6631 = vmatpush.msra.mxu0 %v5136
    %6632 = vmatpush.msra.mxu0 %v5135
    %6633 = vmatpush.msra.mxu0 %v5134
    %6634 = vmatpush.msra.mxu0 %v5133
    %6635 = vmatmul.f32.gmra.mxu0 %v6617
    %v6636 = vpop.f32.mrf.mxu0
    %v6637 = vadd.f32 0.0, %v6636
    %6638 = vdwg.mxu0
    %6640 = vrot.lane.b32.xlu0 %v6637, 96
    %v6641 = vpop.permute.xlu0 %6640
    %v6643 = vadd.f32 %v3526, %v6641
    %v6644 = vxor.u32 %v6643, 2147483648
    %v6645 = vmul.f32 %v6644, 1.442695
    %v6646 = vpow.pop %v6645
    %v6647 = vadd.f32 %v6646, 1.0
    %v6648 = vrcp.pop %v6647
    %v6649 = vmul.f32 %v6647, %v6648
    %v6650 = vsub.f32 1.0, %v6649
    %v6651 = vmul.f32 %v6648, %v6650
    %v6652 = vadd.f32 %v6648, %v6651
    %vm6653 = vweird.f32 %v6647
    %vm6654 = vweird.f32 %v6648
    %vm6655 = vmor %vm6653, %vm6654
    %v6656 = vsel %vm6655, %v6648, %v6652
    %v6657 = vand.u32 2147483647, %v6647
    %vm6658 = vcmp.eq.f32.partialorder %v6657, 8.507059e+37
    %v6659 = vand.u32 %v6647, 2147483648
    %v6660 = vor.u32 1.1754944e-38, %v6659
    %v6661 = vsel %vm6658, %v6660, %v6656
    %v6662 = vmul.f32 1.0, %v6661
    %v6663 = vmul.f32 %v6580, %v6477
    %6665 = vrot.lane.b32.xlu0 %v6612, 64
    %v6666 = vpop.permute.xlu0 %6665
    %v6668 = vmul.f32 %v6530, %v6666
    %6670 = vrot.lane.b32.xlu0 %v6668, 32
    %v6671 = vpop.permute.xlu0 %6670
    %v6673 = vadd.f32 %v6663, %v6671
    %v6674 = vtanh.pop %v6673
    %6676 = vrot.lane.b32.xlu0 %v6674, 64
    %v6677 = vpop.permute.xlu0 %6676
    %v6679 = vmul.f32 %v6662, %v6677
    %s6680 = scalar_lea.vmem [#allocation1], 1
    %6681 = vst [vmem:[%s6680] ss:$4 sm:$0xff] %v3941
    %v6682 = vld.sshfl [vmem:[#allocation1] sm:$0xff pattern:$0x73625140]
    %s6684 = scalar_lea.vmem [#allocation1], 2
    %6685 = vst [vmem:[%s6684] ss:$4 sm:$0xff] %v4137
    %v6686 = vld.sshfl [vmem:[#allocation1] sm:$0xff pattern:$0x73625140]
    %s6688 = scalar_lea.vmem [#allocation1], 3
    %6689 = vst [vmem:[%s6688] ss:$4 sm:$0xff] %v4333
    %v6690 = vld.sshfl [vmem:[#allocation1] sm:$0xff pattern:$0x73625140]
    %s6692 = scalar_lea.vmem [#allocation1], 1
    %6693 = vst [vmem:[%s6692] ss:$4 sm:$0xff] %v4725
    %v6694 = vld.sshfl [vmem:[#allocation1] sm:$0xff pattern:$0x73625140]
    %s6696 = scalar_lea.vmem [#allocation1], 2
    %6697 = vst [vmem:[%s6696] ss:$4 sm:$0xff] %v4921
    %v6698 = vld.sshfl [vmem:[#allocation1] sm:$0xff pattern:$0x73625140]
    %s6701 = scalar_lea.vmem [#allocation1], 3
    %6702 = vst [vmem:[%s6701] ss:$4 sm:$0xff] %v5117
    %v6703 = vld.sshfl [vmem:[#allocation1] sm:$0xff pattern:$0x73625140]
    %v6705 = vsel %vm3349, %v3745, %v6682
    %v6706 = vsel %vm3351, %v6705, %v6686
    %v6707 = vsel %vm3353, %v6706, %v6690
    %v6708 = vsel %vm3349, %v4529, %v6694
    %v6709 = vsel %vm3351, %v6708, %v6698
    %v6710 = vsel %vm3353, %v6709, %v6703
    %s6711 = scalar_lea.vmem [#allocation1], 1
    %6712 = vst [vmem:[%s6711] ss:$4 sm:$0xff] %v6483
    %v6713 = vld.sshfl [vmem:[#allocation1] sm:$0xff pattern:$0x73625140]
    %s6715 = scalar_lea.vmem [#allocation1], 2
    %6716 = vst [vmem:[%s6715] ss:$4 sm:$0xff] %v6287
    %v6717 = vld.sshfl [vmem:[#allocation1] sm:$0xff pattern:$0x73625140]
    %s6719 = scalar_lea.vmem [#allocation1], 3
    %6720 = vst [vmem:[%s6719] ss:$4 sm:$0xff] %v6091
    %v6721 = vld.sshfl [vmem:[#allocation1] sm:$0xff pattern:$0x73625140]
    %s6723 = scalar_lea.vmem [#allocation1], 1
    %6724 = vst [vmem:[%s6723] ss:$4 sm:$0xff] %v5699
    %v6725 = vld.sshfl [vmem:[#allocation1] sm:$0xff pattern:$0x73625140]
    %s6727 = scalar_lea.vmem [#allocation1], 2
    %6728 = vst [vmem:[%s6727] ss:$4 sm:$0xff] %v5503
    %v6729 = vld.sshfl [vmem:[#allocation1] sm:$0xff pattern:$0x73625140]
    %s6731 = scalar_lea.vmem [#allocation1], 3
    %6732 = vst [vmem:[%s6731] ss:$4 sm:$0xff] %v5307
    %v6733 = vld.sshfl [vmem:[#allocation1] sm:$0xff pattern:$0x73625140]
    %v6735 = vsel %vm3349, %v6679, %v6713
    %v6736 = vsel %vm3351, %v6735, %v6717
    %v6737 = vsel %vm3353, %v6736, %v6721
    %v6738 = vsel %vm3349, %v5895, %v6725
    %v6739 = vsel %vm3351, %v6738, %v6729
    %v6740 = vsel %vm3353, %v6739, %v6733
    %v6743 = vrot.slane %v6707, 2
    %v6744 = vrot.slane %v6707, 4
    %v6745 = vrot.slane %v6707, 6
    %v6746 = vrot.slane %v6710, 2
    %v6747 = vrot.slane %v6710, 4
    %v6748 = vrot.slane %v6710, 6
    %v6751 = vrot.slane %v6737, 2
    %v6752 = vrot.slane %v6737, 4
    %v6753 = vrot.slane %v6737, 6
    %v6754 = vrot.slane %v6740, 2
    %v6755 = vrot.slane %v6740, 4
    %v6756 = vrot.slane %v6740, 6
    %v6757 = vld [vmem:[%s13] sm:$0xff]
    %v6758 = vld [vmem:[%s13 + $0x8] sm:$0xff]
    %v6759 = vld [vmem:[%s13 + $0x10] sm:$0xff]
    %v6760 = vld [vmem:[%s13 + $0x18] sm:$0xff]
    %v6761 = vld [vmem:[%s13 + $0x20] sm:$0xff]
    %v6762 = vld [vmem:[%s13 + $0x28] sm:$0xff]
    %v6763 = vld [vmem:[%s13 + $0x30] sm:$0xff]
    %v6764 = vld [vmem:[%s13 + $0x38] sm:$0xff]
    %v6765 = vperm.slane %v6737, 1
    %v6766 = vperm.slane %v6751, 1
    %v6767 = vperm.slane %v6752, 1
    %v6768 = vperm.slane %v6753, 1
    %v6769 = vperm.slane %v6740, 1
    %v6770 = vperm.slane %v6754, 1
    %v6771 = vperm.slane %v6755, 1
    %v6772 = vperm.slane %v6756, 1
    %vm6773 = vcmask 1041409
    %v6774 = vsel %vm6773, %v6766, %v6765
    %vm6775 = vcmask 1042434
    %v6776 = vsel %vm6775, %v6767, %v6774
    %vm6777 = vcmask 1043459
    %v6778 = vsel %vm6777, %v6768, %v6776
    %vm6779 = vcmask 1044484
    %v6780 = vsel %vm6779, %v6769, %v6778
    %vm6781 = vcmask 1045509
    %v6782 = vsel %vm6781, %v6770, %v6780
    %vm6783 = vcmask 1046534
    %v6784 = vsel %vm6783, %v6771, %v6782
    %vm6785 = vcmask 1047559
    %v6786 = vsel %vm6785, %v6772, %v6784
    %6787 = vrot.lane.b32.xlu0 %v6786, 32
    %v6788 = vpop.permute.xlu0 %6787
    %v6789 = vsel %vm215, %v6788, 0
    %6791 = vmatpush.msra.mxu0 0.0
    %6792 = vmatpush.msra.mxu0 0.0
    %6793 = vmatpush.msra.mxu0 0.0
    %6794 = vmatpush.msra.mxu0 0.0
    %6795 = vmatpush.msra.mxu0 0.0
    %6796 = vmatpush.msra.mxu0 0.0
    %6797 = vmatpush.msra.mxu0 0.0
    %6798 = vmatpush.msra.mxu0 0.0
    %6799 = vmatpush.msra.mxu0 0.0
    %6800 = vmatpush.msra.mxu0 0.0
    %6801 = vmatpush.msra.mxu0 0.0
    %6802 = vmatpush.msra.mxu0 0.0
    %6803 = vmatpush.msra.mxu0 %v6764
    %6804 = vmatpush.msra.mxu0 %v6763
    %6805 = vmatpush.msra.mxu0 %v6762
    %6806 = vmatpush.msra.mxu0 %v6761
    %6807 = vmatmul.f32.gmra.mxu0 %v6789
    %v6808 = vpop.f32.mrf.mxu0
    %v6809 = vadd.f32 0.0, %v6808
    %6810 = vdwg.mxu0
    %v6811 = vperm.slane %v6707, 1
    %v6812 = vperm.slane %v6743, 1
    %v6813 = vperm.slane %v6744, 1
    %v6814 = vperm.slane %v6745, 1
    %v6815 = vperm.slane %v6710, 1
    %v6816 = vperm.slane %v6746, 1
    %v6817 = vperm.slane %v6747, 1
    %v6818 = vperm.slane %v6748, 1
    %v6819 = vsel %vm6773, %v6812, %v6811
    %v6820 = vsel %vm6775, %v6813, %v6819
    %v6821 = vsel %vm6777, %v6814, %v6820
    %v6822 = vsel %vm6779, %v6815, %v6821
    %v6823 = vsel %vm6781, %v6816, %v6822
    %v6824 = vsel %vm6783, %v6817, %v6823
    %v6825 = vsel %vm6785, %v6818, %v6824
    %6826 = vrot.lane.b32.xlu0 %v6825, 32
    %v6827 = vpop.permute.xlu0 %6826
    %v6828 = vsel %vm215, %v6827, 0
    %6830 = vmatpush.msra.mxu0 0.0
    %6831 = vmatpush.msra.mxu0 0.0
    %6832 = vmatpush.msra.mxu0 0.0
    %6833 = vmatpush.msra.mxu0 0.0
    %6834 = vmatpush.msra.mxu0 0.0
    %6835 = vmatpush.msra.mxu0 0.0
    %6836 = vmatpush.msra.mxu0 0.0
    %6837 = vmatpush.msra.mxu0 0.0
    %6838 = vmatpush.msra.mxu0 0.0
    %6839 = vmatpush.msra.mxu0 0.0
    %6840 = vmatpush.msra.mxu0 0.0
    %6841 = vmatpush.msra.mxu0 0.0
    %6842 = vmatpush.msra.mxu0 %v6760
    %6843 = vmatpush.msra.mxu0 %v6759
    %6844 = vmatpush.msra.mxu0 %v6758
    %6845 = vmatpush.msra.mxu0 %v6757
    %6846 = vmatmul.f32.gmra.mxu0 %v6828
    %v6847 = vpop.f32.mrf.mxu0
    %v6848 = vadd.f32 %v6809, %v6847
    %6849 = vdwg.mxu0
    %v6850 = vld [vmem:[%s14] sm:$0x1]
    %v6852 = vperm.slane %v6850, 0
    %v6854 = vadd.f32 %v6848, %v6852
    %v6855 = vxor.u32 %v6854, 2147483648
    %v6856 = vmul.f32 %v6855, 1.442695
    %v6857 = vpow.pop %v6856
    %v6858 = vadd.f32 %v6857, 1.0
    %v6859 = vrcp.pop %v6858
    %v6860 = vmul.f32 %v6858, %v6859
    %v6861 = vsub.f32 1.0, %v6860
    %v6862 = vmul.f32 %v6859, %v6861
    %v6863 = vadd.f32 %v6859, %v6862
    %vm6864 = vweird.f32 %v6858
    %vm6865 = vweird.f32 %v6859
    %vm6866 = vmor %vm6864, %vm6865
    %v6867 = vsel %vm6866, %v6859, %v6863
    %v6868 = vand.u32 2147483647, %v6858
    %vm6869 = vcmp.eq.f32.partialorder %v6868, 8.507059e+37
    %v6870 = vand.u32 %v6858, 2147483648
    %v6871 = vor.u32 1.1754944e-38, %v6870
    %v6872 = vsel %vm6869, %v6871, %v6867
    %v6873 = vmul.f32 1.0, %v6872
    %vm6874 = vcmask 80896
    %6875 = vst.msk [vmem:[#allocation2] sm:$0xff] %vm6874, %v6873
    // Predicated region
    $region62: #{lstm_forward.1} parent=1 // pred_check
      _
    $region63: #{lstm_forward.1} parent=1 // pred_check_branch
      %6877 = sbr.rel (0) target = $region65
    $region64: #{lstm_forward.1} parent=1 // pred_region
      %6879 = vsyncadd [#allocation3], 0
      %s6881 = sshll.u32 [#allocation2], 4
      %s6882 = int_to_ptr.vmem [resolvable:$true] %s6881
      %s6883 = sshll.u32 %s15, 4
      %s6884 = int_to_ptr.hbm [resolvable:$true] %s6883
      %6886 = dma.vmem_to_hbm [thread:$0]  %s6882, 128, %s6884, [#allocation3]
    $region65: #{lstm_forward.1} parent=1 // pred_fallthru
      _
    // Predicated region
    $region66: #{lstm_forward.1} parent=1 // pred_check
      _
    $region67: #{lstm_forward.1} parent=1 // pred_check_branch
      %6888 = sbr.rel (0) target = $region69
    $region68: #{lstm_forward.1} parent=1 // pred_region
      %6890 = dma.done [#allocation3], 128
    $region69: #{lstm_forward.1} parent=1 // pred_fallthru
      _
    %6891 = vsyncpa [#allocation3], 1

</llo_original>
